<compile_context>
chip_gen: v5e
topology: v5e:2x2
jax: 0.10.0
libtpu: 0.0.40
codegen_flags: <defaults>
</compile_context>

<pallas_src>
import jax
import jax.numpy as jnp
import numpy as np
from jax.experimental import pallas as pl
from jax.experimental.pallas import tpu as pltpu


# ------------------------------ fused kernel --------------------------------

def make_rdb_kernel(nb_layers, Cin, GR, H, W, Nb):
    """Fused RDB body: all 3x3 conv+ReLU dense layers + 1x1 conv + residual."""
    HW = H * W
    M = Nb * HW
    Ctot = Cin + nb_layers * GR
    Kall = 9 * Ctot + 1          # +1: constant ones column (carries 1x1 bias)
    Cch = max(Cin, GR)

    def kernel(x_ref, w_ref, b_ref, o_ref, xt_ref, pad_ref):
        # x_ref  : (Nb, H, W, Cin)          input tile, NHWC
        # w_ref  : (nb_layers+1, Kall, GR)  packed chunk-major weight slabs
        # b_ref  : (nb_layers, GR)          3x3-layer biases
        # o_ref  : (Nb, GR, H*W)            lane-dense output
        # xt_ref : (M, Kall)                persistent chunk-major im2col slab
        # pad_ref: (Nb, H+2, W+2, Cch)      SAME-padding staging buffer

        # Zero ONLY the 1-px spatial border (interior is rewritten per chunk).
        # Done every grid step: with "parallel" semantics each TensorCore has
        # its own scratch, so this must not be gated on program_id == 0.
        pad_ref[:, 0:1, :, :] = jnp.zeros((Nb, 1, W + 2, Cch), jnp.float32)
        pad_ref[:, H + 1:H + 2, :, :] = jnp.zeros((Nb, 1, W + 2, Cch),
                                                  jnp.float32)
        pad_ref[:, :, 0:1, :] = jnp.zeros((Nb, H + 2, 1, Cch), jnp.float32)
        pad_ref[:, :, W + 1:W + 2, :] = jnp.zeros((Nb, H + 2, 1, Cch),
                                                  jnp.float32)

        # Constant-ones column: lets the 1x1 bias ride inside its matmul.
        xt_ref[:, Kall - 1:Kall] = jnp.ones((M, 1), jnp.float32)

        def append_chunk(vals, start, cs):
            """Stage a new channel chunk in the padded buffer, then write its
            9 conv taps into the persistent im2col slab (chunk-major)."""
            pad_ref[:, 1:H + 1, 1:W + 1, 0:cs] = vals
            base = 9 * start
            for ky in range(3):
                for kx in range(3):
                    t = 3 * ky + kx
                    tap = pad_ref[:, ky:ky + H, kx:kx + W, 0:cs]
                    xt_ref[:, base + t * cs:base + (t + 1) * cs] = (
                        tap.reshape(M, cs))

        # Chunk 0 = block input x (its center-tap columns double as residual).
        append_chunk(x_ref[...].astype(jnp.float32), 0, Cin)

        c = Cin
        for li in range(nb_layers):
            # One MXU matmul per 3x3 layer, contraction K = 9*c over all
            # previously built chunks (dense "torch.cat" is implicit).
            y = jnp.dot(xt_ref[:, 0:9 * c], w_ref[li, 0:9 * c, :],
                        preferred_element_type=jnp.float32)          # (M, GR)
            y = jnp.maximum(y + b_ref[li:li + 1, :], 0.0)            # bias+ReLU
            append_chunk(y.reshape(Nb, H, W, GR), c, GR)
            c += GR

        # 1x1 conv + residual + bias in ONE transposed matmul: the 1x1 weight
        # was embedded host-side on the center-tap rows of the full slab, the
        # residual identity folded into chunk-0's rows, and the bias onto the
        # ones column.  Result (GR, M) keeps stores lane-dense.
        out_t = jax.lax.dot_general(
            w_ref[nb_layers], xt_ref[...],
            dimension_numbers=(((0,), (1,)), ((), ())),
            preferred_element_type=jnp.float32)                       # (GR, M)
        for nb in range(Nb):
            o_ref[nb] = out_t[:, nb * HW:(nb + 1) * HW].astype(o_ref.dtype)

    return kernel


# -------------------------- host-side weight packing -------------------------

def _chunk_bounds(j, Cin, GR):
    if j == 0:
        return 0, Cin
    return Cin + (j - 1) * GR, GR


def pack_rdb_params(params, input_dim):
    """Permute/pack RDB weights for the fused kernel.

    Per-layer 3x3 HWIO weights are reordered to the chunk-major
    (chunk, ky, kx, ci) row order of the in-kernel im2col slab and zero-padded
    into one array.  The last slot holds the 1x1 conv embedded over the full
    slab (center-tap rows only), with the residual identity folded into
    chunk-0's center-tap rows and the 1x1 bias on the constant-ones column."""
    layer_ws = [np.asarray(w) for (w, _) in params["layers"]]
    layer_bs = [np.asarray(b) for (_, b) in params["layers"]]
    nb_layers = len(layer_ws)
    Cin = input_dim
    GR = layer_ws[0].shape[-1]
    Ctot = Cin + nb_layers * GR
    Kall = 9 * Ctot + 1

    w_all = np.zeros((nb_layers + 1, Kall, GR), np.float32)
    for li, w in enumerate(layer_ws):                    # w: (3,3,c_in,GR) HWIO
        rows = []
        for j in range(li + 1):                          # chunks 0..li
            s, cs = _chunk_bounds(j, Cin, GR)
            rows.append(w[:, :, s:s + cs, :].reshape(9 * cs, GR))
        slab = np.concatenate(rows, axis=0)              # (9*c_in, GR)
        w_all[li, :slab.shape[0], :] = slab

    w1 = np.asarray(params["w1x1"])                      # (Ctot, GR)
    b1 = np.asarray(params["b1x1"])                      # (GR,)
    w_emb = np.zeros((Kall, GR), np.float32)
    for j in range(nb_layers + 1):
        s, cs = _chunk_bounds(j, Cin, GR)
        base = 9 * s
        w_emb[base + 4 * cs: base + 5 * cs, :] = w1[s:s + cs, :]   # center tap
    # residual `out + x` (requires GR == Cin): identity on chunk-0 center rows
    w_emb[4 * Cin: 5 * Cin, :] += np.eye(Cin, GR, dtype=np.float32)
    w_emb[Kall - 1, :] = b1                              # bias via ones column
    w_all[nb_layers] = w_emb

    b_all = np.stack(layer_bs, axis=0).astype(np.float32)   # (nb_layers, GR)
    return jnp.asarray(w_all), jnp.asarray(b_all)


# ------------------------------- wrapper -------------------------------------

def _pick_block_batch(N, HW, Kall):
    """Largest per-step image count Nb that divides N, keeps >= 2 grid steps
    when N >= 2 (both v7x TensorCores busy), and keeps the im2col scratch
    under ~8 MiB."""
    kall_pad = -(-Kall // 128) * 128
    best = 1
    for nb in range(1, N + 1):
        if N % nb:
            continue
        if N >= 2 and N // nb < 2:
            continue
        if nb * HW * kall_pad * 4 > (8 << 20):
            continue
        best = nb
    return best


@jax.jit
def _rdb_pallas(x_nchw, w_all, b_all):
    N, Cin, H, W = x_nchw.shape
    nb_layers = int(w_all.shape[0]) - 1
    GR = int(w_all.shape[-1])
    Ctot = Cin + nb_layers * GR
    Kall = 9 * Ctot + 1
    HW = H * W

    x = jnp.transpose(x_nchw, (0, 2, 3, 1))          # NCHW -> NHWC (C -> lanes)
    Nb = _pick_block_batch(N, HW, Kall)
    kernel = make_rdb_kernel(nb_layers, Cin, GR, H, W, Nb)

    out = pl.pallas_call(
        kernel,
        out_shape=jax.ShapeDtypeStruct((N, GR, HW), x.dtype),
        grid_spec=pltpu.PrefetchScalarGridSpec(
            num_scalar_prefetch=0,
            grid=(N // Nb,),
            in_specs=[
                pl.BlockSpec((Nb, H, W, Cin), lambda n: (n, 0, 0, 0)),
                pl.BlockSpec((nb_layers + 1, Kall, GR), lambda n: (0, 0, 0)),
                pl.BlockSpec((nb_layers, GR), lambda n: (0, 0)),
            ],
            out_specs=pl.BlockSpec((Nb, GR, HW), lambda n: (n, 0, 0)),
            scratch_shapes=[
                pltpu.VMEM((Nb * HW, Kall), jnp.float32),        # im2col slab
                pltpu.VMEM((Nb, H + 2, W + 2, max(Cin, GR)), jnp.float32),
            ],
        ),
        compiler_params=pltpu.CompilerParams(
            dimension_semantics=("parallel",)),
    )(x, w_all, b_all)
    # Lane-dense kernel output (N, GR, H*W) -> NCHW for free.
    return out.reshape(N, GR, H, W)


def rdb_forward_nchw(x_nchw, params):
    """RDB.forward: x is NCHW (PyTorch convention)."""
    Cin = x_nchw.shape[1]
    GR = params["w1x1"].shape[-1]
    # The module's `out + x` silently requires growth_rate == input_dim.
    assert GR == Cin, "RDB residual add requires growth_rate == input_dim"
    w_all, b_all = pack_rdb_params(params, Cin)
    return _rdb_pallas(x_nchw, w_all, b_all)


# ------------------------ deterministic param init --------------------------

def make_rdb_params(key, nb_layers, input_dim, growth_rate):
    params = {"layers": []}
    for i in range(nb_layers):
        cin = input_dim + i * growth_rate
        kw, kb = jax.random.split(jax.random.fold_in(key, i))
        w = 0.1 * jax.random.normal(kw, (3, 3, cin, growth_rate), jnp.float32)
        b = 0.1 * jax.random.normal(kb, (growth_rate,), jnp.float32)
        params["layers"].append((w, b))
    ctot = input_dim + nb_layers * growth_rate
    kw, kb = jax.random.split(jax.random.fold_in(key, 1000))
    params["w1x1"] = 0.1 * jax.random.normal(kw, (ctot, growth_rate), jnp.float32)
    params["b1x1"] = 0.1 * jax.random.normal(kb, (growth_rate,), jnp.float32)
    return params


# ------------------------------ pure-JAX reference ---------------------------

def rdb_reference_nchw(x_nchw, params):
    dn = ("NHWC", "HWIO", "NHWC")
    x = jnp.transpose(x_nchw, (0, 2, 3, 1))
    feat = x
    for (w, b) in params["layers"]:
        out = jax.lax.conv_general_dilated(feat, w, (1, 1), "SAME",
                                           dimension_numbers=dn)
        out = jax.nn.relu(out + b)
        feat = jnp.concatenate([feat, out], axis=-1)
    w1 = params["w1x1"].reshape(1, 1, *params["w1x1"].shape)
    y = jax.lax.conv_general_dilated(feat, w1, (1, 1), "SAME",
                                     dimension_numbers=dn) + params["b1x1"]
    y = y + x
    return jnp.transpose(y, (0, 3, 1, 2))


# ---------------------------------- main -------------------------------------

if __name__ == "__main__":
    # RDB(nb_layers=3, input_dim=4, growth_rate=4); the module's residual add
    # (`out + x`) requires growth_rate == input_dim.
    nb_layers, input_dim, growth_rate = 3, 4, 4
    N, H, W = 2, 16, 16

    key = jax.random.PRNGKey(0)
    kx, kp = jax.random.split(key)
    x = jax.random.normal(kx, (N, input_dim, H, W), jnp.float32)  # NCHW input
    params = make_rdb_params(kp, nb_layers, input_dim, growth_rate)

    out = jax.block_until_ready(rdb_forward_nchw(x, params))
    ref = jax.block_until_ready(rdb_reference_nchw(x, params))

    np.testing.assert_allclose(np.asarray(out), np.asarray(ref),
                               rtol=1e-4, atol=1e-4)
    assert out.shape == (N, growth_rate, H, W)
    print("KERNEL_OK")
</pallas_src>

<mosaic_0001>
module attributes {stable_mosaic.version = 11 : i64} {
  func.func @kernel(%arg0: i32, %arg1: memref<1x16x16x4xf32, #tpu.memory_space<vmem>>, %arg2: memref<4x145x4xf32, #tpu.memory_space<vmem>>, %arg3: memref<3x4xf32, #tpu.memory_space<vmem>>, %arg4: memref<1x4x256xf32, #tpu.memory_space<vmem>>, %arg5: memref<256x145xf32, #tpu.memory_space<vmem>>, %arg6: memref<1x18x18x4xf32, #tpu.memory_space<vmem>>) attributes {dimension_semantics = [#tpu.dimension_semantics<parallel>], iteration_bounds = array<i64: 2>, scalar_prefetch = 0 : i64, scratch_operands = 2 : i64, tpu.core_type = #tpu.core_type<tc>, window_params = [{transform_indices = @transform_0, window_bounds = array<i64: 1, 16, 16, 4>}, {pipeline_mode = #tpu.pipeline_mode<synchronous>, transform_indices = @transform_1, window_bounds = array<i64: 4, 145, 4>}, {pipeline_mode = #tpu.pipeline_mode<synchronous>, transform_indices = @transform_2, window_bounds = array<i64: 3, 4>}, {transform_indices = @transform_3, window_bounds = array<i64: 1, 4, 256>}]} {
    %cst = arith.constant 0.000000e+00 : f32
    %0 = vector.broadcast %cst : f32 to vector<1x1x18x4xf32>
    %c0 = arith.constant 0 : index
    %c0_0 = arith.constant 0 : index
    %c0_1 = arith.constant 0 : index
    %c0_2 = arith.constant 0 : index
    %1 = vector.load %arg6[%c0, %c0_0, %c0_1, %c0_2] : memref<1x18x18x4xf32, #tpu.memory_space<vmem>>, vector<1x1x18x4xf32>
    tpu.vector_store %arg6[%c0, %c0_0, %c0_1, %c0_2], %0 {strides = array<i32>} : memref<1x18x18x4xf32, #tpu.memory_space<vmem>>, vector<1x1x18x4xf32>,
    %cst_3 = arith.constant 0.000000e+00 : f32
    %2 = vector.broadcast %cst_3 : f32 to vector<1x1x18x4xf32>
    %c0_4 = arith.constant 0 : index
    %c17 = arith.constant 17 : index
    %c0_5 = arith.constant 0 : index
    %c0_6 = arith.constant 0 : index
    %3 = vector.load %arg6[%c0_4, %c17, %c0_5, %c0_6] : memref<1x18x18x4xf32, #tpu.memory_space<vmem>>, vector<1x1x18x4xf32>
    tpu.vector_store %arg6[%c0_4, %c17, %c0_5, %c0_6], %2 {strides = array<i32>} : memref<1x18x18x4xf32, #tpu.memory_space<vmem>>, vector<1x1x18x4xf32>,
    %cst_7 = arith.constant 0.000000e+00 : f32
    %4 = vector.broadcast %cst_7 : f32 to vector<1x18x1x4xf32>
    %c0_8 = arith.constant 0 : index
    %c0_9 = arith.constant 0 : index
    %c0_10 = arith.constant 0 : index
    %c0_11 = arith.constant 0 : index
    %5 = vector.load %arg6[%c0_8, %c0_9, %c0_10, %c0_11] : memref<1x18x18x4xf32, #tpu.memory_space<vmem>>, vector<1x18x1x4xf32>
    tpu.vector_store %arg6[%c0_8, %c0_9, %c0_10, %c0_11], %4 {strides = array<i32>} : memref<1x18x18x4xf32, #tpu.memory_space<vmem>>, vector<1x18x1x4xf32>,
    %cst_12 = arith.constant 0.000000e+00 : f32
    %6 = vector.broadcast %cst_12 : f32 to vector<1x18x1x4xf32>
    %c0_13 = arith.constant 0 : index
    %c0_14 = arith.constant 0 : index
    %c17_15 = arith.constant 17 : index
    %c0_16 = arith.constant 0 : index
    %7 = vector.load %arg6[%c0_13, %c0_14, %c17_15, %c0_16] : memref<1x18x18x4xf32, #tpu.memory_space<vmem>>, vector<1x18x1x4xf32>
    tpu.vector_store %arg6[%c0_13, %c0_14, %c17_15, %c0_16], %6 {strides = array<i32>} : memref<1x18x18x4xf32, #tpu.memory_space<vmem>>, vector<1x18x1x4xf32>,
    %cst_17 = arith.constant 1.000000e+00 : f32
    %8 = vector.broadcast %cst_17 : f32 to vector<256x1xf32>
    %c0_18 = arith.constant 0 : index
    %c144 = arith.constant 144 : index
    %9 = vector.load %arg5[%c0_18, %c144] : memref<256x145xf32, #tpu.memory_space<vmem>>, vector<256x1xf32>
    tpu.vector_store %arg5[%c0_18, %c144], %8 {strides = array<i32>} : memref<256x145xf32, #tpu.memory_space<vmem>>, vector<256x1xf32>,
    %c0_19 = arith.constant 0 : index
    %c0_20 = arith.constant 0 : index
    %c0_21 = arith.constant 0 : index
    %c0_22 = arith.constant 0 : index
    %10 = vector.load %arg1[%c0_19, %c0_20, %c0_21, %c0_22] : memref<1x16x16x4xf32, #tpu.memory_space<vmem>>, vector<1x16x16x4xf32>
    %c0_23 = arith.constant 0 : index
    %c1 = arith.constant 1 : index
    %c1_24 = arith.constant 1 : index
    %c0_25 = arith.constant 0 : index
    %11 = vector.load %arg6[%c0_23, %c1, %c1_24, %c0_25] : memref<1x18x18x4xf32, #tpu.memory_space<vmem>>, vector<1x16x16x4xf32>
    tpu.vector_store %arg6[%c0_23, %c1, %c1_24, %c0_25], %10 {strides = array<i32>} : memref<1x18x18x4xf32, #tpu.memory_space<vmem>>, vector<1x16x16x4xf32>,
    %c0_26 = arith.constant 0 : index
    %c0_27 = arith.constant 0 : index
    %c0_28 = arith.constant 0 : index
    %c0_29 = arith.constant 0 : index
    %12 = vector.load %arg6[%c0_26, %c0_27, %c0_28, %c0_29] : memref<1x18x18x4xf32, #tpu.memory_space<vmem>>, vector<1x16x16x4xf32>
    %13 = vector.shape_cast %12 : vector<1x16x16x4xf32> to vector<256x4xf32>
    %c0_30 = arith.constant 0 : index
    %c0_31 = arith.constant 0 : index
    %14 = vector.load %arg5[%c0_30, %c0_31] : memref<256x145xf32, #tpu.memory_space<vmem>>, vector<256x4xf32>
    tpu.vector_store %arg5[%c0_30, %c0_31], %13 {strides = array<i32>} : memref<256x145xf32, #tpu.memory_space<vmem>>, vector<256x4xf32>,
    %c0_32 = arith.constant 0 : index
    %c0_33 = arith.constant 0 : index
    %c1_34 = arith.constant 1 : index
    %c0_35 = arith.constant 0 : index
    %15 = vector.load %arg6[%c0_32, %c0_33, %c1_34, %c0_35] : memref<1x18x18x4xf32, #tpu.memory_space<vmem>>, vector<1x16x16x4xf32>
    %16 = vector.shape_cast %15 : vector<1x16x16x4xf32> to vector<256x4xf32>
    %c0_36 = arith.constant 0 : index
    %c4 = arith.constant 4 : index
    %17 = vector.load %arg5[%c0_36, %c4] : memref<256x145xf32, #tpu.memory_space<vmem>>, vector<256x4xf32>
    tpu.vector_store %arg5[%c0_36, %c4], %16 {strides = array<i32>} : memref<256x145xf32, #tpu.memory_space<vmem>>, vector<256x4xf32>,
    %c0_37 = arith.constant 0 : index
    %c0_38 = arith.constant 0 : index
    %c2 = arith.constant 2 : index
    %c0_39 = arith.constant 0 : index
    %18 = vector.load %arg6[%c0_37, %c0_38, %c2, %c0_39] : memref<1x18x18x4xf32, #tpu.memory_space<vmem>>, vector<1x16x16x4xf32>
    %19 = vector.shape_cast %18 : vector<1x16x16x4xf32> to vector<256x4xf32>
    %c0_40 = arith.constant 0 : index
    %c8 = arith.constant 8 : index
    %20 = vector.load %arg5[%c0_40, %c8] : memref<256x145xf32, #tpu.memory_space<vmem>>, vector<256x4xf32>
    tpu.vector_store %arg5[%c0_40, %c8], %19 {strides = array<i32>} : memref<256x145xf32, #tpu.memory_space<vmem>>, vector<256x4xf32>,
    %c0_41 = arith.constant 0 : index
    %c1_42 = arith.constant 1 : index
    %c0_43 = arith.constant 0 : index
    %c0_44 = arith.constant 0 : index
    %21 = vector.load %arg6[%c0_41, %c1_42, %c0_43, %c0_44] : memref<1x18x18x4xf32, #tpu.memory_space<vmem>>, vector<1x16x16x4xf32>
    %22 = vector.shape_cast %21 : vector<1x16x16x4xf32> to vector<256x4xf32>
    %c0_45 = arith.constant 0 : index
    %c12 = arith.constant 12 : index
    %23 = vector.load %arg5[%c0_45, %c12] : memref<256x145xf32, #tpu.memory_space<vmem>>, vector<256x4xf32>
    tpu.vector_store %arg5[%c0_45, %c12], %22 {strides = array<i32>} : memref<256x145xf32, #tpu.memory_space<vmem>>, vector<256x4xf32>,
    %c0_46 = arith.constant 0 : index
    %c1_47 = arith.constant 1 : index
    %c1_48 = arith.constant 1 : index
    %c0_49 = arith.constant 0 : index
    %24 = vector.load %arg6[%c0_46, %c1_47, %c1_48, %c0_49] : memref<1x18x18x4xf32, #tpu.memory_space<vmem>>, vector<1x16x16x4xf32>
    %25 = vector.shape_cast %24 : vector<1x16x16x4xf32> to vector<256x4xf32>
    %c0_50 = arith.constant 0 : index
    %c16 = arith.constant 16 : index
    %26 = vector.load %arg5[%c0_50, %c16] : memref<256x145xf32, #tpu.memory_space<vmem>>, vector<256x4xf32>
    tpu.vector_store %arg5[%c0_50, %c16], %25 {strides = array<i32>} : memref<256x145xf32, #tpu.memory_space<vmem>>, vector<256x4xf32>,
    %c0_51 = arith.constant 0 : index
    %c1_52 = arith.constant 1 : index
    %c2_53 = arith.constant 2 : index
    %c0_54 = arith.constant 0 : index
    %27 = vector.load %arg6[%c0_51, %c1_52, %c2_53, %c0_54] : memref<1x18x18x4xf32, #tpu.memory_space<vmem>>, vector<1x16x16x4xf32>
    %28 = vector.shape_cast %27 : vector<1x16x16x4xf32> to vector<256x4xf32>
    %c0_55 = arith.constant 0 : index
    %c20 = arith.constant 20 : index
    %29 = vector.load %arg5[%c0_55, %c20] : memref<256x145xf32, #tpu.memory_space<vmem>>, vector<256x4xf32>
    tpu.vector_store %arg5[%c0_55, %c20], %28 {strides = array<i32>} : memref<256x145xf32, #tpu.memory_space<vmem>>, vector<256x4xf32>,
    %c0_56 = arith.constant 0 : index
    %c2_57 = arith.constant 2 : index
    %c0_58 = arith.constant 0 : index
    %c0_59 = arith.constant 0 : index
    %30 = vector.load %arg6[%c0_56, %c2_57, %c0_58, %c0_59] : memref<1x18x18x4xf32, #tpu.memory_space<vmem>>, vector<1x16x16x4xf32>
    %31 = vector.shape_cast %30 : vector<1x16x16x4xf32> to vector<256x4xf32>
    %c0_60 = arith.constant 0 : index
    %c24 = arith.constant 24 : index
    %32 = vector.load %arg5[%c0_60, %c24] : memref<256x145xf32, #tpu.memory_space<vmem>>, vector<256x4xf32>
    tpu.vector_store %arg5[%c0_60, %c24], %31 {strides = array<i32>} : memref<256x145xf32, #tpu.memory_space<vmem>>, vector<256x4xf32>,
    %c0_61 = arith.constant 0 : index
    %c2_62 = arith.constant 2 : index
    %c1_63 = arith.constant 1 : index
    %c0_64 = arith.constant 0 : index
    %33 = vector.load %arg6[%c0_61, %c2_62, %c1_63, %c0_64] : memref<1x18x18x4xf32, #tpu.memory_space<vmem>>, vector<1x16x16x4xf32>
    %34 = vector.shape_cast %33 : vector<1x16x16x4xf32> to vector<256x4xf32>
    %c0_65 = arith.constant 0 : index
    %c28 = arith.constant 28 : index
    %35 = vector.load %arg5[%c0_65, %c28] : memref<256x145xf32, #tpu.memory_space<vmem>>, vector<256x4xf32>
    tpu.vector_store %arg5[%c0_65, %c28], %34 {strides = array<i32>} : memref<256x145xf32, #tpu.memory_space<vmem>>, vector<256x4xf32>,
    %c0_66 = arith.constant 0 : index
    %c2_67 = arith.constant 2 : index
    %c2_68 = arith.constant 2 : index
    %c0_69 = arith.constant 0 : index
    %36 = vector.load %arg6[%c0_66, %c2_67, %c2_68, %c0_69] : memref<1x18x18x4xf32, #tpu.memory_space<vmem>>, vector<1x16x16x4xf32>
    %37 = vector.shape_cast %36 : vector<1x16x16x4xf32> to vector<256x4xf32>
    %c0_70 = arith.constant 0 : index
    %c32 = arith.constant 32 : index
    %38 = vector.load %arg5[%c0_70, %c32] : memref<256x145xf32, #tpu.memory_space<vmem>>, vector<256x4xf32>
    tpu.vector_store %arg5[%c0_70, %c32], %37 {strides = array<i32>} : memref<256x145xf32, #tpu.memory_space<vmem>>, vector<256x4xf32>,
    %c0_71 = arith.constant 0 : index
    %c0_72 = arith.constant 0 : index
    %39 = vector.load %arg5[%c0_71, %c0_72] : memref<256x145xf32, #tpu.memory_space<vmem>>, vector<256x36xf32>
    %c0_73 = arith.constant 0 : index
    %c0_74 = arith.constant 0 : index
    %c0_75 = arith.constant 0 : index
    %40 = vector.load %arg2[%c0_73, %c0_74, %c0_75] : memref<4x145x4xf32, #tpu.memory_space<vmem>>, vector<1x36x4xf32>
    %41 = vector.shape_cast %40 : vector<1x36x4xf32> to vector<36x4xf32>
    %cst_76 = arith.constant dense<0.000000e+00> : vector<256x4xf32>
    %42 = tpu.matmul %39, %41, %cst_76 {dimension_numbers = #tpu.dot_dimension_numbers<[1], [0], [0], [1], [0, 0, 1, 1], [], []>} : vector<256x36xf32>, vector<36x4xf32>, vector<256x4xf32> -> vector<256x4xf32>
    %c0_77 = arith.constant 0 : index
    %c0_78 = arith.constant 0 : index
    %43 = vector.load %arg3[%c0_77, %c0_78] : memref<3x4xf32, #tpu.memory_space<vmem>>, vector<1x4xf32>
    %44 = vector.broadcast %43 : vector<1x4xf32> to vector<256x4xf32>
    %45 = arith.addf %42, %44 : vector<256x4xf32>
    %cst_79 = arith.constant 0.000000e+00 : f32
    %46 = vector.broadcast %cst_79 : f32 to vector<256x4xf32>
    %47 = arith.maximumf %45, %46 : vector<256x4xf32>
    %48 = vector.shape_cast %47 : vector<256x4xf32> to vector<1x16x16x4xf32>
    %c0_80 = arith.constant 0 : index
    %c1_81 = arith.constant 1 : index
    %c1_82 = arith.constant 1 : index
    %c0_83 = arith.constant 0 : index
    %49 = vector.load %arg6[%c0_80, %c1_81, %c1_82, %c0_83] : memref<1x18x18x4xf32, #tpu.memory_space<vmem>>, vector<1x16x16x4xf32>
    tpu.vector_store %arg6[%c0_80, %c1_81, %c1_82, %c0_83], %48 {strides = array<i32>} : memref<1x18x18x4xf32, #tpu.memory_space<vmem>>, vector<1x16x16x4xf32>,
    %c0_84 = arith.constant 0 : index
    %c0_85 = arith.constant 0 : index
    %c0_86 = arith.constant 0 : index
    %c0_87 = arith.constant 0 : index
    %50 = vector.load %arg6[%c0_84, %c0_85, %c0_86, %c0_87] : memref<1x18x18x4xf32, #tpu.memory_space<vmem>>, vector<1x16x16x4xf32>
    %51 = vector.shape_cast %50 : vector<1x16x16x4xf32> to vector<256x4xf32>
    %c0_88 = arith.constant 0 : index
    %c36 = arith.constant 36 : index
    %52 = vector.load %arg5[%c0_88, %c36] : memref<256x145xf32, #tpu.memory_space<vmem>>, vector<256x4xf32>
    tpu.vector_store %arg5[%c0_88, %c36], %51 {strides = array<i32>} : memref<256x145xf32, #tpu.memory_space<vmem>>, vector<256x4xf32>,
    %c0_89 = arith.constant 0 : index
    %c0_90 = arith.constant 0 : index
    %c1_91 = arith.constant 1 : index
    %c0_92 = arith.constant 0 : index
    %53 = vector.load %arg6[%c0_89, %c0_90, %c1_91, %c0_92] : memref<1x18x18x4xf32, #tpu.memory_space<vmem>>, vector<1x16x16x4xf32>
    %54 = vector.shape_cast %53 : vector<1x16x16x4xf32> to vector<256x4xf32>
    %c0_93 = arith.constant 0 : index
    %c40 = arith.constant 40 : index
    %55 = vector.load %arg5[%c0_93, %c40] : memref<256x145xf32, #tpu.memory_space<vmem>>, vector<256x4xf32>
    tpu.vector_store %arg5[%c0_93, %c40], %54 {strides = array<i32>} : memref<256x145xf32, #tpu.memory_space<vmem>>, vector<256x4xf32>,
    %c0_94 = arith.constant 0 : index
    %c0_95 = arith.constant 0 : index
    %c2_96 = arith.constant 2 : index
    %c0_97 = arith.constant 0 : index
    %56 = vector.load %arg6[%c0_94, %c0_95, %c2_96, %c0_97] : memref<1x18x18x4xf32, #tpu.memory_space<vmem>>, vector<1x16x16x4xf32>
    %57 = vector.shape_cast %56 : vector<1x16x16x4xf32> to vector<256x4xf32>
    %c0_98 = arith.constant 0 : index
    %c44 = arith.constant 44 : index
    %58 = vector.load %arg5[%c0_98, %c44] : memref<256x145xf32, #tpu.memory_space<vmem>>, vector<256x4xf32>
    tpu.vector_store %arg5[%c0_98, %c44], %57 {strides = array<i32>} : memref<256x145xf32, #tpu.memory_space<vmem>>, vector<256x4xf32>,
    %c0_99 = arith.constant 0 : index
    %c1_100 = arith.constant 1 : index
    %c0_101 = arith.constant 0 : index
    %c0_102 = arith.constant 0 : index
    %59 = vector.load %arg6[%c0_99, %c1_100, %c0_101, %c0_102] : memref<1x18x18x4xf32, #tpu.memory_space<vmem>>, vector<1x16x16x4xf32>
    %60 = vector.shape_cast %59 : vector<1x16x16x4xf32> to vector<256x4xf32>
    %c0_103 = arith.constant 0 : index
    %c48 = arith.constant 48 : index
    %61 = vector.load %arg5[%c0_103, %c48] : memref<256x145xf32, #tpu.memory_space<vmem>>, vector<256x4xf32>
    tpu.vector_store %arg5[%c0_103, %c48], %60 {strides = array<i32>} : memref<256x145xf32, #tpu.memory_space<vmem>>, vector<256x4xf32>,
    %c0_104 = arith.constant 0 : index
    %c1_105 = arith.constant 1 : index
    %c1_106 = arith.constant 1 : index
    %c0_107 = arith.constant 0 : index
    %62 = vector.load %arg6[%c0_104, %c1_105, %c1_106, %c0_107] : memref<1x18x18x4xf32, #tpu.memory_space<vmem>>, vector<1x16x16x4xf32>
    %63 = vector.shape_cast %62 : vector<1x16x16x4xf32> to vector<256x4xf32>
    %c0_108 = arith.constant 0 : index
    %c52 = arith.constant 52 : index
    %64 = vector.load %arg5[%c0_108, %c52] : memref<256x145xf32, #tpu.memory_space<vmem>>, vector<256x4xf32>
    tpu.vector_store %arg5[%c0_108, %c52], %63 {strides = array<i32>} : memref<256x145xf32, #tpu.memory_space<vmem>>, vector<256x4xf32>,
    %c0_109 = arith.constant 0 : index
    %c1_110 = arith.constant 1 : index
    %c2_111 = arith.constant 2 : index
    %c0_112 = arith.constant 0 : index
    %65 = vector.load %arg6[%c0_109, %c1_110, %c2_111, %c0_112] : memref<1x18x18x4xf32, #tpu.memory_space<vmem>>, vector<1x16x16x4xf32>
    %66 = vector.shape_cast %65 : vector<1x16x16x4xf32> to vector<256x4xf32>
    %c0_113 = arith.constant 0 : index
    %c56 = arith.constant 56 : index
    %67 = vector.load %arg5[%c0_113, %c56] : memref<256x145xf32, #tpu.memory_space<vmem>>, vector<256x4xf32>
    tpu.vector_store %arg5[%c0_113, %c56], %66 {strides = array<i32>} : memref<256x145xf32, #tpu.memory_space<vmem>>, vector<256x4xf32>,
    %c0_114 = arith.constant 0 : index
    %c2_115 = arith.constant 2 : index
    %c0_116 = arith.constant 0 : index
    %c0_117 = arith.constant 0 : index
    %68 = vector.load %arg6[%c0_114, %c2_115, %c0_116, %c0_117] : memref<1x18x18x4xf32, #tpu.memory_space<vmem>>, vector<1x16x16x4xf32>
    %69 = vector.shape_cast %68 : vector<1x16x16x4xf32> to vector<256x4xf32>
    %c0_118 = arith.constant 0 : index
    %c60 = arith.constant 60 : index
    %70 = vector.load %arg5[%c0_118, %c60] : memref<256x145xf32, #tpu.memory_space<vmem>>, vector<256x4xf32>
    tpu.vector_store %arg5[%c0_118, %c60], %69 {strides = array<i32>} : memref<256x145xf32, #tpu.memory_space<vmem>>, vector<256x4xf32>,
    %c0_119 = arith.constant 0 : index
    %c2_120 = arith.constant 2 : index
    %c1_121 = arith.constant 1 : index
    %c0_122 = arith.constant 0 : index
    %71 = vector.load %arg6[%c0_119, %c2_120, %c1_121, %c0_122] : memref<1x18x18x4xf32, #tpu.memory_space<vmem>>, vector<1x16x16x4xf32>
    %72 = vector.shape_cast %71 : vector<1x16x16x4xf32> to vector<256x4xf32>
    %c0_123 = arith.constant 0 : index
    %c64 = arith.constant 64 : index
    %73 = vector.load %arg5[%c0_123, %c64] : memref<256x145xf32, #tpu.memory_space<vmem>>, vector<256x4xf32>
    tpu.vector_store %arg5[%c0_123, %c64], %72 {strides = array<i32>} : memref<256x145xf32, #tpu.memory_space<vmem>>, vector<256x4xf32>,
    %c0_124 = arith.constant 0 : index
    %c2_125 = arith.constant 2 : index
    %c2_126 = arith.constant 2 : index
    %c0_127 = arith.constant 0 : index
    %74 = vector.load %arg6[%c0_124, %c2_125, %c2_126, %c0_127] : memref<1x18x18x4xf32, #tpu.memory_space<vmem>>, vector<1x16x16x4xf32>
    %75 = vector.shape_cast %74 : vector<1x16x16x4xf32> to vector<256x4xf32>
    %c0_128 = arith.constant 0 : index
    %c68 = arith.constant 68 : index
    %76 = vector.load %arg5[%c0_128, %c68] : memref<256x145xf32, #tpu.memory_space<vmem>>, vector<256x4xf32>
    tpu.vector_store %arg5[%c0_128, %c68], %75 {strides = array<i32>} : memref<256x145xf32, #tpu.memory_space<vmem>>, vector<256x4xf32>,
    %c0_129 = arith.constant 0 : index
    %c0_130 = arith.constant 0 : index
    %77 = vector.load %arg5[%c0_129, %c0_130] : memref<256x145xf32, #tpu.memory_space<vmem>>, vector<256x72xf32>
    %c1_131 = arith.constant 1 : index
    %c0_132 = arith.constant 0 : index
    %c0_133 = arith.constant 0 : index
    %78 = vector.load %arg2[%c1_131, %c0_132, %c0_133] : memref<4x145x4xf32, #tpu.memory_space<vmem>>, vector<1x72x4xf32>
    %79 = vector.shape_cast %78 : vector<1x72x4xf32> to vector<72x4xf32>
    %cst_134 = arith.constant dense<0.000000e+00> : vector<256x4xf32>
    %80 = tpu.matmul %77, %79, %cst_134 {dimension_numbers = #tpu.dot_dimension_numbers<[1], [0], [0], [1], [0, 0, 1, 1], [], []>} : vector<256x72xf32>, vector<72x4xf32>, vector<256x4xf32> -> vector<256x4xf32>
    %c1_135 = arith.constant 1 : index
    %c0_136 = arith.constant 0 : index
    %81 = vector.load %arg3[%c1_135, %c0_136] : memref<3x4xf32, #tpu.memory_space<vmem>>, vector<1x4xf32>
    %82 = vector.broadcast %81 : vector<1x4xf32> to vector<256x4xf32>
    %83 = arith.addf %80, %82 : vector<256x4xf32>
    %cst_137 = arith.constant 0.000000e+00 : f32
    %84 = vector.broadcast %cst_137 : f32 to vector<256x4xf32>
    %85 = arith.maximumf %83, %84 : vector<256x4xf32>
    %86 = vector.shape_cast %85 : vector<256x4xf32> to vector<1x16x16x4xf32>
    %c0_138 = arith.constant 0 : index
    %c1_139 = arith.constant 1 : index
    %c1_140 = arith.constant 1 : index
    %c0_141 = arith.constant 0 : index
    %87 = vector.load %arg6[%c0_138, %c1_139, %c1_140, %c0_141] : memref<1x18x18x4xf32, #tpu.memory_space<vmem>>, vector<1x16x16x4xf32>
    tpu.vector_store %arg6[%c0_138, %c1_139, %c1_140, %c0_141], %86 {strides = array<i32>} : memref<1x18x18x4xf32, #tpu.memory_space<vmem>>, vector<1x16x16x4xf32>,
    %c0_142 = arith.constant 0 : index
    %c0_143 = arith.constant 0 : index
    %c0_144 = arith.constant 0 : index
    %c0_145 = arith.constant 0 : index
    %88 = vector.load %arg6[%c0_142, %c0_143, %c0_144, %c0_145] : memref<1x18x18x4xf32, #tpu.memory_space<vmem>>, vector<1x16x16x4xf32>
    %89 = vector.shape_cast %88 : vector<1x16x16x4xf32> to vector<256x4xf32>
    %c0_146 = arith.constant 0 : index
    %c72 = arith.constant 72 : index
    %90 = vector.load %arg5[%c0_146, %c72] : memref<256x145xf32, #tpu.memory_space<vmem>>, vector<256x4xf32>
    tpu.vector_store %arg5[%c0_146, %c72], %89 {strides = array<i32>} : memref<256x145xf32, #tpu.memory_space<vmem>>, vector<256x4xf32>,
    %c0_147 = arith.constant 0 : index
    %c0_148 = arith.constant 0 : index
    %c1_149 = arith.constant 1 : index
    %c0_150 = arith.constant 0 : index
    %91 = vector.load %arg6[%c0_147, %c0_148, %c1_149, %c0_150] : memref<1x18x18x4xf32, #tpu.memory_space<vmem>>, vector<1x16x16x4xf32>
    %92 = vector.shape_cast %91 : vector<1x16x16x4xf32> to vector<256x4xf32>
    %c0_151 = arith.constant 0 : index
    %c76 = arith.constant 76 : index
    %93 = vector.load %arg5[%c0_151, %c76] : memref<256x145xf32, #tpu.memory_space<vmem>>, vector<256x4xf32>
    tpu.vector_store %arg5[%c0_151, %c76], %92 {strides = array<i32>} : memref<256x145xf32, #tpu.memory_space<vmem>>, vector<256x4xf32>,
    %c0_152 = arith.constant 0 : index
    %c0_153 = arith.constant 0 : index
    %c2_154 = arith.constant 2 : index
    %c0_155 = arith.constant 0 : index
    %94 = vector.load %arg6[%c0_152, %c0_153, %c2_154, %c0_155] : memref<1x18x18x4xf32, #tpu.memory_space<vmem>>, vector<1x16x16x4xf32>
    %95 = vector.shape_cast %94 : vector<1x16x16x4xf32> to vector<256x4xf32>
    %c0_156 = arith.constant 0 : index
    %c80 = arith.constant 80 : index
    %96 = vector.load %arg5[%c0_156, %c80] : memref<256x145xf32, #tpu.memory_space<vmem>>, vector<256x4xf32>
    tpu.vector_store %arg5[%c0_156, %c80], %95 {strides = array<i32>} : memref<256x145xf32, #tpu.memory_space<vmem>>, vector<256x4xf32>,
    %c0_157 = arith.constant 0 : index
    %c1_158 = arith.constant 1 : index
    %c0_159 = arith.constant 0 : index
    %c0_160 = arith.constant 0 : index
    %97 = vector.load %arg6[%c0_157, %c1_158, %c0_159, %c0_160] : memref<1x18x18x4xf32, #tpu.memory_space<vmem>>, vector<1x16x16x4xf32>
    %98 = vector.shape_cast %97 : vector<1x16x16x4xf32> to vector<256x4xf32>
    %c0_161 = arith.constant 0 : index
    %c84 = arith.constant 84 : index
    %99 = vector.load %arg5[%c0_161, %c84] : memref<256x145xf32, #tpu.memory_space<vmem>>, vector<256x4xf32>
    tpu.vector_store %arg5[%c0_161, %c84], %98 {strides = array<i32>} : memref<256x145xf32, #tpu.memory_space<vmem>>, vector<256x4xf32>,
    %c0_162 = arith.constant 0 : index
    %c1_163 = arith.constant 1 : index
    %c1_164 = arith.constant 1 : index
    %c0_165 = arith.constant 0 : index
    %100 = vector.load %arg6[%c0_162, %c1_163, %c1_164, %c0_165] : memref<1x18x18x4xf32, #tpu.memory_space<vmem>>, vector<1x16x16x4xf32>
    %101 = vector.shape_cast %100 : vector<1x16x16x4xf32> to vector<256x4xf32>
    %c0_166 = arith.constant 0 : index
    %c88 = arith.constant 88 : index
    %102 = vector.load %arg5[%c0_166, %c88] : memref<256x145xf32, #tpu.memory_space<vmem>>, vector<256x4xf32>
    tpu.vector_store %arg5[%c0_166, %c88], %101 {strides = array<i32>} : memref<256x145xf32, #tpu.memory_space<vmem>>, vector<256x4xf32>,
    %c0_167 = arith.constant 0 : index
    %c1_168 = arith.constant 1 : index
    %c2_169 = arith.constant 2 : index
    %c0_170 = arith.constant 0 : index
    %103 = vector.load %arg6[%c0_167, %c1_168, %c2_169, %c0_170] : memref<1x18x18x4xf32, #tpu.memory_space<vmem>>, vector<1x16x16x4xf32>
    %104 = vector.shape_cast %103 : vector<1x16x16x4xf32> to vector<256x4xf32>
    %c0_171 = arith.constant 0 : index
    %c92 = arith.constant 92 : index
    %105 = vector.load %arg5[%c0_171, %c92] : memref<256x145xf32, #tpu.memory_space<vmem>>, vector<256x4xf32>
    tpu.vector_store %arg5[%c0_171, %c92], %104 {strides = array<i32>} : memref<256x145xf32, #tpu.memory_space<vmem>>, vector<256x4xf32>,
    %c0_172 = arith.constant 0 : index
    %c2_173 = arith.constant 2 : index
    %c0_174 = arith.constant 0 : index
    %c0_175 = arith.constant 0 : index
    %106 = vector.load %arg6[%c0_172, %c2_173, %c0_174, %c0_175] : memref<1x18x18x4xf32, #tpu.memory_space<vmem>>, vector<1x16x16x4xf32>
    %107 = vector.shape_cast %106 : vector<1x16x16x4xf32> to vector<256x4xf32>
    %c0_176 = arith.constant 0 : index
    %c96 = arith.constant 96 : index
    %108 = vector.load %arg5[%c0_176, %c96] : memref<256x145xf32, #tpu.memory_space<vmem>>, vector<256x4xf32>
    tpu.vector_store %arg5[%c0_176, %c96], %107 {strides = array<i32>} : memref<256x145xf32, #tpu.memory_space<vmem>>, vector<256x4xf32>,
    %c0_177 = arith.constant 0 : index
    %c2_178 = arith.constant 2 : index
    %c1_179 = arith.constant 1 : index
    %c0_180 = arith.constant 0 : index
    %109 = vector.load %arg6[%c0_177, %c2_178, %c1_179, %c0_180] : memref<1x18x18x4xf32, #tpu.memory_space<vmem>>, vector<1x16x16x4xf32>
    %110 = vector.shape_cast %109 : vector<1x16x16x4xf32> to vector<256x4xf32>
    %c0_181 = arith.constant 0 : index
    %c100 = arith.constant 100 : index
    %111 = vector.load %arg5[%c0_181, %c100] : memref<256x145xf32, #tpu.memory_space<vmem>>, vector<256x4xf32>
    tpu.vector_store %arg5[%c0_181, %c100], %110 {strides = array<i32>} : memref<256x145xf32, #tpu.memory_space<vmem>>, vector<256x4xf32>,
    %c0_182 = arith.constant 0 : index
    %c2_183 = arith.constant 2 : index
    %c2_184 = arith.constant 2 : index
    %c0_185 = arith.constant 0 : index
    %112 = vector.load %arg6[%c0_182, %c2_183, %c2_184, %c0_185] : memref<1x18x18x4xf32, #tpu.memory_space<vmem>>, vector<1x16x16x4xf32>
    %113 = vector.shape_cast %112 : vector<1x16x16x4xf32> to vector<256x4xf32>
    %c0_186 = arith.constant 0 : index
    %c104 = arith.constant 104 : index
    %114 = vector.load %arg5[%c0_186, %c104] : memref<256x145xf32, #tpu.memory_space<vmem>>, vector<256x4xf32>
    tpu.vector_store %arg5[%c0_186, %c104], %113 {strides = array<i32>} : memref<256x145xf32, #tpu.memory_space<vmem>>, vector<256x4xf32>,
    %c0_187 = arith.constant 0 : index
    %c0_188 = arith.constant 0 : index
    %115 = vector.load %arg5[%c0_187, %c0_188] : memref<256x145xf32, #tpu.memory_space<vmem>>, vector<256x108xf32>
    %c2_189 = arith.constant 2 : index
    %c0_190 = arith.constant 0 : index
    %c0_191 = arith.constant 0 : index
    %116 = vector.load %arg2[%c2_189, %c0_190, %c0_191] : memref<4x145x4xf32, #tpu.memory_space<vmem>>, vector<1x108x4xf32>
    %117 = vector.shape_cast %116 : vector<1x108x4xf32> to vector<108x4xf32>
    %cst_192 = arith.constant dense<0.000000e+00> : vector<256x4xf32>
    %118 = tpu.matmul %115, %117, %cst_192 {dimension_numbers = #tpu.dot_dimension_numbers<[1], [0], [0], [1], [0, 0, 1, 1], [], []>} : vector<256x108xf32>, vector<108x4xf32>, vector<256x4xf32> -> vector<256x4xf32>
    %c2_193 = arith.constant 2 : index
    %c0_194 = arith.constant 0 : index
    %119 = vector.load %arg3[%c2_193, %c0_194] : memref<3x4xf32, #tpu.memory_space<vmem>>, vector<1x4xf32>
    %120 = vector.broadcast %119 : vector<1x4xf32> to vector<256x4xf32>
    %121 = arith.addf %118, %120 : vector<256x4xf32>
    %cst_195 = arith.constant 0.000000e+00 : f32
    %122 = vector.broadcast %cst_195 : f32 to vector<256x4xf32>
    %123 = arith.maximumf %121, %122 : vector<256x4xf32>
    %124 = vector.shape_cast %123 : vector<256x4xf32> to vector<1x16x16x4xf32>
    %c0_196 = arith.constant 0 : index
    %c1_197 = arith.constant 1 : index
    %c1_198 = arith.constant 1 : index
    %c0_199 = arith.constant 0 : index
    %125 = vector.load %arg6[%c0_196, %c1_197, %c1_198, %c0_199] : memref<1x18x18x4xf32, #tpu.memory_space<vmem>>, vector<1x16x16x4xf32>
    tpu.vector_store %arg6[%c0_196, %c1_197, %c1_198, %c0_199], %124 {strides = array<i32>} : memref<1x18x18x4xf32, #tpu.memory_space<vmem>>, vector<1x16x16x4xf32>,
    %c0_200 = arith.constant 0 : index
    %c0_201 = arith.constant 0 : index
    %c0_202 = arith.constant 0 : index
    %c0_203 = arith.constant 0 : index
    %126 = vector.load %arg6[%c0_200, %c0_201, %c0_202, %c0_203] : memref<1x18x18x4xf32, #tpu.memory_space<vmem>>, vector<1x16x16x4xf32>
    %127 = vector.shape_cast %126 : vector<1x16x16x4xf32> to vector<256x4xf32>
    %c0_204 = arith.constant 0 : index
    %c108 = arith.constant 108 : index
    %128 = vector.load %arg5[%c0_204, %c108] : memref<256x145xf32, #tpu.memory_space<vmem>>, vector<256x4xf32>
    tpu.vector_store %arg5[%c0_204, %c108], %127 {strides = array<i32>} : memref<256x145xf32, #tpu.memory_space<vmem>>, vector<256x4xf32>,
    %c0_205 = arith.constant 0 : index
    %c0_206 = arith.constant 0 : index
    %c1_207 = arith.constant 1 : index
    %c0_208 = arith.constant 0 : index
    %129 = vector.load %arg6[%c0_205, %c0_206, %c1_207, %c0_208] : memref<1x18x18x4xf32, #tpu.memory_space<vmem>>, vector<1x16x16x4xf32>
    %130 = vector.shape_cast %129 : vector<1x16x16x4xf32> to vector<256x4xf32>
    %c0_209 = arith.constant 0 : index
    %c112 = arith.constant 112 : index
    %131 = vector.load %arg5[%c0_209, %c112] : memref<256x145xf32, #tpu.memory_space<vmem>>, vector<256x4xf32>
    tpu.vector_store %arg5[%c0_209, %c112], %130 {strides = array<i32>} : memref<256x145xf32, #tpu.memory_space<vmem>>, vector<256x4xf32>,
    %c0_210 = arith.constant 0 : index
    %c0_211 = arith.constant 0 : index
    %c2_212 = arith.constant 2 : index
    %c0_213 = arith.constant 0 : index
    %132 = vector.load %arg6[%c0_210, %c0_211, %c2_212, %c0_213] : memref<1x18x18x4xf32, #tpu.memory_space<vmem>>, vector<1x16x16x4xf32>
    %133 = vector.shape_cast %132 : vector<1x16x16x4xf32> to vector<256x4xf32>
    %c0_214 = arith.constant 0 : index
    %c116 = arith.constant 116 : index
    %134 = vector.load %arg5[%c0_214, %c116] : memref<256x145xf32, #tpu.memory_space<vmem>>, vector<256x4xf32>
    tpu.vector_store %arg5[%c0_214, %c116], %133 {strides = array<i32>} : memref<256x145xf32, #tpu.memory_space<vmem>>, vector<256x4xf32>,
    %c0_215 = arith.constant 0 : index
    %c1_216 = arith.constant 1 : index
    %c0_217 = arith.constant 0 : index
    %c0_218 = arith.constant 0 : index
    %135 = vector.load %arg6[%c0_215, %c1_216, %c0_217, %c0_218] : memref<1x18x18x4xf32, #tpu.memory_space<vmem>>, vector<1x16x16x4xf32>
    %136 = vector.shape_cast %135 : vector<1x16x16x4xf32> to vector<256x4xf32>
    %c0_219 = arith.constant 0 : index
    %c120 = arith.constant 120 : index
    %137 = vector.load %arg5[%c0_219, %c120] : memref<256x145xf32, #tpu.memory_space<vmem>>, vector<256x4xf32>
    tpu.vector_store %arg5[%c0_219, %c120], %136 {strides = array<i32>} : memref<256x145xf32, #tpu.memory_space<vmem>>, vector<256x4xf32>,
    %c0_220 = arith.constant 0 : index
    %c1_221 = arith.constant 1 : index
    %c1_222 = arith.constant 1 : index
    %c0_223 = arith.constant 0 : index
    %138 = vector.load %arg6[%c0_220, %c1_221, %c1_222, %c0_223] : memref<1x18x18x4xf32, #tpu.memory_space<vmem>>, vector<1x16x16x4xf32>
    %139 = vector.shape_cast %138 : vector<1x16x16x4xf32> to vector<256x4xf32>
    %c0_224 = arith.constant 0 : index
    %c124 = arith.constant 124 : index
    %140 = vector.load %arg5[%c0_224, %c124] : memref<256x145xf32, #tpu.memory_space<vmem>>, vector<256x4xf32>
    tpu.vector_store %arg5[%c0_224, %c124], %139 {strides = array<i32>} : memref<256x145xf32, #tpu.memory_space<vmem>>, vector<256x4xf32>,
    %c0_225 = arith.constant 0 : index
    %c1_226 = arith.constant 1 : index
    %c2_227 = arith.constant 2 : index
    %c0_228 = arith.constant 0 : index
    %141 = vector.load %arg6[%c0_225, %c1_226, %c2_227, %c0_228] : memref<1x18x18x4xf32, #tpu.memory_space<vmem>>, vector<1x16x16x4xf32>
    %142 = vector.shape_cast %141 : vector<1x16x16x4xf32> to vector<256x4xf32>
    %c0_229 = arith.constant 0 : index
    %c128 = arith.constant 128 : index
    %143 = vector.load %arg5[%c0_229, %c128] : memref<256x145xf32, #tpu.memory_space<vmem>>, vector<256x4xf32>
    tpu.vector_store %arg5[%c0_229, %c128], %142 {strides = array<i32>} : memref<256x145xf32, #tpu.memory_space<vmem>>, vector<256x4xf32>,
    %c0_230 = arith.constant 0 : index
    %c2_231 = arith.constant 2 : index
    %c0_232 = arith.constant 0 : index
    %c0_233 = arith.constant 0 : index
    %144 = vector.load %arg6[%c0_230, %c2_231, %c0_232, %c0_233] : memref<1x18x18x4xf32, #tpu.memory_space<vmem>>, vector<1x16x16x4xf32>
    %145 = vector.shape_cast %144 : vector<1x16x16x4xf32> to vector<256x4xf32>
    %c0_234 = arith.constant 0 : index
    %c132 = arith.constant 132 : index
    %146 = vector.load %arg5[%c0_234, %c132] : memref<256x145xf32, #tpu.memory_space<vmem>>, vector<256x4xf32>
    tpu.vector_store %arg5[%c0_234, %c132], %145 {strides = array<i32>} : memref<256x145xf32, #tpu.memory_space<vmem>>, vector<256x4xf32>,
    %c0_235 = arith.constant 0 : index
    %c2_236 = arith.constant 2 : index
    %c1_237 = arith.constant 1 : index
    %c0_238 = arith.constant 0 : index
    %147 = vector.load %arg6[%c0_235, %c2_236, %c1_237, %c0_238] : memref<1x18x18x4xf32, #tpu.memory_space<vmem>>, vector<1x16x16x4xf32>
    %148 = vector.shape_cast %147 : vector<1x16x16x4xf32> to vector<256x4xf32>
    %c0_239 = arith.constant 0 : index
    %c136 = arith.constant 136 : index
    %149 = vector.load %arg5[%c0_239, %c136] : memref<256x145xf32, #tpu.memory_space<vmem>>, vector<256x4xf32>
    tpu.vector_store %arg5[%c0_239, %c136], %148 {strides = array<i32>} : memref<256x145xf32, #tpu.memory_space<vmem>>, vector<256x4xf32>,
    %c0_240 = arith.constant 0 : index
    %c2_241 = arith.constant 2 : index
    %c2_242 = arith.constant 2 : index
    %c0_243 = arith.constant 0 : index
    %150 = vector.load %arg6[%c0_240, %c2_241, %c2_242, %c0_243] : memref<1x18x18x4xf32, #tpu.memory_space<vmem>>, vector<1x16x16x4xf32>
    %151 = vector.shape_cast %150 : vector<1x16x16x4xf32> to vector<256x4xf32>
    %c0_244 = arith.constant 0 : index
    %c140 = arith.constant 140 : index
    %152 = vector.load %arg5[%c0_244, %c140] : memref<256x145xf32, #tpu.memory_space<vmem>>, vector<256x4xf32>
    tpu.vector_store %arg5[%c0_244, %c140], %151 {strides = array<i32>} : memref<256x145xf32, #tpu.memory_space<vmem>>, vector<256x4xf32>,
    %c3 = arith.constant 3 : index
    %c0_245 = arith.constant 0 : index
    %c0_246 = arith.constant 0 : index
    %153 = vector.load %arg2[%c3, %c0_245, %c0_246] : memref<4x145x4xf32, #tpu.memory_space<vmem>>, vector<1x145x4xf32>
    %154 = vector.shape_cast %153 : vector<1x145x4xf32> to vector<145x4xf32>
    %c0_247 = arith.constant 0 : index
    %c0_248 = arith.constant 0 : index
    %155 = vector.load %arg5[%c0_247, %c0_248] : memref<256x145xf32, #tpu.memory_space<vmem>>, vector<256x145xf32>
    %cst_249 = arith.constant dense<0.000000e+00> : vector<4x256xf32>
    %156 = tpu.matmul %154, %155, %cst_249 {dimension_numbers = #tpu.dot_dimension_numbers<[0], [1], [1], [0], [0, 1, 1, 0], [], []>} : vector<145x4xf32>, vector<256x145xf32>, vector<4x256xf32> -> vector<4x256xf32>
    %c0_250 = arith.constant 0 : index
    %c0_251 = arith.constant 0 : index
    %c0_252 = arith.constant 0 : index
    %157 = vector.load %arg4[%c0_250, %c0_251, %c0_252] : memref<1x4x256xf32, #tpu.memory_space<vmem>>, vector<1x4x256xf32>
    %158 = vector.shape_cast %157 : vector<1x4x256xf32> to vector<4x256xf32>
    %159 = vector.shape_cast %156 : vector<4x256xf32> to vector<1x4x256xf32>
    tpu.vector_store %arg4[%c0_250, %c0_251, %c0_252], %159 {strides = array<i32>} : memref<1x4x256xf32, #tpu.memory_space<vmem>>, vector<1x4x256xf32>,
    return
  }
  func.func @transform_0(%arg0: i32) -> (i32, i32, i32, i32) {
    %c0_i32 = arith.constant 0 : i32
    %c0_i32_0 = arith.constant 0 : i32
    %c0_i32_1 = arith.constant 0 : i32
    %c0_i32_2 = arith.constant 0 : i32
    return %arg0, %c0_i32, %c0_i32_0, %c0_i32_1 : i32, i32, i32, i32
  }
  func.func @transform_1(%arg0: i32) -> (i32, i32, i32) {
    %c0_i32 = arith.constant 0 : i32
    %c0_i32_0 = arith.constant 0 : i32
    %c0_i32_1 = arith.constant 0 : i32
    %c0_i32_2 = arith.constant 0 : i32
    return %c0_i32, %c0_i32_0, %c0_i32_1 : i32, i32, i32
  }
  func.func @transform_2(%arg0: i32) -> (i32, i32) {
    %c0_i32 = arith.constant 0 : i32
    %c0_i32_0 = arith.constant 0 : i32
    %c0_i32_1 = arith.constant 0 : i32
    return %c0_i32, %c0_i32_0 : i32, i32
  }
  func.func @transform_3(%arg0: i32) -> (i32, i32, i32) {
    %c0_i32 = arith.constant 0 : i32
    %c0_i32_0 = arith.constant 0 : i32
    %c0_i32_1 = arith.constant 0 : i32
    return %arg0, %c0_i32, %c0_i32_0 : i32, i32, i32
  }
}

</mosaic_0001>

<llo_original>
// kernel: _rdb_pallas.1
$region0: #{_rdb_pallas.1}
  #allocation0 [shape = 'u32[]', space=smem, size = 0x4, offset = 0x4, fixed_abs, tag = 'smem constant byte address 0x4 - core index']
  #allocation1 [shape = 'u32[72,128]{1,0:T(1,128)}', space=vmem, size = 0x9000, scoped, tag = 'internal scratch']
  #allocation2 [shape = 'f32[256,145]{1,0:T(8,128)}', space=vmem, size = 0x40000, scoped, tag = 'scratch operand']
  #allocation3 [shape = 'f32[1,18,18,4]{3,2,1,0:T(8,128)}', space=vmem, size = 0x36000, scoped, tag = 'scratch operand']
  %s0 = inlined_call_operand.vmem [shape: f32[2,16,16,4], index: 0, kind: input, shape index: {}]
  %s1 = inlined_call_operand.vmem [shape: f32[4,145,4], index: 1, kind: input, shape index: {}]
  %s2 = inlined_call_operand.vmem [shape: f32[3,4], index: 2, kind: input, shape index: {}]
  %s3 = inlined_call_operand.vmem [shape: f32[2,4,256], index: 3, kind: output, shape index: {}]
  %s4 = sld [smem:[#allocation0]]
  $region45: #{_rdb_pallas.1} parent=0
    _
  %s6 = ssub.s32 1, %s4
  %s7 = scalar_select 0, %s6, %s4
  loop: start=0, step=1, limit=4
  $region2: #{_rdb_pallas.1} parent=0 // loop_pre_header
    _
  $region3: #{_rdb_pallas.1} parent=0 // loop_header
    %s9 = sphi 0, %s13
    %p10 = scmp.ge.s32.totalorder %s9, 4
    %s19 = sphi 0, %s21
    %s22 = sphi 0, %s19
    %s23 = sphi 0, %s22
    %s39 = sphi 0, %s23
    %s43 = sphi 0, %s43
    %s45 = sphi 0, %s43
    %s46 = sphi 0, %s45
    %s60 = sphi 0, %s46
    %s64 = sphi 0, %s64
    %s66 = sphi 0, %s64
    %s67 = sphi 0, %s66
    %s81 = sphi 0, %s67
    %s87 = sphi 0, %s89
    %s90 = sphi 0, %s87
    %s91 = sphi 0, %s90
    %s107 = sphi 0, %s91
  $region4: #{_rdb_pallas.1} parent=0 // loop_header_branch
    %12 = sbr.rel (%p10) target = $region8
  $region5: #{_rdb_pallas.1} parent=0 // loop_body
    %s14 = ssub.s32 %s9, 1
    %s15 = ssub.s32 %s9, 2
    %s16 = sadd.s32 %s9, 1
    %s17 = ssub.s32 %s9, %s16
    %p18 = scmp.eq.s32.totalorder %s17, 0
    %s20 = sadd.s32 %s19, 1
    %s21 = scalar_select %p18, %s19, %s20
    %p24 = pneg %p18
    %p25 = scmp.eq.s32.totalorder %s9, 1
    %p26 = por %p24, %p25
    %p27 = scmp.ne.s32.totalorder %s19, %s22
    %p28 = scmp.eq.s32.totalorder %s9, 0
    %p29 = por %p27, %p28
    %p30 = scmp.ne.s32.totalorder %s19, %s22
    %p31 = scmp.eq.s32.totalorder %s14, 1
    %p32 = por %p30, %p31
    %p33 = scmp.ne.s32.totalorder %s22, %s23
    %p34 = scmp.eq.s32.totalorder %s14, 0
    %p35 = por %p33, %p34
    %p36 = scmp.ne.s32.totalorder %s22, %s23
    %p37 = scmp.eq.s32.totalorder %s15, 1
    %p38 = por %p36, %p37
    %p40 = scmp.ne.s32.totalorder %s23, %s39
    %p41 = scmp.eq.s32.totalorder %s15, 0
    %p42 = por %p40, %p41
    %s44 = sadd.s32 %s43, 1
    %p47 = scmp.eq.s32.totalorder %s9, 1
    %p48 = scmp.ne.s32.totalorder %s43, %s45
    %p49 = scmp.eq.s32.totalorder %s9, 0
    %p50 = por %p48, %p49
    %p51 = scmp.ne.s32.totalorder %s43, %s45
    %p52 = scmp.eq.s32.totalorder %s14, 1
    %p53 = por %p51, %p52
    %p54 = scmp.ne.s32.totalorder %s45, %s46
    %p55 = scmp.eq.s32.totalorder %s14, 0
    %p56 = por %p54, %p55
    %p57 = scmp.ne.s32.totalorder %s45, %s46
    %p58 = scmp.eq.s32.totalorder %s15, 1
    %p59 = por %p57, %p58
    %p61 = scmp.ne.s32.totalorder %s46, %s60
    %p62 = scmp.eq.s32.totalorder %s15, 0
    %p63 = por %p61, %p62
    %s65 = sadd.s32 %s64, 1
    %p68 = scmp.eq.s32.totalorder %s9, 1
    %p69 = scmp.ne.s32.totalorder %s64, %s66
    %p70 = scmp.eq.s32.totalorder %s9, 0
    %p71 = por %p69, %p70
    %p72 = scmp.ne.s32.totalorder %s64, %s66
    %p73 = scmp.eq.s32.totalorder %s14, 1
    %p74 = por %p72, %p73
    %p75 = scmp.ne.s32.totalorder %s66, %s67
    %p76 = scmp.eq.s32.totalorder %s14, 0
    %p77 = por %p75, %p76
    %p78 = scmp.ne.s32.totalorder %s66, %s67
    %p79 = scmp.eq.s32.totalorder %s15, 1
    %p80 = por %p78, %p79
    %p82 = scmp.ne.s32.totalorder %s67, %s81
    %p83 = scmp.eq.s32.totalorder %s15, 0
    %p84 = por %p82, %p83
    %s85 = ssub.s32 %s9, %s16
    %p86 = scmp.eq.s32.totalorder %s85, 0
    %s88 = sadd.s32 %s87, 1
    %s89 = scalar_select %p86, %s87, %s88
    %p92 = pneg %p86
    %p93 = scmp.eq.s32.totalorder %s9, 1
    %p94 = por %p92, %p93
    %p95 = scmp.ne.s32.totalorder %s87, %s90
    %p96 = scmp.eq.s32.totalorder %s9, 0
    %p97 = por %p95, %p96
    %p98 = scmp.ne.s32.totalorder %s87, %s90
    %p99 = scmp.eq.s32.totalorder %s14, 1
    %p100 = por %p98, %p99
    %p101 = scmp.ne.s32.totalorder %s90, %s91
    %p102 = scmp.eq.s32.totalorder %s14, 0
    %p103 = por %p101, %p102
    %p104 = scmp.ne.s32.totalorder %s90, %s91
    %p105 = scmp.eq.s32.totalorder %s15, 1
    %p106 = por %p104, %p105
    %p108 = scmp.ne.s32.totalorder %s91, %s107
    %p109 = scmp.eq.s32.totalorder %s15, 0
    %p110 = por %p108, %p109
    %p111 = scmp.le.s32.totalorder 1, %s9
    %p112 = scmp.lt.s32.totalorder %s9, 3
    %p113 = pnand %p111, %p112
    %p114 = pneg %p113
    // Predicated region
    $region9: #{_rdb_pallas.1} parent=5 // pred_check
      _
    $region10: #{_rdb_pallas.1} parent=5 // pred_check_branch
      %116 = sbr.rel (%p113) target = $region12
    $region11: #{_rdb_pallas.1} parent=5 // pred_region
      %s117 = ssub.s32 %s9, 1
      // Predicated region
      $region13: #{_rdb_pallas.1} parent=11 // pred_check
        %p118 = pneg %p56
      $region14: #{_rdb_pallas.1} parent=11 // pred_check_branch
        %120 = sbr.rel (%p118) target = $region16
      $region15: #{_rdb_pallas.1} parent=11 // pred_region
        _
      $region16: #{_rdb_pallas.1} parent=11 // pred_fallthru
        _
      // Predicated region
      $region17: #{_rdb_pallas.1} parent=11 // pred_check
        %p121 = pneg %p77
      $region18: #{_rdb_pallas.1} parent=11 // pred_check_branch
        %123 = sbr.rel (%p121) target = $region20
      $region19: #{_rdb_pallas.1} parent=11 // pred_region
        _
      $region20: #{_rdb_pallas.1} parent=11 // pred_fallthru
        _
    $region12: #{_rdb_pallas.1} parent=5 // pred_fallthru
      _
    %p124 = scmp.lt.s32.totalorder %s9, 2
    // Predicated region
    $region21: #{_rdb_pallas.1} parent=5 // pred_check
      %p125 = pneg %p124
    $region22: #{_rdb_pallas.1} parent=5 // pred_check_branch
      %127 = sbr.rel (%p125) target = $region24
    $region23: #{_rdb_pallas.1} parent=5 // pred_region
      // Predicated region
      $region25: #{_rdb_pallas.1} parent=23 // pred_check
        %p128 = pneg %p29
      $region26: #{_rdb_pallas.1} parent=23 // pred_check_branch
        %130 = sbr.rel (%p128) target = $region28
      $region27: #{_rdb_pallas.1} parent=23 // pred_region
        %p131 = scmp.lt.s32.totalorder %s9, 1
        %s132 = scalar_select %p131, %s9, 1
        %s133 = smul.addr %s132, 32
        %s134 = smul.addr %s133, 8
        %s135 = scalar_lea.vmem %s0, %s134
      $region28: #{_rdb_pallas.1} parent=23 // pred_fallthru
        _
    $region24: #{_rdb_pallas.1} parent=5 // pred_fallthru
      _
    %p136 = scmp.le.s32.totalorder 1, %s9
    %p137 = scmp.lt.s32.totalorder %s9, 3
    %p138 = pnand %p136, %p137
    %p139 = pneg %p138
    // Predicated region
    $region29: #{_rdb_pallas.1} parent=5 // pred_check
      _
    $region30: #{_rdb_pallas.1} parent=5 // pred_check_branch
      %141 = sbr.rel (%p138) target = $region32
    $region31: #{_rdb_pallas.1} parent=5 // pred_region
      %s142 = ssub.s32 %s9, 1
      %p143 = scmp.lt.s32.totalorder %s14, 1
      %s144 = scalar_select %p143, %s14, 1
      %s145 = smul.addr %s144, 32
      %s146 = smul.addr %s145, 8
      %s147 = scalar_lea.vmem %s0, %s146
      %p148 = pneg %p35
      %p149 = pneg %p32
      %p150 = pneg %p56
      %p151 = pneg %p53
      %p152 = pneg %p77
      %p153 = pneg %p74
      %p154 = pneg %p103
      %p155 = pneg %p100
      %p156 = scmp.lt.s32.totalorder %s14, 1
      %s157 = scalar_select %p156, %s14, 1
      %s158 = smul.addr %s157, 2
      %s159 = smul.addr %s158, 4
      %s160 = scalar_lea.vmem %s3, %s159
      %p161 = scmp.lt.s32.totalorder %s14, 1
      %s162 = scalar_select %p161, %s14, 1
      %s163 = smul.addr %s162, 32
      %s164 = smul.addr %s163, 8
      %s165 = scalar_lea.vmem %s0, %s164
      %p166 = scmp.lt.s32.totalorder %s14, 1
      %s167 = scalar_select %p166, %s14, 1
      %s168 = smul.addr %s167, 2
      %s169 = smul.addr %s168, 4
      %s170 = scalar_lea.vmem %s3, %s169
      %vm171 = vcmask 31744
      %172 = vst.msk [vmem:[#allocation3] sm:$0xff] %vm171, 0.0
      %173 = vst.msk [vmem:[#allocation3 + $0x8] sm:$0xff] %vm171, 0.0
      %vm174 = vcmask 25600
      %175 = vst.msk [vmem:[#allocation3 + $0x10] sm:$0x3] %vm174, 0.0
      %s176 = scalar_lea.vmem [#allocation3], 408
      %177 = vst.msk [vmem:[%s176] sm:$0xff] %vm171, 0.0
      %178 = vst.msk [vmem:[%s176 + $0x8] sm:$0xff] %vm171, 0.0
      %179 = vst.msk [vmem:[%s176 + $0x10] sm:$0x3] %vm174, 0.0
      %vm180 = vcmask 24576
      %181 = vst.msk [vmem:[#allocation3] sm:$0x1] %vm180, 0.0
      %182 = vst.msk [vmem:[#allocation3 + $0x18] sm:$0x1] %vm180, 0.0
      %183 = vst.msk [vmem:[#allocation3 + $0x30] sm:$0x1] %vm180, 0.0
      %184 = vst.msk [vmem:[#allocation3 + $0x48] sm:$0x1] %vm180, 0.0
      %185 = vst.msk [vmem:[#allocation3 + $0x60] sm:$0x1] %vm180, 0.0
      %186 = vst.msk [vmem:[#allocation3 + $0x78] sm:$0x1] %vm180, 0.0
      %187 = vst.msk [vmem:[#allocation3 + $0x90] sm:$0x1] %vm180, 0.0
      %188 = vst.msk [vmem:[#allocation3 + $0xa8] sm:$0x1] %vm180, 0.0
      %189 = vst.msk [vmem:[#allocation3 + $0xc0] sm:$0x1] %vm180, 0.0
      %190 = vst.msk [vmem:[#allocation3 + $0xd8] sm:$0x1] %vm180, 0.0
      %191 = vst.msk [vmem:[#allocation3 + $0xf0] sm:$0x1] %vm180, 0.0
      %192 = vst.msk [vmem:[#allocation3 + $0x108] sm:$0x1] %vm180, 0.0
      %193 = vst.msk [vmem:[#allocation3 + $0x120] sm:$0x1] %vm180, 0.0
      %194 = vst.msk [vmem:[#allocation3 + $0x138] sm:$0x1] %vm180, 0.0
      %195 = vst.msk [vmem:[#allocation3 + $0x150] sm:$0x1] %vm180, 0.0
      %196 = vst.msk [vmem:[#allocation3 + $0x168] sm:$0x1] %vm180, 0.0
      %197 = vst.msk [vmem:[#allocation3 + $0x180] sm:$0x1] %vm180, 0.0
      %198 = vst.msk [vmem:[#allocation3 + $0x198] sm:$0x1] %vm180, 0.0
      %199 = vst.msk [vmem:[#allocation3 + $0x11] sm:$0x1] %vm180, 0.0
      %200 = vst.msk [vmem:[#allocation3 + $0x29] sm:$0x1] %vm180, 0.0
      %201 = vst.msk [vmem:[#allocation3 + $0x41] sm:$0x1] %vm180, 0.0
      %202 = vst.msk [vmem:[#allocation3 + $0x59] sm:$0x1] %vm180, 0.0
      %203 = vst.msk [vmem:[#allocation3 + $0x71] sm:$0x1] %vm180, 0.0
      %204 = vst.msk [vmem:[#allocation3 + $0x89] sm:$0x1] %vm180, 0.0
      %205 = vst.msk [vmem:[#allocation3 + $0xa1] sm:$0x1] %vm180, 0.0
      %206 = vst.msk [vmem:[#allocation3 + $0xb9] sm:$0x1] %vm180, 0.0
      %207 = vst.msk [vmem:[#allocation3 + $0xd1] sm:$0x1] %vm180, 0.0
      %208 = vst.msk [vmem:[#allocation3 + $0xe9] sm:$0x1] %vm180, 0.0
      %209 = vst.msk [vmem:[#allocation3 + $0x101] sm:$0x1] %vm180, 0.0
      %210 = vst.msk [vmem:[#allocation3 + $0x119] sm:$0x1] %vm180, 0.0
      %211 = vst.msk [vmem:[#allocation3 + $0x131] sm:$0x1] %vm180, 0.0
      %212 = vst.msk [vmem:[#allocation3 + $0x149] sm:$0x1] %vm180, 0.0
      %213 = vst.msk [vmem:[#allocation3 + $0x161] sm:$0x1] %vm180, 0.0
      %214 = vst.msk [vmem:[#allocation3 + $0x179] sm:$0x1] %vm180, 0.0
      %215 = vst.msk [vmem:[#allocation3 + $0x191] sm:$0x1] %vm180, 0.0
      %216 = vst.msk [vmem:[#allocation3 + $0x1a9] sm:$0x1] %vm180, 0.0
      %vm217 = vcmask 138368
      %218 = vst.msk [vmem:[#allocation2 + $0x8] sm:$0xff] %vm217, 1.0
      %219 = vst.msk [vmem:[#allocation2 + $0x18] sm:$0xff] %vm217, 1.0
      %220 = vst.msk [vmem:[#allocation2 + $0x28] sm:$0xff] %vm217, 1.0
      %221 = vst.msk [vmem:[#allocation2 + $0x38] sm:$0xff] %vm217, 1.0
      %222 = vst.msk [vmem:[#allocation2 + $0x48] sm:$0xff] %vm217, 1.0
      %223 = vst.msk [vmem:[#allocation2 + $0x58] sm:$0xff] %vm217, 1.0
      %224 = vst.msk [vmem:[#allocation2 + $0x68] sm:$0xff] %vm217, 1.0
      %225 = vst.msk [vmem:[#allocation2 + $0x78] sm:$0xff] %vm217, 1.0
      %226 = vst.msk [vmem:[#allocation2 + $0x88] sm:$0xff] %vm217, 1.0
      %227 = vst.msk [vmem:[#allocation2 + $0x98] sm:$0xff] %vm217, 1.0
      %228 = vst.msk [vmem:[#allocation2 + $0xa8] sm:$0xff] %vm217, 1.0
      %229 = vst.msk [vmem:[#allocation2 + $0xb8] sm:$0xff] %vm217, 1.0
      %230 = vst.msk [vmem:[#allocation2 + $0xc8] sm:$0xff] %vm217, 1.0
      %231 = vst.msk [vmem:[#allocation2 + $0xd8] sm:$0xff] %vm217, 1.0
      %232 = vst.msk [vmem:[#allocation2 + $0xe8] sm:$0xff] %vm217, 1.0
      %233 = vst.msk [vmem:[#allocation2 + $0xf8] sm:$0xff] %vm217, 1.0
      %234 = vst.msk [vmem:[#allocation2 + $0x108] sm:$0xff] %vm217, 1.0
      %235 = vst.msk [vmem:[#allocation2 + $0x118] sm:$0xff] %vm217, 1.0
      %236 = vst.msk [vmem:[#allocation2 + $0x128] sm:$0xff] %vm217, 1.0
      %237 = vst.msk [vmem:[#allocation2 + $0x138] sm:$0xff] %vm217, 1.0
      %238 = vst.msk [vmem:[#allocation2 + $0x148] sm:$0xff] %vm217, 1.0
      %239 = vst.msk [vmem:[#allocation2 + $0x158] sm:$0xff] %vm217, 1.0
      %240 = vst.msk [vmem:[#allocation2 + $0x168] sm:$0xff] %vm217, 1.0
      %241 = vst.msk [vmem:[#allocation2 + $0x178] sm:$0xff] %vm217, 1.0
      %242 = vst.msk [vmem:[#allocation2 + $0x188] sm:$0xff] %vm217, 1.0
      %243 = vst.msk [vmem:[#allocation2 + $0x198] sm:$0xff] %vm217, 1.0
      %244 = vst.msk [vmem:[#allocation2 + $0x1a8] sm:$0xff] %vm217, 1.0
      %245 = vst.msk [vmem:[#allocation2 + $0x1b8] sm:$0xff] %vm217, 1.0
      %246 = vst.msk [vmem:[#allocation2 + $0x1c8] sm:$0xff] %vm217, 1.0
      %247 = vst.msk [vmem:[#allocation2 + $0x1d8] sm:$0xff] %vm217, 1.0
      %248 = vst.msk [vmem:[#allocation2 + $0x1e8] sm:$0xff] %vm217, 1.0
      %249 = vst.msk [vmem:[#allocation2 + $0x1f8] sm:$0xff] %vm217, 1.0
      %v250 = vld [vmem:[%s165] sm:$0xff]
      %v251 = vld [vmem:[%s165 + $0x8] sm:$0xff]
      %v252 = vld [vmem:[%s165 + $0x10] sm:$0xff]
      %v253 = vld [vmem:[%s165 + $0x18] sm:$0xff]
      %v254 = vld [vmem:[%s165 + $0x20] sm:$0xff]
      %v255 = vld [vmem:[%s165 + $0x28] sm:$0xff]
      %v256 = vld [vmem:[%s165 + $0x30] sm:$0xff]
      %v257 = vld [vmem:[%s165 + $0x38] sm:$0xff]
      %v258 = vld [vmem:[%s165 + $0x40] sm:$0xff]
      %v259 = vld [vmem:[%s165 + $0x48] sm:$0xff]
      %v260 = vld [vmem:[%s165 + $0x50] sm:$0xff]
      %v261 = vld [vmem:[%s165 + $0x58] sm:$0xff]
      %v262 = vld [vmem:[%s165 + $0x60] sm:$0xff]
      %v263 = vld [vmem:[%s165 + $0x68] sm:$0xff]
      %v264 = vld [vmem:[%s165 + $0x70] sm:$0xff]
      %v265 = vld [vmem:[%s165 + $0x78] sm:$0xff]
      %v266 = vld [vmem:[%s165 + $0x80] sm:$0xff]
      %v267 = vld [vmem:[%s165 + $0x88] sm:$0xff]
      %v268 = vld [vmem:[%s165 + $0x90] sm:$0xff]
      %v269 = vld [vmem:[%s165 + $0x98] sm:$0xff]
      %v270 = vld [vmem:[%s165 + $0xa0] sm:$0xff]
      %v271 = vld [vmem:[%s165 + $0xa8] sm:$0xff]
      %v272 = vld [vmem:[%s165 + $0xb0] sm:$0xff]
      %v273 = vld [vmem:[%s165 + $0xb8] sm:$0xff]
      %v274 = vld [vmem:[%s165 + $0xc0] sm:$0xff]
      %v275 = vld [vmem:[%s165 + $0xc8] sm:$0xff]
      %v276 = vld [vmem:[%s165 + $0xd0] sm:$0xff]
      %v277 = vld [vmem:[%s165 + $0xd8] sm:$0xff]
      %v278 = vld [vmem:[%s165 + $0xe0] sm:$0xff]
      %v279 = vld [vmem:[%s165 + $0xe8] sm:$0xff]
      %v280 = vld [vmem:[%s165 + $0xf0] sm:$0xff]
      %v281 = vld [vmem:[%s165 + $0xf8] sm:$0xff]
      %s282 = scalar_lea.vmem [#allocation3], 24
      %283 = vst.msk [vmem:[%s282 + $0x1] sm:$0xff] %vm171, %v250
      %284 = vst.msk [vmem:[%s282 + $0x9] sm:$0xff] %vm171, %v251
      %285 = vst.msk [vmem:[%s282 + $0x19] sm:$0xff] %vm171, %v252
      %286 = vst.msk [vmem:[%s282 + $0x21] sm:$0xff] %vm171, %v253
      %287 = vst.msk [vmem:[%s282 + $0x31] sm:$0xff] %vm171, %v254
      %288 = vst.msk [vmem:[%s282 + $0x39] sm:$0xff] %vm171, %v255
      %289 = vst.msk [vmem:[%s282 + $0x49] sm:$0xff] %vm171, %v256
      %290 = vst.msk [vmem:[%s282 + $0x51] sm:$0xff] %vm171, %v257
      %291 = vst.msk [vmem:[%s282 + $0x61] sm:$0xff] %vm171, %v258
      %292 = vst.msk [vmem:[%s282 + $0x69] sm:$0xff] %vm171, %v259
      %293 = vst.msk [vmem:[%s282 + $0x79] sm:$0xff] %vm171, %v260
      %294 = vst.msk [vmem:[%s282 + $0x81] sm:$0xff] %vm171, %v261
      %295 = vst.msk [vmem:[%s282 + $0x91] sm:$0xff] %vm171, %v262
      %296 = vst.msk [vmem:[%s282 + $0x99] sm:$0xff] %vm171, %v263
      %297 = vst.msk [vmem:[%s282 + $0xa9] sm:$0xff] %vm171, %v264
      %298 = vst.msk [vmem:[%s282 + $0xb1] sm:$0xff] %vm171, %v265
      %299 = vst.msk [vmem:[%s282 + $0xc1] sm:$0xff] %vm171, %v266
      %300 = vst.msk [vmem:[%s282 + $0xc9] sm:$0xff] %vm171, %v267
      %301 = vst.msk [vmem:[%s282 + $0xd9] sm:$0xff] %vm171, %v268
      %302 = vst.msk [vmem:[%s282 + $0xe1] sm:$0xff] %vm171, %v269
      %303 = vst.msk [vmem:[%s282 + $0xf1] sm:$0xff] %vm171, %v270
      %304 = vst.msk [vmem:[%s282 + $0xf9] sm:$0xff] %vm171, %v271
      %305 = vst.msk [vmem:[%s282 + $0x109] sm:$0xff] %vm171, %v272
      %306 = vst.msk [vmem:[%s282 + $0x111] sm:$0xff] %vm171, %v273
      %307 = vst.msk [vmem:[%s282 + $0x121] sm:$0xff] %vm171, %v274
      %308 = vst.msk [vmem:[%s282 + $0x129] sm:$0xff] %vm171, %v275
      %309 = vst.msk [vmem:[%s282 + $0x139] sm:$0xff] %vm171, %v276
      %310 = vst.msk [vmem:[%s282 + $0x141] sm:$0xff] %vm171, %v277
      %311 = vst.msk [vmem:[%s282 + $0x151] sm:$0xff] %vm171, %v278
      %312 = vst.msk [vmem:[%s282 + $0x159] sm:$0xff] %vm171, %v279
      %313 = vst.msk [vmem:[%s282 + $0x169] sm:$0xff] %vm171, %v280
      %314 = vst.msk [vmem:[%s282 + $0x171] sm:$0xff] %vm171, %v281
      %v315 = vld [vmem:[#allocation3] sm:$0xff]
      %v316 = vld [vmem:[#allocation3 + $0x8] sm:$0xff]
      %v317 = vld [vmem:[#allocation3 + $0x18] sm:$0xff]
      %v318 = vld [vmem:[#allocation3 + $0x20] sm:$0xff]
      %v319 = vld [vmem:[#allocation3 + $0x30] sm:$0xff]
      %v320 = vld [vmem:[#allocation3 + $0x38] sm:$0xff]
      %v321 = vld [vmem:[#allocation3 + $0x48] sm:$0xff]
      %v322 = vld [vmem:[#allocation3 + $0x50] sm:$0xff]
      %v323 = vld [vmem:[#allocation3 + $0x60] sm:$0xff]
      %v324 = vld [vmem:[#allocation3 + $0x68] sm:$0xff]
      %v325 = vld [vmem:[#allocation3 + $0x78] sm:$0xff]
      %v326 = vld [vmem:[#allocation3 + $0x80] sm:$0xff]
      %v327 = vld [vmem:[#allocation3 + $0x90] sm:$0xff]
      %v328 = vld [vmem:[#allocation3 + $0x98] sm:$0xff]
      %v329 = vld [vmem:[#allocation3 + $0xa8] sm:$0xff]
      %v330 = vld [vmem:[#allocation3 + $0xb0] sm:$0xff]
      %v331 = vld [vmem:[#allocation3 + $0xc0] sm:$0xff]
      %v332 = vld [vmem:[#allocation3 + $0xc8] sm:$0xff]
      %v333 = vld [vmem:[#allocation3 + $0xd8] sm:$0xff]
      %v334 = vld [vmem:[#allocation3 + $0xe0] sm:$0xff]
      %v335 = vld [vmem:[#allocation3 + $0xf0] sm:$0xff]
      %v336 = vld [vmem:[#allocation3 + $0xf8] sm:$0xff]
      %v337 = vld [vmem:[#allocation3 + $0x108] sm:$0xff]
      %v338 = vld [vmem:[#allocation3 + $0x110] sm:$0xff]
      %v339 = vld [vmem:[#allocation3 + $0x120] sm:$0xff]
      %v340 = vld [vmem:[#allocation3 + $0x128] sm:$0xff]
      %v341 = vld [vmem:[#allocation3 + $0x138] sm:$0xff]
      %v342 = vld [vmem:[#allocation3 + $0x140] sm:$0xff]
      %v343 = vld [vmem:[#allocation3 + $0x150] sm:$0xff]
      %v344 = vld [vmem:[#allocation3 + $0x158] sm:$0xff]
      %v345 = vld [vmem:[#allocation3 + $0x168] sm:$0xff]
      %v346 = vld [vmem:[#allocation3 + $0x170] sm:$0xff]
      %347 = vst.msk [vmem:[#allocation2] sm:$0xff] %vm171, %v315
      %348 = vst.msk [vmem:[#allocation2 + $0x10] sm:$0xff] %vm171, %v316
      %349 = vst.msk [vmem:[#allocation2 + $0x20] sm:$0xff] %vm171, %v317
      %350 = vst.msk [vmem:[#allocation2 + $0x30] sm:$0xff] %vm171, %v318
      %351 = vst.msk [vmem:[#allocation2 + $0x40] sm:$0xff] %vm171, %v319
      %352 = vst.msk [vmem:[#allocation2 + $0x50] sm:$0xff] %vm171, %v320
      %353 = vst.msk [vmem:[#allocation2 + $0x60] sm:$0xff] %vm171, %v321
      %354 = vst.msk [vmem:[#allocation2 + $0x70] sm:$0xff] %vm171, %v322
      %355 = vst.msk [vmem:[#allocation2 + $0x80] sm:$0xff] %vm171, %v323
      %356 = vst.msk [vmem:[#allocation2 + $0x90] sm:$0xff] %vm171, %v324
      %357 = vst.msk [vmem:[#allocation2 + $0xa0] sm:$0xff] %vm171, %v325
      %358 = vst.msk [vmem:[#allocation2 + $0xb0] sm:$0xff] %vm171, %v326
      %359 = vst.msk [vmem:[#allocation2 + $0xc0] sm:$0xff] %vm171, %v327
      %360 = vst.msk [vmem:[#allocation2 + $0xd0] sm:$0xff] %vm171, %v328
      %361 = vst.msk [vmem:[#allocation2 + $0xe0] sm:$0xff] %vm171, %v329
      %362 = vst.msk [vmem:[#allocation2 + $0xf0] sm:$0xff] %vm171, %v330
      %363 = vst.msk [vmem:[#allocation2 + $0x100] sm:$0xff] %vm171, %v331
      %364 = vst.msk [vmem:[#allocation2 + $0x110] sm:$0xff] %vm171, %v332
      %365 = vst.msk [vmem:[#allocation2 + $0x120] sm:$0xff] %vm171, %v333
      %366 = vst.msk [vmem:[#allocation2 + $0x130] sm:$0xff] %vm171, %v334
      %367 = vst.msk [vmem:[#allocation2 + $0x140] sm:$0xff] %vm171, %v335
      %368 = vst.msk [vmem:[#allocation2 + $0x150] sm:$0xff] %vm171, %v336
      %369 = vst.msk [vmem:[#allocation2 + $0x160] sm:$0xff] %vm171, %v337
      %370 = vst.msk [vmem:[#allocation2 + $0x170] sm:$0xff] %vm171, %v338
      %371 = vst.msk [vmem:[#allocation2 + $0x180] sm:$0xff] %vm171, %v339
      %372 = vst.msk [vmem:[#allocation2 + $0x190] sm:$0xff] %vm171, %v340
      %373 = vst.msk [vmem:[#allocation2 + $0x1a0] sm:$0xff] %vm171, %v341
      %374 = vst.msk [vmem:[#allocation2 + $0x1b0] sm:$0xff] %vm171, %v342
      %375 = vst.msk [vmem:[#allocation2 + $0x1c0] sm:$0xff] %vm171, %v343
      %376 = vst.msk [vmem:[#allocation2 + $0x1d0] sm:$0xff] %vm171, %v344
      %377 = vst.msk [vmem:[#allocation2 + $0x1e0] sm:$0xff] %vm171, %v345
      %378 = vst.msk [vmem:[#allocation2 + $0x1f0] sm:$0xff] %vm171, %v346
      %v379 = vld [vmem:[#allocation3 + $0x1] sm:$0xff]
      %v380 = vld [vmem:[#allocation3 + $0x9] sm:$0xff]
      %v381 = vld [vmem:[#allocation3 + $0x19] sm:$0xff]
      %v382 = vld [vmem:[#allocation3 + $0x21] sm:$0xff]
      %v383 = vld [vmem:[#allocation3 + $0x31] sm:$0xff]
      %v384 = vld [vmem:[#allocation3 + $0x39] sm:$0xff]
      %v385 = vld [vmem:[#allocation3 + $0x49] sm:$0xff]
      %v386 = vld [vmem:[#allocation3 + $0x51] sm:$0xff]
      %v387 = vld [vmem:[#allocation3 + $0x61] sm:$0xff]
      %v388 = vld [vmem:[#allocation3 + $0x69] sm:$0xff]
      %v389 = vld [vmem:[#allocation3 + $0x79] sm:$0xff]
      %v390 = vld [vmem:[#allocation3 + $0x81] sm:$0xff]
      %v391 = vld [vmem:[#allocation3 + $0x91] sm:$0xff]
      %v392 = vld [vmem:[#allocation3 + $0x99] sm:$0xff]
      %v393 = vld [vmem:[#allocation3 + $0xa9] sm:$0xff]
      %v394 = vld [vmem:[#allocation3 + $0xb1] sm:$0xff]
      %v395 = vld [vmem:[#allocation3 + $0xc1] sm:$0xff]
      %v396 = vld [vmem:[#allocation3 + $0xc9] sm:$0xff]
      %v397 = vld [vmem:[#allocation3 + $0xd9] sm:$0xff]
      %v398 = vld [vmem:[#allocation3 + $0xe1] sm:$0xff]
      %v399 = vld [vmem:[#allocation3 + $0xf1] sm:$0xff]
      %v400 = vld [vmem:[#allocation3 + $0xf9] sm:$0xff]
      %v401 = vld [vmem:[#allocation3 + $0x109] sm:$0xff]
      %v402 = vld [vmem:[#allocation3 + $0x111] sm:$0xff]
      %v403 = vld [vmem:[#allocation3 + $0x121] sm:$0xff]
      %v404 = vld [vmem:[#allocation3 + $0x129] sm:$0xff]
      %v405 = vld [vmem:[#allocation3 + $0x139] sm:$0xff]
      %v406 = vld [vmem:[#allocation3 + $0x141] sm:$0xff]
      %v407 = vld [vmem:[#allocation3 + $0x151] sm:$0xff]
      %v408 = vld [vmem:[#allocation3 + $0x159] sm:$0xff]
      %v409 = vld [vmem:[#allocation3 + $0x169] sm:$0xff]
      %v410 = vld [vmem:[#allocation3 + $0x171] sm:$0xff]
      %443 = vrot.lane.b32.xlu0 %v379, 4
      %v444 = vpop.permute.xlu0 %443
      %445 = vrot.lane.b32.xlu0 %v380, 4
      %v446 = vpop.permute.xlu0 %445
      %447 = vrot.lane.b32.xlu0 %v381, 4
      %v448 = vpop.permute.xlu0 %447
      %449 = vrot.lane.b32.xlu0 %v382, 4
      %v450 = vpop.permute.xlu0 %449
      %451 = vrot.lane.b32.xlu0 %v383, 4
      %v452 = vpop.permute.xlu0 %451
      %453 = vrot.lane.b32.xlu0 %v384, 4
      %v454 = vpop.permute.xlu0 %453
      %455 = vrot.lane.b32.xlu0 %v385, 4
      %v456 = vpop.permute.xlu0 %455
      %457 = vrot.lane.b32.xlu0 %v386, 4
      %v458 = vpop.permute.xlu0 %457
      %459 = vrot.lane.b32.xlu0 %v387, 4
      %v460 = vpop.permute.xlu0 %459
      %461 = vrot.lane.b32.xlu0 %v388, 4
      %v462 = vpop.permute.xlu0 %461
      %463 = vrot.lane.b32.xlu0 %v389, 4
      %v464 = vpop.permute.xlu0 %463
      %465 = vrot.lane.b32.xlu0 %v390, 4
      %v466 = vpop.permute.xlu0 %465
      %467 = vrot.lane.b32.xlu0 %v391, 4
      %v468 = vpop.permute.xlu0 %467
      %469 = vrot.lane.b32.xlu0 %v392, 4
      %v470 = vpop.permute.xlu0 %469
      %471 = vrot.lane.b32.xlu0 %v393, 4
      %v472 = vpop.permute.xlu0 %471
      %473 = vrot.lane.b32.xlu0 %v394, 4
      %v474 = vpop.permute.xlu0 %473
      %475 = vrot.lane.b32.xlu0 %v395, 4
      %v476 = vpop.permute.xlu0 %475
      %477 = vrot.lane.b32.xlu0 %v396, 4
      %v478 = vpop.permute.xlu0 %477
      %479 = vrot.lane.b32.xlu0 %v397, 4
      %v480 = vpop.permute.xlu0 %479
      %481 = vrot.lane.b32.xlu0 %v398, 4
      %v482 = vpop.permute.xlu0 %481
      %483 = vrot.lane.b32.xlu0 %v399, 4
      %v484 = vpop.permute.xlu0 %483
      %485 = vrot.lane.b32.xlu0 %v400, 4
      %v486 = vpop.permute.xlu0 %485
      %487 = vrot.lane.b32.xlu0 %v401, 4
      %v488 = vpop.permute.xlu0 %487
      %489 = vrot.lane.b32.xlu0 %v402, 4
      %v490 = vpop.permute.xlu0 %489
      %491 = vrot.lane.b32.xlu0 %v403, 4
      %v492 = vpop.permute.xlu0 %491
      %493 = vrot.lane.b32.xlu0 %v404, 4
      %v494 = vpop.permute.xlu0 %493
      %495 = vrot.lane.b32.xlu0 %v405, 4
      %v496 = vpop.permute.xlu0 %495
      %497 = vrot.lane.b32.xlu0 %v406, 4
      %v498 = vpop.permute.xlu0 %497
      %499 = vrot.lane.b32.xlu0 %v407, 4
      %v500 = vpop.permute.xlu0 %499
      %501 = vrot.lane.b32.xlu0 %v408, 4
      %v502 = vpop.permute.xlu0 %501
      %503 = vrot.lane.b32.xlu0 %v409, 4
      %v504 = vpop.permute.xlu0 %503
      %505 = vrot.lane.b32.xlu0 %v410, 4
      %v506 = vpop.permute.xlu0 %505
      %vm539 = vcmask 64544
      %540 = vst.msk [vmem:[#allocation2] sm:$0xff] %vm539, %v444
      %541 = vst.msk [vmem:[#allocation2 + $0x10] sm:$0xff] %vm539, %v446
      %542 = vst.msk [vmem:[#allocation2 + $0x20] sm:$0xff] %vm539, %v448
      %543 = vst.msk [vmem:[#allocation2 + $0x30] sm:$0xff] %vm539, %v450
      %544 = vst.msk [vmem:[#allocation2 + $0x40] sm:$0xff] %vm539, %v452
      %545 = vst.msk [vmem:[#allocation2 + $0x50] sm:$0xff] %vm539, %v454
      %546 = vst.msk [vmem:[#allocation2 + $0x60] sm:$0xff] %vm539, %v456
      %547 = vst.msk [vmem:[#allocation2 + $0x70] sm:$0xff] %vm539, %v458
      %548 = vst.msk [vmem:[#allocation2 + $0x80] sm:$0xff] %vm539, %v460
      %549 = vst.msk [vmem:[#allocation2 + $0x90] sm:$0xff] %vm539, %v462
      %550 = vst.msk [vmem:[#allocation2 + $0xa0] sm:$0xff] %vm539, %v464
      %551 = vst.msk [vmem:[#allocation2 + $0xb0] sm:$0xff] %vm539, %v466
      %552 = vst.msk [vmem:[#allocation2 + $0xc0] sm:$0xff] %vm539, %v468
      %553 = vst.msk [vmem:[#allocation2 + $0xd0] sm:$0xff] %vm539, %v470
      %554 = vst.msk [vmem:[#allocation2 + $0xe0] sm:$0xff] %vm539, %v472
      %555 = vst.msk [vmem:[#allocation2 + $0xf0] sm:$0xff] %vm539, %v474
      %556 = vst.msk [vmem:[#allocation2 + $0x100] sm:$0xff] %vm539, %v476
      %557 = vst.msk [vmem:[#allocation2 + $0x110] sm:$0xff] %vm539, %v478
      %558 = vst.msk [vmem:[#allocation2 + $0x120] sm:$0xff] %vm539, %v480
      %559 = vst.msk [vmem:[#allocation2 + $0x130] sm:$0xff] %vm539, %v482
      %560 = vst.msk [vmem:[#allocation2 + $0x140] sm:$0xff] %vm539, %v484
      %561 = vst.msk [vmem:[#allocation2 + $0x150] sm:$0xff] %vm539, %v486
      %562 = vst.msk [vmem:[#allocation2 + $0x160] sm:$0xff] %vm539, %v488
      %563 = vst.msk [vmem:[#allocation2 + $0x170] sm:$0xff] %vm539, %v490
      %564 = vst.msk [vmem:[#allocation2 + $0x180] sm:$0xff] %vm539, %v492
      %565 = vst.msk [vmem:[#allocation2 + $0x190] sm:$0xff] %vm539, %v494
      %566 = vst.msk [vmem:[#allocation2 + $0x1a0] sm:$0xff] %vm539, %v496
      %567 = vst.msk [vmem:[#allocation2 + $0x1b0] sm:$0xff] %vm539, %v498
      %568 = vst.msk [vmem:[#allocation2 + $0x1c0] sm:$0xff] %vm539, %v500
      %569 = vst.msk [vmem:[#allocation2 + $0x1d0] sm:$0xff] %vm539, %v502
      %570 = vst.msk [vmem:[#allocation2 + $0x1e0] sm:$0xff] %vm539, %v504
      %571 = vst.msk [vmem:[#allocation2 + $0x1f0] sm:$0xff] %vm539, %v506
      %v572 = vld [vmem:[#allocation3 + $0x2] sm:$0xff]
      %v573 = vld [vmem:[#allocation3 + $0xa] sm:$0xff]
      %v574 = vld [vmem:[#allocation3 + $0x1a] sm:$0xff]
      %v575 = vld [vmem:[#allocation3 + $0x22] sm:$0xff]
      %v576 = vld [vmem:[#allocation3 + $0x32] sm:$0xff]
      %v577 = vld [vmem:[#allocation3 + $0x3a] sm:$0xff]
      %v578 = vld [vmem:[#allocation3 + $0x4a] sm:$0xff]
      %v579 = vld [vmem:[#allocation3 + $0x52] sm:$0xff]
      %v580 = vld [vmem:[#allocation3 + $0x62] sm:$0xff]
      %v581 = vld [vmem:[#allocation3 + $0x6a] sm:$0xff]
      %v582 = vld [vmem:[#allocation3 + $0x7a] sm:$0xff]
      %v583 = vld [vmem:[#allocation3 + $0x82] sm:$0xff]
      %v584 = vld [vmem:[#allocation3 + $0x92] sm:$0xff]
      %v585 = vld [vmem:[#allocation3 + $0x9a] sm:$0xff]
      %v586 = vld [vmem:[#allocation3 + $0xaa] sm:$0xff]
      %v587 = vld [vmem:[#allocation3 + $0xb2] sm:$0xff]
      %v588 = vld [vmem:[#allocation3 + $0xc2] sm:$0xff]
      %v589 = vld [vmem:[#allocation3 + $0xca] sm:$0xff]
      %v590 = vld [vmem:[#allocation3 + $0xda] sm:$0xff]
      %v591 = vld [vmem:[#allocation3 + $0xe2] sm:$0xff]
      %v592 = vld [vmem:[#allocation3 + $0xf2] sm:$0xff]
      %v593 = vld [vmem:[#allocation3 + $0xfa] sm:$0xff]
      %v594 = vld [vmem:[#allocation3 + $0x10a] sm:$0xff]
      %v595 = vld [vmem:[#allocation3 + $0x112] sm:$0xff]
      %v596 = vld [vmem:[#allocation3 + $0x122] sm:$0xff]
      %v597 = vld [vmem:[#allocation3 + $0x12a] sm:$0xff]
      %v598 = vld [vmem:[#allocation3 + $0x13a] sm:$0xff]
      %v599 = vld [vmem:[#allocation3 + $0x142] sm:$0xff]
      %v600 = vld [vmem:[#allocation3 + $0x152] sm:$0xff]
      %v601 = vld [vmem:[#allocation3 + $0x15a] sm:$0xff]
      %v602 = vld [vmem:[#allocation3 + $0x16a] sm:$0xff]
      %v603 = vld [vmem:[#allocation3 + $0x172] sm:$0xff]
      %636 = vrot.lane.b32.xlu0 %v572, 8
      %v637 = vpop.permute.xlu0 %636
      %638 = vrot.lane.b32.xlu0 %v573, 8
      %v639 = vpop.permute.xlu0 %638
      %640 = vrot.lane.b32.xlu0 %v574, 8
      %v641 = vpop.permute.xlu0 %640
      %642 = vrot.lane.b32.xlu0 %v575, 8
      %v643 = vpop.permute.xlu0 %642
      %644 = vrot.lane.b32.xlu0 %v576, 8
      %v645 = vpop.permute.xlu0 %644
      %646 = vrot.lane.b32.xlu0 %v577, 8
      %v647 = vpop.permute.xlu0 %646
      %648 = vrot.lane.b32.xlu0 %v578, 8
      %v649 = vpop.permute.xlu0 %648
      %650 = vrot.lane.b32.xlu0 %v579, 8
      %v651 = vpop.permute.xlu0 %650
      %652 = vrot.lane.b32.xlu0 %v580, 8
      %v653 = vpop.permute.xlu0 %652
      %654 = vrot.lane.b32.xlu0 %v581, 8
      %v655 = vpop.permute.xlu0 %654
      %656 = vrot.lane.b32.xlu0 %v582, 8
      %v657 = vpop.permute.xlu0 %656
      %658 = vrot.lane.b32.xlu0 %v583, 8
      %v659 = vpop.permute.xlu0 %658
      %660 = vrot.lane.b32.xlu0 %v584, 8
      %v661 = vpop.permute.xlu0 %660
      %662 = vrot.lane.b32.xlu0 %v585, 8
      %v663 = vpop.permute.xlu0 %662
      %664 = vrot.lane.b32.xlu0 %v586, 8
      %v665 = vpop.permute.xlu0 %664
      %666 = vrot.lane.b32.xlu0 %v587, 8
      %v667 = vpop.permute.xlu0 %666
      %668 = vrot.lane.b32.xlu0 %v588, 8
      %v669 = vpop.permute.xlu0 %668
      %670 = vrot.lane.b32.xlu0 %v589, 8
      %v671 = vpop.permute.xlu0 %670
      %672 = vrot.lane.b32.xlu0 %v590, 8
      %v673 = vpop.permute.xlu0 %672
      %674 = vrot.lane.b32.xlu0 %v591, 8
      %v675 = vpop.permute.xlu0 %674
      %676 = vrot.lane.b32.xlu0 %v592, 8
      %v677 = vpop.permute.xlu0 %676
      %678 = vrot.lane.b32.xlu0 %v593, 8
      %v679 = vpop.permute.xlu0 %678
      %680 = vrot.lane.b32.xlu0 %v594, 8
      %v681 = vpop.permute.xlu0 %680
      %682 = vrot.lane.b32.xlu0 %v595, 8
      %v683 = vpop.permute.xlu0 %682
      %684 = vrot.lane.b32.xlu0 %v596, 8
      %v685 = vpop.permute.xlu0 %684
      %686 = vrot.lane.b32.xlu0 %v597, 8
      %v687 = vpop.permute.xlu0 %686
      %688 = vrot.lane.b32.xlu0 %v598, 8
      %v689 = vpop.permute.xlu0 %688
      %690 = vrot.lane.b32.xlu0 %v599, 8
      %v691 = vpop.permute.xlu0 %690
      %692 = vrot.lane.b32.xlu0 %v600, 8
      %v693 = vpop.permute.xlu0 %692
      %694 = vrot.lane.b32.xlu0 %v601, 8
      %v695 = vpop.permute.xlu0 %694
      %696 = vrot.lane.b32.xlu0 %v602, 8
      %v697 = vpop.permute.xlu0 %696
      %698 = vrot.lane.b32.xlu0 %v603, 8
      %v699 = vpop.permute.xlu0 %698
      %vm732 = vcmask 97344
      %733 = vst.msk [vmem:[#allocation2] sm:$0xff] %vm732, %v637
      %734 = vst.msk [vmem:[#allocation2 + $0x10] sm:$0xff] %vm732, %v639
      %735 = vst.msk [vmem:[#allocation2 + $0x20] sm:$0xff] %vm732, %v641
      %736 = vst.msk [vmem:[#allocation2 + $0x30] sm:$0xff] %vm732, %v643
      %737 = vst.msk [vmem:[#allocation2 + $0x40] sm:$0xff] %vm732, %v645
      %738 = vst.msk [vmem:[#allocation2 + $0x50] sm:$0xff] %vm732, %v647
      %739 = vst.msk [vmem:[#allocation2 + $0x60] sm:$0xff] %vm732, %v649
      %740 = vst.msk [vmem:[#allocation2 + $0x70] sm:$0xff] %vm732, %v651
      %741 = vst.msk [vmem:[#allocation2 + $0x80] sm:$0xff] %vm732, %v653
      %742 = vst.msk [vmem:[#allocation2 + $0x90] sm:$0xff] %vm732, %v655
      %743 = vst.msk [vmem:[#allocation2 + $0xa0] sm:$0xff] %vm732, %v657
      %744 = vst.msk [vmem:[#allocation2 + $0xb0] sm:$0xff] %vm732, %v659
      %745 = vst.msk [vmem:[#allocation2 + $0xc0] sm:$0xff] %vm732, %v661
      %746 = vst.msk [vmem:[#allocation2 + $0xd0] sm:$0xff] %vm732, %v663
      %747 = vst.msk [vmem:[#allocation2 + $0xe0] sm:$0xff] %vm732, %v665
      %748 = vst.msk [vmem:[#allocation2 + $0xf0] sm:$0xff] %vm732, %v667
      %749 = vst.msk [vmem:[#allocation2 + $0x100] sm:$0xff] %vm732, %v669
      %750 = vst.msk [vmem:[#allocation2 + $0x110] sm:$0xff] %vm732, %v671
      %751 = vst.msk [vmem:[#allocation2 + $0x120] sm:$0xff] %vm732, %v673
      %752 = vst.msk [vmem:[#allocation2 + $0x130] sm:$0xff] %vm732, %v675
      %753 = vst.msk [vmem:[#allocation2 + $0x140] sm:$0xff] %vm732, %v677
      %754 = vst.msk [vmem:[#allocation2 + $0x150] sm:$0xff] %vm732, %v679
      %755 = vst.msk [vmem:[#allocation2 + $0x160] sm:$0xff] %vm732, %v681
      %756 = vst.msk [vmem:[#allocation2 + $0x170] sm:$0xff] %vm732, %v683
      %757 = vst.msk [vmem:[#allocation2 + $0x180] sm:$0xff] %vm732, %v685
      %758 = vst.msk [vmem:[#allocation2 + $0x190] sm:$0xff] %vm732, %v687
      %759 = vst.msk [vmem:[#allocation2 + $0x1a0] sm:$0xff] %vm732, %v689
      %760 = vst.msk [vmem:[#allocation2 + $0x1b0] sm:$0xff] %vm732, %v691
      %761 = vst.msk [vmem:[#allocation2 + $0x1c0] sm:$0xff] %vm732, %v693
      %762 = vst.msk [vmem:[#allocation2 + $0x1d0] sm:$0xff] %vm732, %v695
      %763 = vst.msk [vmem:[#allocation2 + $0x1e0] sm:$0xff] %vm732, %v697
      %764 = vst.msk [vmem:[#allocation2 + $0x1f0] sm:$0xff] %vm732, %v699
      %v765 = vld [vmem:[%s282] sm:$0xff]
      %v766 = vld [vmem:[%s282 + $0x8] sm:$0xff]
      %v767 = vld [vmem:[%s282 + $0x18] sm:$0xff]
      %v768 = vld [vmem:[%s282 + $0x20] sm:$0xff]
      %v769 = vld [vmem:[%s282 + $0x30] sm:$0xff]
      %v770 = vld [vmem:[%s282 + $0x38] sm:$0xff]
      %v771 = vld [vmem:[%s282 + $0x48] sm:$0xff]
      %v772 = vld [vmem:[%s282 + $0x50] sm:$0xff]
      %v773 = vld [vmem:[%s282 + $0x60] sm:$0xff]
      %v774 = vld [vmem:[%s282 + $0x68] sm:$0xff]
      %v775 = vld [vmem:[%s282 + $0x78] sm:$0xff]
      %v776 = vld [vmem:[%s282 + $0x80] sm:$0xff]
      %v777 = vld [vmem:[%s282 + $0x90] sm:$0xff]
      %v778 = vld [vmem:[%s282 + $0x98] sm:$0xff]
      %v779 = vld [vmem:[%s282 + $0xa8] sm:$0xff]
      %v780 = vld [vmem:[%s282 + $0xb0] sm:$0xff]
      %v781 = vld [vmem:[%s282 + $0xc0] sm:$0xff]
      %v782 = vld [vmem:[%s282 + $0xc8] sm:$0xff]
      %v783 = vld [vmem:[%s282 + $0xd8] sm:$0xff]
      %v784 = vld [vmem:[%s282 + $0xe0] sm:$0xff]
      %v785 = vld [vmem:[%s282 + $0xf0] sm:$0xff]
      %v786 = vld [vmem:[%s282 + $0xf8] sm:$0xff]
      %v787 = vld [vmem:[%s282 + $0x108] sm:$0xff]
      %v788 = vld [vmem:[%s282 + $0x110] sm:$0xff]
      %v789 = vld [vmem:[%s282 + $0x120] sm:$0xff]
      %v790 = vld [vmem:[%s282 + $0x128] sm:$0xff]
      %v791 = vld [vmem:[%s282 + $0x138] sm:$0xff]
      %v792 = vld [vmem:[%s282 + $0x140] sm:$0xff]
      %v793 = vld [vmem:[%s282 + $0x150] sm:$0xff]
      %v794 = vld [vmem:[%s282 + $0x158] sm:$0xff]
      %v795 = vld [vmem:[%s282 + $0x168] sm:$0xff]
      %v796 = vld [vmem:[%s282 + $0x170] sm:$0xff]
      %829 = vrot.lane.b32.xlu0 %v765, 12
      %v830 = vpop.permute.xlu0 %829
      %831 = vrot.lane.b32.xlu0 %v766, 12
      %v832 = vpop.permute.xlu0 %831
      %833 = vrot.lane.b32.xlu0 %v767, 12
      %v834 = vpop.permute.xlu0 %833
      %835 = vrot.lane.b32.xlu0 %v768, 12
      %v836 = vpop.permute.xlu0 %835
      %837 = vrot.lane.b32.xlu0 %v769, 12
      %v838 = vpop.permute.xlu0 %837
      %839 = vrot.lane.b32.xlu0 %v770, 12
      %v840 = vpop.permute.xlu0 %839
      %841 = vrot.lane.b32.xlu0 %v771, 12
      %v842 = vpop.permute.xlu0 %841
      %843 = vrot.lane.b32.xlu0 %v772, 12
      %v844 = vpop.permute.xlu0 %843
      %845 = vrot.lane.b32.xlu0 %v773, 12
      %v846 = vpop.permute.xlu0 %845
      %847 = vrot.lane.b32.xlu0 %v774, 12
      %v848 = vpop.permute.xlu0 %847
      %849 = vrot.lane.b32.xlu0 %v775, 12
      %v850 = vpop.permute.xlu0 %849
      %851 = vrot.lane.b32.xlu0 %v776, 12
      %v852 = vpop.permute.xlu0 %851
      %853 = vrot.lane.b32.xlu0 %v777, 12
      %v854 = vpop.permute.xlu0 %853
      %855 = vrot.lane.b32.xlu0 %v778, 12
      %v856 = vpop.permute.xlu0 %855
      %857 = vrot.lane.b32.xlu0 %v779, 12
      %v858 = vpop.permute.xlu0 %857
      %859 = vrot.lane.b32.xlu0 %v780, 12
      %v860 = vpop.permute.xlu0 %859
      %861 = vrot.lane.b32.xlu0 %v781, 12
      %v862 = vpop.permute.xlu0 %861
      %863 = vrot.lane.b32.xlu0 %v782, 12
      %v864 = vpop.permute.xlu0 %863
      %865 = vrot.lane.b32.xlu0 %v783, 12
      %v866 = vpop.permute.xlu0 %865
      %867 = vrot.lane.b32.xlu0 %v784, 12
      %v868 = vpop.permute.xlu0 %867
      %869 = vrot.lane.b32.xlu0 %v785, 12
      %v870 = vpop.permute.xlu0 %869
      %871 = vrot.lane.b32.xlu0 %v786, 12
      %v872 = vpop.permute.xlu0 %871
      %873 = vrot.lane.b32.xlu0 %v787, 12
      %v874 = vpop.permute.xlu0 %873
      %875 = vrot.lane.b32.xlu0 %v788, 12
      %v876 = vpop.permute.xlu0 %875
      %877 = vrot.lane.b32.xlu0 %v789, 12
      %v878 = vpop.permute.xlu0 %877
      %879 = vrot.lane.b32.xlu0 %v790, 12
      %v880 = vpop.permute.xlu0 %879
      %881 = vrot.lane.b32.xlu0 %v791, 12
      %v882 = vpop.permute.xlu0 %881
      %883 = vrot.lane.b32.xlu0 %v792, 12
      %v884 = vpop.permute.xlu0 %883
      %885 = vrot.lane.b32.xlu0 %v793, 12
      %v886 = vpop.permute.xlu0 %885
      %887 = vrot.lane.b32.xlu0 %v794, 12
      %v888 = vpop.permute.xlu0 %887
      %889 = vrot.lane.b32.xlu0 %v795, 12
      %v890 = vpop.permute.xlu0 %889
      %891 = vrot.lane.b32.xlu0 %v796, 12
      %v892 = vpop.permute.xlu0 %891
      %vm925 = vcmask 130144
      %926 = vst.msk [vmem:[#allocation2] sm:$0xff] %vm925, %v830
      %927 = vst.msk [vmem:[#allocation2 + $0x10] sm:$0xff] %vm925, %v832
      %928 = vst.msk [vmem:[#allocation2 + $0x20] sm:$0xff] %vm925, %v834
      %929 = vst.msk [vmem:[#allocation2 + $0x30] sm:$0xff] %vm925, %v836
      %930 = vst.msk [vmem:[#allocation2 + $0x40] sm:$0xff] %vm925, %v838
      %931 = vst.msk [vmem:[#allocation2 + $0x50] sm:$0xff] %vm925, %v840
      %932 = vst.msk [vmem:[#allocation2 + $0x60] sm:$0xff] %vm925, %v842
      %933 = vst.msk [vmem:[#allocation2 + $0x70] sm:$0xff] %vm925, %v844
      %934 = vst.msk [vmem:[#allocation2 + $0x80] sm:$0xff] %vm925, %v846
      %935 = vst.msk [vmem:[#allocation2 + $0x90] sm:$0xff] %vm925, %v848
      %936 = vst.msk [vmem:[#allocation2 + $0xa0] sm:$0xff] %vm925, %v850
      %937 = vst.msk [vmem:[#allocation2 + $0xb0] sm:$0xff] %vm925, %v852
      %938 = vst.msk [vmem:[#allocation2 + $0xc0] sm:$0xff] %vm925, %v854
      %939 = vst.msk [vmem:[#allocation2 + $0xd0] sm:$0xff] %vm925, %v856
      %940 = vst.msk [vmem:[#allocation2 + $0xe0] sm:$0xff] %vm925, %v858
      %941 = vst.msk [vmem:[#allocation2 + $0xf0] sm:$0xff] %vm925, %v860
      %942 = vst.msk [vmem:[#allocation2 + $0x100] sm:$0xff] %vm925, %v862
      %943 = vst.msk [vmem:[#allocation2 + $0x110] sm:$0xff] %vm925, %v864
      %944 = vst.msk [vmem:[#allocation2 + $0x120] sm:$0xff] %vm925, %v866
      %945 = vst.msk [vmem:[#allocation2 + $0x130] sm:$0xff] %vm925, %v868
      %946 = vst.msk [vmem:[#allocation2 + $0x140] sm:$0xff] %vm925, %v870
      %947 = vst.msk [vmem:[#allocation2 + $0x150] sm:$0xff] %vm925, %v872
      %948 = vst.msk [vmem:[#allocation2 + $0x160] sm:$0xff] %vm925, %v874
      %949 = vst.msk [vmem:[#allocation2 + $0x170] sm:$0xff] %vm925, %v876
      %950 = vst.msk [vmem:[#allocation2 + $0x180] sm:$0xff] %vm925, %v878
      %951 = vst.msk [vmem:[#allocation2 + $0x190] sm:$0xff] %vm925, %v880
      %952 = vst.msk [vmem:[#allocation2 + $0x1a0] sm:$0xff] %vm925, %v882
      %953 = vst.msk [vmem:[#allocation2 + $0x1b0] sm:$0xff] %vm925, %v884
      %954 = vst.msk [vmem:[#allocation2 + $0x1c0] sm:$0xff] %vm925, %v886
      %955 = vst.msk [vmem:[#allocation2 + $0x1d0] sm:$0xff] %vm925, %v888
      %956 = vst.msk [vmem:[#allocation2 + $0x1e0] sm:$0xff] %vm925, %v890
      %957 = vst.msk [vmem:[#allocation2 + $0x1f0] sm:$0xff] %vm925, %v892
      %v958 = vld [vmem:[%s282 + $0x1] sm:$0xff]
      %v959 = vld [vmem:[%s282 + $0x9] sm:$0xff]
      %v960 = vld [vmem:[%s282 + $0x19] sm:$0xff]
      %v961 = vld [vmem:[%s282 + $0x21] sm:$0xff]
      %v962 = vld [vmem:[%s282 + $0x31] sm:$0xff]
      %v963 = vld [vmem:[%s282 + $0x39] sm:$0xff]
      %v964 = vld [vmem:[%s282 + $0x49] sm:$0xff]
      %v965 = vld [vmem:[%s282 + $0x51] sm:$0xff]
      %v966 = vld [vmem:[%s282 + $0x61] sm:$0xff]
      %v967 = vld [vmem:[%s282 + $0x69] sm:$0xff]
      %v968 = vld [vmem:[%s282 + $0x79] sm:$0xff]
      %v969 = vld [vmem:[%s282 + $0x81] sm:$0xff]
      %v970 = vld [vmem:[%s282 + $0x91] sm:$0xff]
      %v971 = vld [vmem:[%s282 + $0x99] sm:$0xff]
      %v972 = vld [vmem:[%s282 + $0xa9] sm:$0xff]
      %v973 = vld [vmem:[%s282 + $0xb1] sm:$0xff]
      %v974 = vld [vmem:[%s282 + $0xc1] sm:$0xff]
      %v975 = vld [vmem:[%s282 + $0xc9] sm:$0xff]
      %v976 = vld [vmem:[%s282 + $0xd9] sm:$0xff]
      %v977 = vld [vmem:[%s282 + $0xe1] sm:$0xff]
      %v978 = vld [vmem:[%s282 + $0xf1] sm:$0xff]
      %v979 = vld [vmem:[%s282 + $0xf9] sm:$0xff]
      %v980 = vld [vmem:[%s282 + $0x109] sm:$0xff]
      %v981 = vld [vmem:[%s282 + $0x111] sm:$0xff]
      %v982 = vld [vmem:[%s282 + $0x121] sm:$0xff]
      %v983 = vld [vmem:[%s282 + $0x129] sm:$0xff]
      %v984 = vld [vmem:[%s282 + $0x139] sm:$0xff]
      %v985 = vld [vmem:[%s282 + $0x141] sm:$0xff]
      %v986 = vld [vmem:[%s282 + $0x151] sm:$0xff]
      %v987 = vld [vmem:[%s282 + $0x159] sm:$0xff]
      %v988 = vld [vmem:[%s282 + $0x169] sm:$0xff]
      %v989 = vld [vmem:[%s282 + $0x171] sm:$0xff]
      %1022 = vrot.lane.b32.xlu0 %v958, 16
      %v1023 = vpop.permute.xlu0 %1022
      %1024 = vrot.lane.b32.xlu0 %v959, 16
      %v1025 = vpop.permute.xlu0 %1024
      %1026 = vrot.lane.b32.xlu0 %v960, 16
      %v1027 = vpop.permute.xlu0 %1026
      %1028 = vrot.lane.b32.xlu0 %v961, 16
      %v1029 = vpop.permute.xlu0 %1028
      %1030 = vrot.lane.b32.xlu0 %v962, 16
      %v1031 = vpop.permute.xlu0 %1030
      %1032 = vrot.lane.b32.xlu0 %v963, 16
      %v1033 = vpop.permute.xlu0 %1032
      %1034 = vrot.lane.b32.xlu0 %v964, 16
      %v1035 = vpop.permute.xlu0 %1034
      %1036 = vrot.lane.b32.xlu0 %v965, 16
      %v1037 = vpop.permute.xlu0 %1036
      %1038 = vrot.lane.b32.xlu0 %v966, 16
      %v1039 = vpop.permute.xlu0 %1038
      %1040 = vrot.lane.b32.xlu0 %v967, 16
      %v1041 = vpop.permute.xlu0 %1040
      %1042 = vrot.lane.b32.xlu0 %v968, 16
      %v1043 = vpop.permute.xlu0 %1042
      %1044 = vrot.lane.b32.xlu0 %v969, 16
      %v1045 = vpop.permute.xlu0 %1044
      %1046 = vrot.lane.b32.xlu0 %v970, 16
      %v1047 = vpop.permute.xlu0 %1046
      %1048 = vrot.lane.b32.xlu0 %v971, 16
      %v1049 = vpop.permute.xlu0 %1048
      %1050 = vrot.lane.b32.xlu0 %v972, 16
      %v1051 = vpop.permute.xlu0 %1050
      %1052 = vrot.lane.b32.xlu0 %v973, 16
      %v1053 = vpop.permute.xlu0 %1052
      %1054 = vrot.lane.b32.xlu0 %v974, 16
      %v1055 = vpop.permute.xlu0 %1054
      %1056 = vrot.lane.b32.xlu0 %v975, 16
      %v1057 = vpop.permute.xlu0 %1056
      %1058 = vrot.lane.b32.xlu0 %v976, 16
      %v1059 = vpop.permute.xlu0 %1058
      %1060 = vrot.lane.b32.xlu0 %v977, 16
      %v1061 = vpop.permute.xlu0 %1060
      %1062 = vrot.lane.b32.xlu0 %v978, 16
      %v1063 = vpop.permute.xlu0 %1062
      %1064 = vrot.lane.b32.xlu0 %v979, 16
      %v1065 = vpop.permute.xlu0 %1064
      %1066 = vrot.lane.b32.xlu0 %v980, 16
      %v1067 = vpop.permute.xlu0 %1066
      %1068 = vrot.lane.b32.xlu0 %v981, 16
      %v1069 = vpop.permute.xlu0 %1068
      %1070 = vrot.lane.b32.xlu0 %v982, 16
      %v1071 = vpop.permute.xlu0 %1070
      %1072 = vrot.lane.b32.xlu0 %v983, 16
      %v1073 = vpop.permute.xlu0 %1072
      %1074 = vrot.lane.b32.xlu0 %v984, 16
      %v1075 = vpop.permute.xlu0 %1074
      %1076 = vrot.lane.b32.xlu0 %v985, 16
      %v1077 = vpop.permute.xlu0 %1076
      %1078 = vrot.lane.b32.xlu0 %v986, 16
      %v1079 = vpop.permute.xlu0 %1078
      %1080 = vrot.lane.b32.xlu0 %v987, 16
      %v1081 = vpop.permute.xlu0 %1080
      %1082 = vrot.lane.b32.xlu0 %v988, 16
      %v1083 = vpop.permute.xlu0 %1082
      %1084 = vrot.lane.b32.xlu0 %v989, 16
      %v1085 = vpop.permute.xlu0 %1084
      %vm1118 = vcmask 162944
      %1119 = vst.msk [vmem:[#allocation2] sm:$0xff] %vm1118, %v1023
      %1120 = vst.msk [vmem:[#allocation2 + $0x10] sm:$0xff] %vm1118, %v1025
      %1121 = vst.msk [vmem:[#allocation2 + $0x20] sm:$0xff] %vm1118, %v1027
      %1122 = vst.msk [vmem:[#allocation2 + $0x30] sm:$0xff] %vm1118, %v1029
      %1123 = vst.msk [vmem:[#allocation2 + $0x40] sm:$0xff] %vm1118, %v1031
      %1124 = vst.msk [vmem:[#allocation2 + $0x50] sm:$0xff] %vm1118, %v1033
      %1125 = vst.msk [vmem:[#allocation2 + $0x60] sm:$0xff] %vm1118, %v1035
      %1126 = vst.msk [vmem:[#allocation2 + $0x70] sm:$0xff] %vm1118, %v1037
      %1127 = vst.msk [vmem:[#allocation2 + $0x80] sm:$0xff] %vm1118, %v1039
      %1128 = vst.msk [vmem:[#allocation2 + $0x90] sm:$0xff] %vm1118, %v1041
      %1129 = vst.msk [vmem:[#allocation2 + $0xa0] sm:$0xff] %vm1118, %v1043
      %1130 = vst.msk [vmem:[#allocation2 + $0xb0] sm:$0xff] %vm1118, %v1045
      %1131 = vst.msk [vmem:[#allocation2 + $0xc0] sm:$0xff] %vm1118, %v1047
      %1132 = vst.msk [vmem:[#allocation2 + $0xd0] sm:$0xff] %vm1118, %v1049
      %1133 = vst.msk [vmem:[#allocation2 + $0xe0] sm:$0xff] %vm1118, %v1051
      %1134 = vst.msk [vmem:[#allocation2 + $0xf0] sm:$0xff] %vm1118, %v1053
      %1135 = vst.msk [vmem:[#allocation2 + $0x100] sm:$0xff] %vm1118, %v1055
      %1136 = vst.msk [vmem:[#allocation2 + $0x110] sm:$0xff] %vm1118, %v1057
      %1137 = vst.msk [vmem:[#allocation2 + $0x120] sm:$0xff] %vm1118, %v1059
      %1138 = vst.msk [vmem:[#allocation2 + $0x130] sm:$0xff] %vm1118, %v1061
      %1139 = vst.msk [vmem:[#allocation2 + $0x140] sm:$0xff] %vm1118, %v1063
      %1140 = vst.msk [vmem:[#allocation2 + $0x150] sm:$0xff] %vm1118, %v1065
      %1141 = vst.msk [vmem:[#allocation2 + $0x160] sm:$0xff] %vm1118, %v1067
      %1142 = vst.msk [vmem:[#allocation2 + $0x170] sm:$0xff] %vm1118, %v1069
      %1143 = vst.msk [vmem:[#allocation2 + $0x180] sm:$0xff] %vm1118, %v1071
      %1144 = vst.msk [vmem:[#allocation2 + $0x190] sm:$0xff] %vm1118, %v1073
      %1145 = vst.msk [vmem:[#allocation2 + $0x1a0] sm:$0xff] %vm1118, %v1075
      %1146 = vst.msk [vmem:[#allocation2 + $0x1b0] sm:$0xff] %vm1118, %v1077
      %1147 = vst.msk [vmem:[#allocation2 + $0x1c0] sm:$0xff] %vm1118, %v1079
      %1148 = vst.msk [vmem:[#allocation2 + $0x1d0] sm:$0xff] %vm1118, %v1081
      %1149 = vst.msk [vmem:[#allocation2 + $0x1e0] sm:$0xff] %vm1118, %v1083
      %1150 = vst.msk [vmem:[#allocation2 + $0x1f0] sm:$0xff] %vm1118, %v1085
      %v1151 = vld [vmem:[%s282 + $0x2] sm:$0xff]
      %v1152 = vld [vmem:[%s282 + $0xa] sm:$0xff]
      %v1153 = vld [vmem:[%s282 + $0x1a] sm:$0xff]
      %v1154 = vld [vmem:[%s282 + $0x22] sm:$0xff]
      %v1155 = vld [vmem:[%s282 + $0x32] sm:$0xff]
      %v1156 = vld [vmem:[%s282 + $0x3a] sm:$0xff]
      %v1157 = vld [vmem:[%s282 + $0x4a] sm:$0xff]
      %v1158 = vld [vmem:[%s282 + $0x52] sm:$0xff]
      %v1159 = vld [vmem:[%s282 + $0x62] sm:$0xff]
      %v1160 = vld [vmem:[%s282 + $0x6a] sm:$0xff]
      %v1161 = vld [vmem:[%s282 + $0x7a] sm:$0xff]
      %v1162 = vld [vmem:[%s282 + $0x82] sm:$0xff]
      %v1163 = vld [vmem:[%s282 + $0x92] sm:$0xff]
      %v1164 = vld [vmem:[%s282 + $0x9a] sm:$0xff]
      %v1165 = vld [vmem:[%s282 + $0xaa] sm:$0xff]
      %v1166 = vld [vmem:[%s282 + $0xb2] sm:$0xff]
      %v1167 = vld [vmem:[%s282 + $0xc2] sm:$0xff]
      %v1168 = vld [vmem:[%s282 + $0xca] sm:$0xff]
      %v1169 = vld [vmem:[%s282 + $0xda] sm:$0xff]
      %v1170 = vld [vmem:[%s282 + $0xe2] sm:$0xff]
      %v1171 = vld [vmem:[%s282 + $0xf2] sm:$0xff]
      %v1172 = vld [vmem:[%s282 + $0xfa] sm:$0xff]
      %v1173 = vld [vmem:[%s282 + $0x10a] sm:$0xff]
      %v1174 = vld [vmem:[%s282 + $0x112] sm:$0xff]
      %v1175 = vld [vmem:[%s282 + $0x122] sm:$0xff]
      %v1176 = vld [vmem:[%s282 + $0x12a] sm:$0xff]
      %v1177 = vld [vmem:[%s282 + $0x13a] sm:$0xff]
      %v1178 = vld [vmem:[%s282 + $0x142] sm:$0xff]
      %v1179 = vld [vmem:[%s282 + $0x152] sm:$0xff]
      %v1180 = vld [vmem:[%s282 + $0x15a] sm:$0xff]
      %v1181 = vld [vmem:[%s282 + $0x16a] sm:$0xff]
      %v1182 = vld [vmem:[%s282 + $0x172] sm:$0xff]
      %1215 = vrot.lane.b32.xlu0 %v1151, 20
      %v1216 = vpop.permute.xlu0 %1215
      %1217 = vrot.lane.b32.xlu0 %v1152, 20
      %v1218 = vpop.permute.xlu0 %1217
      %1219 = vrot.lane.b32.xlu0 %v1153, 20
      %v1220 = vpop.permute.xlu0 %1219
      %1221 = vrot.lane.b32.xlu0 %v1154, 20
      %v1222 = vpop.permute.xlu0 %1221
      %1223 = vrot.lane.b32.xlu0 %v1155, 20
      %v1224 = vpop.permute.xlu0 %1223
      %1225 = vrot.lane.b32.xlu0 %v1156, 20
      %v1226 = vpop.permute.xlu0 %1225
      %1227 = vrot.lane.b32.xlu0 %v1157, 20
      %v1228 = vpop.permute.xlu0 %1227
      %1229 = vrot.lane.b32.xlu0 %v1158, 20
      %v1230 = vpop.permute.xlu0 %1229
      %1231 = vrot.lane.b32.xlu0 %v1159, 20
      %v1232 = vpop.permute.xlu0 %1231
      %1233 = vrot.lane.b32.xlu0 %v1160, 20
      %v1234 = vpop.permute.xlu0 %1233
      %1235 = vrot.lane.b32.xlu0 %v1161, 20
      %v1236 = vpop.permute.xlu0 %1235
      %1237 = vrot.lane.b32.xlu0 %v1162, 20
      %v1238 = vpop.permute.xlu0 %1237
      %1239 = vrot.lane.b32.xlu0 %v1163, 20
      %v1240 = vpop.permute.xlu0 %1239
      %1241 = vrot.lane.b32.xlu0 %v1164, 20
      %v1242 = vpop.permute.xlu0 %1241
      %1243 = vrot.lane.b32.xlu0 %v1165, 20
      %v1244 = vpop.permute.xlu0 %1243
      %1245 = vrot.lane.b32.xlu0 %v1166, 20
      %v1246 = vpop.permute.xlu0 %1245
      %1247 = vrot.lane.b32.xlu0 %v1167, 20
      %v1248 = vpop.permute.xlu0 %1247
      %1249 = vrot.lane.b32.xlu0 %v1168, 20
      %v1250 = vpop.permute.xlu0 %1249
      %1251 = vrot.lane.b32.xlu0 %v1169, 20
      %v1252 = vpop.permute.xlu0 %1251
      %1253 = vrot.lane.b32.xlu0 %v1170, 20
      %v1254 = vpop.permute.xlu0 %1253
      %1255 = vrot.lane.b32.xlu0 %v1171, 20
      %v1256 = vpop.permute.xlu0 %1255
      %1257 = vrot.lane.b32.xlu0 %v1172, 20
      %v1258 = vpop.permute.xlu0 %1257
      %1259 = vrot.lane.b32.xlu0 %v1173, 20
      %v1260 = vpop.permute.xlu0 %1259
      %1261 = vrot.lane.b32.xlu0 %v1174, 20
      %v1262 = vpop.permute.xlu0 %1261
      %1263 = vrot.lane.b32.xlu0 %v1175, 20
      %v1264 = vpop.permute.xlu0 %1263
      %1265 = vrot.lane.b32.xlu0 %v1176, 20
      %v1266 = vpop.permute.xlu0 %1265
      %1267 = vrot.lane.b32.xlu0 %v1177, 20
      %v1268 = vpop.permute.xlu0 %1267
      %1269 = vrot.lane.b32.xlu0 %v1178, 20
      %v1270 = vpop.permute.xlu0 %1269
      %1271 = vrot.lane.b32.xlu0 %v1179, 20
      %v1272 = vpop.permute.xlu0 %1271
      %1273 = vrot.lane.b32.xlu0 %v1180, 20
      %v1274 = vpop.permute.xlu0 %1273
      %1275 = vrot.lane.b32.xlu0 %v1181, 20
      %v1276 = vpop.permute.xlu0 %1275
      %1277 = vrot.lane.b32.xlu0 %v1182, 20
      %v1278 = vpop.permute.xlu0 %1277
      %vm1311 = vcmask 195744
      %1312 = vst.msk [vmem:[#allocation2] sm:$0xff] %vm1311, %v1216
      %1313 = vst.msk [vmem:[#allocation2 + $0x10] sm:$0xff] %vm1311, %v1218
      %1314 = vst.msk [vmem:[#allocation2 + $0x20] sm:$0xff] %vm1311, %v1220
      %1315 = vst.msk [vmem:[#allocation2 + $0x30] sm:$0xff] %vm1311, %v1222
      %1316 = vst.msk [vmem:[#allocation2 + $0x40] sm:$0xff] %vm1311, %v1224
      %1317 = vst.msk [vmem:[#allocation2 + $0x50] sm:$0xff] %vm1311, %v1226
      %1318 = vst.msk [vmem:[#allocation2 + $0x60] sm:$0xff] %vm1311, %v1228
      %1319 = vst.msk [vmem:[#allocation2 + $0x70] sm:$0xff] %vm1311, %v1230
      %1320 = vst.msk [vmem:[#allocation2 + $0x80] sm:$0xff] %vm1311, %v1232
      %1321 = vst.msk [vmem:[#allocation2 + $0x90] sm:$0xff] %vm1311, %v1234
      %1322 = vst.msk [vmem:[#allocation2 + $0xa0] sm:$0xff] %vm1311, %v1236
      %1323 = vst.msk [vmem:[#allocation2 + $0xb0] sm:$0xff] %vm1311, %v1238
      %1324 = vst.msk [vmem:[#allocation2 + $0xc0] sm:$0xff] %vm1311, %v1240
      %1325 = vst.msk [vmem:[#allocation2 + $0xd0] sm:$0xff] %vm1311, %v1242
      %1326 = vst.msk [vmem:[#allocation2 + $0xe0] sm:$0xff] %vm1311, %v1244
      %1327 = vst.msk [vmem:[#allocation2 + $0xf0] sm:$0xff] %vm1311, %v1246
      %1328 = vst.msk [vmem:[#allocation2 + $0x100] sm:$0xff] %vm1311, %v1248
      %1329 = vst.msk [vmem:[#allocation2 + $0x110] sm:$0xff] %vm1311, %v1250
      %1330 = vst.msk [vmem:[#allocation2 + $0x120] sm:$0xff] %vm1311, %v1252
      %1331 = vst.msk [vmem:[#allocation2 + $0x130] sm:$0xff] %vm1311, %v1254
      %1332 = vst.msk [vmem:[#allocation2 + $0x140] sm:$0xff] %vm1311, %v1256
      %1333 = vst.msk [vmem:[#allocation2 + $0x150] sm:$0xff] %vm1311, %v1258
      %1334 = vst.msk [vmem:[#allocation2 + $0x160] sm:$0xff] %vm1311, %v1260
      %1335 = vst.msk [vmem:[#allocation2 + $0x170] sm:$0xff] %vm1311, %v1262
      %1336 = vst.msk [vmem:[#allocation2 + $0x180] sm:$0xff] %vm1311, %v1264
      %1337 = vst.msk [vmem:[#allocation2 + $0x190] sm:$0xff] %vm1311, %v1266
      %1338 = vst.msk [vmem:[#allocation2 + $0x1a0] sm:$0xff] %vm1311, %v1268
      %1339 = vst.msk [vmem:[#allocation2 + $0x1b0] sm:$0xff] %vm1311, %v1270
      %1340 = vst.msk [vmem:[#allocation2 + $0x1c0] sm:$0xff] %vm1311, %v1272
      %1341 = vst.msk [vmem:[#allocation2 + $0x1d0] sm:$0xff] %vm1311, %v1274
      %1342 = vst.msk [vmem:[#allocation2 + $0x1e0] sm:$0xff] %vm1311, %v1276
      %1343 = vst.msk [vmem:[#allocation2 + $0x1f0] sm:$0xff] %vm1311, %v1278
      %s1344 = scalar_lea.vmem [#allocation3], 48
      %v1345 = vld [vmem:[%s1344] sm:$0xff]
      %v1346 = vld [vmem:[%s1344 + $0x8] sm:$0xff]
      %v1347 = vld [vmem:[%s1344 + $0x18] sm:$0xff]
      %v1348 = vld [vmem:[%s1344 + $0x20] sm:$0xff]
      %v1349 = vld [vmem:[%s1344 + $0x30] sm:$0xff]
      %v1350 = vld [vmem:[%s1344 + $0x38] sm:$0xff]
      %v1351 = vld [vmem:[%s1344 + $0x48] sm:$0xff]
      %v1352 = vld [vmem:[%s1344 + $0x50] sm:$0xff]
      %v1353 = vld [vmem:[%s1344 + $0x60] sm:$0xff]
      %v1354 = vld [vmem:[%s1344 + $0x68] sm:$0xff]
      %v1355 = vld [vmem:[%s1344 + $0x78] sm:$0xff]
      %v1356 = vld [vmem:[%s1344 + $0x80] sm:$0xff]
      %v1357 = vld [vmem:[%s1344 + $0x90] sm:$0xff]
      %v1358 = vld [vmem:[%s1344 + $0x98] sm:$0xff]
      %v1359 = vld [vmem:[%s1344 + $0xa8] sm:$0xff]
      %v1360 = vld [vmem:[%s1344 + $0xb0] sm:$0xff]
      %v1361 = vld [vmem:[%s1344 + $0xc0] sm:$0xff]
      %v1362 = vld [vmem:[%s1344 + $0xc8] sm:$0xff]
      %v1363 = vld [vmem:[%s1344 + $0xd8] sm:$0xff]
      %v1364 = vld [vmem:[%s1344 + $0xe0] sm:$0xff]
      %v1365 = vld [vmem:[%s1344 + $0xf0] sm:$0xff]
      %v1366 = vld [vmem:[%s1344 + $0xf8] sm:$0xff]
      %v1367 = vld [vmem:[%s1344 + $0x108] sm:$0xff]
      %v1368 = vld [vmem:[%s1344 + $0x110] sm:$0xff]
      %v1369 = vld [vmem:[%s1344 + $0x120] sm:$0xff]
      %v1370 = vld [vmem:[%s1344 + $0x128] sm:$0xff]
      %v1371 = vld [vmem:[%s1344 + $0x138] sm:$0xff]
      %v1372 = vld [vmem:[%s1344 + $0x140] sm:$0xff]
      %v1373 = vld [vmem:[%s1344 + $0x150] sm:$0xff]
      %v1374 = vld [vmem:[%s1344 + $0x158] sm:$0xff]
      %v1375 = vld [vmem:[%s1344 + $0x168] sm:$0xff]
      %v1376 = vld [vmem:[%s1344 + $0x170] sm:$0xff]
      %1409 = vrot.lane.b32.xlu0 %v1345, 24
      %v1410 = vpop.permute.xlu0 %1409
      %1411 = vrot.lane.b32.xlu0 %v1346, 24
      %v1412 = vpop.permute.xlu0 %1411
      %1413 = vrot.lane.b32.xlu0 %v1347, 24
      %v1414 = vpop.permute.xlu0 %1413
      %1415 = vrot.lane.b32.xlu0 %v1348, 24
      %v1416 = vpop.permute.xlu0 %1415
      %1417 = vrot.lane.b32.xlu0 %v1349, 24
      %v1418 = vpop.permute.xlu0 %1417
      %1419 = vrot.lane.b32.xlu0 %v1350, 24
      %v1420 = vpop.permute.xlu0 %1419
      %1421 = vrot.lane.b32.xlu0 %v1351, 24
      %v1422 = vpop.permute.xlu0 %1421
      %1423 = vrot.lane.b32.xlu0 %v1352, 24
      %v1424 = vpop.permute.xlu0 %1423
      %1425 = vrot.lane.b32.xlu0 %v1353, 24
      %v1426 = vpop.permute.xlu0 %1425
      %1427 = vrot.lane.b32.xlu0 %v1354, 24
      %v1428 = vpop.permute.xlu0 %1427
      %1429 = vrot.lane.b32.xlu0 %v1355, 24
      %v1430 = vpop.permute.xlu0 %1429
      %1431 = vrot.lane.b32.xlu0 %v1356, 24
      %v1432 = vpop.permute.xlu0 %1431
      %1433 = vrot.lane.b32.xlu0 %v1357, 24
      %v1434 = vpop.permute.xlu0 %1433
      %1435 = vrot.lane.b32.xlu0 %v1358, 24
      %v1436 = vpop.permute.xlu0 %1435
      %1437 = vrot.lane.b32.xlu0 %v1359, 24
      %v1438 = vpop.permute.xlu0 %1437
      %1439 = vrot.lane.b32.xlu0 %v1360, 24
      %v1440 = vpop.permute.xlu0 %1439
      %1441 = vrot.lane.b32.xlu0 %v1361, 24
      %v1442 = vpop.permute.xlu0 %1441
      %1443 = vrot.lane.b32.xlu0 %v1362, 24
      %v1444 = vpop.permute.xlu0 %1443
      %1445 = vrot.lane.b32.xlu0 %v1363, 24
      %v1446 = vpop.permute.xlu0 %1445
      %1447 = vrot.lane.b32.xlu0 %v1364, 24
      %v1448 = vpop.permute.xlu0 %1447
      %1449 = vrot.lane.b32.xlu0 %v1365, 24
      %v1450 = vpop.permute.xlu0 %1449
      %1451 = vrot.lane.b32.xlu0 %v1366, 24
      %v1452 = vpop.permute.xlu0 %1451
      %1453 = vrot.lane.b32.xlu0 %v1367, 24
      %v1454 = vpop.permute.xlu0 %1453
      %1455 = vrot.lane.b32.xlu0 %v1368, 24
      %v1456 = vpop.permute.xlu0 %1455
      %1457 = vrot.lane.b32.xlu0 %v1369, 24
      %v1458 = vpop.permute.xlu0 %1457
      %1459 = vrot.lane.b32.xlu0 %v1370, 24
      %v1460 = vpop.permute.xlu0 %1459
      %1461 = vrot.lane.b32.xlu0 %v1371, 24
      %v1462 = vpop.permute.xlu0 %1461
      %1463 = vrot.lane.b32.xlu0 %v1372, 24
      %v1464 = vpop.permute.xlu0 %1463
      %1465 = vrot.lane.b32.xlu0 %v1373, 24
      %v1466 = vpop.permute.xlu0 %1465
      %1467 = vrot.lane.b32.xlu0 %v1374, 24
      %v1468 = vpop.permute.xlu0 %1467
      %1469 = vrot.lane.b32.xlu0 %v1375, 24
      %v1470 = vpop.permute.xlu0 %1469
      %1471 = vrot.lane.b32.xlu0 %v1376, 24
      %v1472 = vpop.permute.xlu0 %1471
      %vm1505 = vcmask 228544
      %1506 = vst.msk [vmem:[#allocation2] sm:$0xff] %vm1505, %v1410
      %1507 = vst.msk [vmem:[#allocation2 + $0x10] sm:$0xff] %vm1505, %v1412
      %1508 = vst.msk [vmem:[#allocation2 + $0x20] sm:$0xff] %vm1505, %v1414
      %1509 = vst.msk [vmem:[#allocation2 + $0x30] sm:$0xff] %vm1505, %v1416
      %1510 = vst.msk [vmem:[#allocation2 + $0x40] sm:$0xff] %vm1505, %v1418
      %1511 = vst.msk [vmem:[#allocation2 + $0x50] sm:$0xff] %vm1505, %v1420
      %1512 = vst.msk [vmem:[#allocation2 + $0x60] sm:$0xff] %vm1505, %v1422
      %1513 = vst.msk [vmem:[#allocation2 + $0x70] sm:$0xff] %vm1505, %v1424
      %1514 = vst.msk [vmem:[#allocation2 + $0x80] sm:$0xff] %vm1505, %v1426
      %1515 = vst.msk [vmem:[#allocation2 + $0x90] sm:$0xff] %vm1505, %v1428
      %1516 = vst.msk [vmem:[#allocation2 + $0xa0] sm:$0xff] %vm1505, %v1430
      %1517 = vst.msk [vmem:[#allocation2 + $0xb0] sm:$0xff] %vm1505, %v1432
      %1518 = vst.msk [vmem:[#allocation2 + $0xc0] sm:$0xff] %vm1505, %v1434
      %1519 = vst.msk [vmem:[#allocation2 + $0xd0] sm:$0xff] %vm1505, %v1436
      %1520 = vst.msk [vmem:[#allocation2 + $0xe0] sm:$0xff] %vm1505, %v1438
      %1521 = vst.msk [vmem:[#allocation2 + $0xf0] sm:$0xff] %vm1505, %v1440
      %1522 = vst.msk [vmem:[#allocation2 + $0x100] sm:$0xff] %vm1505, %v1442
      %1523 = vst.msk [vmem:[#allocation2 + $0x110] sm:$0xff] %vm1505, %v1444
      %1524 = vst.msk [vmem:[#allocation2 + $0x120] sm:$0xff] %vm1505, %v1446
      %1525 = vst.msk [vmem:[#allocation2 + $0x130] sm:$0xff] %vm1505, %v1448
      %1526 = vst.msk [vmem:[#allocation2 + $0x140] sm:$0xff] %vm1505, %v1450
      %1527 = vst.msk [vmem:[#allocation2 + $0x150] sm:$0xff] %vm1505, %v1452
      %1528 = vst.msk [vmem:[#allocation2 + $0x160] sm:$0xff] %vm1505, %v1454
      %1529 = vst.msk [vmem:[#allocation2 + $0x170] sm:$0xff] %vm1505, %v1456
      %1530 = vst.msk [vmem:[#allocation2 + $0x180] sm:$0xff] %vm1505, %v1458
      %1531 = vst.msk [vmem:[#allocation2 + $0x190] sm:$0xff] %vm1505, %v1460
      %1532 = vst.msk [vmem:[#allocation2 + $0x1a0] sm:$0xff] %vm1505, %v1462
      %1533 = vst.msk [vmem:[#allocation2 + $0x1b0] sm:$0xff] %vm1505, %v1464
      %1534 = vst.msk [vmem:[#allocation2 + $0x1c0] sm:$0xff] %vm1505, %v1466
      %1535 = vst.msk [vmem:[#allocation2 + $0x1d0] sm:$0xff] %vm1505, %v1468
      %1536 = vst.msk [vmem:[#allocation2 + $0x1e0] sm:$0xff] %vm1505, %v1470
      %1537 = vst.msk [vmem:[#allocation2 + $0x1f0] sm:$0xff] %vm1505, %v1472
      %v1538 = vld [vmem:[%s1344 + $0x1] sm:$0xff]
      %v1539 = vld [vmem:[%s1344 + $0x9] sm:$0xff]
      %v1540 = vld [vmem:[%s1344 + $0x19] sm:$0xff]
      %v1541 = vld [vmem:[%s1344 + $0x21] sm:$0xff]
      %v1542 = vld [vmem:[%s1344 + $0x31] sm:$0xff]
      %v1543 = vld [vmem:[%s1344 + $0x39] sm:$0xff]
      %v1544 = vld [vmem:[%s1344 + $0x49] sm:$0xff]
      %v1545 = vld [vmem:[%s1344 + $0x51] sm:$0xff]
      %v1546 = vld [vmem:[%s1344 + $0x61] sm:$0xff]
      %v1547 = vld [vmem:[%s1344 + $0x69] sm:$0xff]
      %v1548 = vld [vmem:[%s1344 + $0x79] sm:$0xff]
      %v1549 = vld [vmem:[%s1344 + $0x81] sm:$0xff]
      %v1550 = vld [vmem:[%s1344 + $0x91] sm:$0xff]
      %v1551 = vld [vmem:[%s1344 + $0x99] sm:$0xff]
      %v1552 = vld [vmem:[%s1344 + $0xa9] sm:$0xff]
      %v1553 = vld [vmem:[%s1344 + $0xb1] sm:$0xff]
      %v1554 = vld [vmem:[%s1344 + $0xc1] sm:$0xff]
      %v1555 = vld [vmem:[%s1344 + $0xc9] sm:$0xff]
      %v1556 = vld [vmem:[%s1344 + $0xd9] sm:$0xff]
      %v1557 = vld [vmem:[%s1344 + $0xe1] sm:$0xff]
      %v1558 = vld [vmem:[%s1344 + $0xf1] sm:$0xff]
      %v1559 = vld [vmem:[%s1344 + $0xf9] sm:$0xff]
      %v1560 = vld [vmem:[%s1344 + $0x109] sm:$0xff]
      %v1561 = vld [vmem:[%s1344 + $0x111] sm:$0xff]
      %v1562 = vld [vmem:[%s1344 + $0x121] sm:$0xff]
      %v1563 = vld [vmem:[%s1344 + $0x129] sm:$0xff]
      %v1564 = vld [vmem:[%s1344 + $0x139] sm:$0xff]
      %v1565 = vld [vmem:[%s1344 + $0x141] sm:$0xff]
      %v1566 = vld [vmem:[%s1344 + $0x151] sm:$0xff]
      %v1567 = vld [vmem:[%s1344 + $0x159] sm:$0xff]
      %v1568 = vld [vmem:[%s1344 + $0x169] sm:$0xff]
      %v1569 = vld [vmem:[%s1344 + $0x171] sm:$0xff]
      %1602 = vrot.lane.b32.xlu0 %v1538, 28
      %v1603 = vpop.permute.xlu0 %1602
      %1604 = vrot.lane.b32.xlu0 %v1539, 28
      %v1605 = vpop.permute.xlu0 %1604
      %1606 = vrot.lane.b32.xlu0 %v1540, 28
      %v1607 = vpop.permute.xlu0 %1606
      %1608 = vrot.lane.b32.xlu0 %v1541, 28
      %v1609 = vpop.permute.xlu0 %1608
      %1610 = vrot.lane.b32.xlu0 %v1542, 28
      %v1611 = vpop.permute.xlu0 %1610
      %1612 = vrot.lane.b32.xlu0 %v1543, 28
      %v1613 = vpop.permute.xlu0 %1612
      %1614 = vrot.lane.b32.xlu0 %v1544, 28
      %v1615 = vpop.permute.xlu0 %1614
      %1616 = vrot.lane.b32.xlu0 %v1545, 28
      %v1617 = vpop.permute.xlu0 %1616
      %1618 = vrot.lane.b32.xlu0 %v1546, 28
      %v1619 = vpop.permute.xlu0 %1618
      %1620 = vrot.lane.b32.xlu0 %v1547, 28
      %v1621 = vpop.permute.xlu0 %1620
      %1622 = vrot.lane.b32.xlu0 %v1548, 28
      %v1623 = vpop.permute.xlu0 %1622
      %1624 = vrot.lane.b32.xlu0 %v1549, 28
      %v1625 = vpop.permute.xlu0 %1624
      %1626 = vrot.lane.b32.xlu0 %v1550, 28
      %v1627 = vpop.permute.xlu0 %1626
      %1628 = vrot.lane.b32.xlu0 %v1551, 28
      %v1629 = vpop.permute.xlu0 %1628
      %1630 = vrot.lane.b32.xlu0 %v1552, 28
      %v1631 = vpop.permute.xlu0 %1630
      %1632 = vrot.lane.b32.xlu0 %v1553, 28
      %v1633 = vpop.permute.xlu0 %1632
      %1634 = vrot.lane.b32.xlu0 %v1554, 28
      %v1635 = vpop.permute.xlu0 %1634
      %1636 = vrot.lane.b32.xlu0 %v1555, 28
      %v1637 = vpop.permute.xlu0 %1636
      %1638 = vrot.lane.b32.xlu0 %v1556, 28
      %v1639 = vpop.permute.xlu0 %1638
      %1640 = vrot.lane.b32.xlu0 %v1557, 28
      %v1641 = vpop.permute.xlu0 %1640
      %1642 = vrot.lane.b32.xlu0 %v1558, 28
      %v1643 = vpop.permute.xlu0 %1642
      %1644 = vrot.lane.b32.xlu0 %v1559, 28
      %v1645 = vpop.permute.xlu0 %1644
      %1646 = vrot.lane.b32.xlu0 %v1560, 28
      %v1647 = vpop.permute.xlu0 %1646
      %1648 = vrot.lane.b32.xlu0 %v1561, 28
      %v1649 = vpop.permute.xlu0 %1648
      %1650 = vrot.lane.b32.xlu0 %v1562, 28
      %v1651 = vpop.permute.xlu0 %1650
      %1652 = vrot.lane.b32.xlu0 %v1563, 28
      %v1653 = vpop.permute.xlu0 %1652
      %1654 = vrot.lane.b32.xlu0 %v1564, 28
      %v1655 = vpop.permute.xlu0 %1654
      %1656 = vrot.lane.b32.xlu0 %v1565, 28
      %v1657 = vpop.permute.xlu0 %1656
      %1658 = vrot.lane.b32.xlu0 %v1566, 28
      %v1659 = vpop.permute.xlu0 %1658
      %1660 = vrot.lane.b32.xlu0 %v1567, 28
      %v1661 = vpop.permute.xlu0 %1660
      %1662 = vrot.lane.b32.xlu0 %v1568, 28
      %v1663 = vpop.permute.xlu0 %1662
      %1664 = vrot.lane.b32.xlu0 %v1569, 28
      %v1665 = vpop.permute.xlu0 %1664
      %vm1698 = vcmask 261344
      %1699 = vst.msk [vmem:[#allocation2] sm:$0xff] %vm1698, %v1603
      %1700 = vst.msk [vmem:[#allocation2 + $0x10] sm:$0xff] %vm1698, %v1605
      %1701 = vst.msk [vmem:[#allocation2 + $0x20] sm:$0xff] %vm1698, %v1607
      %1702 = vst.msk [vmem:[#allocation2 + $0x30] sm:$0xff] %vm1698, %v1609
      %1703 = vst.msk [vmem:[#allocation2 + $0x40] sm:$0xff] %vm1698, %v1611
      %1704 = vst.msk [vmem:[#allocation2 + $0x50] sm:$0xff] %vm1698, %v1613
      %1705 = vst.msk [vmem:[#allocation2 + $0x60] sm:$0xff] %vm1698, %v1615
      %1706 = vst.msk [vmem:[#allocation2 + $0x70] sm:$0xff] %vm1698, %v1617
      %1707 = vst.msk [vmem:[#allocation2 + $0x80] sm:$0xff] %vm1698, %v1619
      %1708 = vst.msk [vmem:[#allocation2 + $0x90] sm:$0xff] %vm1698, %v1621
      %1709 = vst.msk [vmem:[#allocation2 + $0xa0] sm:$0xff] %vm1698, %v1623
      %1710 = vst.msk [vmem:[#allocation2 + $0xb0] sm:$0xff] %vm1698, %v1625
      %1711 = vst.msk [vmem:[#allocation2 + $0xc0] sm:$0xff] %vm1698, %v1627
      %1712 = vst.msk [vmem:[#allocation2 + $0xd0] sm:$0xff] %vm1698, %v1629
      %1713 = vst.msk [vmem:[#allocation2 + $0xe0] sm:$0xff] %vm1698, %v1631
      %1714 = vst.msk [vmem:[#allocation2 + $0xf0] sm:$0xff] %vm1698, %v1633
      %1715 = vst.msk [vmem:[#allocation2 + $0x100] sm:$0xff] %vm1698, %v1635
      %1716 = vst.msk [vmem:[#allocation2 + $0x110] sm:$0xff] %vm1698, %v1637
      %1717 = vst.msk [vmem:[#allocation2 + $0x120] sm:$0xff] %vm1698, %v1639
      %1718 = vst.msk [vmem:[#allocation2 + $0x130] sm:$0xff] %vm1698, %v1641
      %1719 = vst.msk [vmem:[#allocation2 + $0x140] sm:$0xff] %vm1698, %v1643
      %1720 = vst.msk [vmem:[#allocation2 + $0x150] sm:$0xff] %vm1698, %v1645
      %1721 = vst.msk [vmem:[#allocation2 + $0x160] sm:$0xff] %vm1698, %v1647
      %1722 = vst.msk [vmem:[#allocation2 + $0x170] sm:$0xff] %vm1698, %v1649
      %1723 = vst.msk [vmem:[#allocation2 + $0x180] sm:$0xff] %vm1698, %v1651
      %1724 = vst.msk [vmem:[#allocation2 + $0x190] sm:$0xff] %vm1698, %v1653
      %1725 = vst.msk [vmem:[#allocation2 + $0x1a0] sm:$0xff] %vm1698, %v1655
      %1726 = vst.msk [vmem:[#allocation2 + $0x1b0] sm:$0xff] %vm1698, %v1657
      %1727 = vst.msk [vmem:[#allocation2 + $0x1c0] sm:$0xff] %vm1698, %v1659
      %1728 = vst.msk [vmem:[#allocation2 + $0x1d0] sm:$0xff] %vm1698, %v1661
      %1729 = vst.msk [vmem:[#allocation2 + $0x1e0] sm:$0xff] %vm1698, %v1663
      %1730 = vst.msk [vmem:[#allocation2 + $0x1f0] sm:$0xff] %vm1698, %v1665
      %v1731 = vld [vmem:[%s1344 + $0x2] sm:$0xff]
      %v1732 = vld [vmem:[%s1344 + $0xa] sm:$0xff]
      %v1733 = vld [vmem:[%s1344 + $0x1a] sm:$0xff]
      %v1734 = vld [vmem:[%s1344 + $0x22] sm:$0xff]
      %v1735 = vld [vmem:[%s1344 + $0x32] sm:$0xff]
      %v1736 = vld [vmem:[%s1344 + $0x3a] sm:$0xff]
      %v1737 = vld [vmem:[%s1344 + $0x4a] sm:$0xff]
      %v1738 = vld [vmem:[%s1344 + $0x52] sm:$0xff]
      %v1739 = vld [vmem:[%s1344 + $0x62] sm:$0xff]
      %v1740 = vld [vmem:[%s1344 + $0x6a] sm:$0xff]
      %v1741 = vld [vmem:[%s1344 + $0x7a] sm:$0xff]
      %v1742 = vld [vmem:[%s1344 + $0x82] sm:$0xff]
      %v1743 = vld [vmem:[%s1344 + $0x92] sm:$0xff]
      %v1744 = vld [vmem:[%s1344 + $0x9a] sm:$0xff]
      %v1745 = vld [vmem:[%s1344 + $0xaa] sm:$0xff]
      %v1746 = vld [vmem:[%s1344 + $0xb2] sm:$0xff]
      %v1747 = vld [vmem:[%s1344 + $0xc2] sm:$0xff]
      %v1748 = vld [vmem:[%s1344 + $0xca] sm:$0xff]
      %v1749 = vld [vmem:[%s1344 + $0xda] sm:$0xff]
      %v1750 = vld [vmem:[%s1344 + $0xe2] sm:$0xff]
      %v1751 = vld [vmem:[%s1344 + $0xf2] sm:$0xff]
      %v1752 = vld [vmem:[%s1344 + $0xfa] sm:$0xff]
      %v1753 = vld [vmem:[%s1344 + $0x10a] sm:$0xff]
      %v1754 = vld [vmem:[%s1344 + $0x112] sm:$0xff]
      %v1755 = vld [vmem:[%s1344 + $0x122] sm:$0xff]
      %v1756 = vld [vmem:[%s1344 + $0x12a] sm:$0xff]
      %v1757 = vld [vmem:[%s1344 + $0x13a] sm:$0xff]
      %v1758 = vld [vmem:[%s1344 + $0x142] sm:$0xff]
      %v1759 = vld [vmem:[%s1344 + $0x152] sm:$0xff]
      %v1760 = vld [vmem:[%s1344 + $0x15a] sm:$0xff]
      %v1761 = vld [vmem:[%s1344 + $0x16a] sm:$0xff]
      %v1762 = vld [vmem:[%s1344 + $0x172] sm:$0xff]
      %1795 = vrot.lane.b32.xlu0 %v1731, 32
      %v1796 = vpop.permute.xlu0 %1795
      %1797 = vrot.lane.b32.xlu0 %v1732, 32
      %v1798 = vpop.permute.xlu0 %1797
      %1799 = vrot.lane.b32.xlu0 %v1733, 32
      %v1800 = vpop.permute.xlu0 %1799
      %1801 = vrot.lane.b32.xlu0 %v1734, 32
      %v1802 = vpop.permute.xlu0 %1801
      %1803 = vrot.lane.b32.xlu0 %v1735, 32
      %v1804 = vpop.permute.xlu0 %1803
      %1805 = vrot.lane.b32.xlu0 %v1736, 32
      %v1806 = vpop.permute.xlu0 %1805
      %1807 = vrot.lane.b32.xlu0 %v1737, 32
      %v1808 = vpop.permute.xlu0 %1807
      %1809 = vrot.lane.b32.xlu0 %v1738, 32
      %v1810 = vpop.permute.xlu0 %1809
      %1811 = vrot.lane.b32.xlu0 %v1739, 32
      %v1812 = vpop.permute.xlu0 %1811
      %1813 = vrot.lane.b32.xlu0 %v1740, 32
      %v1814 = vpop.permute.xlu0 %1813
      %1815 = vrot.lane.b32.xlu0 %v1741, 32
      %v1816 = vpop.permute.xlu0 %1815
      %1817 = vrot.lane.b32.xlu0 %v1742, 32
      %v1818 = vpop.permute.xlu0 %1817
      %1819 = vrot.lane.b32.xlu0 %v1743, 32
      %v1820 = vpop.permute.xlu0 %1819
      %1821 = vrot.lane.b32.xlu0 %v1744, 32
      %v1822 = vpop.permute.xlu0 %1821
      %1823 = vrot.lane.b32.xlu0 %v1745, 32
      %v1824 = vpop.permute.xlu0 %1823
      %1825 = vrot.lane.b32.xlu0 %v1746, 32
      %v1826 = vpop.permute.xlu0 %1825
      %1827 = vrot.lane.b32.xlu0 %v1747, 32
      %v1828 = vpop.permute.xlu0 %1827
      %1829 = vrot.lane.b32.xlu0 %v1748, 32
      %v1830 = vpop.permute.xlu0 %1829
      %1831 = vrot.lane.b32.xlu0 %v1749, 32
      %v1832 = vpop.permute.xlu0 %1831
      %1833 = vrot.lane.b32.xlu0 %v1750, 32
      %v1834 = vpop.permute.xlu0 %1833
      %1835 = vrot.lane.b32.xlu0 %v1751, 32
      %v1836 = vpop.permute.xlu0 %1835
      %1837 = vrot.lane.b32.xlu0 %v1752, 32
      %v1838 = vpop.permute.xlu0 %1837
      %1839 = vrot.lane.b32.xlu0 %v1753, 32
      %v1840 = vpop.permute.xlu0 %1839
      %1841 = vrot.lane.b32.xlu0 %v1754, 32
      %v1842 = vpop.permute.xlu0 %1841
      %1843 = vrot.lane.b32.xlu0 %v1755, 32
      %v1844 = vpop.permute.xlu0 %1843
      %1845 = vrot.lane.b32.xlu0 %v1756, 32
      %v1846 = vpop.permute.xlu0 %1845
      %1847 = vrot.lane.b32.xlu0 %v1757, 32
      %v1848 = vpop.permute.xlu0 %1847
      %1849 = vrot.lane.b32.xlu0 %v1758, 32
      %v1850 = vpop.permute.xlu0 %1849
      %1851 = vrot.lane.b32.xlu0 %v1759, 32
      %v1852 = vpop.permute.xlu0 %1851
      %1853 = vrot.lane.b32.xlu0 %v1760, 32
      %v1854 = vpop.permute.xlu0 %1853
      %1855 = vrot.lane.b32.xlu0 %v1761, 32
      %v1856 = vpop.permute.xlu0 %1855
      %1857 = vrot.lane.b32.xlu0 %v1762, 32
      %v1858 = vpop.permute.xlu0 %1857
      %vm1891 = vcmask 294144
      %1892 = vst.msk [vmem:[#allocation2] sm:$0xff] %vm1891, %v1796
      %1893 = vst.msk [vmem:[#allocation2 + $0x10] sm:$0xff] %vm1891, %v1798
      %1894 = vst.msk [vmem:[#allocation2 + $0x20] sm:$0xff] %vm1891, %v1800
      %1895 = vst.msk [vmem:[#allocation2 + $0x30] sm:$0xff] %vm1891, %v1802
      %1896 = vst.msk [vmem:[#allocation2 + $0x40] sm:$0xff] %vm1891, %v1804
      %1897 = vst.msk [vmem:[#allocation2 + $0x50] sm:$0xff] %vm1891, %v1806
      %1898 = vst.msk [vmem:[#allocation2 + $0x60] sm:$0xff] %vm1891, %v1808
      %1899 = vst.msk [vmem:[#allocation2 + $0x70] sm:$0xff] %vm1891, %v1810
      %1900 = vst.msk [vmem:[#allocation2 + $0x80] sm:$0xff] %vm1891, %v1812
      %1901 = vst.msk [vmem:[#allocation2 + $0x90] sm:$0xff] %vm1891, %v1814
      %1902 = vst.msk [vmem:[#allocation2 + $0xa0] sm:$0xff] %vm1891, %v1816
      %1903 = vst.msk [vmem:[#allocation2 + $0xb0] sm:$0xff] %vm1891, %v1818
      %1904 = vst.msk [vmem:[#allocation2 + $0xc0] sm:$0xff] %vm1891, %v1820
      %1905 = vst.msk [vmem:[#allocation2 + $0xd0] sm:$0xff] %vm1891, %v1822
      %1906 = vst.msk [vmem:[#allocation2 + $0xe0] sm:$0xff] %vm1891, %v1824
      %1907 = vst.msk [vmem:[#allocation2 + $0xf0] sm:$0xff] %vm1891, %v1826
      %1908 = vst.msk [vmem:[#allocation2 + $0x100] sm:$0xff] %vm1891, %v1828
      %1909 = vst.msk [vmem:[#allocation2 + $0x110] sm:$0xff] %vm1891, %v1830
      %1910 = vst.msk [vmem:[#allocation2 + $0x120] sm:$0xff] %vm1891, %v1832
      %1911 = vst.msk [vmem:[#allocation2 + $0x130] sm:$0xff] %vm1891, %v1834
      %1912 = vst.msk [vmem:[#allocation2 + $0x140] sm:$0xff] %vm1891, %v1836
      %1913 = vst.msk [vmem:[#allocation2 + $0x150] sm:$0xff] %vm1891, %v1838
      %1914 = vst.msk [vmem:[#allocation2 + $0x160] sm:$0xff] %vm1891, %v1840
      %1915 = vst.msk [vmem:[#allocation2 + $0x170] sm:$0xff] %vm1891, %v1842
      %1916 = vst.msk [vmem:[#allocation2 + $0x180] sm:$0xff] %vm1891, %v1844
      %1917 = vst.msk [vmem:[#allocation2 + $0x190] sm:$0xff] %vm1891, %v1846
      %1918 = vst.msk [vmem:[#allocation2 + $0x1a0] sm:$0xff] %vm1891, %v1848
      %1919 = vst.msk [vmem:[#allocation2 + $0x1b0] sm:$0xff] %vm1891, %v1850
      %1920 = vst.msk [vmem:[#allocation2 + $0x1c0] sm:$0xff] %vm1891, %v1852
      %1921 = vst.msk [vmem:[#allocation2 + $0x1d0] sm:$0xff] %vm1891, %v1854
      %1922 = vst.msk [vmem:[#allocation2 + $0x1e0] sm:$0xff] %vm1891, %v1856
      %1923 = vst.msk [vmem:[#allocation2 + $0x1f0] sm:$0xff] %vm1891, %v1858
      %v1924 = vld [vmem:[#allocation2] sm:$0xff]
      %v1925 = vld [vmem:[#allocation2 + $0x10] sm:$0xff]
      %v1926 = vld [vmem:[#allocation2 + $0x20] sm:$0xff]
      %v1927 = vld [vmem:[#allocation2 + $0x30] sm:$0xff]
      %v1928 = vld [vmem:[#allocation2 + $0x40] sm:$0xff]
      %v1929 = vld [vmem:[#allocation2 + $0x50] sm:$0xff]
      %v1930 = vld [vmem:[#allocation2 + $0x60] sm:$0xff]
      %v1931 = vld [vmem:[#allocation2 + $0x70] sm:$0xff]
      %v1932 = vld [vmem:[#allocation2 + $0x80] sm:$0xff]
      %v1933 = vld [vmem:[#allocation2 + $0x90] sm:$0xff]
      %v1934 = vld [vmem:[#allocation2 + $0xa0] sm:$0xff]
      %v1935 = vld [vmem:[#allocation2 + $0xb0] sm:$0xff]
      %v1936 = vld [vmem:[#allocation2 + $0xc0] sm:$0xff]
      %v1937 = vld [vmem:[#allocation2 + $0xd0] sm:$0xff]
      %v1938 = vld [vmem:[#allocation2 + $0xe0] sm:$0xff]
      %v1939 = vld [vmem:[#allocation2 + $0xf0] sm:$0xff]
      %v1940 = vld [vmem:[#allocation2 + $0x100] sm:$0xff]
      %v1941 = vld [vmem:[#allocation2 + $0x110] sm:$0xff]
      %v1942 = vld [vmem:[#allocation2 + $0x120] sm:$0xff]
      %v1943 = vld [vmem:[#allocation2 + $0x130] sm:$0xff]
      %v1944 = vld [vmem:[#allocation2 + $0x140] sm:$0xff]
      %v1945 = vld [vmem:[#allocation2 + $0x150] sm:$0xff]
      %v1946 = vld [vmem:[#allocation2 + $0x160] sm:$0xff]
      %v1947 = vld [vmem:[#allocation2 + $0x170] sm:$0xff]
      %v1948 = vld [vmem:[#allocation2 + $0x180] sm:$0xff]
      %v1949 = vld [vmem:[#allocation2 + $0x190] sm:$0xff]
      %v1950 = vld [vmem:[#allocation2 + $0x1a0] sm:$0xff]
      %v1951 = vld [vmem:[#allocation2 + $0x1b0] sm:$0xff]
      %v1952 = vld [vmem:[#allocation2 + $0x1c0] sm:$0xff]
      %v1953 = vld [vmem:[#allocation2 + $0x1d0] sm:$0xff]
      %v1954 = vld [vmem:[#allocation2 + $0x1e0] sm:$0xff]
      %v1955 = vld [vmem:[#allocation2 + $0x1f0] sm:$0xff]
      %v1956 = vld [vmem:[%s1] sm:$0xff]
      %v1957 = vld [vmem:[%s1 + $0x8] sm:$0xff]
      %v1958 = vld [vmem:[%s1 + $0x10] sm:$0xff]
      %v1959 = vld [vmem:[%s1 + $0x18] sm:$0xff]
      %v1960 = vld [vmem:[%s1 + $0x20] sm:$0xf]
      %v1961 = vld [vmem:[%s2] sm:$0x1]
      %v1962 = vperm.slane %v1961, 0
      %vm1963 = vcmask 293888
      %v1965 = vsel %vm1963, %v1924, 0
      %v1968 = vsel %vm1963, %v1925, 0
      %v1971 = vsel %vm1963, %v1926, 0
      %v1974 = vsel %vm1963, %v1927, 0
      %v1977 = vsel %vm1963, %v1928, 0
      %v1980 = vsel %vm1963, %v1929, 0
      %v1983 = vsel %vm1963, %v1930, 0
      %v1986 = vsel %vm1963, %v1931, 0
      %v1989 = vsel %vm1963, %v1932, 0
      %v1992 = vsel %vm1963, %v1933, 0
      %v1995 = vsel %vm1963, %v1934, 0
      %v1998 = vsel %vm1963, %v1935, 0
      %v2001 = vsel %vm1963, %v1936, 0
      %v2004 = vsel %vm1963, %v1937, 0
      %v2007 = vsel %vm1963, %v1938, 0
      %v2010 = vsel %vm1963, %v1939, 0
      %v2013 = vsel %vm1963, %v1940, 0
      %v2016 = vsel %vm1963, %v1941, 0
      %v2019 = vsel %vm1963, %v1942, 0
      %v2022 = vsel %vm1963, %v1943, 0
      %v2025 = vsel %vm1963, %v1944, 0
      %v2028 = vsel %vm1963, %v1945, 0
      %v2031 = vsel %vm1963, %v1946, 0
      %v2034 = vsel %vm1963, %v1947, 0
      %v2037 = vsel %vm1963, %v1948, 0
      %v2040 = vsel %vm1963, %v1949, 0
      %v2043 = vsel %vm1963, %v1950, 0
      %v2046 = vsel %vm1963, %v1951, 0
      %v2049 = vsel %vm1963, %v1952, 0
      %v2052 = vsel %vm1963, %v1953, 0
      %v2055 = vsel %vm1963, %v1954, 0
      %v2058 = vsel %vm1963, %v1955, 0
      %vm2060 = vcmask 1043456
      %v2062 = vsel %vm2060, %v1960, 0
      %2064 = vmatpush.msra.mxu0 0.0
      %2065 = vmatpush.msra.mxu0 0.0
      %2066 = vmatpush.msra.mxu0 0.0
      %2067 = vmatpush.msra.mxu0 0.0
      %2068 = vmatpush.msra.mxu0 0.0
      %2069 = vmatpush.msra.mxu0 0.0
      %2070 = vmatpush.msra.mxu0 0.0
      %2071 = vmatpush.msra.mxu0 0.0
      %2072 = vmatpush.msra.mxu0 0.0
      %2073 = vmatpush.msra.mxu0 0.0
      %2074 = vmatpush.msra.mxu0 0.0
      %2075 = vmatpush.msra.mxu0 %v2062
      %2076 = vmatpush.msra.mxu0 %v1959
      %2077 = vmatpush.msra.mxu0 %v1958
      %2078 = vmatpush.msra.mxu0 %v1957
      %2079 = vmatpush.msra.mxu0 %v1956
      %2080 = vmatmul.f32.gmra.mxu0 %v1965
      %v2081 = vpop.f32.mrf.mxu0
      %v2082 = vadd.f32 %v1962, %v2081
      %2083 = vmatmul.f32.gmra.mxu0 %v1968
      %v2084 = vpop.f32.mrf.mxu0
      %v2085 = vadd.f32 %v1962, %v2084
      %2086 = vmatmul.f32.gmra.mxu0 %v1971
      %v2087 = vpop.f32.mrf.mxu0
      %v2088 = vadd.f32 %v1962, %v2087
      %2089 = vmatmul.f32.gmra.mxu0 %v1974
      %v2090 = vpop.f32.mrf.mxu0
      %v2091 = vadd.f32 %v1962, %v2090
      %2092 = vmatmul.f32.gmra.mxu0 %v1977
      %v2093 = vpop.f32.mrf.mxu0
      %v2094 = vadd.f32 %v1962, %v2093
      %2095 = vmatmul.f32.gmra.mxu0 %v1980
      %v2096 = vpop.f32.mrf.mxu0
      %v2097 = vadd.f32 %v1962, %v2096
      %2098 = vmatmul.f32.gmra.mxu0 %v1983
      %v2099 = vpop.f32.mrf.mxu0
      %v2100 = vadd.f32 %v1962, %v2099
      %2101 = vmatmul.f32.gmra.mxu0 %v1986
      %v2102 = vpop.f32.mrf.mxu0
      %v2103 = vadd.f32 %v1962, %v2102
      %2104 = vmatmul.f32.gmra.mxu0 %v1989
      %v2105 = vpop.f32.mrf.mxu0
      %v2106 = vadd.f32 %v1962, %v2105
      %2107 = vmatmul.f32.gmra.mxu0 %v1992
      %v2108 = vpop.f32.mrf.mxu0
      %v2109 = vadd.f32 %v1962, %v2108
      %2110 = vmatmul.f32.gmra.mxu0 %v1995
      %v2111 = vpop.f32.mrf.mxu0
      %v2112 = vadd.f32 %v1962, %v2111
      %2113 = vmatmul.f32.gmra.mxu0 %v1998
      %v2114 = vpop.f32.mrf.mxu0
      %v2115 = vadd.f32 %v1962, %v2114
      %2116 = vmatmul.f32.gmra.mxu0 %v2001
      %v2117 = vpop.f32.mrf.mxu0
      %v2118 = vadd.f32 %v1962, %v2117
      %2119 = vmatmul.f32.gmra.mxu0 %v2004
      %v2120 = vpop.f32.mrf.mxu0
      %v2121 = vadd.f32 %v1962, %v2120
      %2122 = vmatmul.f32.gmra.mxu0 %v2007
      %v2123 = vpop.f32.mrf.mxu0
      %v2124 = vadd.f32 %v1962, %v2123
      %2125 = vmatmul.f32.gmra.mxu0 %v2010
      %v2126 = vpop.f32.mrf.mxu0
      %v2127 = vadd.f32 %v1962, %v2126
      %2128 = vmatmul.f32.gmra.mxu0 %v2013
      %v2129 = vpop.f32.mrf.mxu0
      %v2130 = vadd.f32 %v1962, %v2129
      %2131 = vmatmul.f32.gmra.mxu0 %v2016
      %v2132 = vpop.f32.mrf.mxu0
      %v2133 = vadd.f32 %v1962, %v2132
      %2134 = vmatmul.f32.gmra.mxu0 %v2019
      %v2135 = vpop.f32.mrf.mxu0
      %v2136 = vadd.f32 %v1962, %v2135
      %2137 = vmatmul.f32.gmra.mxu0 %v2022
      %v2138 = vpop.f32.mrf.mxu0
      %v2139 = vadd.f32 %v1962, %v2138
      %2140 = vmatmul.f32.gmra.mxu0 %v2025
      %v2141 = vpop.f32.mrf.mxu0
      %v2142 = vadd.f32 %v1962, %v2141
      %2143 = vmatmul.f32.gmra.mxu0 %v2028
      %v2144 = vpop.f32.mrf.mxu0
      %v2145 = vadd.f32 %v1962, %v2144
      %2146 = vmatmul.f32.gmra.mxu0 %v2031
      %v2147 = vpop.f32.mrf.mxu0
      %v2148 = vadd.f32 %v1962, %v2147
      %2149 = vmatmul.f32.gmra.mxu0 %v2034
      %v2150 = vpop.f32.mrf.mxu0
      %v2151 = vadd.f32 %v1962, %v2150
      %2152 = vmatmul.f32.gmra.mxu0 %v2037
      %v2153 = vpop.f32.mrf.mxu0
      %v2154 = vadd.f32 %v1962, %v2153
      %2155 = vmatmul.f32.gmra.mxu0 %v2040
      %v2156 = vpop.f32.mrf.mxu0
      %v2157 = vadd.f32 %v1962, %v2156
      %2158 = vmatmul.f32.gmra.mxu0 %v2043
      %v2159 = vpop.f32.mrf.mxu0
      %v2160 = vadd.f32 %v1962, %v2159
      %2161 = vmatmul.f32.gmra.mxu0 %v2046
      %v2162 = vpop.f32.mrf.mxu0
      %v2163 = vadd.f32 %v1962, %v2162
      %2164 = vmatmul.f32.gmra.mxu0 %v2049
      %v2165 = vpop.f32.mrf.mxu0
      %v2166 = vadd.f32 %v1962, %v2165
      %2167 = vmatmul.f32.gmra.mxu0 %v2052
      %v2168 = vpop.f32.mrf.mxu0
      %v2169 = vadd.f32 %v1962, %v2168
      %2170 = vmatmul.f32.gmra.mxu0 %v2055
      %v2171 = vpop.f32.mrf.mxu0
      %v2172 = vadd.f32 %v1962, %v2171
      %2173 = vmatmul.f32.gmra.mxu0 %v2058
      %v2174 = vpop.f32.mrf.mxu0
      %v2175 = vadd.f32 %v1962, %v2174
      %2176 = vdwg.mxu0
      %v2177 = vmax.f32 %v2082, 0.0
      %v2178 = vmax.f32 %v2085, 0.0
      %v2179 = vmax.f32 %v2088, 0.0
      %v2180 = vmax.f32 %v2091, 0.0
      %v2181 = vmax.f32 %v2094, 0.0
      %v2182 = vmax.f32 %v2097, 0.0
      %v2183 = vmax.f32 %v2100, 0.0
      %v2184 = vmax.f32 %v2103, 0.0
      %v2185 = vmax.f32 %v2106, 0.0
      %v2186 = vmax.f32 %v2109, 0.0
      %v2187 = vmax.f32 %v2112, 0.0
      %v2188 = vmax.f32 %v2115, 0.0
      %v2189 = vmax.f32 %v2118, 0.0
      %v2190 = vmax.f32 %v2121, 0.0
      %v2191 = vmax.f32 %v2124, 0.0
      %v2192 = vmax.f32 %v2127, 0.0
      %v2193 = vmax.f32 %v2130, 0.0
      %v2194 = vmax.f32 %v2133, 0.0
      %v2195 = vmax.f32 %v2136, 0.0
      %v2196 = vmax.f32 %v2139, 0.0
      %v2197 = vmax.f32 %v2142, 0.0
      %v2198 = vmax.f32 %v2145, 0.0
      %v2199 = vmax.f32 %v2148, 0.0
      %v2200 = vmax.f32 %v2151, 0.0
      %v2201 = vmax.f32 %v2154, 0.0
      %v2202 = vmax.f32 %v2157, 0.0
      %v2203 = vmax.f32 %v2160, 0.0
      %v2204 = vmax.f32 %v2163, 0.0
      %v2205 = vmax.f32 %v2166, 0.0
      %v2206 = vmax.f32 %v2169, 0.0
      %v2207 = vmax.f32 %v2172, 0.0
      %v2208 = vmax.f32 %v2175, 0.0
      %2209 = vst.msk [vmem:[%s282 + $0x1] sm:$0xff] %vm171, %v2177
      %2210 = vst.msk [vmem:[%s282 + $0x9] sm:$0xff] %vm171, %v2178
      %2211 = vst.msk [vmem:[%s282 + $0x19] sm:$0xff] %vm171, %v2179
      %2212 = vst.msk [vmem:[%s282 + $0x21] sm:$0xff] %vm171, %v2180
      %2213 = vst.msk [vmem:[%s282 + $0x31] sm:$0xff] %vm171, %v2181
      %2214 = vst.msk [vmem:[%s282 + $0x39] sm:$0xff] %vm171, %v2182
      %2215 = vst.msk [vmem:[%s282 + $0x49] sm:$0xff] %vm171, %v2183
      %2216 = vst.msk [vmem:[%s282 + $0x51] sm:$0xff] %vm171, %v2184
      %2217 = vst.msk [vmem:[%s282 + $0x61] sm:$0xff] %vm171, %v2185
      %2218 = vst.msk [vmem:[%s282 + $0x69] sm:$0xff] %vm171, %v2186
      %2219 = vst.msk [vmem:[%s282 + $0x79] sm:$0xff] %vm171, %v2187
      %2220 = vst.msk [vmem:[%s282 + $0x81] sm:$0xff] %vm171, %v2188
      %2221 = vst.msk [vmem:[%s282 + $0x91] sm:$0xff] %vm171, %v2189
      %2222 = vst.msk [vmem:[%s282 + $0x99] sm:$0xff] %vm171, %v2190
      %2223 = vst.msk [vmem:[%s282 + $0xa9] sm:$0xff] %vm171, %v2191
      %2224 = vst.msk [vmem:[%s282 + $0xb1] sm:$0xff] %vm171, %v2192
      %2225 = vst.msk [vmem:[%s282 + $0xc1] sm:$0xff] %vm171, %v2193
      %2226 = vst.msk [vmem:[%s282 + $0xc9] sm:$0xff] %vm171, %v2194
      %2227 = vst.msk [vmem:[%s282 + $0xd9] sm:$0xff] %vm171, %v2195
      %2228 = vst.msk [vmem:[%s282 + $0xe1] sm:$0xff] %vm171, %v2196
      %2229 = vst.msk [vmem:[%s282 + $0xf1] sm:$0xff] %vm171, %v2197
      %2230 = vst.msk [vmem:[%s282 + $0xf9] sm:$0xff] %vm171, %v2198
      %2231 = vst.msk [vmem:[%s282 + $0x109] sm:$0xff] %vm171, %v2199
      %2232 = vst.msk [vmem:[%s282 + $0x111] sm:$0xff] %vm171, %v2200
      %2233 = vst.msk [vmem:[%s282 + $0x121] sm:$0xff] %vm171, %v2201
      %2234 = vst.msk [vmem:[%s282 + $0x129] sm:$0xff] %vm171, %v2202
      %2235 = vst.msk [vmem:[%s282 + $0x139] sm:$0xff] %vm171, %v2203
      %2236 = vst.msk [vmem:[%s282 + $0x141] sm:$0xff] %vm171, %v2204
      %2237 = vst.msk [vmem:[%s282 + $0x151] sm:$0xff] %vm171, %v2205
      %2238 = vst.msk [vmem:[%s282 + $0x159] sm:$0xff] %vm171, %v2206
      %2239 = vst.msk [vmem:[%s282 + $0x169] sm:$0xff] %vm171, %v2207
      %2240 = vst.msk [vmem:[%s282 + $0x171] sm:$0xff] %vm171, %v2208
      %v2241 = vld [vmem:[#allocation3] sm:$0xff]
      %v2242 = vld [vmem:[#allocation3 + $0x8] sm:$0xff]
      %v2243 = vld [vmem:[#allocation3 + $0x18] sm:$0xff]
      %v2244 = vld [vmem:[#allocation3 + $0x20] sm:$0xff]
      %v2245 = vld [vmem:[#allocation3 + $0x30] sm:$0xff]
      %v2246 = vld [vmem:[#allocation3 + $0x38] sm:$0xff]
      %v2247 = vld [vmem:[#allocation3 + $0x48] sm:$0xff]
      %v2248 = vld [vmem:[#allocation3 + $0x50] sm:$0xff]
      %v2249 = vld [vmem:[#allocation3 + $0x60] sm:$0xff]
      %v2250 = vld [vmem:[#allocation3 + $0x68] sm:$0xff]
      %v2251 = vld [vmem:[#allocation3 + $0x78] sm:$0xff]
      %v2252 = vld [vmem:[#allocation3 + $0x80] sm:$0xff]
      %v2253 = vld [vmem:[#allocation3 + $0x90] sm:$0xff]
      %v2254 = vld [vmem:[#allocation3 + $0x98] sm:$0xff]
      %v2255 = vld [vmem:[#allocation3 + $0xa8] sm:$0xff]
      %v2256 = vld [vmem:[#allocation3 + $0xb0] sm:$0xff]
      %v2257 = vld [vmem:[#allocation3 + $0xc0] sm:$0xff]
      %v2258 = vld [vmem:[#allocation3 + $0xc8] sm:$0xff]
      %v2259 = vld [vmem:[#allocation3 + $0xd8] sm:$0xff]
      %v2260 = vld [vmem:[#allocation3 + $0xe0] sm:$0xff]
      %v2261 = vld [vmem:[#allocation3 + $0xf0] sm:$0xff]
      %v2262 = vld [vmem:[#allocation3 + $0xf8] sm:$0xff]
      %v2263 = vld [vmem:[#allocation3 + $0x108] sm:$0xff]
      %v2264 = vld [vmem:[#allocation3 + $0x110] sm:$0xff]
      %v2265 = vld [vmem:[#allocation3 + $0x120] sm:$0xff]
      %v2266 = vld [vmem:[#allocation3 + $0x128] sm:$0xff]
      %v2267 = vld [vmem:[#allocation3 + $0x138] sm:$0xff]
      %v2268 = vld [vmem:[#allocation3 + $0x140] sm:$0xff]
      %v2269 = vld [vmem:[#allocation3 + $0x150] sm:$0xff]
      %v2270 = vld [vmem:[#allocation3 + $0x158] sm:$0xff]
      %v2271 = vld [vmem:[#allocation3 + $0x168] sm:$0xff]
      %v2272 = vld [vmem:[#allocation3 + $0x170] sm:$0xff]
      %2305 = vrot.lane.b32.xlu0 %v2241, 36
      %v2306 = vpop.permute.xlu0 %2305
      %2307 = vrot.lane.b32.xlu0 %v2242, 36
      %v2308 = vpop.permute.xlu0 %2307
      %2309 = vrot.lane.b32.xlu0 %v2243, 36
      %v2310 = vpop.permute.xlu0 %2309
      %2311 = vrot.lane.b32.xlu0 %v2244, 36
      %v2312 = vpop.permute.xlu0 %2311
      %2313 = vrot.lane.b32.xlu0 %v2245, 36
      %v2314 = vpop.permute.xlu0 %2313
      %2315 = vrot.lane.b32.xlu0 %v2246, 36
      %v2316 = vpop.permute.xlu0 %2315
      %2317 = vrot.lane.b32.xlu0 %v2247, 36
      %v2318 = vpop.permute.xlu0 %2317
      %2319 = vrot.lane.b32.xlu0 %v2248, 36
      %v2320 = vpop.permute.xlu0 %2319
      %2321 = vrot.lane.b32.xlu0 %v2249, 36
      %v2322 = vpop.permute.xlu0 %2321
      %2323 = vrot.lane.b32.xlu0 %v2250, 36
      %v2324 = vpop.permute.xlu0 %2323
      %2325 = vrot.lane.b32.xlu0 %v2251, 36
      %v2326 = vpop.permute.xlu0 %2325
      %2327 = vrot.lane.b32.xlu0 %v2252, 36
      %v2328 = vpop.permute.xlu0 %2327
      %2329 = vrot.lane.b32.xlu0 %v2253, 36
      %v2330 = vpop.permute.xlu0 %2329
      %2331 = vrot.lane.b32.xlu0 %v2254, 36
      %v2332 = vpop.permute.xlu0 %2331
      %2333 = vrot.lane.b32.xlu0 %v2255, 36
      %v2334 = vpop.permute.xlu0 %2333
      %2335 = vrot.lane.b32.xlu0 %v2256, 36
      %v2336 = vpop.permute.xlu0 %2335
      %2337 = vrot.lane.b32.xlu0 %v2257, 36
      %v2338 = vpop.permute.xlu0 %2337
      %2339 = vrot.lane.b32.xlu0 %v2258, 36
      %v2340 = vpop.permute.xlu0 %2339
      %2341 = vrot.lane.b32.xlu0 %v2259, 36
      %v2342 = vpop.permute.xlu0 %2341
      %2343 = vrot.lane.b32.xlu0 %v2260, 36
      %v2344 = vpop.permute.xlu0 %2343
      %2345 = vrot.lane.b32.xlu0 %v2261, 36
      %v2346 = vpop.permute.xlu0 %2345
      %2347 = vrot.lane.b32.xlu0 %v2262, 36
      %v2348 = vpop.permute.xlu0 %2347
      %2349 = vrot.lane.b32.xlu0 %v2263, 36
      %v2350 = vpop.permute.xlu0 %2349
      %2351 = vrot.lane.b32.xlu0 %v2264, 36
      %v2352 = vpop.permute.xlu0 %2351
      %2353 = vrot.lane.b32.xlu0 %v2265, 36
      %v2354 = vpop.permute.xlu0 %2353
      %2355 = vrot.lane.b32.xlu0 %v2266, 36
      %v2356 = vpop.permute.xlu0 %2355
      %2357 = vrot.lane.b32.xlu0 %v2267, 36
      %v2358 = vpop.permute.xlu0 %2357
      %2359 = vrot.lane.b32.xlu0 %v2268, 36
      %v2360 = vpop.permute.xlu0 %2359
      %2361 = vrot.lane.b32.xlu0 %v2269, 36
      %v2362 = vpop.permute.xlu0 %2361
      %2363 = vrot.lane.b32.xlu0 %v2270, 36
      %v2364 = vpop.permute.xlu0 %2363
      %2365 = vrot.lane.b32.xlu0 %v2271, 36
      %v2366 = vpop.permute.xlu0 %2365
      %2367 = vrot.lane.b32.xlu0 %v2272, 36
      %v2368 = vpop.permute.xlu0 %2367
      %vm2401 = vcmask 326944
      %2402 = vst.msk [vmem:[#allocation2] sm:$0xff] %vm2401, %v2306
      %2403 = vst.msk [vmem:[#allocation2 + $0x10] sm:$0xff] %vm2401, %v2308
      %2404 = vst.msk [vmem:[#allocation2 + $0x20] sm:$0xff] %vm2401, %v2310
      %2405 = vst.msk [vmem:[#allocation2 + $0x30] sm:$0xff] %vm2401, %v2312
      %2406 = vst.msk [vmem:[#allocation2 + $0x40] sm:$0xff] %vm2401, %v2314
      %2407 = vst.msk [vmem:[#allocation2 + $0x50] sm:$0xff] %vm2401, %v2316
      %2408 = vst.msk [vmem:[#allocation2 + $0x60] sm:$0xff] %vm2401, %v2318
      %2409 = vst.msk [vmem:[#allocation2 + $0x70] sm:$0xff] %vm2401, %v2320
      %2410 = vst.msk [vmem:[#allocation2 + $0x80] sm:$0xff] %vm2401, %v2322
      %2411 = vst.msk [vmem:[#allocation2 + $0x90] sm:$0xff] %vm2401, %v2324
      %2412 = vst.msk [vmem:[#allocation2 + $0xa0] sm:$0xff] %vm2401, %v2326
      %2413 = vst.msk [vmem:[#allocation2 + $0xb0] sm:$0xff] %vm2401, %v2328
      %2414 = vst.msk [vmem:[#allocation2 + $0xc0] sm:$0xff] %vm2401, %v2330
      %2415 = vst.msk [vmem:[#allocation2 + $0xd0] sm:$0xff] %vm2401, %v2332
      %2416 = vst.msk [vmem:[#allocation2 + $0xe0] sm:$0xff] %vm2401, %v2334
      %2417 = vst.msk [vmem:[#allocation2 + $0xf0] sm:$0xff] %vm2401, %v2336
      %2418 = vst.msk [vmem:[#allocation2 + $0x100] sm:$0xff] %vm2401, %v2338
      %2419 = vst.msk [vmem:[#allocation2 + $0x110] sm:$0xff] %vm2401, %v2340
      %2420 = vst.msk [vmem:[#allocation2 + $0x120] sm:$0xff] %vm2401, %v2342
      %2421 = vst.msk [vmem:[#allocation2 + $0x130] sm:$0xff] %vm2401, %v2344
      %2422 = vst.msk [vmem:[#allocation2 + $0x140] sm:$0xff] %vm2401, %v2346
      %2423 = vst.msk [vmem:[#allocation2 + $0x150] sm:$0xff] %vm2401, %v2348
      %2424 = vst.msk [vmem:[#allocation2 + $0x160] sm:$0xff] %vm2401, %v2350
      %2425 = vst.msk [vmem:[#allocation2 + $0x170] sm:$0xff] %vm2401, %v2352
      %2426 = vst.msk [vmem:[#allocation2 + $0x180] sm:$0xff] %vm2401, %v2354
      %2427 = vst.msk [vmem:[#allocation2 + $0x190] sm:$0xff] %vm2401, %v2356
      %2428 = vst.msk [vmem:[#allocation2 + $0x1a0] sm:$0xff] %vm2401, %v2358
      %2429 = vst.msk [vmem:[#allocation2 + $0x1b0] sm:$0xff] %vm2401, %v2360
      %2430 = vst.msk [vmem:[#allocation2 + $0x1c0] sm:$0xff] %vm2401, %v2362
      %2431 = vst.msk [vmem:[#allocation2 + $0x1d0] sm:$0xff] %vm2401, %v2364
      %2432 = vst.msk [vmem:[#allocation2 + $0x1e0] sm:$0xff] %vm2401, %v2366
      %2433 = vst.msk [vmem:[#allocation2 + $0x1f0] sm:$0xff] %vm2401, %v2368
      %v2434 = vld [vmem:[#allocation3 + $0x1] sm:$0xff]
      %v2435 = vld [vmem:[#allocation3 + $0x9] sm:$0xff]
      %v2436 = vld [vmem:[#allocation3 + $0x19] sm:$0xff]
      %v2437 = vld [vmem:[#allocation3 + $0x21] sm:$0xff]
      %v2438 = vld [vmem:[#allocation3 + $0x31] sm:$0xff]
      %v2439 = vld [vmem:[#allocation3 + $0x39] sm:$0xff]
      %v2440 = vld [vmem:[#allocation3 + $0x49] sm:$0xff]
      %v2441 = vld [vmem:[#allocation3 + $0x51] sm:$0xff]
      %v2442 = vld [vmem:[#allocation3 + $0x61] sm:$0xff]
      %v2443 = vld [vmem:[#allocation3 + $0x69] sm:$0xff]
      %v2444 = vld [vmem:[#allocation3 + $0x79] sm:$0xff]
      %v2445 = vld [vmem:[#allocation3 + $0x81] sm:$0xff]
      %v2446 = vld [vmem:[#allocation3 + $0x91] sm:$0xff]
      %v2447 = vld [vmem:[#allocation3 + $0x99] sm:$0xff]
      %v2448 = vld [vmem:[#allocation3 + $0xa9] sm:$0xff]
      %v2449 = vld [vmem:[#allocation3 + $0xb1] sm:$0xff]
      %v2450 = vld [vmem:[#allocation3 + $0xc1] sm:$0xff]
      %v2451 = vld [vmem:[#allocation3 + $0xc9] sm:$0xff]
      %v2452 = vld [vmem:[#allocation3 + $0xd9] sm:$0xff]
      %v2453 = vld [vmem:[#allocation3 + $0xe1] sm:$0xff]
      %v2454 = vld [vmem:[#allocation3 + $0xf1] sm:$0xff]
      %v2455 = vld [vmem:[#allocation3 + $0xf9] sm:$0xff]
      %v2456 = vld [vmem:[#allocation3 + $0x109] sm:$0xff]
      %v2457 = vld [vmem:[#allocation3 + $0x111] sm:$0xff]
      %v2458 = vld [vmem:[#allocation3 + $0x121] sm:$0xff]
      %v2459 = vld [vmem:[#allocation3 + $0x129] sm:$0xff]
      %v2460 = vld [vmem:[#allocation3 + $0x139] sm:$0xff]
      %v2461 = vld [vmem:[#allocation3 + $0x141] sm:$0xff]
      %v2462 = vld [vmem:[#allocation3 + $0x151] sm:$0xff]
      %v2463 = vld [vmem:[#allocation3 + $0x159] sm:$0xff]
      %v2464 = vld [vmem:[#allocation3 + $0x169] sm:$0xff]
      %v2465 = vld [vmem:[#allocation3 + $0x171] sm:$0xff]
      %2498 = vrot.lane.b32.xlu0 %v2434, 40
      %v2499 = vpop.permute.xlu0 %2498
      %2500 = vrot.lane.b32.xlu0 %v2435, 40
      %v2501 = vpop.permute.xlu0 %2500
      %2502 = vrot.lane.b32.xlu0 %v2436, 40
      %v2503 = vpop.permute.xlu0 %2502
      %2504 = vrot.lane.b32.xlu0 %v2437, 40
      %v2505 = vpop.permute.xlu0 %2504
      %2506 = vrot.lane.b32.xlu0 %v2438, 40
      %v2507 = vpop.permute.xlu0 %2506
      %2508 = vrot.lane.b32.xlu0 %v2439, 40
      %v2509 = vpop.permute.xlu0 %2508
      %2510 = vrot.lane.b32.xlu0 %v2440, 40
      %v2511 = vpop.permute.xlu0 %2510
      %2512 = vrot.lane.b32.xlu0 %v2441, 40
      %v2513 = vpop.permute.xlu0 %2512
      %2514 = vrot.lane.b32.xlu0 %v2442, 40
      %v2515 = vpop.permute.xlu0 %2514
      %2516 = vrot.lane.b32.xlu0 %v2443, 40
      %v2517 = vpop.permute.xlu0 %2516
      %2518 = vrot.lane.b32.xlu0 %v2444, 40
      %v2519 = vpop.permute.xlu0 %2518
      %2520 = vrot.lane.b32.xlu0 %v2445, 40
      %v2521 = vpop.permute.xlu0 %2520
      %2522 = vrot.lane.b32.xlu0 %v2446, 40
      %v2523 = vpop.permute.xlu0 %2522
      %2524 = vrot.lane.b32.xlu0 %v2447, 40
      %v2525 = vpop.permute.xlu0 %2524
      %2526 = vrot.lane.b32.xlu0 %v2448, 40
      %v2527 = vpop.permute.xlu0 %2526
      %2528 = vrot.lane.b32.xlu0 %v2449, 40
      %v2529 = vpop.permute.xlu0 %2528
      %2530 = vrot.lane.b32.xlu0 %v2450, 40
      %v2531 = vpop.permute.xlu0 %2530
      %2532 = vrot.lane.b32.xlu0 %v2451, 40
      %v2533 = vpop.permute.xlu0 %2532
      %2534 = vrot.lane.b32.xlu0 %v2452, 40
      %v2535 = vpop.permute.xlu0 %2534
      %2536 = vrot.lane.b32.xlu0 %v2453, 40
      %v2537 = vpop.permute.xlu0 %2536
      %2538 = vrot.lane.b32.xlu0 %v2454, 40
      %v2539 = vpop.permute.xlu0 %2538
      %2540 = vrot.lane.b32.xlu0 %v2455, 40
      %v2541 = vpop.permute.xlu0 %2540
      %2542 = vrot.lane.b32.xlu0 %v2456, 40
      %v2543 = vpop.permute.xlu0 %2542
      %2544 = vrot.lane.b32.xlu0 %v2457, 40
      %v2545 = vpop.permute.xlu0 %2544
      %2546 = vrot.lane.b32.xlu0 %v2458, 40
      %v2547 = vpop.permute.xlu0 %2546
      %2548 = vrot.lane.b32.xlu0 %v2459, 40
      %v2549 = vpop.permute.xlu0 %2548
      %2550 = vrot.lane.b32.xlu0 %v2460, 40
      %v2551 = vpop.permute.xlu0 %2550
      %2552 = vrot.lane.b32.xlu0 %v2461, 40
      %v2553 = vpop.permute.xlu0 %2552
      %2554 = vrot.lane.b32.xlu0 %v2462, 40
      %v2555 = vpop.permute.xlu0 %2554
      %2556 = vrot.lane.b32.xlu0 %v2463, 40
      %v2557 = vpop.permute.xlu0 %2556
      %2558 = vrot.lane.b32.xlu0 %v2464, 40
      %v2559 = vpop.permute.xlu0 %2558
      %2560 = vrot.lane.b32.xlu0 %v2465, 40
      %v2561 = vpop.permute.xlu0 %2560
      %vm2594 = vcmask 359744
      %2595 = vst.msk [vmem:[#allocation2] sm:$0xff] %vm2594, %v2499
      %2596 = vst.msk [vmem:[#allocation2 + $0x10] sm:$0xff] %vm2594, %v2501
      %2597 = vst.msk [vmem:[#allocation2 + $0x20] sm:$0xff] %vm2594, %v2503
      %2598 = vst.msk [vmem:[#allocation2 + $0x30] sm:$0xff] %vm2594, %v2505
      %2599 = vst.msk [vmem:[#allocation2 + $0x40] sm:$0xff] %vm2594, %v2507
      %2600 = vst.msk [vmem:[#allocation2 + $0x50] sm:$0xff] %vm2594, %v2509
      %2601 = vst.msk [vmem:[#allocation2 + $0x60] sm:$0xff] %vm2594, %v2511
      %2602 = vst.msk [vmem:[#allocation2 + $0x70] sm:$0xff] %vm2594, %v2513
      %2603 = vst.msk [vmem:[#allocation2 + $0x80] sm:$0xff] %vm2594, %v2515
      %2604 = vst.msk [vmem:[#allocation2 + $0x90] sm:$0xff] %vm2594, %v2517
      %2605 = vst.msk [vmem:[#allocation2 + $0xa0] sm:$0xff] %vm2594, %v2519
      %2606 = vst.msk [vmem:[#allocation2 + $0xb0] sm:$0xff] %vm2594, %v2521
      %2607 = vst.msk [vmem:[#allocation2 + $0xc0] sm:$0xff] %vm2594, %v2523
      %2608 = vst.msk [vmem:[#allocation2 + $0xd0] sm:$0xff] %vm2594, %v2525
      %2609 = vst.msk [vmem:[#allocation2 + $0xe0] sm:$0xff] %vm2594, %v2527
      %2610 = vst.msk [vmem:[#allocation2 + $0xf0] sm:$0xff] %vm2594, %v2529
      %2611 = vst.msk [vmem:[#allocation2 + $0x100] sm:$0xff] %vm2594, %v2531
      %2612 = vst.msk [vmem:[#allocation2 + $0x110] sm:$0xff] %vm2594, %v2533
      %2613 = vst.msk [vmem:[#allocation2 + $0x120] sm:$0xff] %vm2594, %v2535
      %2614 = vst.msk [vmem:[#allocation2 + $0x130] sm:$0xff] %vm2594, %v2537
      %2615 = vst.msk [vmem:[#allocation2 + $0x140] sm:$0xff] %vm2594, %v2539
      %2616 = vst.msk [vmem:[#allocation2 + $0x150] sm:$0xff] %vm2594, %v2541
      %2617 = vst.msk [vmem:[#allocation2 + $0x160] sm:$0xff] %vm2594, %v2543
      %2618 = vst.msk [vmem:[#allocation2 + $0x170] sm:$0xff] %vm2594, %v2545
      %2619 = vst.msk [vmem:[#allocation2 + $0x180] sm:$0xff] %vm2594, %v2547
      %2620 = vst.msk [vmem:[#allocation2 + $0x190] sm:$0xff] %vm2594, %v2549
      %2621 = vst.msk [vmem:[#allocation2 + $0x1a0] sm:$0xff] %vm2594, %v2551
      %2622 = vst.msk [vmem:[#allocation2 + $0x1b0] sm:$0xff] %vm2594, %v2553
      %2623 = vst.msk [vmem:[#allocation2 + $0x1c0] sm:$0xff] %vm2594, %v2555
      %2624 = vst.msk [vmem:[#allocation2 + $0x1d0] sm:$0xff] %vm2594, %v2557
      %2625 = vst.msk [vmem:[#allocation2 + $0x1e0] sm:$0xff] %vm2594, %v2559
      %2626 = vst.msk [vmem:[#allocation2 + $0x1f0] sm:$0xff] %vm2594, %v2561
      %v2627 = vld [vmem:[#allocation3 + $0x2] sm:$0xff]
      %v2628 = vld [vmem:[#allocation3 + $0xa] sm:$0xff]
      %v2629 = vld [vmem:[#allocation3 + $0x1a] sm:$0xff]
      %v2630 = vld [vmem:[#allocation3 + $0x22] sm:$0xff]
      %v2631 = vld [vmem:[#allocation3 + $0x32] sm:$0xff]
      %v2632 = vld [vmem:[#allocation3 + $0x3a] sm:$0xff]
      %v2633 = vld [vmem:[#allocation3 + $0x4a] sm:$0xff]
      %v2634 = vld [vmem:[#allocation3 + $0x52] sm:$0xff]
      %v2635 = vld [vmem:[#allocation3 + $0x62] sm:$0xff]
      %v2636 = vld [vmem:[#allocation3 + $0x6a] sm:$0xff]
      %v2637 = vld [vmem:[#allocation3 + $0x7a] sm:$0xff]
      %v2638 = vld [vmem:[#allocation3 + $0x82] sm:$0xff]
      %v2639 = vld [vmem:[#allocation3 + $0x92] sm:$0xff]
      %v2640 = vld [vmem:[#allocation3 + $0x9a] sm:$0xff]
      %v2641 = vld [vmem:[#allocation3 + $0xaa] sm:$0xff]
      %v2642 = vld [vmem:[#allocation3 + $0xb2] sm:$0xff]
      %v2643 = vld [vmem:[#allocation3 + $0xc2] sm:$0xff]
      %v2644 = vld [vmem:[#allocation3 + $0xca] sm:$0xff]
      %v2645 = vld [vmem:[#allocation3 + $0xda] sm:$0xff]
      %v2646 = vld [vmem:[#allocation3 + $0xe2] sm:$0xff]
      %v2647 = vld [vmem:[#allocation3 + $0xf2] sm:$0xff]
      %v2648 = vld [vmem:[#allocation3 + $0xfa] sm:$0xff]
      %v2649 = vld [vmem:[#allocation3 + $0x10a] sm:$0xff]
      %v2650 = vld [vmem:[#allocation3 + $0x112] sm:$0xff]
      %v2651 = vld [vmem:[#allocation3 + $0x122] sm:$0xff]
      %v2652 = vld [vmem:[#allocation3 + $0x12a] sm:$0xff]
      %v2653 = vld [vmem:[#allocation3 + $0x13a] sm:$0xff]
      %v2654 = vld [vmem:[#allocation3 + $0x142] sm:$0xff]
      %v2655 = vld [vmem:[#allocation3 + $0x152] sm:$0xff]
      %v2656 = vld [vmem:[#allocation3 + $0x15a] sm:$0xff]
      %v2657 = vld [vmem:[#allocation3 + $0x16a] sm:$0xff]
      %v2658 = vld [vmem:[#allocation3 + $0x172] sm:$0xff]
      %2691 = vrot.lane.b32.xlu0 %v2627, 44
      %v2692 = vpop.permute.xlu0 %2691
      %2693 = vrot.lane.b32.xlu0 %v2628, 44
      %v2694 = vpop.permute.xlu0 %2693
      %2695 = vrot.lane.b32.xlu0 %v2629, 44
      %v2696 = vpop.permute.xlu0 %2695
      %2697 = vrot.lane.b32.xlu0 %v2630, 44
      %v2698 = vpop.permute.xlu0 %2697
      %2699 = vrot.lane.b32.xlu0 %v2631, 44
      %v2700 = vpop.permute.xlu0 %2699
      %2701 = vrot.lane.b32.xlu0 %v2632, 44
      %v2702 = vpop.permute.xlu0 %2701
      %2703 = vrot.lane.b32.xlu0 %v2633, 44
      %v2704 = vpop.permute.xlu0 %2703
      %2705 = vrot.lane.b32.xlu0 %v2634, 44
      %v2706 = vpop.permute.xlu0 %2705
      %2707 = vrot.lane.b32.xlu0 %v2635, 44
      %v2708 = vpop.permute.xlu0 %2707
      %2709 = vrot.lane.b32.xlu0 %v2636, 44
      %v2710 = vpop.permute.xlu0 %2709
      %2711 = vrot.lane.b32.xlu0 %v2637, 44
      %v2712 = vpop.permute.xlu0 %2711
      %2713 = vrot.lane.b32.xlu0 %v2638, 44
      %v2714 = vpop.permute.xlu0 %2713
      %2715 = vrot.lane.b32.xlu0 %v2639, 44
      %v2716 = vpop.permute.xlu0 %2715
      %2717 = vrot.lane.b32.xlu0 %v2640, 44
      %v2718 = vpop.permute.xlu0 %2717
      %2719 = vrot.lane.b32.xlu0 %v2641, 44
      %v2720 = vpop.permute.xlu0 %2719
      %2721 = vrot.lane.b32.xlu0 %v2642, 44
      %v2722 = vpop.permute.xlu0 %2721
      %2723 = vrot.lane.b32.xlu0 %v2643, 44
      %v2724 = vpop.permute.xlu0 %2723
      %2725 = vrot.lane.b32.xlu0 %v2644, 44
      %v2726 = vpop.permute.xlu0 %2725
      %2727 = vrot.lane.b32.xlu0 %v2645, 44
      %v2728 = vpop.permute.xlu0 %2727
      %2729 = vrot.lane.b32.xlu0 %v2646, 44
      %v2730 = vpop.permute.xlu0 %2729
      %2731 = vrot.lane.b32.xlu0 %v2647, 44
      %v2732 = vpop.permute.xlu0 %2731
      %2733 = vrot.lane.b32.xlu0 %v2648, 44
      %v2734 = vpop.permute.xlu0 %2733
      %2735 = vrot.lane.b32.xlu0 %v2649, 44
      %v2736 = vpop.permute.xlu0 %2735
      %2737 = vrot.lane.b32.xlu0 %v2650, 44
      %v2738 = vpop.permute.xlu0 %2737
      %2739 = vrot.lane.b32.xlu0 %v2651, 44
      %v2740 = vpop.permute.xlu0 %2739
      %2741 = vrot.lane.b32.xlu0 %v2652, 44
      %v2742 = vpop.permute.xlu0 %2741
      %2743 = vrot.lane.b32.xlu0 %v2653, 44
      %v2744 = vpop.permute.xlu0 %2743
      %2745 = vrot.lane.b32.xlu0 %v2654, 44
      %v2746 = vpop.permute.xlu0 %2745
      %2747 = vrot.lane.b32.xlu0 %v2655, 44
      %v2748 = vpop.permute.xlu0 %2747
      %2749 = vrot.lane.b32.xlu0 %v2656, 44
      %v2750 = vpop.permute.xlu0 %2749
      %2751 = vrot.lane.b32.xlu0 %v2657, 44
      %v2752 = vpop.permute.xlu0 %2751
      %2753 = vrot.lane.b32.xlu0 %v2658, 44
      %v2754 = vpop.permute.xlu0 %2753
      %vm2787 = vcmask 392544
      %2788 = vst.msk [vmem:[#allocation2] sm:$0xff] %vm2787, %v2692
      %2789 = vst.msk [vmem:[#allocation2 + $0x10] sm:$0xff] %vm2787, %v2694
      %2790 = vst.msk [vmem:[#allocation2 + $0x20] sm:$0xff] %vm2787, %v2696
      %2791 = vst.msk [vmem:[#allocation2 + $0x30] sm:$0xff] %vm2787, %v2698
      %2792 = vst.msk [vmem:[#allocation2 + $0x40] sm:$0xff] %vm2787, %v2700
      %2793 = vst.msk [vmem:[#allocation2 + $0x50] sm:$0xff] %vm2787, %v2702
      %2794 = vst.msk [vmem:[#allocation2 + $0x60] sm:$0xff] %vm2787, %v2704
      %2795 = vst.msk [vmem:[#allocation2 + $0x70] sm:$0xff] %vm2787, %v2706
      %2796 = vst.msk [vmem:[#allocation2 + $0x80] sm:$0xff] %vm2787, %v2708
      %2797 = vst.msk [vmem:[#allocation2 + $0x90] sm:$0xff] %vm2787, %v2710
      %2798 = vst.msk [vmem:[#allocation2 + $0xa0] sm:$0xff] %vm2787, %v2712
      %2799 = vst.msk [vmem:[#allocation2 + $0xb0] sm:$0xff] %vm2787, %v2714
      %2800 = vst.msk [vmem:[#allocation2 + $0xc0] sm:$0xff] %vm2787, %v2716
      %2801 = vst.msk [vmem:[#allocation2 + $0xd0] sm:$0xff] %vm2787, %v2718
      %2802 = vst.msk [vmem:[#allocation2 + $0xe0] sm:$0xff] %vm2787, %v2720
      %2803 = vst.msk [vmem:[#allocation2 + $0xf0] sm:$0xff] %vm2787, %v2722
      %2804 = vst.msk [vmem:[#allocation2 + $0x100] sm:$0xff] %vm2787, %v2724
      %2805 = vst.msk [vmem:[#allocation2 + $0x110] sm:$0xff] %vm2787, %v2726
      %2806 = vst.msk [vmem:[#allocation2 + $0x120] sm:$0xff] %vm2787, %v2728
      %2807 = vst.msk [vmem:[#allocation2 + $0x130] sm:$0xff] %vm2787, %v2730
      %2808 = vst.msk [vmem:[#allocation2 + $0x140] sm:$0xff] %vm2787, %v2732
      %2809 = vst.msk [vmem:[#allocation2 + $0x150] sm:$0xff] %vm2787, %v2734
      %2810 = vst.msk [vmem:[#allocation2 + $0x160] sm:$0xff] %vm2787, %v2736
      %2811 = vst.msk [vmem:[#allocation2 + $0x170] sm:$0xff] %vm2787, %v2738
      %2812 = vst.msk [vmem:[#allocation2 + $0x180] sm:$0xff] %vm2787, %v2740
      %2813 = vst.msk [vmem:[#allocation2 + $0x190] sm:$0xff] %vm2787, %v2742
      %2814 = vst.msk [vmem:[#allocation2 + $0x1a0] sm:$0xff] %vm2787, %v2744
      %2815 = vst.msk [vmem:[#allocation2 + $0x1b0] sm:$0xff] %vm2787, %v2746
      %2816 = vst.msk [vmem:[#allocation2 + $0x1c0] sm:$0xff] %vm2787, %v2748
      %2817 = vst.msk [vmem:[#allocation2 + $0x1d0] sm:$0xff] %vm2787, %v2750
      %2818 = vst.msk [vmem:[#allocation2 + $0x1e0] sm:$0xff] %vm2787, %v2752
      %2819 = vst.msk [vmem:[#allocation2 + $0x1f0] sm:$0xff] %vm2787, %v2754
      %v2820 = vld [vmem:[%s282] sm:$0xff]
      %v2821 = vld [vmem:[%s282 + $0x8] sm:$0xff]
      %v2822 = vld [vmem:[%s282 + $0x18] sm:$0xff]
      %v2823 = vld [vmem:[%s282 + $0x20] sm:$0xff]
      %v2824 = vld [vmem:[%s282 + $0x30] sm:$0xff]
      %v2825 = vld [vmem:[%s282 + $0x38] sm:$0xff]
      %v2826 = vld [vmem:[%s282 + $0x48] sm:$0xff]
      %v2827 = vld [vmem:[%s282 + $0x50] sm:$0xff]
      %v2828 = vld [vmem:[%s282 + $0x60] sm:$0xff]
      %v2829 = vld [vmem:[%s282 + $0x68] sm:$0xff]
      %v2830 = vld [vmem:[%s282 + $0x78] sm:$0xff]
      %v2831 = vld [vmem:[%s282 + $0x80] sm:$0xff]
      %v2832 = vld [vmem:[%s282 + $0x90] sm:$0xff]
      %v2833 = vld [vmem:[%s282 + $0x98] sm:$0xff]
      %v2834 = vld [vmem:[%s282 + $0xa8] sm:$0xff]
      %v2835 = vld [vmem:[%s282 + $0xb0] sm:$0xff]
      %v2836 = vld [vmem:[%s282 + $0xc0] sm:$0xff]
      %v2837 = vld [vmem:[%s282 + $0xc8] sm:$0xff]
      %v2838 = vld [vmem:[%s282 + $0xd8] sm:$0xff]
      %v2839 = vld [vmem:[%s282 + $0xe0] sm:$0xff]
      %v2840 = vld [vmem:[%s282 + $0xf0] sm:$0xff]
      %v2841 = vld [vmem:[%s282 + $0xf8] sm:$0xff]
      %v2842 = vld [vmem:[%s282 + $0x108] sm:$0xff]
      %v2843 = vld [vmem:[%s282 + $0x110] sm:$0xff]
      %v2844 = vld [vmem:[%s282 + $0x120] sm:$0xff]
      %v2845 = vld [vmem:[%s282 + $0x128] sm:$0xff]
      %v2846 = vld [vmem:[%s282 + $0x138] sm:$0xff]
      %v2847 = vld [vmem:[%s282 + $0x140] sm:$0xff]
      %v2848 = vld [vmem:[%s282 + $0x150] sm:$0xff]
      %v2849 = vld [vmem:[%s282 + $0x158] sm:$0xff]
      %v2850 = vld [vmem:[%s282 + $0x168] sm:$0xff]
      %v2851 = vld [vmem:[%s282 + $0x170] sm:$0xff]
      %2884 = vrot.lane.b32.xlu0 %v2820, 48
      %v2885 = vpop.permute.xlu0 %2884
      %2886 = vrot.lane.b32.xlu0 %v2821, 48
      %v2887 = vpop.permute.xlu0 %2886
      %2888 = vrot.lane.b32.xlu0 %v2822, 48
      %v2889 = vpop.permute.xlu0 %2888
      %2890 = vrot.lane.b32.xlu0 %v2823, 48
      %v2891 = vpop.permute.xlu0 %2890
      %2892 = vrot.lane.b32.xlu0 %v2824, 48
      %v2893 = vpop.permute.xlu0 %2892
      %2894 = vrot.lane.b32.xlu0 %v2825, 48
      %v2895 = vpop.permute.xlu0 %2894
      %2896 = vrot.lane.b32.xlu0 %v2826, 48
      %v2897 = vpop.permute.xlu0 %2896
      %2898 = vrot.lane.b32.xlu0 %v2827, 48
      %v2899 = vpop.permute.xlu0 %2898
      %2900 = vrot.lane.b32.xlu0 %v2828, 48
      %v2901 = vpop.permute.xlu0 %2900
      %2902 = vrot.lane.b32.xlu0 %v2829, 48
      %v2903 = vpop.permute.xlu0 %2902
      %2904 = vrot.lane.b32.xlu0 %v2830, 48
      %v2905 = vpop.permute.xlu0 %2904
      %2906 = vrot.lane.b32.xlu0 %v2831, 48
      %v2907 = vpop.permute.xlu0 %2906
      %2908 = vrot.lane.b32.xlu0 %v2832, 48
      %v2909 = vpop.permute.xlu0 %2908
      %2910 = vrot.lane.b32.xlu0 %v2833, 48
      %v2911 = vpop.permute.xlu0 %2910
      %2912 = vrot.lane.b32.xlu0 %v2834, 48
      %v2913 = vpop.permute.xlu0 %2912
      %2914 = vrot.lane.b32.xlu0 %v2835, 48
      %v2915 = vpop.permute.xlu0 %2914
      %2916 = vrot.lane.b32.xlu0 %v2836, 48
      %v2917 = vpop.permute.xlu0 %2916
      %2918 = vrot.lane.b32.xlu0 %v2837, 48
      %v2919 = vpop.permute.xlu0 %2918
      %2920 = vrot.lane.b32.xlu0 %v2838, 48
      %v2921 = vpop.permute.xlu0 %2920
      %2922 = vrot.lane.b32.xlu0 %v2839, 48
      %v2923 = vpop.permute.xlu0 %2922
      %2924 = vrot.lane.b32.xlu0 %v2840, 48
      %v2925 = vpop.permute.xlu0 %2924
      %2926 = vrot.lane.b32.xlu0 %v2841, 48
      %v2927 = vpop.permute.xlu0 %2926
      %2928 = vrot.lane.b32.xlu0 %v2842, 48
      %v2929 = vpop.permute.xlu0 %2928
      %2930 = vrot.lane.b32.xlu0 %v2843, 48
      %v2931 = vpop.permute.xlu0 %2930
      %2932 = vrot.lane.b32.xlu0 %v2844, 48
      %v2933 = vpop.permute.xlu0 %2932
      %2934 = vrot.lane.b32.xlu0 %v2845, 48
      %v2935 = vpop.permute.xlu0 %2934
      %2936 = vrot.lane.b32.xlu0 %v2846, 48
      %v2937 = vpop.permute.xlu0 %2936
      %2938 = vrot.lane.b32.xlu0 %v2847, 48
      %v2939 = vpop.permute.xlu0 %2938
      %2940 = vrot.lane.b32.xlu0 %v2848, 48
      %v2941 = vpop.permute.xlu0 %2940
      %2942 = vrot.lane.b32.xlu0 %v2849, 48
      %v2943 = vpop.permute.xlu0 %2942
      %2944 = vrot.lane.b32.xlu0 %v2850, 48
      %v2945 = vpop.permute.xlu0 %2944
      %2946 = vrot.lane.b32.xlu0 %v2851, 48
      %v2947 = vpop.permute.xlu0 %2946
      %vm2980 = vcmask 425344
      %2981 = vst.msk [vmem:[#allocation2] sm:$0xff] %vm2980, %v2885
      %2982 = vst.msk [vmem:[#allocation2 + $0x10] sm:$0xff] %vm2980, %v2887
      %2983 = vst.msk [vmem:[#allocation2 + $0x20] sm:$0xff] %vm2980, %v2889
      %2984 = vst.msk [vmem:[#allocation2 + $0x30] sm:$0xff] %vm2980, %v2891
      %2985 = vst.msk [vmem:[#allocation2 + $0x40] sm:$0xff] %vm2980, %v2893
      %2986 = vst.msk [vmem:[#allocation2 + $0x50] sm:$0xff] %vm2980, %v2895
      %2987 = vst.msk [vmem:[#allocation2 + $0x60] sm:$0xff] %vm2980, %v2897
      %2988 = vst.msk [vmem:[#allocation2 + $0x70] sm:$0xff] %vm2980, %v2899
      %2989 = vst.msk [vmem:[#allocation2 + $0x80] sm:$0xff] %vm2980, %v2901
      %2990 = vst.msk [vmem:[#allocation2 + $0x90] sm:$0xff] %vm2980, %v2903
      %2991 = vst.msk [vmem:[#allocation2 + $0xa0] sm:$0xff] %vm2980, %v2905
      %2992 = vst.msk [vmem:[#allocation2 + $0xb0] sm:$0xff] %vm2980, %v2907
      %2993 = vst.msk [vmem:[#allocation2 + $0xc0] sm:$0xff] %vm2980, %v2909
      %2994 = vst.msk [vmem:[#allocation2 + $0xd0] sm:$0xff] %vm2980, %v2911
      %2995 = vst.msk [vmem:[#allocation2 + $0xe0] sm:$0xff] %vm2980, %v2913
      %2996 = vst.msk [vmem:[#allocation2 + $0xf0] sm:$0xff] %vm2980, %v2915
      %2997 = vst.msk [vmem:[#allocation2 + $0x100] sm:$0xff] %vm2980, %v2917
      %2998 = vst.msk [vmem:[#allocation2 + $0x110] sm:$0xff] %vm2980, %v2919
      %2999 = vst.msk [vmem:[#allocation2 + $0x120] sm:$0xff] %vm2980, %v2921
      %3000 = vst.msk [vmem:[#allocation2 + $0x130] sm:$0xff] %vm2980, %v2923
      %3001 = vst.msk [vmem:[#allocation2 + $0x140] sm:$0xff] %vm2980, %v2925
      %3002 = vst.msk [vmem:[#allocation2 + $0x150] sm:$0xff] %vm2980, %v2927
      %3003 = vst.msk [vmem:[#allocation2 + $0x160] sm:$0xff] %vm2980, %v2929
      %3004 = vst.msk [vmem:[#allocation2 + $0x170] sm:$0xff] %vm2980, %v2931
      %3005 = vst.msk [vmem:[#allocation2 + $0x180] sm:$0xff] %vm2980, %v2933
      %3006 = vst.msk [vmem:[#allocation2 + $0x190] sm:$0xff] %vm2980, %v2935
      %3007 = vst.msk [vmem:[#allocation2 + $0x1a0] sm:$0xff] %vm2980, %v2937
      %3008 = vst.msk [vmem:[#allocation2 + $0x1b0] sm:$0xff] %vm2980, %v2939
      %3009 = vst.msk [vmem:[#allocation2 + $0x1c0] sm:$0xff] %vm2980, %v2941
      %3010 = vst.msk [vmem:[#allocation2 + $0x1d0] sm:$0xff] %vm2980, %v2943
      %3011 = vst.msk [vmem:[#allocation2 + $0x1e0] sm:$0xff] %vm2980, %v2945
      %3012 = vst.msk [vmem:[#allocation2 + $0x1f0] sm:$0xff] %vm2980, %v2947
      %v3013 = vld [vmem:[%s282 + $0x1] sm:$0xff]
      %v3014 = vld [vmem:[%s282 + $0x9] sm:$0xff]
      %v3015 = vld [vmem:[%s282 + $0x19] sm:$0xff]
      %v3016 = vld [vmem:[%s282 + $0x21] sm:$0xff]
      %v3017 = vld [vmem:[%s282 + $0x31] sm:$0xff]
      %v3018 = vld [vmem:[%s282 + $0x39] sm:$0xff]
      %v3019 = vld [vmem:[%s282 + $0x49] sm:$0xff]
      %v3020 = vld [vmem:[%s282 + $0x51] sm:$0xff]
      %v3021 = vld [vmem:[%s282 + $0x61] sm:$0xff]
      %v3022 = vld [vmem:[%s282 + $0x69] sm:$0xff]
      %v3023 = vld [vmem:[%s282 + $0x79] sm:$0xff]
      %v3024 = vld [vmem:[%s282 + $0x81] sm:$0xff]
      %v3025 = vld [vmem:[%s282 + $0x91] sm:$0xff]
      %v3026 = vld [vmem:[%s282 + $0x99] sm:$0xff]
      %v3027 = vld [vmem:[%s282 + $0xa9] sm:$0xff]
      %v3028 = vld [vmem:[%s282 + $0xb1] sm:$0xff]
      %v3029 = vld [vmem:[%s282 + $0xc1] sm:$0xff]
      %v3030 = vld [vmem:[%s282 + $0xc9] sm:$0xff]
      %v3031 = vld [vmem:[%s282 + $0xd9] sm:$0xff]
      %v3032 = vld [vmem:[%s282 + $0xe1] sm:$0xff]
      %v3033 = vld [vmem:[%s282 + $0xf1] sm:$0xff]
      %v3034 = vld [vmem:[%s282 + $0xf9] sm:$0xff]
      %v3035 = vld [vmem:[%s282 + $0x109] sm:$0xff]
      %v3036 = vld [vmem:[%s282 + $0x111] sm:$0xff]
      %v3037 = vld [vmem:[%s282 + $0x121] sm:$0xff]
      %v3038 = vld [vmem:[%s282 + $0x129] sm:$0xff]
      %v3039 = vld [vmem:[%s282 + $0x139] sm:$0xff]
      %v3040 = vld [vmem:[%s282 + $0x141] sm:$0xff]
      %v3041 = vld [vmem:[%s282 + $0x151] sm:$0xff]
      %v3042 = vld [vmem:[%s282 + $0x159] sm:$0xff]
      %v3043 = vld [vmem:[%s282 + $0x169] sm:$0xff]
      %v3044 = vld [vmem:[%s282 + $0x171] sm:$0xff]
      %3077 = vrot.lane.b32.xlu0 %v3013, 52
      %v3078 = vpop.permute.xlu0 %3077
      %3079 = vrot.lane.b32.xlu0 %v3014, 52
      %v3080 = vpop.permute.xlu0 %3079
      %3081 = vrot.lane.b32.xlu0 %v3015, 52
      %v3082 = vpop.permute.xlu0 %3081
      %3083 = vrot.lane.b32.xlu0 %v3016, 52
      %v3084 = vpop.permute.xlu0 %3083
      %3085 = vrot.lane.b32.xlu0 %v3017, 52
      %v3086 = vpop.permute.xlu0 %3085
      %3087 = vrot.lane.b32.xlu0 %v3018, 52
      %v3088 = vpop.permute.xlu0 %3087
      %3089 = vrot.lane.b32.xlu0 %v3019, 52
      %v3090 = vpop.permute.xlu0 %3089
      %3091 = vrot.lane.b32.xlu0 %v3020, 52
      %v3092 = vpop.permute.xlu0 %3091
      %3093 = vrot.lane.b32.xlu0 %v3021, 52
      %v3094 = vpop.permute.xlu0 %3093
      %3095 = vrot.lane.b32.xlu0 %v3022, 52
      %v3096 = vpop.permute.xlu0 %3095
      %3097 = vrot.lane.b32.xlu0 %v3023, 52
      %v3098 = vpop.permute.xlu0 %3097
      %3099 = vrot.lane.b32.xlu0 %v3024, 52
      %v3100 = vpop.permute.xlu0 %3099
      %3101 = vrot.lane.b32.xlu0 %v3025, 52
      %v3102 = vpop.permute.xlu0 %3101
      %3103 = vrot.lane.b32.xlu0 %v3026, 52
      %v3104 = vpop.permute.xlu0 %3103
      %3105 = vrot.lane.b32.xlu0 %v3027, 52
      %v3106 = vpop.permute.xlu0 %3105
      %3107 = vrot.lane.b32.xlu0 %v3028, 52
      %v3108 = vpop.permute.xlu0 %3107
      %3109 = vrot.lane.b32.xlu0 %v3029, 52
      %v3110 = vpop.permute.xlu0 %3109
      %3111 = vrot.lane.b32.xlu0 %v3030, 52
      %v3112 = vpop.permute.xlu0 %3111
      %3113 = vrot.lane.b32.xlu0 %v3031, 52
      %v3114 = vpop.permute.xlu0 %3113
      %3115 = vrot.lane.b32.xlu0 %v3032, 52
      %v3116 = vpop.permute.xlu0 %3115
      %3117 = vrot.lane.b32.xlu0 %v3033, 52
      %v3118 = vpop.permute.xlu0 %3117
      %3119 = vrot.lane.b32.xlu0 %v3034, 52
      %v3120 = vpop.permute.xlu0 %3119
      %3121 = vrot.lane.b32.xlu0 %v3035, 52
      %v3122 = vpop.permute.xlu0 %3121
      %3123 = vrot.lane.b32.xlu0 %v3036, 52
      %v3124 = vpop.permute.xlu0 %3123
      %3125 = vrot.lane.b32.xlu0 %v3037, 52
      %v3126 = vpop.permute.xlu0 %3125
      %3127 = vrot.lane.b32.xlu0 %v3038, 52
      %v3128 = vpop.permute.xlu0 %3127
      %3129 = vrot.lane.b32.xlu0 %v3039, 52
      %v3130 = vpop.permute.xlu0 %3129
      %3131 = vrot.lane.b32.xlu0 %v3040, 52
      %v3132 = vpop.permute.xlu0 %3131
      %3133 = vrot.lane.b32.xlu0 %v3041, 52
      %v3134 = vpop.permute.xlu0 %3133
      %3135 = vrot.lane.b32.xlu0 %v3042, 52
      %v3136 = vpop.permute.xlu0 %3135
      %3137 = vrot.lane.b32.xlu0 %v3043, 52
      %v3138 = vpop.permute.xlu0 %3137
      %3139 = vrot.lane.b32.xlu0 %v3044, 52
      %v3140 = vpop.permute.xlu0 %3139
      %vm3173 = vcmask 458144
      %3174 = vst.msk [vmem:[#allocation2] sm:$0xff] %vm3173, %v3078
      %3175 = vst.msk [vmem:[#allocation2 + $0x10] sm:$0xff] %vm3173, %v3080
      %3176 = vst.msk [vmem:[#allocation2 + $0x20] sm:$0xff] %vm3173, %v3082
      %3177 = vst.msk [vmem:[#allocation2 + $0x30] sm:$0xff] %vm3173, %v3084
      %3178 = vst.msk [vmem:[#allocation2 + $0x40] sm:$0xff] %vm3173, %v3086
      %3179 = vst.msk [vmem:[#allocation2 + $0x50] sm:$0xff] %vm3173, %v3088
      %3180 = vst.msk [vmem:[#allocation2 + $0x60] sm:$0xff] %vm3173, %v3090
      %3181 = vst.msk [vmem:[#allocation2 + $0x70] sm:$0xff] %vm3173, %v3092
      %3182 = vst.msk [vmem:[#allocation2 + $0x80] sm:$0xff] %vm3173, %v3094
      %3183 = vst.msk [vmem:[#allocation2 + $0x90] sm:$0xff] %vm3173, %v3096
      %3184 = vst.msk [vmem:[#allocation2 + $0xa0] sm:$0xff] %vm3173, %v3098
      %3185 = vst.msk [vmem:[#allocation2 + $0xb0] sm:$0xff] %vm3173, %v3100
      %3186 = vst.msk [vmem:[#allocation2 + $0xc0] sm:$0xff] %vm3173, %v3102
      %3187 = vst.msk [vmem:[#allocation2 + $0xd0] sm:$0xff] %vm3173, %v3104
      %3188 = vst.msk [vmem:[#allocation2 + $0xe0] sm:$0xff] %vm3173, %v3106
      %3189 = vst.msk [vmem:[#allocation2 + $0xf0] sm:$0xff] %vm3173, %v3108
      %3190 = vst.msk [vmem:[#allocation2 + $0x100] sm:$0xff] %vm3173, %v3110
      %3191 = vst.msk [vmem:[#allocation2 + $0x110] sm:$0xff] %vm3173, %v3112
      %3192 = vst.msk [vmem:[#allocation2 + $0x120] sm:$0xff] %vm3173, %v3114
      %3193 = vst.msk [vmem:[#allocation2 + $0x130] sm:$0xff] %vm3173, %v3116
      %3194 = vst.msk [vmem:[#allocation2 + $0x140] sm:$0xff] %vm3173, %v3118
      %3195 = vst.msk [vmem:[#allocation2 + $0x150] sm:$0xff] %vm3173, %v3120
      %3196 = vst.msk [vmem:[#allocation2 + $0x160] sm:$0xff] %vm3173, %v3122
      %3197 = vst.msk [vmem:[#allocation2 + $0x170] sm:$0xff] %vm3173, %v3124
      %3198 = vst.msk [vmem:[#allocation2 + $0x180] sm:$0xff] %vm3173, %v3126
      %3199 = vst.msk [vmem:[#allocation2 + $0x190] sm:$0xff] %vm3173, %v3128
      %3200 = vst.msk [vmem:[#allocation2 + $0x1a0] sm:$0xff] %vm3173, %v3130
      %3201 = vst.msk [vmem:[#allocation2 + $0x1b0] sm:$0xff] %vm3173, %v3132
      %3202 = vst.msk [vmem:[#allocation2 + $0x1c0] sm:$0xff] %vm3173, %v3134
      %3203 = vst.msk [vmem:[#allocation2 + $0x1d0] sm:$0xff] %vm3173, %v3136
      %3204 = vst.msk [vmem:[#allocation2 + $0x1e0] sm:$0xff] %vm3173, %v3138
      %3205 = vst.msk [vmem:[#allocation2 + $0x1f0] sm:$0xff] %vm3173, %v3140
      %v3206 = vld [vmem:[%s282 + $0x2] sm:$0xff]
      %v3207 = vld [vmem:[%s282 + $0xa] sm:$0xff]
      %v3208 = vld [vmem:[%s282 + $0x1a] sm:$0xff]
      %v3209 = vld [vmem:[%s282 + $0x22] sm:$0xff]
      %v3210 = vld [vmem:[%s282 + $0x32] sm:$0xff]
      %v3211 = vld [vmem:[%s282 + $0x3a] sm:$0xff]
      %v3212 = vld [vmem:[%s282 + $0x4a] sm:$0xff]
      %v3213 = vld [vmem:[%s282 + $0x52] sm:$0xff]
      %v3214 = vld [vmem:[%s282 + $0x62] sm:$0xff]
      %v3215 = vld [vmem:[%s282 + $0x6a] sm:$0xff]
      %v3216 = vld [vmem:[%s282 + $0x7a] sm:$0xff]
      %v3217 = vld [vmem:[%s282 + $0x82] sm:$0xff]
      %v3218 = vld [vmem:[%s282 + $0x92] sm:$0xff]
      %v3219 = vld [vmem:[%s282 + $0x9a] sm:$0xff]
      %v3220 = vld [vmem:[%s282 + $0xaa] sm:$0xff]
      %v3221 = vld [vmem:[%s282 + $0xb2] sm:$0xff]
      %v3222 = vld [vmem:[%s282 + $0xc2] sm:$0xff]
      %v3223 = vld [vmem:[%s282 + $0xca] sm:$0xff]
      %v3224 = vld [vmem:[%s282 + $0xda] sm:$0xff]
      %v3225 = vld [vmem:[%s282 + $0xe2] sm:$0xff]
      %v3226 = vld [vmem:[%s282 + $0xf2] sm:$0xff]
      %v3227 = vld [vmem:[%s282 + $0xfa] sm:$0xff]
      %v3228 = vld [vmem:[%s282 + $0x10a] sm:$0xff]
      %v3229 = vld [vmem:[%s282 + $0x112] sm:$0xff]
      %v3230 = vld [vmem:[%s282 + $0x122] sm:$0xff]
      %v3231 = vld [vmem:[%s282 + $0x12a] sm:$0xff]
      %v3232 = vld [vmem:[%s282 + $0x13a] sm:$0xff]
      %v3233 = vld [vmem:[%s282 + $0x142] sm:$0xff]
      %v3234 = vld [vmem:[%s282 + $0x152] sm:$0xff]
      %v3235 = vld [vmem:[%s282 + $0x15a] sm:$0xff]
      %v3236 = vld [vmem:[%s282 + $0x16a] sm:$0xff]
      %v3237 = vld [vmem:[%s282 + $0x172] sm:$0xff]
      %3270 = vrot.lane.b32.xlu0 %v3206, 56
      %v3271 = vpop.permute.xlu0 %3270
      %3272 = vrot.lane.b32.xlu0 %v3207, 56
      %v3273 = vpop.permute.xlu0 %3272
      %3274 = vrot.lane.b32.xlu0 %v3208, 56
      %v3275 = vpop.permute.xlu0 %3274
      %3276 = vrot.lane.b32.xlu0 %v3209, 56
      %v3277 = vpop.permute.xlu0 %3276
      %3278 = vrot.lane.b32.xlu0 %v3210, 56
      %v3279 = vpop.permute.xlu0 %3278
      %3280 = vrot.lane.b32.xlu0 %v3211, 56
      %v3281 = vpop.permute.xlu0 %3280
      %3282 = vrot.lane.b32.xlu0 %v3212, 56
      %v3283 = vpop.permute.xlu0 %3282
      %3284 = vrot.lane.b32.xlu0 %v3213, 56
      %v3285 = vpop.permute.xlu0 %3284
      %3286 = vrot.lane.b32.xlu0 %v3214, 56
      %v3287 = vpop.permute.xlu0 %3286
      %3288 = vrot.lane.b32.xlu0 %v3215, 56
      %v3289 = vpop.permute.xlu0 %3288
      %3290 = vrot.lane.b32.xlu0 %v3216, 56
      %v3291 = vpop.permute.xlu0 %3290
      %3292 = vrot.lane.b32.xlu0 %v3217, 56
      %v3293 = vpop.permute.xlu0 %3292
      %3294 = vrot.lane.b32.xlu0 %v3218, 56
      %v3295 = vpop.permute.xlu0 %3294
      %3296 = vrot.lane.b32.xlu0 %v3219, 56
      %v3297 = vpop.permute.xlu0 %3296
      %3298 = vrot.lane.b32.xlu0 %v3220, 56
      %v3299 = vpop.permute.xlu0 %3298
      %3300 = vrot.lane.b32.xlu0 %v3221, 56
      %v3301 = vpop.permute.xlu0 %3300
      %3302 = vrot.lane.b32.xlu0 %v3222, 56
      %v3303 = vpop.permute.xlu0 %3302
      %3304 = vrot.lane.b32.xlu0 %v3223, 56
      %v3305 = vpop.permute.xlu0 %3304
      %3306 = vrot.lane.b32.xlu0 %v3224, 56
      %v3307 = vpop.permute.xlu0 %3306
      %3308 = vrot.lane.b32.xlu0 %v3225, 56
      %v3309 = vpop.permute.xlu0 %3308
      %3310 = vrot.lane.b32.xlu0 %v3226, 56
      %v3311 = vpop.permute.xlu0 %3310
      %3312 = vrot.lane.b32.xlu0 %v3227, 56
      %v3313 = vpop.permute.xlu0 %3312
      %3314 = vrot.lane.b32.xlu0 %v3228, 56
      %v3315 = vpop.permute.xlu0 %3314
      %3316 = vrot.lane.b32.xlu0 %v3229, 56
      %v3317 = vpop.permute.xlu0 %3316
      %3318 = vrot.lane.b32.xlu0 %v3230, 56
      %v3319 = vpop.permute.xlu0 %3318
      %3320 = vrot.lane.b32.xlu0 %v3231, 56
      %v3321 = vpop.permute.xlu0 %3320
      %3322 = vrot.lane.b32.xlu0 %v3232, 56
      %v3323 = vpop.permute.xlu0 %3322
      %3324 = vrot.lane.b32.xlu0 %v3233, 56
      %v3325 = vpop.permute.xlu0 %3324
      %3326 = vrot.lane.b32.xlu0 %v3234, 56
      %v3327 = vpop.permute.xlu0 %3326
      %3328 = vrot.lane.b32.xlu0 %v3235, 56
      %v3329 = vpop.permute.xlu0 %3328
      %3330 = vrot.lane.b32.xlu0 %v3236, 56
      %v3331 = vpop.permute.xlu0 %3330
      %3332 = vrot.lane.b32.xlu0 %v3237, 56
      %v3333 = vpop.permute.xlu0 %3332
      %vm3366 = vcmask 490944
      %3367 = vst.msk [vmem:[#allocation2] sm:$0xff] %vm3366, %v3271
      %3368 = vst.msk [vmem:[#allocation2 + $0x10] sm:$0xff] %vm3366, %v3273
      %3369 = vst.msk [vmem:[#allocation2 + $0x20] sm:$0xff] %vm3366, %v3275
      %3370 = vst.msk [vmem:[#allocation2 + $0x30] sm:$0xff] %vm3366, %v3277
      %3371 = vst.msk [vmem:[#allocation2 + $0x40] sm:$0xff] %vm3366, %v3279
      %3372 = vst.msk [vmem:[#allocation2 + $0x50] sm:$0xff] %vm3366, %v3281
      %3373 = vst.msk [vmem:[#allocation2 + $0x60] sm:$0xff] %vm3366, %v3283
      %3374 = vst.msk [vmem:[#allocation2 + $0x70] sm:$0xff] %vm3366, %v3285
      %3375 = vst.msk [vmem:[#allocation2 + $0x80] sm:$0xff] %vm3366, %v3287
      %3376 = vst.msk [vmem:[#allocation2 + $0x90] sm:$0xff] %vm3366, %v3289
      %3377 = vst.msk [vmem:[#allocation2 + $0xa0] sm:$0xff] %vm3366, %v3291
      %3378 = vst.msk [vmem:[#allocation2 + $0xb0] sm:$0xff] %vm3366, %v3293
      %3379 = vst.msk [vmem:[#allocation2 + $0xc0] sm:$0xff] %vm3366, %v3295
      %3380 = vst.msk [vmem:[#allocation2 + $0xd0] sm:$0xff] %vm3366, %v3297
      %3381 = vst.msk [vmem:[#allocation2 + $0xe0] sm:$0xff] %vm3366, %v3299
      %3382 = vst.msk [vmem:[#allocation2 + $0xf0] sm:$0xff] %vm3366, %v3301
      %3383 = vst.msk [vmem:[#allocation2 + $0x100] sm:$0xff] %vm3366, %v3303
      %3384 = vst.msk [vmem:[#allocation2 + $0x110] sm:$0xff] %vm3366, %v3305
      %3385 = vst.msk [vmem:[#allocation2 + $0x120] sm:$0xff] %vm3366, %v3307
      %3386 = vst.msk [vmem:[#allocation2 + $0x130] sm:$0xff] %vm3366, %v3309
      %3387 = vst.msk [vmem:[#allocation2 + $0x140] sm:$0xff] %vm3366, %v3311
      %3388 = vst.msk [vmem:[#allocation2 + $0x150] sm:$0xff] %vm3366, %v3313
      %3389 = vst.msk [vmem:[#allocation2 + $0x160] sm:$0xff] %vm3366, %v3315
      %3390 = vst.msk [vmem:[#allocation2 + $0x170] sm:$0xff] %vm3366, %v3317
      %3391 = vst.msk [vmem:[#allocation2 + $0x180] sm:$0xff] %vm3366, %v3319
      %3392 = vst.msk [vmem:[#allocation2 + $0x190] sm:$0xff] %vm3366, %v3321
      %3393 = vst.msk [vmem:[#allocation2 + $0x1a0] sm:$0xff] %vm3366, %v3323
      %3394 = vst.msk [vmem:[#allocation2 + $0x1b0] sm:$0xff] %vm3366, %v3325
      %3395 = vst.msk [vmem:[#allocation2 + $0x1c0] sm:$0xff] %vm3366, %v3327
      %3396 = vst.msk [vmem:[#allocation2 + $0x1d0] sm:$0xff] %vm3366, %v3329
      %3397 = vst.msk [vmem:[#allocation2 + $0x1e0] sm:$0xff] %vm3366, %v3331
      %3398 = vst.msk [vmem:[#allocation2 + $0x1f0] sm:$0xff] %vm3366, %v3333
      %v3399 = vld [vmem:[%s1344] sm:$0xff]
      %v3400 = vld [vmem:[%s1344 + $0x8] sm:$0xff]
      %v3401 = vld [vmem:[%s1344 + $0x18] sm:$0xff]
      %v3402 = vld [vmem:[%s1344 + $0x20] sm:$0xff]
      %v3403 = vld [vmem:[%s1344 + $0x30] sm:$0xff]
      %v3404 = vld [vmem:[%s1344 + $0x38] sm:$0xff]
      %v3405 = vld [vmem:[%s1344 + $0x48] sm:$0xff]
      %v3406 = vld [vmem:[%s1344 + $0x50] sm:$0xff]
      %v3407 = vld [vmem:[%s1344 + $0x60] sm:$0xff]
      %v3408 = vld [vmem:[%s1344 + $0x68] sm:$0xff]
      %v3409 = vld [vmem:[%s1344 + $0x78] sm:$0xff]
      %v3410 = vld [vmem:[%s1344 + $0x80] sm:$0xff]
      %v3411 = vld [vmem:[%s1344 + $0x90] sm:$0xff]
      %v3412 = vld [vmem:[%s1344 + $0x98] sm:$0xff]
      %v3413 = vld [vmem:[%s1344 + $0xa8] sm:$0xff]
      %v3414 = vld [vmem:[%s1344 + $0xb0] sm:$0xff]
      %v3415 = vld [vmem:[%s1344 + $0xc0] sm:$0xff]
      %v3416 = vld [vmem:[%s1344 + $0xc8] sm:$0xff]
      %v3417 = vld [vmem:[%s1344 + $0xd8] sm:$0xff]
      %v3418 = vld [vmem:[%s1344 + $0xe0] sm:$0xff]
      %v3419 = vld [vmem:[%s1344 + $0xf0] sm:$0xff]
      %v3420 = vld [vmem:[%s1344 + $0xf8] sm:$0xff]
      %v3421 = vld [vmem:[%s1344 + $0x108] sm:$0xff]
      %v3422 = vld [vmem:[%s1344 + $0x110] sm:$0xff]
      %v3423 = vld [vmem:[%s1344 + $0x120] sm:$0xff]
      %v3424 = vld [vmem:[%s1344 + $0x128] sm:$0xff]
      %v3425 = vld [vmem:[%s1344 + $0x138] sm:$0xff]
      %v3426 = vld [vmem:[%s1344 + $0x140] sm:$0xff]
      %v3427 = vld [vmem:[%s1344 + $0x150] sm:$0xff]
      %v3428 = vld [vmem:[%s1344 + $0x158] sm:$0xff]
      %v3429 = vld [vmem:[%s1344 + $0x168] sm:$0xff]
      %v3430 = vld [vmem:[%s1344 + $0x170] sm:$0xff]
      %3463 = vrot.lane.b32.xlu0 %v3399, 60
      %v3464 = vpop.permute.xlu0 %3463
      %3465 = vrot.lane.b32.xlu0 %v3400, 60
      %v3466 = vpop.permute.xlu0 %3465
      %3467 = vrot.lane.b32.xlu0 %v3401, 60
      %v3468 = vpop.permute.xlu0 %3467
      %3469 = vrot.lane.b32.xlu0 %v3402, 60
      %v3470 = vpop.permute.xlu0 %3469
      %3471 = vrot.lane.b32.xlu0 %v3403, 60
      %v3472 = vpop.permute.xlu0 %3471
      %3473 = vrot.lane.b32.xlu0 %v3404, 60
      %v3474 = vpop.permute.xlu0 %3473
      %3475 = vrot.lane.b32.xlu0 %v3405, 60
      %v3476 = vpop.permute.xlu0 %3475
      %3477 = vrot.lane.b32.xlu0 %v3406, 60
      %v3478 = vpop.permute.xlu0 %3477
      %3479 = vrot.lane.b32.xlu0 %v3407, 60
      %v3480 = vpop.permute.xlu0 %3479
      %3481 = vrot.lane.b32.xlu0 %v3408, 60
      %v3482 = vpop.permute.xlu0 %3481
      %3483 = vrot.lane.b32.xlu0 %v3409, 60
      %v3484 = vpop.permute.xlu0 %3483
      %3485 = vrot.lane.b32.xlu0 %v3410, 60
      %v3486 = vpop.permute.xlu0 %3485
      %3487 = vrot.lane.b32.xlu0 %v3411, 60
      %v3488 = vpop.permute.xlu0 %3487
      %3489 = vrot.lane.b32.xlu0 %v3412, 60
      %v3490 = vpop.permute.xlu0 %3489
      %3491 = vrot.lane.b32.xlu0 %v3413, 60
      %v3492 = vpop.permute.xlu0 %3491
      %3493 = vrot.lane.b32.xlu0 %v3414, 60
      %v3494 = vpop.permute.xlu0 %3493
      %3495 = vrot.lane.b32.xlu0 %v3415, 60
      %v3496 = vpop.permute.xlu0 %3495
      %3497 = vrot.lane.b32.xlu0 %v3416, 60
      %v3498 = vpop.permute.xlu0 %3497
      %3499 = vrot.lane.b32.xlu0 %v3417, 60
      %v3500 = vpop.permute.xlu0 %3499
      %3501 = vrot.lane.b32.xlu0 %v3418, 60
      %v3502 = vpop.permute.xlu0 %3501
      %3503 = vrot.lane.b32.xlu0 %v3419, 60
      %v3504 = vpop.permute.xlu0 %3503
      %3505 = vrot.lane.b32.xlu0 %v3420, 60
      %v3506 = vpop.permute.xlu0 %3505
      %3507 = vrot.lane.b32.xlu0 %v3421, 60
      %v3508 = vpop.permute.xlu0 %3507
      %3509 = vrot.lane.b32.xlu0 %v3422, 60
      %v3510 = vpop.permute.xlu0 %3509
      %3511 = vrot.lane.b32.xlu0 %v3423, 60
      %v3512 = vpop.permute.xlu0 %3511
      %3513 = vrot.lane.b32.xlu0 %v3424, 60
      %v3514 = vpop.permute.xlu0 %3513
      %3515 = vrot.lane.b32.xlu0 %v3425, 60
      %v3516 = vpop.permute.xlu0 %3515
      %3517 = vrot.lane.b32.xlu0 %v3426, 60
      %v3518 = vpop.permute.xlu0 %3517
      %3519 = vrot.lane.b32.xlu0 %v3427, 60
      %v3520 = vpop.permute.xlu0 %3519
      %3521 = vrot.lane.b32.xlu0 %v3428, 60
      %v3522 = vpop.permute.xlu0 %3521
      %3523 = vrot.lane.b32.xlu0 %v3429, 60
      %v3524 = vpop.permute.xlu0 %3523
      %3525 = vrot.lane.b32.xlu0 %v3430, 60
      %v3526 = vpop.permute.xlu0 %3525
      %vm3559 = vcmask 523744
      %3560 = vst.msk [vmem:[#allocation2] sm:$0xff] %vm3559, %v3464
      %3561 = vst.msk [vmem:[#allocation2 + $0x10] sm:$0xff] %vm3559, %v3466
      %3562 = vst.msk [vmem:[#allocation2 + $0x20] sm:$0xff] %vm3559, %v3468
      %3563 = vst.msk [vmem:[#allocation2 + $0x30] sm:$0xff] %vm3559, %v3470
      %3564 = vst.msk [vmem:[#allocation2 + $0x40] sm:$0xff] %vm3559, %v3472
      %3565 = vst.msk [vmem:[#allocation2 + $0x50] sm:$0xff] %vm3559, %v3474
      %3566 = vst.msk [vmem:[#allocation2 + $0x60] sm:$0xff] %vm3559, %v3476
      %3567 = vst.msk [vmem:[#allocation2 + $0x70] sm:$0xff] %vm3559, %v3478
      %3568 = vst.msk [vmem:[#allocation2 + $0x80] sm:$0xff] %vm3559, %v3480
      %3569 = vst.msk [vmem:[#allocation2 + $0x90] sm:$0xff] %vm3559, %v3482
      %3570 = vst.msk [vmem:[#allocation2 + $0xa0] sm:$0xff] %vm3559, %v3484
      %3571 = vst.msk [vmem:[#allocation2 + $0xb0] sm:$0xff] %vm3559, %v3486
      %3572 = vst.msk [vmem:[#allocation2 + $0xc0] sm:$0xff] %vm3559, %v3488
      %3573 = vst.msk [vmem:[#allocation2 + $0xd0] sm:$0xff] %vm3559, %v3490
      %3574 = vst.msk [vmem:[#allocation2 + $0xe0] sm:$0xff] %vm3559, %v3492
      %3575 = vst.msk [vmem:[#allocation2 + $0xf0] sm:$0xff] %vm3559, %v3494
      %3576 = vst.msk [vmem:[#allocation2 + $0x100] sm:$0xff] %vm3559, %v3496
      %3577 = vst.msk [vmem:[#allocation2 + $0x110] sm:$0xff] %vm3559, %v3498
      %3578 = vst.msk [vmem:[#allocation2 + $0x120] sm:$0xff] %vm3559, %v3500
      %3579 = vst.msk [vmem:[#allocation2 + $0x130] sm:$0xff] %vm3559, %v3502
      %3580 = vst.msk [vmem:[#allocation2 + $0x140] sm:$0xff] %vm3559, %v3504
      %3581 = vst.msk [vmem:[#allocation2 + $0x150] sm:$0xff] %vm3559, %v3506
      %3582 = vst.msk [vmem:[#allocation2 + $0x160] sm:$0xff] %vm3559, %v3508
      %3583 = vst.msk [vmem:[#allocation2 + $0x170] sm:$0xff] %vm3559, %v3510
      %3584 = vst.msk [vmem:[#allocation2 + $0x180] sm:$0xff] %vm3559, %v3512
      %3585 = vst.msk [vmem:[#allocation2 + $0x190] sm:$0xff] %vm3559, %v3514
      %3586 = vst.msk [vmem:[#allocation2 + $0x1a0] sm:$0xff] %vm3559, %v3516
      %3587 = vst.msk [vmem:[#allocation2 + $0x1b0] sm:$0xff] %vm3559, %v3518
      %3588 = vst.msk [vmem:[#allocation2 + $0x1c0] sm:$0xff] %vm3559, %v3520
      %3589 = vst.msk [vmem:[#allocation2 + $0x1d0] sm:$0xff] %vm3559, %v3522
      %3590 = vst.msk [vmem:[#allocation2 + $0x1e0] sm:$0xff] %vm3559, %v3524
      %3591 = vst.msk [vmem:[#allocation2 + $0x1f0] sm:$0xff] %vm3559, %v3526
      %v3592 = vld [vmem:[%s1344 + $0x1] sm:$0xff]
      %v3593 = vld [vmem:[%s1344 + $0x9] sm:$0xff]
      %v3594 = vld [vmem:[%s1344 + $0x19] sm:$0xff]
      %v3595 = vld [vmem:[%s1344 + $0x21] sm:$0xff]
      %v3596 = vld [vmem:[%s1344 + $0x31] sm:$0xff]
      %v3597 = vld [vmem:[%s1344 + $0x39] sm:$0xff]
      %v3598 = vld [vmem:[%s1344 + $0x49] sm:$0xff]
      %v3599 = vld [vmem:[%s1344 + $0x51] sm:$0xff]
      %v3600 = vld [vmem:[%s1344 + $0x61] sm:$0xff]
      %v3601 = vld [vmem:[%s1344 + $0x69] sm:$0xff]
      %v3602 = vld [vmem:[%s1344 + $0x79] sm:$0xff]
      %v3603 = vld [vmem:[%s1344 + $0x81] sm:$0xff]
      %v3604 = vld [vmem:[%s1344 + $0x91] sm:$0xff]
      %v3605 = vld [vmem:[%s1344 + $0x99] sm:$0xff]
      %v3606 = vld [vmem:[%s1344 + $0xa9] sm:$0xff]
      %v3607 = vld [vmem:[%s1344 + $0xb1] sm:$0xff]
      %v3608 = vld [vmem:[%s1344 + $0xc1] sm:$0xff]
      %v3609 = vld [vmem:[%s1344 + $0xc9] sm:$0xff]
      %v3610 = vld [vmem:[%s1344 + $0xd9] sm:$0xff]
      %v3611 = vld [vmem:[%s1344 + $0xe1] sm:$0xff]
      %v3612 = vld [vmem:[%s1344 + $0xf1] sm:$0xff]
      %v3613 = vld [vmem:[%s1344 + $0xf9] sm:$0xff]
      %v3614 = vld [vmem:[%s1344 + $0x109] sm:$0xff]
      %v3615 = vld [vmem:[%s1344 + $0x111] sm:$0xff]
      %v3616 = vld [vmem:[%s1344 + $0x121] sm:$0xff]
      %v3617 = vld [vmem:[%s1344 + $0x129] sm:$0xff]
      %v3618 = vld [vmem:[%s1344 + $0x139] sm:$0xff]
      %v3619 = vld [vmem:[%s1344 + $0x141] sm:$0xff]
      %v3620 = vld [vmem:[%s1344 + $0x151] sm:$0xff]
      %v3621 = vld [vmem:[%s1344 + $0x159] sm:$0xff]
      %v3622 = vld [vmem:[%s1344 + $0x169] sm:$0xff]
      %v3623 = vld [vmem:[%s1344 + $0x171] sm:$0xff]
      %3656 = vrot.lane.b32.xlu0 %v3592, 64
      %v3657 = vpop.permute.xlu0 %3656
      %3658 = vrot.lane.b32.xlu0 %v3593, 64
      %v3659 = vpop.permute.xlu0 %3658
      %3660 = vrot.lane.b32.xlu0 %v3594, 64
      %v3661 = vpop.permute.xlu0 %3660
      %3662 = vrot.lane.b32.xlu0 %v3595, 64
      %v3663 = vpop.permute.xlu0 %3662
      %3664 = vrot.lane.b32.xlu0 %v3596, 64
      %v3665 = vpop.permute.xlu0 %3664
      %3666 = vrot.lane.b32.xlu0 %v3597, 64
      %v3667 = vpop.permute.xlu0 %3666
      %3668 = vrot.lane.b32.xlu0 %v3598, 64
      %v3669 = vpop.permute.xlu0 %3668
      %3670 = vrot.lane.b32.xlu0 %v3599, 64
      %v3671 = vpop.permute.xlu0 %3670
      %3672 = vrot.lane.b32.xlu0 %v3600, 64
      %v3673 = vpop.permute.xlu0 %3672
      %3674 = vrot.lane.b32.xlu0 %v3601, 64
      %v3675 = vpop.permute.xlu0 %3674
      %3676 = vrot.lane.b32.xlu0 %v3602, 64
      %v3677 = vpop.permute.xlu0 %3676
      %3678 = vrot.lane.b32.xlu0 %v3603, 64
      %v3679 = vpop.permute.xlu0 %3678
      %3680 = vrot.lane.b32.xlu0 %v3604, 64
      %v3681 = vpop.permute.xlu0 %3680
      %3682 = vrot.lane.b32.xlu0 %v3605, 64
      %v3683 = vpop.permute.xlu0 %3682
      %3684 = vrot.lane.b32.xlu0 %v3606, 64
      %v3685 = vpop.permute.xlu0 %3684
      %3686 = vrot.lane.b32.xlu0 %v3607, 64
      %v3687 = vpop.permute.xlu0 %3686
      %3688 = vrot.lane.b32.xlu0 %v3608, 64
      %v3689 = vpop.permute.xlu0 %3688
      %3690 = vrot.lane.b32.xlu0 %v3609, 64
      %v3691 = vpop.permute.xlu0 %3690
      %3692 = vrot.lane.b32.xlu0 %v3610, 64
      %v3693 = vpop.permute.xlu0 %3692
      %3694 = vrot.lane.b32.xlu0 %v3611, 64
      %v3695 = vpop.permute.xlu0 %3694
      %3696 = vrot.lane.b32.xlu0 %v3612, 64
      %v3697 = vpop.permute.xlu0 %3696
      %3698 = vrot.lane.b32.xlu0 %v3613, 64
      %v3699 = vpop.permute.xlu0 %3698
      %3700 = vrot.lane.b32.xlu0 %v3614, 64
      %v3701 = vpop.permute.xlu0 %3700
      %3702 = vrot.lane.b32.xlu0 %v3615, 64
      %v3703 = vpop.permute.xlu0 %3702
      %3704 = vrot.lane.b32.xlu0 %v3616, 64
      %v3705 = vpop.permute.xlu0 %3704
      %3706 = vrot.lane.b32.xlu0 %v3617, 64
      %v3707 = vpop.permute.xlu0 %3706
      %3708 = vrot.lane.b32.xlu0 %v3618, 64
      %v3709 = vpop.permute.xlu0 %3708
      %3710 = vrot.lane.b32.xlu0 %v3619, 64
      %v3711 = vpop.permute.xlu0 %3710
      %3712 = vrot.lane.b32.xlu0 %v3620, 64
      %v3713 = vpop.permute.xlu0 %3712
      %3714 = vrot.lane.b32.xlu0 %v3621, 64
      %v3715 = vpop.permute.xlu0 %3714
      %3716 = vrot.lane.b32.xlu0 %v3622, 64
      %v3717 = vpop.permute.xlu0 %3716
      %3718 = vrot.lane.b32.xlu0 %v3623, 64
      %v3719 = vpop.permute.xlu0 %3718
      %vm3752 = vcmask 556544
      %3753 = vst.msk [vmem:[#allocation2] sm:$0xff] %vm3752, %v3657
      %3754 = vst.msk [vmem:[#allocation2 + $0x10] sm:$0xff] %vm3752, %v3659
      %3755 = vst.msk [vmem:[#allocation2 + $0x20] sm:$0xff] %vm3752, %v3661
      %3756 = vst.msk [vmem:[#allocation2 + $0x30] sm:$0xff] %vm3752, %v3663
      %3757 = vst.msk [vmem:[#allocation2 + $0x40] sm:$0xff] %vm3752, %v3665
      %3758 = vst.msk [vmem:[#allocation2 + $0x50] sm:$0xff] %vm3752, %v3667
      %3759 = vst.msk [vmem:[#allocation2 + $0x60] sm:$0xff] %vm3752, %v3669
      %3760 = vst.msk [vmem:[#allocation2 + $0x70] sm:$0xff] %vm3752, %v3671
      %3761 = vst.msk [vmem:[#allocation2 + $0x80] sm:$0xff] %vm3752, %v3673
      %3762 = vst.msk [vmem:[#allocation2 + $0x90] sm:$0xff] %vm3752, %v3675
      %3763 = vst.msk [vmem:[#allocation2 + $0xa0] sm:$0xff] %vm3752, %v3677
      %3764 = vst.msk [vmem:[#allocation2 + $0xb0] sm:$0xff] %vm3752, %v3679
      %3765 = vst.msk [vmem:[#allocation2 + $0xc0] sm:$0xff] %vm3752, %v3681
      %3766 = vst.msk [vmem:[#allocation2 + $0xd0] sm:$0xff] %vm3752, %v3683
      %3767 = vst.msk [vmem:[#allocation2 + $0xe0] sm:$0xff] %vm3752, %v3685
      %3768 = vst.msk [vmem:[#allocation2 + $0xf0] sm:$0xff] %vm3752, %v3687
      %3769 = vst.msk [vmem:[#allocation2 + $0x100] sm:$0xff] %vm3752, %v3689
      %3770 = vst.msk [vmem:[#allocation2 + $0x110] sm:$0xff] %vm3752, %v3691
      %3771 = vst.msk [vmem:[#allocation2 + $0x120] sm:$0xff] %vm3752, %v3693
      %3772 = vst.msk [vmem:[#allocation2 + $0x130] sm:$0xff] %vm3752, %v3695
      %3773 = vst.msk [vmem:[#allocation2 + $0x140] sm:$0xff] %vm3752, %v3697
      %3774 = vst.msk [vmem:[#allocation2 + $0x150] sm:$0xff] %vm3752, %v3699
      %3775 = vst.msk [vmem:[#allocation2 + $0x160] sm:$0xff] %vm3752, %v3701
      %3776 = vst.msk [vmem:[#allocation2 + $0x170] sm:$0xff] %vm3752, %v3703
      %3777 = vst.msk [vmem:[#allocation2 + $0x180] sm:$0xff] %vm3752, %v3705
      %3778 = vst.msk [vmem:[#allocation2 + $0x190] sm:$0xff] %vm3752, %v3707
      %3779 = vst.msk [vmem:[#allocation2 + $0x1a0] sm:$0xff] %vm3752, %v3709
      %3780 = vst.msk [vmem:[#allocation2 + $0x1b0] sm:$0xff] %vm3752, %v3711
      %3781 = vst.msk [vmem:[#allocation2 + $0x1c0] sm:$0xff] %vm3752, %v3713
      %3782 = vst.msk [vmem:[#allocation2 + $0x1d0] sm:$0xff] %vm3752, %v3715
      %3783 = vst.msk [vmem:[#allocation2 + $0x1e0] sm:$0xff] %vm3752, %v3717
      %3784 = vst.msk [vmem:[#allocation2 + $0x1f0] sm:$0xff] %vm3752, %v3719
      %v3785 = vld [vmem:[%s1344 + $0x2] sm:$0xff]
      %v3786 = vld [vmem:[%s1344 + $0xa] sm:$0xff]
      %v3787 = vld [vmem:[%s1344 + $0x1a] sm:$0xff]
      %v3788 = vld [vmem:[%s1344 + $0x22] sm:$0xff]
      %v3789 = vld [vmem:[%s1344 + $0x32] sm:$0xff]
      %v3790 = vld [vmem:[%s1344 + $0x3a] sm:$0xff]
      %v3791 = vld [vmem:[%s1344 + $0x4a] sm:$0xff]
      %v3792 = vld [vmem:[%s1344 + $0x52] sm:$0xff]
      %v3793 = vld [vmem:[%s1344 + $0x62] sm:$0xff]
      %v3794 = vld [vmem:[%s1344 + $0x6a] sm:$0xff]
      %v3795 = vld [vmem:[%s1344 + $0x7a] sm:$0xff]
      %v3796 = vld [vmem:[%s1344 + $0x82] sm:$0xff]
      %v3797 = vld [vmem:[%s1344 + $0x92] sm:$0xff]
      %v3798 = vld [vmem:[%s1344 + $0x9a] sm:$0xff]
      %v3799 = vld [vmem:[%s1344 + $0xaa] sm:$0xff]
      %v3800 = vld [vmem:[%s1344 + $0xb2] sm:$0xff]
      %v3801 = vld [vmem:[%s1344 + $0xc2] sm:$0xff]
      %v3802 = vld [vmem:[%s1344 + $0xca] sm:$0xff]
      %v3803 = vld [vmem:[%s1344 + $0xda] sm:$0xff]
      %v3804 = vld [vmem:[%s1344 + $0xe2] sm:$0xff]
      %v3805 = vld [vmem:[%s1344 + $0xf2] sm:$0xff]
      %v3806 = vld [vmem:[%s1344 + $0xfa] sm:$0xff]
      %v3807 = vld [vmem:[%s1344 + $0x10a] sm:$0xff]
      %v3808 = vld [vmem:[%s1344 + $0x112] sm:$0xff]
      %v3809 = vld [vmem:[%s1344 + $0x122] sm:$0xff]
      %v3810 = vld [vmem:[%s1344 + $0x12a] sm:$0xff]
      %v3811 = vld [vmem:[%s1344 + $0x13a] sm:$0xff]
      %v3812 = vld [vmem:[%s1344 + $0x142] sm:$0xff]
      %v3813 = vld [vmem:[%s1344 + $0x152] sm:$0xff]
      %v3814 = vld [vmem:[%s1344 + $0x15a] sm:$0xff]
      %v3815 = vld [vmem:[%s1344 + $0x16a] sm:$0xff]
      %v3816 = vld [vmem:[%s1344 + $0x172] sm:$0xff]
      %3849 = vrot.lane.b32.xlu0 %v3785, 68
      %v3850 = vpop.permute.xlu0 %3849
      %3851 = vrot.lane.b32.xlu0 %v3786, 68
      %v3852 = vpop.permute.xlu0 %3851
      %3853 = vrot.lane.b32.xlu0 %v3787, 68
      %v3854 = vpop.permute.xlu0 %3853
      %3855 = vrot.lane.b32.xlu0 %v3788, 68
      %v3856 = vpop.permute.xlu0 %3855
      %3857 = vrot.lane.b32.xlu0 %v3789, 68
      %v3858 = vpop.permute.xlu0 %3857
      %3859 = vrot.lane.b32.xlu0 %v3790, 68
      %v3860 = vpop.permute.xlu0 %3859
      %3861 = vrot.lane.b32.xlu0 %v3791, 68
      %v3862 = vpop.permute.xlu0 %3861
      %3863 = vrot.lane.b32.xlu0 %v3792, 68
      %v3864 = vpop.permute.xlu0 %3863
      %3865 = vrot.lane.b32.xlu0 %v3793, 68
      %v3866 = vpop.permute.xlu0 %3865
      %3867 = vrot.lane.b32.xlu0 %v3794, 68
      %v3868 = vpop.permute.xlu0 %3867
      %3869 = vrot.lane.b32.xlu0 %v3795, 68
      %v3870 = vpop.permute.xlu0 %3869
      %3871 = vrot.lane.b32.xlu0 %v3796, 68
      %v3872 = vpop.permute.xlu0 %3871
      %3873 = vrot.lane.b32.xlu0 %v3797, 68
      %v3874 = vpop.permute.xlu0 %3873
      %3875 = vrot.lane.b32.xlu0 %v3798, 68
      %v3876 = vpop.permute.xlu0 %3875
      %3877 = vrot.lane.b32.xlu0 %v3799, 68
      %v3878 = vpop.permute.xlu0 %3877
      %3879 = vrot.lane.b32.xlu0 %v3800, 68
      %v3880 = vpop.permute.xlu0 %3879
      %3881 = vrot.lane.b32.xlu0 %v3801, 68
      %v3882 = vpop.permute.xlu0 %3881
      %3883 = vrot.lane.b32.xlu0 %v3802, 68
      %v3884 = vpop.permute.xlu0 %3883
      %3885 = vrot.lane.b32.xlu0 %v3803, 68
      %v3886 = vpop.permute.xlu0 %3885
      %3887 = vrot.lane.b32.xlu0 %v3804, 68
      %v3888 = vpop.permute.xlu0 %3887
      %3889 = vrot.lane.b32.xlu0 %v3805, 68
      %v3890 = vpop.permute.xlu0 %3889
      %3891 = vrot.lane.b32.xlu0 %v3806, 68
      %v3892 = vpop.permute.xlu0 %3891
      %3893 = vrot.lane.b32.xlu0 %v3807, 68
      %v3894 = vpop.permute.xlu0 %3893
      %3895 = vrot.lane.b32.xlu0 %v3808, 68
      %v3896 = vpop.permute.xlu0 %3895
      %3897 = vrot.lane.b32.xlu0 %v3809, 68
      %v3898 = vpop.permute.xlu0 %3897
      %3899 = vrot.lane.b32.xlu0 %v3810, 68
      %v3900 = vpop.permute.xlu0 %3899
      %3901 = vrot.lane.b32.xlu0 %v3811, 68
      %v3902 = vpop.permute.xlu0 %3901
      %3903 = vrot.lane.b32.xlu0 %v3812, 68
      %v3904 = vpop.permute.xlu0 %3903
      %3905 = vrot.lane.b32.xlu0 %v3813, 68
      %v3906 = vpop.permute.xlu0 %3905
      %3907 = vrot.lane.b32.xlu0 %v3814, 68
      %v3908 = vpop.permute.xlu0 %3907
      %3909 = vrot.lane.b32.xlu0 %v3815, 68
      %v3910 = vpop.permute.xlu0 %3909
      %3911 = vrot.lane.b32.xlu0 %v3816, 68
      %v3912 = vpop.permute.xlu0 %3911
      %vm3945 = vcmask 589344
      %3946 = vst.msk [vmem:[#allocation2] sm:$0xff] %vm3945, %v3850
      %3947 = vst.msk [vmem:[#allocation2 + $0x10] sm:$0xff] %vm3945, %v3852
      %3948 = vst.msk [vmem:[#allocation2 + $0x20] sm:$0xff] %vm3945, %v3854
      %3949 = vst.msk [vmem:[#allocation2 + $0x30] sm:$0xff] %vm3945, %v3856
      %3950 = vst.msk [vmem:[#allocation2 + $0x40] sm:$0xff] %vm3945, %v3858
      %3951 = vst.msk [vmem:[#allocation2 + $0x50] sm:$0xff] %vm3945, %v3860
      %3952 = vst.msk [vmem:[#allocation2 + $0x60] sm:$0xff] %vm3945, %v3862
      %3953 = vst.msk [vmem:[#allocation2 + $0x70] sm:$0xff] %vm3945, %v3864
      %3954 = vst.msk [vmem:[#allocation2 + $0x80] sm:$0xff] %vm3945, %v3866
      %3955 = vst.msk [vmem:[#allocation2 + $0x90] sm:$0xff] %vm3945, %v3868
      %3956 = vst.msk [vmem:[#allocation2 + $0xa0] sm:$0xff] %vm3945, %v3870
      %3957 = vst.msk [vmem:[#allocation2 + $0xb0] sm:$0xff] %vm3945, %v3872
      %3958 = vst.msk [vmem:[#allocation2 + $0xc0] sm:$0xff] %vm3945, %v3874
      %3959 = vst.msk [vmem:[#allocation2 + $0xd0] sm:$0xff] %vm3945, %v3876
      %3960 = vst.msk [vmem:[#allocation2 + $0xe0] sm:$0xff] %vm3945, %v3878
      %3961 = vst.msk [vmem:[#allocation2 + $0xf0] sm:$0xff] %vm3945, %v3880
      %3962 = vst.msk [vmem:[#allocation2 + $0x100] sm:$0xff] %vm3945, %v3882
      %3963 = vst.msk [vmem:[#allocation2 + $0x110] sm:$0xff] %vm3945, %v3884
      %3964 = vst.msk [vmem:[#allocation2 + $0x120] sm:$0xff] %vm3945, %v3886
      %3965 = vst.msk [vmem:[#allocation2 + $0x130] sm:$0xff] %vm3945, %v3888
      %3966 = vst.msk [vmem:[#allocation2 + $0x140] sm:$0xff] %vm3945, %v3890
      %3967 = vst.msk [vmem:[#allocation2 + $0x150] sm:$0xff] %vm3945, %v3892
      %3968 = vst.msk [vmem:[#allocation2 + $0x160] sm:$0xff] %vm3945, %v3894
      %3969 = vst.msk [vmem:[#allocation2 + $0x170] sm:$0xff] %vm3945, %v3896
      %3970 = vst.msk [vmem:[#allocation2 + $0x180] sm:$0xff] %vm3945, %v3898
      %3971 = vst.msk [vmem:[#allocation2 + $0x190] sm:$0xff] %vm3945, %v3900
      %3972 = vst.msk [vmem:[#allocation2 + $0x1a0] sm:$0xff] %vm3945, %v3902
      %3973 = vst.msk [vmem:[#allocation2 + $0x1b0] sm:$0xff] %vm3945, %v3904
      %3974 = vst.msk [vmem:[#allocation2 + $0x1c0] sm:$0xff] %vm3945, %v3906
      %3975 = vst.msk [vmem:[#allocation2 + $0x1d0] sm:$0xff] %vm3945, %v3908
      %3976 = vst.msk [vmem:[#allocation2 + $0x1e0] sm:$0xff] %vm3945, %v3910
      %3977 = vst.msk [vmem:[#allocation2 + $0x1f0] sm:$0xff] %vm3945, %v3912
      %v3978 = vld [vmem:[#allocation2] sm:$0xff]
      %v3979 = vld [vmem:[#allocation2 + $0x10] sm:$0xff]
      %v3980 = vld [vmem:[#allocation2 + $0x20] sm:$0xff]
      %v3981 = vld [vmem:[#allocation2 + $0x30] sm:$0xff]
      %v3982 = vld [vmem:[#allocation2 + $0x40] sm:$0xff]
      %v3983 = vld [vmem:[#allocation2 + $0x50] sm:$0xff]
      %v3984 = vld [vmem:[#allocation2 + $0x60] sm:$0xff]
      %v3985 = vld [vmem:[#allocation2 + $0x70] sm:$0xff]
      %v3986 = vld [vmem:[#allocation2 + $0x80] sm:$0xff]
      %v3987 = vld [vmem:[#allocation2 + $0x90] sm:$0xff]
      %v3988 = vld [vmem:[#allocation2 + $0xa0] sm:$0xff]
      %v3989 = vld [vmem:[#allocation2 + $0xb0] sm:$0xff]
      %v3990 = vld [vmem:[#allocation2 + $0xc0] sm:$0xff]
      %v3991 = vld [vmem:[#allocation2 + $0xd0] sm:$0xff]
      %v3992 = vld [vmem:[#allocation2 + $0xe0] sm:$0xff]
      %v3993 = vld [vmem:[#allocation2 + $0xf0] sm:$0xff]
      %v3994 = vld [vmem:[#allocation2 + $0x100] sm:$0xff]
      %v3995 = vld [vmem:[#allocation2 + $0x110] sm:$0xff]
      %v3996 = vld [vmem:[#allocation2 + $0x120] sm:$0xff]
      %v3997 = vld [vmem:[#allocation2 + $0x130] sm:$0xff]
      %v3998 = vld [vmem:[#allocation2 + $0x140] sm:$0xff]
      %v3999 = vld [vmem:[#allocation2 + $0x150] sm:$0xff]
      %v4000 = vld [vmem:[#allocation2 + $0x160] sm:$0xff]
      %v4001 = vld [vmem:[#allocation2 + $0x170] sm:$0xff]
      %v4002 = vld [vmem:[#allocation2 + $0x180] sm:$0xff]
      %v4003 = vld [vmem:[#allocation2 + $0x190] sm:$0xff]
      %v4004 = vld [vmem:[#allocation2 + $0x1a0] sm:$0xff]
      %v4005 = vld [vmem:[#allocation2 + $0x1b0] sm:$0xff]
      %v4006 = vld [vmem:[#allocation2 + $0x1c0] sm:$0xff]
      %v4007 = vld [vmem:[#allocation2 + $0x1d0] sm:$0xff]
      %v4008 = vld [vmem:[#allocation2 + $0x1e0] sm:$0xff]
      %v4009 = vld [vmem:[#allocation2 + $0x1f0] sm:$0xff]
      %s4010 = scalar_lea.vmem %s1, 152
      %v4011 = vld [vmem:[%s4010] sm:$0xff]
      %v4012 = vld [vmem:[%s4010 + $0x8] sm:$0xff]
      %v4013 = vld [vmem:[%s4010 + $0x10] sm:$0xff]
      %v4014 = vld [vmem:[%s4010 + $0x18] sm:$0xff]
      %v4015 = vld [vmem:[%s4010 + $0x20] sm:$0xff]
      %v4016 = vld [vmem:[%s4010 + $0x28] sm:$0xff]
      %v4017 = vld [vmem:[%s4010 + $0x30] sm:$0xff]
      %v4018 = vld [vmem:[%s4010 + $0x38] sm:$0xff]
      %v4019 = vld [vmem:[%s4010 + $0x40] sm:$0xff]
      %v4020 = vld [vmem:[%s2 + $0x1] sm:$0x1]
      %v4021 = vperm.slane %v4020, 0
      %vm4022 = vcmask 588800
      %v4024 = vsel %vm4022, %v3978, 0
      %v4027 = vsel %vm4022, %v3979, 0
      %v4030 = vsel %vm4022, %v3980, 0
      %v4033 = vsel %vm4022, %v3981, 0
      %v4036 = vsel %vm4022, %v3982, 0
      %v4039 = vsel %vm4022, %v3983, 0
      %v4042 = vsel %vm4022, %v3984, 0
      %v4045 = vsel %vm4022, %v3985, 0
      %v4048 = vsel %vm4022, %v3986, 0
      %v4051 = vsel %vm4022, %v3987, 0
      %v4054 = vsel %vm4022, %v3988, 0
      %v4057 = vsel %vm4022, %v3989, 0
      %v4060 = vsel %vm4022, %v3990, 0
      %v4063 = vsel %vm4022, %v3991, 0
      %v4066 = vsel %vm4022, %v3992, 0
      %v4069 = vsel %vm4022, %v3993, 0
      %v4072 = vsel %vm4022, %v3994, 0
      %v4075 = vsel %vm4022, %v3995, 0
      %v4078 = vsel %vm4022, %v3996, 0
      %v4081 = vsel %vm4022, %v3997, 0
      %v4084 = vsel %vm4022, %v3998, 0
      %v4087 = vsel %vm4022, %v3999, 0
      %v4090 = vsel %vm4022, %v4000, 0
      %v4093 = vsel %vm4022, %v4001, 0
      %v4096 = vsel %vm4022, %v4002, 0
      %v4099 = vsel %vm4022, %v4003, 0
      %v4102 = vsel %vm4022, %v4004, 0
      %v4105 = vsel %vm4022, %v4005, 0
      %v4108 = vsel %vm4022, %v4006, 0
      %v4111 = vsel %vm4022, %v4007, 0
      %v4114 = vsel %vm4022, %v4008, 0
      %v4117 = vsel %vm4022, %v4009, 0
      %4119 = vmatpush.msra.mxu0 0.0
      %4120 = vmatpush.msra.mxu0 0.0
      %4121 = vmatpush.msra.mxu0 0.0
      %4122 = vmatpush.msra.mxu0 0.0
      %4123 = vmatpush.msra.mxu0 0.0
      %4124 = vmatpush.msra.mxu0 0.0
      %4125 = vmatpush.msra.mxu0 0.0
      %4126 = vmatpush.msra.mxu0 %v4019
      %4127 = vmatpush.msra.mxu0 %v4018
      %4128 = vmatpush.msra.mxu0 %v4017
      %4129 = vmatpush.msra.mxu0 %v4016
      %4130 = vmatpush.msra.mxu0 %v4015
      %4131 = vmatpush.msra.mxu0 %v4014
      %4132 = vmatpush.msra.mxu0 %v4013
      %4133 = vmatpush.msra.mxu0 %v4012
      %4134 = vmatpush.msra.mxu0 %v4011
      %4135 = vmatmul.f32.gmra.mxu0 %v4024
      %v4136 = vpop.f32.mrf.mxu0
      %v4137 = vadd.f32 %v4021, %v4136
      %4138 = vmatmul.f32.gmra.mxu0 %v4027
      %v4139 = vpop.f32.mrf.mxu0
      %v4140 = vadd.f32 %v4021, %v4139
      %4141 = vmatmul.f32.gmra.mxu0 %v4030
      %v4142 = vpop.f32.mrf.mxu0
      %v4143 = vadd.f32 %v4021, %v4142
      %4144 = vmatmul.f32.gmra.mxu0 %v4033
      %v4145 = vpop.f32.mrf.mxu0
      %v4146 = vadd.f32 %v4021, %v4145
      %4147 = vmatmul.f32.gmra.mxu0 %v4036
      %v4148 = vpop.f32.mrf.mxu0
      %v4149 = vadd.f32 %v4021, %v4148
      %4150 = vmatmul.f32.gmra.mxu0 %v4039
      %v4151 = vpop.f32.mrf.mxu0
      %v4152 = vadd.f32 %v4021, %v4151
      %4153 = vmatmul.f32.gmra.mxu0 %v4042
      %v4154 = vpop.f32.mrf.mxu0
      %v4155 = vadd.f32 %v4021, %v4154
      %4156 = vmatmul.f32.gmra.mxu0 %v4045
      %v4157 = vpop.f32.mrf.mxu0
      %v4158 = vadd.f32 %v4021, %v4157
      %4159 = vmatmul.f32.gmra.mxu0 %v4048
      %v4160 = vpop.f32.mrf.mxu0
      %v4161 = vadd.f32 %v4021, %v4160
      %4162 = vmatmul.f32.gmra.mxu0 %v4051
      %v4163 = vpop.f32.mrf.mxu0
      %v4164 = vadd.f32 %v4021, %v4163
      %4165 = vmatmul.f32.gmra.mxu0 %v4054
      %v4166 = vpop.f32.mrf.mxu0
      %v4167 = vadd.f32 %v4021, %v4166
      %4168 = vmatmul.f32.gmra.mxu0 %v4057
      %v4169 = vpop.f32.mrf.mxu0
      %v4170 = vadd.f32 %v4021, %v4169
      %4171 = vmatmul.f32.gmra.mxu0 %v4060
      %v4172 = vpop.f32.mrf.mxu0
      %v4173 = vadd.f32 %v4021, %v4172
      %4174 = vmatmul.f32.gmra.mxu0 %v4063
      %v4175 = vpop.f32.mrf.mxu0
      %v4176 = vadd.f32 %v4021, %v4175
      %4177 = vmatmul.f32.gmra.mxu0 %v4066
      %v4178 = vpop.f32.mrf.mxu0
      %v4179 = vadd.f32 %v4021, %v4178
      %4180 = vmatmul.f32.gmra.mxu0 %v4069
      %v4181 = vpop.f32.mrf.mxu0
      %v4182 = vadd.f32 %v4021, %v4181
      %4183 = vmatmul.f32.gmra.mxu0 %v4072
      %v4184 = vpop.f32.mrf.mxu0
      %v4185 = vadd.f32 %v4021, %v4184
      %4186 = vmatmul.f32.gmra.mxu0 %v4075
      %v4187 = vpop.f32.mrf.mxu0
      %v4188 = vadd.f32 %v4021, %v4187
      %4189 = vmatmul.f32.gmra.mxu0 %v4078
      %v4190 = vpop.f32.mrf.mxu0
      %v4191 = vadd.f32 %v4021, %v4190
      %4192 = vmatmul.f32.gmra.mxu0 %v4081
      %v4193 = vpop.f32.mrf.mxu0
      %v4194 = vadd.f32 %v4021, %v4193
      %4195 = vmatmul.f32.gmra.mxu0 %v4084
      %v4196 = vpop.f32.mrf.mxu0
      %v4197 = vadd.f32 %v4021, %v4196
      %4198 = vmatmul.f32.gmra.mxu0 %v4087
      %v4199 = vpop.f32.mrf.mxu0
      %v4200 = vadd.f32 %v4021, %v4199
      %4201 = vmatmul.f32.gmra.mxu0 %v4090
      %v4202 = vpop.f32.mrf.mxu0
      %v4203 = vadd.f32 %v4021, %v4202
      %4204 = vmatmul.f32.gmra.mxu0 %v4093
      %v4205 = vpop.f32.mrf.mxu0
      %v4206 = vadd.f32 %v4021, %v4205
      %4207 = vmatmul.f32.gmra.mxu0 %v4096
      %v4208 = vpop.f32.mrf.mxu0
      %v4209 = vadd.f32 %v4021, %v4208
      %4210 = vmatmul.f32.gmra.mxu0 %v4099
      %v4211 = vpop.f32.mrf.mxu0
      %v4212 = vadd.f32 %v4021, %v4211
      %4213 = vmatmul.f32.gmra.mxu0 %v4102
      %v4214 = vpop.f32.mrf.mxu0
      %v4215 = vadd.f32 %v4021, %v4214
      %4216 = vmatmul.f32.gmra.mxu0 %v4105
      %v4217 = vpop.f32.mrf.mxu0
      %v4218 = vadd.f32 %v4021, %v4217
      %4219 = vmatmul.f32.gmra.mxu0 %v4108
      %v4220 = vpop.f32.mrf.mxu0
      %v4221 = vadd.f32 %v4021, %v4220
      %4222 = vmatmul.f32.gmra.mxu0 %v4111
      %v4223 = vpop.f32.mrf.mxu0
      %v4224 = vadd.f32 %v4021, %v4223
      %4225 = vmatmul.f32.gmra.mxu0 %v4114
      %v4226 = vpop.f32.mrf.mxu0
      %v4227 = vadd.f32 %v4021, %v4226
      %4228 = vmatmul.f32.gmra.mxu0 %v4117
      %v4229 = vpop.f32.mrf.mxu0
      %v4230 = vadd.f32 %v4021, %v4229
      %4231 = vdwg.mxu0
      %v4232 = vmax.f32 %v4137, 0.0
      %v4233 = vmax.f32 %v4140, 0.0
      %v4234 = vmax.f32 %v4143, 0.0
      %v4235 = vmax.f32 %v4146, 0.0
      %v4236 = vmax.f32 %v4149, 0.0
      %v4237 = vmax.f32 %v4152, 0.0
      %v4238 = vmax.f32 %v4155, 0.0
      %v4239 = vmax.f32 %v4158, 0.0
      %v4240 = vmax.f32 %v4161, 0.0
      %v4241 = vmax.f32 %v4164, 0.0
      %v4242 = vmax.f32 %v4167, 0.0
      %v4243 = vmax.f32 %v4170, 0.0
      %v4244 = vmax.f32 %v4173, 0.0
      %v4245 = vmax.f32 %v4176, 0.0
      %v4246 = vmax.f32 %v4179, 0.0
      %v4247 = vmax.f32 %v4182, 0.0
      %v4248 = vmax.f32 %v4185, 0.0
      %v4249 = vmax.f32 %v4188, 0.0
      %v4250 = vmax.f32 %v4191, 0.0
      %v4251 = vmax.f32 %v4194, 0.0
      %v4252 = vmax.f32 %v4197, 0.0
      %v4253 = vmax.f32 %v4200, 0.0
      %v4254 = vmax.f32 %v4203, 0.0
      %v4255 = vmax.f32 %v4206, 0.0
      %v4256 = vmax.f32 %v4209, 0.0
      %v4257 = vmax.f32 %v4212, 0.0
      %v4258 = vmax.f32 %v4215, 0.0
      %v4259 = vmax.f32 %v4218, 0.0
      %v4260 = vmax.f32 %v4221, 0.0
      %v4261 = vmax.f32 %v4224, 0.0
      %v4262 = vmax.f32 %v4227, 0.0
      %v4263 = vmax.f32 %v4230, 0.0
      %4264 = vst.msk [vmem:[%s282 + $0x1] sm:$0xff] %vm171, %v4232
      %4265 = vst.msk [vmem:[%s282 + $0x9] sm:$0xff] %vm171, %v4233
      %4266 = vst.msk [vmem:[%s282 + $0x19] sm:$0xff] %vm171, %v4234
      %4267 = vst.msk [vmem:[%s282 + $0x21] sm:$0xff] %vm171, %v4235
      %4268 = vst.msk [vmem:[%s282 + $0x31] sm:$0xff] %vm171, %v4236
      %4269 = vst.msk [vmem:[%s282 + $0x39] sm:$0xff] %vm171, %v4237
      %4270 = vst.msk [vmem:[%s282 + $0x49] sm:$0xff] %vm171, %v4238
      %4271 = vst.msk [vmem:[%s282 + $0x51] sm:$0xff] %vm171, %v4239
      %4272 = vst.msk [vmem:[%s282 + $0x61] sm:$0xff] %vm171, %v4240
      %4273 = vst.msk [vmem:[%s282 + $0x69] sm:$0xff] %vm171, %v4241
      %4274 = vst.msk [vmem:[%s282 + $0x79] sm:$0xff] %vm171, %v4242
      %4275 = vst.msk [vmem:[%s282 + $0x81] sm:$0xff] %vm171, %v4243
      %4276 = vst.msk [vmem:[%s282 + $0x91] sm:$0xff] %vm171, %v4244
      %4277 = vst.msk [vmem:[%s282 + $0x99] sm:$0xff] %vm171, %v4245
      %4278 = vst.msk [vmem:[%s282 + $0xa9] sm:$0xff] %vm171, %v4246
      %4279 = vst.msk [vmem:[%s282 + $0xb1] sm:$0xff] %vm171, %v4247
      %4280 = vst.msk [vmem:[%s282 + $0xc1] sm:$0xff] %vm171, %v4248
      %4281 = vst.msk [vmem:[%s282 + $0xc9] sm:$0xff] %vm171, %v4249
      %4282 = vst.msk [vmem:[%s282 + $0xd9] sm:$0xff] %vm171, %v4250
      %4283 = vst.msk [vmem:[%s282 + $0xe1] sm:$0xff] %vm171, %v4251
      %4284 = vst.msk [vmem:[%s282 + $0xf1] sm:$0xff] %vm171, %v4252
      %4285 = vst.msk [vmem:[%s282 + $0xf9] sm:$0xff] %vm171, %v4253
      %4286 = vst.msk [vmem:[%s282 + $0x109] sm:$0xff] %vm171, %v4254
      %4287 = vst.msk [vmem:[%s282 + $0x111] sm:$0xff] %vm171, %v4255
      %4288 = vst.msk [vmem:[%s282 + $0x121] sm:$0xff] %vm171, %v4256
      %4289 = vst.msk [vmem:[%s282 + $0x129] sm:$0xff] %vm171, %v4257
      %4290 = vst.msk [vmem:[%s282 + $0x139] sm:$0xff] %vm171, %v4258
      %4291 = vst.msk [vmem:[%s282 + $0x141] sm:$0xff] %vm171, %v4259
      %4292 = vst.msk [vmem:[%s282 + $0x151] sm:$0xff] %vm171, %v4260
      %4293 = vst.msk [vmem:[%s282 + $0x159] sm:$0xff] %vm171, %v4261
      %4294 = vst.msk [vmem:[%s282 + $0x169] sm:$0xff] %vm171, %v4262
      %4295 = vst.msk [vmem:[%s282 + $0x171] sm:$0xff] %vm171, %v4263
      %v4296 = vld [vmem:[#allocation3] sm:$0xff]
      %v4297 = vld [vmem:[#allocation3 + $0x8] sm:$0xff]
      %v4298 = vld [vmem:[#allocation3 + $0x18] sm:$0xff]
      %v4299 = vld [vmem:[#allocation3 + $0x20] sm:$0xff]
      %v4300 = vld [vmem:[#allocation3 + $0x30] sm:$0xff]
      %v4301 = vld [vmem:[#allocation3 + $0x38] sm:$0xff]
      %v4302 = vld [vmem:[#allocation3 + $0x48] sm:$0xff]
      %v4303 = vld [vmem:[#allocation3 + $0x50] sm:$0xff]
      %v4304 = vld [vmem:[#allocation3 + $0x60] sm:$0xff]
      %v4305 = vld [vmem:[#allocation3 + $0x68] sm:$0xff]
      %v4306 = vld [vmem:[#allocation3 + $0x78] sm:$0xff]
      %v4307 = vld [vmem:[#allocation3 + $0x80] sm:$0xff]
      %v4308 = vld [vmem:[#allocation3 + $0x90] sm:$0xff]
      %v4309 = vld [vmem:[#allocation3 + $0x98] sm:$0xff]
      %v4310 = vld [vmem:[#allocation3 + $0xa8] sm:$0xff]
      %v4311 = vld [vmem:[#allocation3 + $0xb0] sm:$0xff]
      %v4312 = vld [vmem:[#allocation3 + $0xc0] sm:$0xff]
      %v4313 = vld [vmem:[#allocation3 + $0xc8] sm:$0xff]
      %v4314 = vld [vmem:[#allocation3 + $0xd8] sm:$0xff]
      %v4315 = vld [vmem:[#allocation3 + $0xe0] sm:$0xff]
      %v4316 = vld [vmem:[#allocation3 + $0xf0] sm:$0xff]
      %v4317 = vld [vmem:[#allocation3 + $0xf8] sm:$0xff]
      %v4318 = vld [vmem:[#allocation3 + $0x108] sm:$0xff]
      %v4319 = vld [vmem:[#allocation3 + $0x110] sm:$0xff]
      %v4320 = vld [vmem:[#allocation3 + $0x120] sm:$0xff]
      %v4321 = vld [vmem:[#allocation3 + $0x128] sm:$0xff]
      %v4322 = vld [vmem:[#allocation3 + $0x138] sm:$0xff]
      %v4323 = vld [vmem:[#allocation3 + $0x140] sm:$0xff]
      %v4324 = vld [vmem:[#allocation3 + $0x150] sm:$0xff]
      %v4325 = vld [vmem:[#allocation3 + $0x158] sm:$0xff]
      %v4326 = vld [vmem:[#allocation3 + $0x168] sm:$0xff]
      %v4327 = vld [vmem:[#allocation3 + $0x170] sm:$0xff]
      %4360 = vrot.lane.b32.xlu0 %v4296, 72
      %v4361 = vpop.permute.xlu0 %4360
      %4362 = vrot.lane.b32.xlu0 %v4297, 72
      %v4363 = vpop.permute.xlu0 %4362
      %4364 = vrot.lane.b32.xlu0 %v4298, 72
      %v4365 = vpop.permute.xlu0 %4364
      %4366 = vrot.lane.b32.xlu0 %v4299, 72
      %v4367 = vpop.permute.xlu0 %4366
      %4368 = vrot.lane.b32.xlu0 %v4300, 72
      %v4369 = vpop.permute.xlu0 %4368
      %4370 = vrot.lane.b32.xlu0 %v4301, 72
      %v4371 = vpop.permute.xlu0 %4370
      %4372 = vrot.lane.b32.xlu0 %v4302, 72
      %v4373 = vpop.permute.xlu0 %4372
      %4374 = vrot.lane.b32.xlu0 %v4303, 72
      %v4375 = vpop.permute.xlu0 %4374
      %4376 = vrot.lane.b32.xlu0 %v4304, 72
      %v4377 = vpop.permute.xlu0 %4376
      %4378 = vrot.lane.b32.xlu0 %v4305, 72
      %v4379 = vpop.permute.xlu0 %4378
      %4380 = vrot.lane.b32.xlu0 %v4306, 72
      %v4381 = vpop.permute.xlu0 %4380
      %4382 = vrot.lane.b32.xlu0 %v4307, 72
      %v4383 = vpop.permute.xlu0 %4382
      %4384 = vrot.lane.b32.xlu0 %v4308, 72
      %v4385 = vpop.permute.xlu0 %4384
      %4386 = vrot.lane.b32.xlu0 %v4309, 72
      %v4387 = vpop.permute.xlu0 %4386
      %4388 = vrot.lane.b32.xlu0 %v4310, 72
      %v4389 = vpop.permute.xlu0 %4388
      %4390 = vrot.lane.b32.xlu0 %v4311, 72
      %v4391 = vpop.permute.xlu0 %4390
      %4392 = vrot.lane.b32.xlu0 %v4312, 72
      %v4393 = vpop.permute.xlu0 %4392
      %4394 = vrot.lane.b32.xlu0 %v4313, 72
      %v4395 = vpop.permute.xlu0 %4394
      %4396 = vrot.lane.b32.xlu0 %v4314, 72
      %v4397 = vpop.permute.xlu0 %4396
      %4398 = vrot.lane.b32.xlu0 %v4315, 72
      %v4399 = vpop.permute.xlu0 %4398
      %4400 = vrot.lane.b32.xlu0 %v4316, 72
      %v4401 = vpop.permute.xlu0 %4400
      %4402 = vrot.lane.b32.xlu0 %v4317, 72
      %v4403 = vpop.permute.xlu0 %4402
      %4404 = vrot.lane.b32.xlu0 %v4318, 72
      %v4405 = vpop.permute.xlu0 %4404
      %4406 = vrot.lane.b32.xlu0 %v4319, 72
      %v4407 = vpop.permute.xlu0 %4406
      %4408 = vrot.lane.b32.xlu0 %v4320, 72
      %v4409 = vpop.permute.xlu0 %4408
      %4410 = vrot.lane.b32.xlu0 %v4321, 72
      %v4411 = vpop.permute.xlu0 %4410
      %4412 = vrot.lane.b32.xlu0 %v4322, 72
      %v4413 = vpop.permute.xlu0 %4412
      %4414 = vrot.lane.b32.xlu0 %v4323, 72
      %v4415 = vpop.permute.xlu0 %4414
      %4416 = vrot.lane.b32.xlu0 %v4324, 72
      %v4417 = vpop.permute.xlu0 %4416
      %4418 = vrot.lane.b32.xlu0 %v4325, 72
      %v4419 = vpop.permute.xlu0 %4418
      %4420 = vrot.lane.b32.xlu0 %v4326, 72
      %v4421 = vpop.permute.xlu0 %4420
      %4422 = vrot.lane.b32.xlu0 %v4327, 72
      %v4423 = vpop.permute.xlu0 %4422
      %vm4456 = vcmask 622144
      %4457 = vst.msk [vmem:[#allocation2] sm:$0xff] %vm4456, %v4361
      %4458 = vst.msk [vmem:[#allocation2 + $0x10] sm:$0xff] %vm4456, %v4363
      %4459 = vst.msk [vmem:[#allocation2 + $0x20] sm:$0xff] %vm4456, %v4365
      %4460 = vst.msk [vmem:[#allocation2 + $0x30] sm:$0xff] %vm4456, %v4367
      %4461 = vst.msk [vmem:[#allocation2 + $0x40] sm:$0xff] %vm4456, %v4369
      %4462 = vst.msk [vmem:[#allocation2 + $0x50] sm:$0xff] %vm4456, %v4371
      %4463 = vst.msk [vmem:[#allocation2 + $0x60] sm:$0xff] %vm4456, %v4373
      %4464 = vst.msk [vmem:[#allocation2 + $0x70] sm:$0xff] %vm4456, %v4375
      %4465 = vst.msk [vmem:[#allocation2 + $0x80] sm:$0xff] %vm4456, %v4377
      %4466 = vst.msk [vmem:[#allocation2 + $0x90] sm:$0xff] %vm4456, %v4379
      %4467 = vst.msk [vmem:[#allocation2 + $0xa0] sm:$0xff] %vm4456, %v4381
      %4468 = vst.msk [vmem:[#allocation2 + $0xb0] sm:$0xff] %vm4456, %v4383
      %4469 = vst.msk [vmem:[#allocation2 + $0xc0] sm:$0xff] %vm4456, %v4385
      %4470 = vst.msk [vmem:[#allocation2 + $0xd0] sm:$0xff] %vm4456, %v4387
      %4471 = vst.msk [vmem:[#allocation2 + $0xe0] sm:$0xff] %vm4456, %v4389
      %4472 = vst.msk [vmem:[#allocation2 + $0xf0] sm:$0xff] %vm4456, %v4391
      %4473 = vst.msk [vmem:[#allocation2 + $0x100] sm:$0xff] %vm4456, %v4393
      %4474 = vst.msk [vmem:[#allocation2 + $0x110] sm:$0xff] %vm4456, %v4395
      %4475 = vst.msk [vmem:[#allocation2 + $0x120] sm:$0xff] %vm4456, %v4397
      %4476 = vst.msk [vmem:[#allocation2 + $0x130] sm:$0xff] %vm4456, %v4399
      %4477 = vst.msk [vmem:[#allocation2 + $0x140] sm:$0xff] %vm4456, %v4401
      %4478 = vst.msk [vmem:[#allocation2 + $0x150] sm:$0xff] %vm4456, %v4403
      %4479 = vst.msk [vmem:[#allocation2 + $0x160] sm:$0xff] %vm4456, %v4405
      %4480 = vst.msk [vmem:[#allocation2 + $0x170] sm:$0xff] %vm4456, %v4407
      %4481 = vst.msk [vmem:[#allocation2 + $0x180] sm:$0xff] %vm4456, %v4409
      %4482 = vst.msk [vmem:[#allocation2 + $0x190] sm:$0xff] %vm4456, %v4411
      %4483 = vst.msk [vmem:[#allocation2 + $0x1a0] sm:$0xff] %vm4456, %v4413
      %4484 = vst.msk [vmem:[#allocation2 + $0x1b0] sm:$0xff] %vm4456, %v4415
      %4485 = vst.msk [vmem:[#allocation2 + $0x1c0] sm:$0xff] %vm4456, %v4417
      %4486 = vst.msk [vmem:[#allocation2 + $0x1d0] sm:$0xff] %vm4456, %v4419
      %4487 = vst.msk [vmem:[#allocation2 + $0x1e0] sm:$0xff] %vm4456, %v4421
      %4488 = vst.msk [vmem:[#allocation2 + $0x1f0] sm:$0xff] %vm4456, %v4423
      %v4489 = vld [vmem:[#allocation3 + $0x1] sm:$0xff]
      %v4490 = vld [vmem:[#allocation3 + $0x9] sm:$0xff]
      %v4491 = vld [vmem:[#allocation3 + $0x19] sm:$0xff]
      %v4492 = vld [vmem:[#allocation3 + $0x21] sm:$0xff]
      %v4493 = vld [vmem:[#allocation3 + $0x31] sm:$0xff]
      %v4494 = vld [vmem:[#allocation3 + $0x39] sm:$0xff]
      %v4495 = vld [vmem:[#allocation3 + $0x49] sm:$0xff]
      %v4496 = vld [vmem:[#allocation3 + $0x51] sm:$0xff]
      %v4497 = vld [vmem:[#allocation3 + $0x61] sm:$0xff]
      %v4498 = vld [vmem:[#allocation3 + $0x69] sm:$0xff]
      %v4499 = vld [vmem:[#allocation3 + $0x79] sm:$0xff]
      %v4500 = vld [vmem:[#allocation3 + $0x81] sm:$0xff]
      %v4501 = vld [vmem:[#allocation3 + $0x91] sm:$0xff]
      %v4502 = vld [vmem:[#allocation3 + $0x99] sm:$0xff]
      %v4503 = vld [vmem:[#allocation3 + $0xa9] sm:$0xff]
      %v4504 = vld [vmem:[#allocation3 + $0xb1] sm:$0xff]
      %v4505 = vld [vmem:[#allocation3 + $0xc1] sm:$0xff]
      %v4506 = vld [vmem:[#allocation3 + $0xc9] sm:$0xff]
      %v4507 = vld [vmem:[#allocation3 + $0xd9] sm:$0xff]
      %v4508 = vld [vmem:[#allocation3 + $0xe1] sm:$0xff]
      %v4509 = vld [vmem:[#allocation3 + $0xf1] sm:$0xff]
      %v4510 = vld [vmem:[#allocation3 + $0xf9] sm:$0xff]
      %v4511 = vld [vmem:[#allocation3 + $0x109] sm:$0xff]
      %v4512 = vld [vmem:[#allocation3 + $0x111] sm:$0xff]
      %v4513 = vld [vmem:[#allocation3 + $0x121] sm:$0xff]
      %v4514 = vld [vmem:[#allocation3 + $0x129] sm:$0xff]
      %v4515 = vld [vmem:[#allocation3 + $0x139] sm:$0xff]
      %v4516 = vld [vmem:[#allocation3 + $0x141] sm:$0xff]
      %v4517 = vld [vmem:[#allocation3 + $0x151] sm:$0xff]
      %v4518 = vld [vmem:[#allocation3 + $0x159] sm:$0xff]
      %v4519 = vld [vmem:[#allocation3 + $0x169] sm:$0xff]
      %v4520 = vld [vmem:[#allocation3 + $0x171] sm:$0xff]
      %4553 = vrot.lane.b32.xlu0 %v4489, 76
      %v4554 = vpop.permute.xlu0 %4553
      %4555 = vrot.lane.b32.xlu0 %v4490, 76
      %v4556 = vpop.permute.xlu0 %4555
      %4557 = vrot.lane.b32.xlu0 %v4491, 76
      %v4558 = vpop.permute.xlu0 %4557
      %4559 = vrot.lane.b32.xlu0 %v4492, 76
      %v4560 = vpop.permute.xlu0 %4559
      %4561 = vrot.lane.b32.xlu0 %v4493, 76
      %v4562 = vpop.permute.xlu0 %4561
      %4563 = vrot.lane.b32.xlu0 %v4494, 76
      %v4564 = vpop.permute.xlu0 %4563
      %4565 = vrot.lane.b32.xlu0 %v4495, 76
      %v4566 = vpop.permute.xlu0 %4565
      %4567 = vrot.lane.b32.xlu0 %v4496, 76
      %v4568 = vpop.permute.xlu0 %4567
      %4569 = vrot.lane.b32.xlu0 %v4497, 76
      %v4570 = vpop.permute.xlu0 %4569
      %4571 = vrot.lane.b32.xlu0 %v4498, 76
      %v4572 = vpop.permute.xlu0 %4571
      %4573 = vrot.lane.b32.xlu0 %v4499, 76
      %v4574 = vpop.permute.xlu0 %4573
      %4575 = vrot.lane.b32.xlu0 %v4500, 76
      %v4576 = vpop.permute.xlu0 %4575
      %4577 = vrot.lane.b32.xlu0 %v4501, 76
      %v4578 = vpop.permute.xlu0 %4577
      %4579 = vrot.lane.b32.xlu0 %v4502, 76
      %v4580 = vpop.permute.xlu0 %4579
      %4581 = vrot.lane.b32.xlu0 %v4503, 76
      %v4582 = vpop.permute.xlu0 %4581
      %4583 = vrot.lane.b32.xlu0 %v4504, 76
      %v4584 = vpop.permute.xlu0 %4583
      %4585 = vrot.lane.b32.xlu0 %v4505, 76
      %v4586 = vpop.permute.xlu0 %4585
      %4587 = vrot.lane.b32.xlu0 %v4506, 76
      %v4588 = vpop.permute.xlu0 %4587
      %4589 = vrot.lane.b32.xlu0 %v4507, 76
      %v4590 = vpop.permute.xlu0 %4589
      %4591 = vrot.lane.b32.xlu0 %v4508, 76
      %v4592 = vpop.permute.xlu0 %4591
      %4593 = vrot.lane.b32.xlu0 %v4509, 76
      %v4594 = vpop.permute.xlu0 %4593
      %4595 = vrot.lane.b32.xlu0 %v4510, 76
      %v4596 = vpop.permute.xlu0 %4595
      %4597 = vrot.lane.b32.xlu0 %v4511, 76
      %v4598 = vpop.permute.xlu0 %4597
      %4599 = vrot.lane.b32.xlu0 %v4512, 76
      %v4600 = vpop.permute.xlu0 %4599
      %4601 = vrot.lane.b32.xlu0 %v4513, 76
      %v4602 = vpop.permute.xlu0 %4601
      %4603 = vrot.lane.b32.xlu0 %v4514, 76
      %v4604 = vpop.permute.xlu0 %4603
      %4605 = vrot.lane.b32.xlu0 %v4515, 76
      %v4606 = vpop.permute.xlu0 %4605
      %4607 = vrot.lane.b32.xlu0 %v4516, 76
      %v4608 = vpop.permute.xlu0 %4607
      %4609 = vrot.lane.b32.xlu0 %v4517, 76
      %v4610 = vpop.permute.xlu0 %4609
      %4611 = vrot.lane.b32.xlu0 %v4518, 76
      %v4612 = vpop.permute.xlu0 %4611
      %4613 = vrot.lane.b32.xlu0 %v4519, 76
      %v4614 = vpop.permute.xlu0 %4613
      %4615 = vrot.lane.b32.xlu0 %v4520, 76
      %v4616 = vpop.permute.xlu0 %4615
      %vm4649 = vcmask 654944
      %4650 = vst.msk [vmem:[#allocation2] sm:$0xff] %vm4649, %v4554
      %4651 = vst.msk [vmem:[#allocation2 + $0x10] sm:$0xff] %vm4649, %v4556
      %4652 = vst.msk [vmem:[#allocation2 + $0x20] sm:$0xff] %vm4649, %v4558
      %4653 = vst.msk [vmem:[#allocation2 + $0x30] sm:$0xff] %vm4649, %v4560
      %4654 = vst.msk [vmem:[#allocation2 + $0x40] sm:$0xff] %vm4649, %v4562
      %4655 = vst.msk [vmem:[#allocation2 + $0x50] sm:$0xff] %vm4649, %v4564
      %4656 = vst.msk [vmem:[#allocation2 + $0x60] sm:$0xff] %vm4649, %v4566
      %4657 = vst.msk [vmem:[#allocation2 + $0x70] sm:$0xff] %vm4649, %v4568
      %4658 = vst.msk [vmem:[#allocation2 + $0x80] sm:$0xff] %vm4649, %v4570
      %4659 = vst.msk [vmem:[#allocation2 + $0x90] sm:$0xff] %vm4649, %v4572
      %4660 = vst.msk [vmem:[#allocation2 + $0xa0] sm:$0xff] %vm4649, %v4574
      %4661 = vst.msk [vmem:[#allocation2 + $0xb0] sm:$0xff] %vm4649, %v4576
      %4662 = vst.msk [vmem:[#allocation2 + $0xc0] sm:$0xff] %vm4649, %v4578
      %4663 = vst.msk [vmem:[#allocation2 + $0xd0] sm:$0xff] %vm4649, %v4580
      %4664 = vst.msk [vmem:[#allocation2 + $0xe0] sm:$0xff] %vm4649, %v4582
      %4665 = vst.msk [vmem:[#allocation2 + $0xf0] sm:$0xff] %vm4649, %v4584
      %4666 = vst.msk [vmem:[#allocation2 + $0x100] sm:$0xff] %vm4649, %v4586
      %4667 = vst.msk [vmem:[#allocation2 + $0x110] sm:$0xff] %vm4649, %v4588
      %4668 = vst.msk [vmem:[#allocation2 + $0x120] sm:$0xff] %vm4649, %v4590
      %4669 = vst.msk [vmem:[#allocation2 + $0x130] sm:$0xff] %vm4649, %v4592
      %4670 = vst.msk [vmem:[#allocation2 + $0x140] sm:$0xff] %vm4649, %v4594
      %4671 = vst.msk [vmem:[#allocation2 + $0x150] sm:$0xff] %vm4649, %v4596
      %4672 = vst.msk [vmem:[#allocation2 + $0x160] sm:$0xff] %vm4649, %v4598
      %4673 = vst.msk [vmem:[#allocation2 + $0x170] sm:$0xff] %vm4649, %v4600
      %4674 = vst.msk [vmem:[#allocation2 + $0x180] sm:$0xff] %vm4649, %v4602
      %4675 = vst.msk [vmem:[#allocation2 + $0x190] sm:$0xff] %vm4649, %v4604
      %4676 = vst.msk [vmem:[#allocation2 + $0x1a0] sm:$0xff] %vm4649, %v4606
      %4677 = vst.msk [vmem:[#allocation2 + $0x1b0] sm:$0xff] %vm4649, %v4608
      %4678 = vst.msk [vmem:[#allocation2 + $0x1c0] sm:$0xff] %vm4649, %v4610
      %4679 = vst.msk [vmem:[#allocation2 + $0x1d0] sm:$0xff] %vm4649, %v4612
      %4680 = vst.msk [vmem:[#allocation2 + $0x1e0] sm:$0xff] %vm4649, %v4614
      %4681 = vst.msk [vmem:[#allocation2 + $0x1f0] sm:$0xff] %vm4649, %v4616
      %v4682 = vld [vmem:[#allocation3 + $0x2] sm:$0xff]
      %v4683 = vld [vmem:[#allocation3 + $0xa] sm:$0xff]
      %v4684 = vld [vmem:[#allocation3 + $0x1a] sm:$0xff]
      %v4685 = vld [vmem:[#allocation3 + $0x22] sm:$0xff]
      %v4686 = vld [vmem:[#allocation3 + $0x32] sm:$0xff]
      %v4687 = vld [vmem:[#allocation3 + $0x3a] sm:$0xff]
      %v4688 = vld [vmem:[#allocation3 + $0x4a] sm:$0xff]
      %v4689 = vld [vmem:[#allocation3 + $0x52] sm:$0xff]
      %v4690 = vld [vmem:[#allocation3 + $0x62] sm:$0xff]
      %v4691 = vld [vmem:[#allocation3 + $0x6a] sm:$0xff]
      %v4692 = vld [vmem:[#allocation3 + $0x7a] sm:$0xff]
      %v4693 = vld [vmem:[#allocation3 + $0x82] sm:$0xff]
      %v4694 = vld [vmem:[#allocation3 + $0x92] sm:$0xff]
      %v4695 = vld [vmem:[#allocation3 + $0x9a] sm:$0xff]
      %v4696 = vld [vmem:[#allocation3 + $0xaa] sm:$0xff]
      %v4697 = vld [vmem:[#allocation3 + $0xb2] sm:$0xff]
      %v4698 = vld [vmem:[#allocation3 + $0xc2] sm:$0xff]
      %v4699 = vld [vmem:[#allocation3 + $0xca] sm:$0xff]
      %v4700 = vld [vmem:[#allocation3 + $0xda] sm:$0xff]
      %v4701 = vld [vmem:[#allocation3 + $0xe2] sm:$0xff]
      %v4702 = vld [vmem:[#allocation3 + $0xf2] sm:$0xff]
      %v4703 = vld [vmem:[#allocation3 + $0xfa] sm:$0xff]
      %v4704 = vld [vmem:[#allocation3 + $0x10a] sm:$0xff]
      %v4705 = vld [vmem:[#allocation3 + $0x112] sm:$0xff]
      %v4706 = vld [vmem:[#allocation3 + $0x122] sm:$0xff]
      %v4707 = vld [vmem:[#allocation3 + $0x12a] sm:$0xff]
      %v4708 = vld [vmem:[#allocation3 + $0x13a] sm:$0xff]
      %v4709 = vld [vmem:[#allocation3 + $0x142] sm:$0xff]
      %v4710 = vld [vmem:[#allocation3 + $0x152] sm:$0xff]
      %v4711 = vld [vmem:[#allocation3 + $0x15a] sm:$0xff]
      %v4712 = vld [vmem:[#allocation3 + $0x16a] sm:$0xff]
      %v4713 = vld [vmem:[#allocation3 + $0x172] sm:$0xff]
      %4746 = vrot.lane.b32.xlu0 %v4682, 80
      %v4747 = vpop.permute.xlu0 %4746
      %4748 = vrot.lane.b32.xlu0 %v4683, 80
      %v4749 = vpop.permute.xlu0 %4748
      %4750 = vrot.lane.b32.xlu0 %v4684, 80
      %v4751 = vpop.permute.xlu0 %4750
      %4752 = vrot.lane.b32.xlu0 %v4685, 80
      %v4753 = vpop.permute.xlu0 %4752
      %4754 = vrot.lane.b32.xlu0 %v4686, 80
      %v4755 = vpop.permute.xlu0 %4754
      %4756 = vrot.lane.b32.xlu0 %v4687, 80
      %v4757 = vpop.permute.xlu0 %4756
      %4758 = vrot.lane.b32.xlu0 %v4688, 80
      %v4759 = vpop.permute.xlu0 %4758
      %4760 = vrot.lane.b32.xlu0 %v4689, 80
      %v4761 = vpop.permute.xlu0 %4760
      %4762 = vrot.lane.b32.xlu0 %v4690, 80
      %v4763 = vpop.permute.xlu0 %4762
      %4764 = vrot.lane.b32.xlu0 %v4691, 80
      %v4765 = vpop.permute.xlu0 %4764
      %4766 = vrot.lane.b32.xlu0 %v4692, 80
      %v4767 = vpop.permute.xlu0 %4766
      %4768 = vrot.lane.b32.xlu0 %v4693, 80
      %v4769 = vpop.permute.xlu0 %4768
      %4770 = vrot.lane.b32.xlu0 %v4694, 80
      %v4771 = vpop.permute.xlu0 %4770
      %4772 = vrot.lane.b32.xlu0 %v4695, 80
      %v4773 = vpop.permute.xlu0 %4772
      %4774 = vrot.lane.b32.xlu0 %v4696, 80
      %v4775 = vpop.permute.xlu0 %4774
      %4776 = vrot.lane.b32.xlu0 %v4697, 80
      %v4777 = vpop.permute.xlu0 %4776
      %4778 = vrot.lane.b32.xlu0 %v4698, 80
      %v4779 = vpop.permute.xlu0 %4778
      %4780 = vrot.lane.b32.xlu0 %v4699, 80
      %v4781 = vpop.permute.xlu0 %4780
      %4782 = vrot.lane.b32.xlu0 %v4700, 80
      %v4783 = vpop.permute.xlu0 %4782
      %4784 = vrot.lane.b32.xlu0 %v4701, 80
      %v4785 = vpop.permute.xlu0 %4784
      %4786 = vrot.lane.b32.xlu0 %v4702, 80
      %v4787 = vpop.permute.xlu0 %4786
      %4788 = vrot.lane.b32.xlu0 %v4703, 80
      %v4789 = vpop.permute.xlu0 %4788
      %4790 = vrot.lane.b32.xlu0 %v4704, 80
      %v4791 = vpop.permute.xlu0 %4790
      %4792 = vrot.lane.b32.xlu0 %v4705, 80
      %v4793 = vpop.permute.xlu0 %4792
      %4794 = vrot.lane.b32.xlu0 %v4706, 80
      %v4795 = vpop.permute.xlu0 %4794
      %4796 = vrot.lane.b32.xlu0 %v4707, 80
      %v4797 = vpop.permute.xlu0 %4796
      %4798 = vrot.lane.b32.xlu0 %v4708, 80
      %v4799 = vpop.permute.xlu0 %4798
      %4800 = vrot.lane.b32.xlu0 %v4709, 80
      %v4801 = vpop.permute.xlu0 %4800
      %4802 = vrot.lane.b32.xlu0 %v4710, 80
      %v4803 = vpop.permute.xlu0 %4802
      %4804 = vrot.lane.b32.xlu0 %v4711, 80
      %v4805 = vpop.permute.xlu0 %4804
      %4806 = vrot.lane.b32.xlu0 %v4712, 80
      %v4807 = vpop.permute.xlu0 %4806
      %4808 = vrot.lane.b32.xlu0 %v4713, 80
      %v4809 = vpop.permute.xlu0 %4808
      %vm4842 = vcmask 687744
      %4843 = vst.msk [vmem:[#allocation2] sm:$0xff] %vm4842, %v4747
      %4844 = vst.msk [vmem:[#allocation2 + $0x10] sm:$0xff] %vm4842, %v4749
      %4845 = vst.msk [vmem:[#allocation2 + $0x20] sm:$0xff] %vm4842, %v4751
      %4846 = vst.msk [vmem:[#allocation2 + $0x30] sm:$0xff] %vm4842, %v4753
      %4847 = vst.msk [vmem:[#allocation2 + $0x40] sm:$0xff] %vm4842, %v4755
      %4848 = vst.msk [vmem:[#allocation2 + $0x50] sm:$0xff] %vm4842, %v4757
      %4849 = vst.msk [vmem:[#allocation2 + $0x60] sm:$0xff] %vm4842, %v4759
      %4850 = vst.msk [vmem:[#allocation2 + $0x70] sm:$0xff] %vm4842, %v4761
      %4851 = vst.msk [vmem:[#allocation2 + $0x80] sm:$0xff] %vm4842, %v4763
      %4852 = vst.msk [vmem:[#allocation2 + $0x90] sm:$0xff] %vm4842, %v4765
      %4853 = vst.msk [vmem:[#allocation2 + $0xa0] sm:$0xff] %vm4842, %v4767
      %4854 = vst.msk [vmem:[#allocation2 + $0xb0] sm:$0xff] %vm4842, %v4769
      %4855 = vst.msk [vmem:[#allocation2 + $0xc0] sm:$0xff] %vm4842, %v4771
      %4856 = vst.msk [vmem:[#allocation2 + $0xd0] sm:$0xff] %vm4842, %v4773
      %4857 = vst.msk [vmem:[#allocation2 + $0xe0] sm:$0xff] %vm4842, %v4775
      %4858 = vst.msk [vmem:[#allocation2 + $0xf0] sm:$0xff] %vm4842, %v4777
      %4859 = vst.msk [vmem:[#allocation2 + $0x100] sm:$0xff] %vm4842, %v4779
      %4860 = vst.msk [vmem:[#allocation2 + $0x110] sm:$0xff] %vm4842, %v4781
      %4861 = vst.msk [vmem:[#allocation2 + $0x120] sm:$0xff] %vm4842, %v4783
      %4862 = vst.msk [vmem:[#allocation2 + $0x130] sm:$0xff] %vm4842, %v4785
      %4863 = vst.msk [vmem:[#allocation2 + $0x140] sm:$0xff] %vm4842, %v4787
      %4864 = vst.msk [vmem:[#allocation2 + $0x150] sm:$0xff] %vm4842, %v4789
      %4865 = vst.msk [vmem:[#allocation2 + $0x160] sm:$0xff] %vm4842, %v4791
      %4866 = vst.msk [vmem:[#allocation2 + $0x170] sm:$0xff] %vm4842, %v4793
      %4867 = vst.msk [vmem:[#allocation2 + $0x180] sm:$0xff] %vm4842, %v4795
      %4868 = vst.msk [vmem:[#allocation2 + $0x190] sm:$0xff] %vm4842, %v4797
      %4869 = vst.msk [vmem:[#allocation2 + $0x1a0] sm:$0xff] %vm4842, %v4799
      %4870 = vst.msk [vmem:[#allocation2 + $0x1b0] sm:$0xff] %vm4842, %v4801
      %4871 = vst.msk [vmem:[#allocation2 + $0x1c0] sm:$0xff] %vm4842, %v4803
      %4872 = vst.msk [vmem:[#allocation2 + $0x1d0] sm:$0xff] %vm4842, %v4805
      %4873 = vst.msk [vmem:[#allocation2 + $0x1e0] sm:$0xff] %vm4842, %v4807
      %4874 = vst.msk [vmem:[#allocation2 + $0x1f0] sm:$0xff] %vm4842, %v4809
      %v4875 = vld [vmem:[%s282] sm:$0xff]
      %v4876 = vld [vmem:[%s282 + $0x8] sm:$0xff]
      %v4877 = vld [vmem:[%s282 + $0x18] sm:$0xff]
      %v4878 = vld [vmem:[%s282 + $0x20] sm:$0xff]
      %v4879 = vld [vmem:[%s282 + $0x30] sm:$0xff]
      %v4880 = vld [vmem:[%s282 + $0x38] sm:$0xff]
      %v4881 = vld [vmem:[%s282 + $0x48] sm:$0xff]
      %v4882 = vld [vmem:[%s282 + $0x50] sm:$0xff]
      %v4883 = vld [vmem:[%s282 + $0x60] sm:$0xff]
      %v4884 = vld [vmem:[%s282 + $0x68] sm:$0xff]
      %v4885 = vld [vmem:[%s282 + $0x78] sm:$0xff]
      %v4886 = vld [vmem:[%s282 + $0x80] sm:$0xff]
      %v4887 = vld [vmem:[%s282 + $0x90] sm:$0xff]
      %v4888 = vld [vmem:[%s282 + $0x98] sm:$0xff]
      %v4889 = vld [vmem:[%s282 + $0xa8] sm:$0xff]
      %v4890 = vld [vmem:[%s282 + $0xb0] sm:$0xff]
      %v4891 = vld [vmem:[%s282 + $0xc0] sm:$0xff]
      %v4892 = vld [vmem:[%s282 + $0xc8] sm:$0xff]
      %v4893 = vld [vmem:[%s282 + $0xd8] sm:$0xff]
      %v4894 = vld [vmem:[%s282 + $0xe0] sm:$0xff]
      %v4895 = vld [vmem:[%s282 + $0xf0] sm:$0xff]
      %v4896 = vld [vmem:[%s282 + $0xf8] sm:$0xff]
      %v4897 = vld [vmem:[%s282 + $0x108] sm:$0xff]
      %v4898 = vld [vmem:[%s282 + $0x110] sm:$0xff]
      %v4899 = vld [vmem:[%s282 + $0x120] sm:$0xff]
      %v4900 = vld [vmem:[%s282 + $0x128] sm:$0xff]
      %v4901 = vld [vmem:[%s282 + $0x138] sm:$0xff]
      %v4902 = vld [vmem:[%s282 + $0x140] sm:$0xff]
      %v4903 = vld [vmem:[%s282 + $0x150] sm:$0xff]
      %v4904 = vld [vmem:[%s282 + $0x158] sm:$0xff]
      %v4905 = vld [vmem:[%s282 + $0x168] sm:$0xff]
      %v4906 = vld [vmem:[%s282 + $0x170] sm:$0xff]
      %4939 = vrot.lane.b32.xlu0 %v4875, 84
      %v4940 = vpop.permute.xlu0 %4939
      %4941 = vrot.lane.b32.xlu0 %v4876, 84
      %v4942 = vpop.permute.xlu0 %4941
      %4943 = vrot.lane.b32.xlu0 %v4877, 84
      %v4944 = vpop.permute.xlu0 %4943
      %4945 = vrot.lane.b32.xlu0 %v4878, 84
      %v4946 = vpop.permute.xlu0 %4945
      %4947 = vrot.lane.b32.xlu0 %v4879, 84
      %v4948 = vpop.permute.xlu0 %4947
      %4949 = vrot.lane.b32.xlu0 %v4880, 84
      %v4950 = vpop.permute.xlu0 %4949
      %4951 = vrot.lane.b32.xlu0 %v4881, 84
      %v4952 = vpop.permute.xlu0 %4951
      %4953 = vrot.lane.b32.xlu0 %v4882, 84
      %v4954 = vpop.permute.xlu0 %4953
      %4955 = vrot.lane.b32.xlu0 %v4883, 84
      %v4956 = vpop.permute.xlu0 %4955
      %4957 = vrot.lane.b32.xlu0 %v4884, 84
      %v4958 = vpop.permute.xlu0 %4957
      %4959 = vrot.lane.b32.xlu0 %v4885, 84
      %v4960 = vpop.permute.xlu0 %4959
      %4961 = vrot.lane.b32.xlu0 %v4886, 84
      %v4962 = vpop.permute.xlu0 %4961
      %4963 = vrot.lane.b32.xlu0 %v4887, 84
      %v4964 = vpop.permute.xlu0 %4963
      %4965 = vrot.lane.b32.xlu0 %v4888, 84
      %v4966 = vpop.permute.xlu0 %4965
      %4967 = vrot.lane.b32.xlu0 %v4889, 84
      %v4968 = vpop.permute.xlu0 %4967
      %4969 = vrot.lane.b32.xlu0 %v4890, 84
      %v4970 = vpop.permute.xlu0 %4969
      %4971 = vrot.lane.b32.xlu0 %v4891, 84
      %v4972 = vpop.permute.xlu0 %4971
      %4973 = vrot.lane.b32.xlu0 %v4892, 84
      %v4974 = vpop.permute.xlu0 %4973
      %4975 = vrot.lane.b32.xlu0 %v4893, 84
      %v4976 = vpop.permute.xlu0 %4975
      %4977 = vrot.lane.b32.xlu0 %v4894, 84
      %v4978 = vpop.permute.xlu0 %4977
      %4979 = vrot.lane.b32.xlu0 %v4895, 84
      %v4980 = vpop.permute.xlu0 %4979
      %4981 = vrot.lane.b32.xlu0 %v4896, 84
      %v4982 = vpop.permute.xlu0 %4981
      %4983 = vrot.lane.b32.xlu0 %v4897, 84
      %v4984 = vpop.permute.xlu0 %4983
      %4985 = vrot.lane.b32.xlu0 %v4898, 84
      %v4986 = vpop.permute.xlu0 %4985
      %4987 = vrot.lane.b32.xlu0 %v4899, 84
      %v4988 = vpop.permute.xlu0 %4987
      %4989 = vrot.lane.b32.xlu0 %v4900, 84
      %v4990 = vpop.permute.xlu0 %4989
      %4991 = vrot.lane.b32.xlu0 %v4901, 84
      %v4992 = vpop.permute.xlu0 %4991
      %4993 = vrot.lane.b32.xlu0 %v4902, 84
      %v4994 = vpop.permute.xlu0 %4993
      %4995 = vrot.lane.b32.xlu0 %v4903, 84
      %v4996 = vpop.permute.xlu0 %4995
      %4997 = vrot.lane.b32.xlu0 %v4904, 84
      %v4998 = vpop.permute.xlu0 %4997
      %4999 = vrot.lane.b32.xlu0 %v4905, 84
      %v5000 = vpop.permute.xlu0 %4999
      %5001 = vrot.lane.b32.xlu0 %v4906, 84
      %v5002 = vpop.permute.xlu0 %5001
      %vm5035 = vcmask 720544
      %5036 = vst.msk [vmem:[#allocation2] sm:$0xff] %vm5035, %v4940
      %5037 = vst.msk [vmem:[#allocation2 + $0x10] sm:$0xff] %vm5035, %v4942
      %5038 = vst.msk [vmem:[#allocation2 + $0x20] sm:$0xff] %vm5035, %v4944
      %5039 = vst.msk [vmem:[#allocation2 + $0x30] sm:$0xff] %vm5035, %v4946
      %5040 = vst.msk [vmem:[#allocation2 + $0x40] sm:$0xff] %vm5035, %v4948
      %5041 = vst.msk [vmem:[#allocation2 + $0x50] sm:$0xff] %vm5035, %v4950
      %5042 = vst.msk [vmem:[#allocation2 + $0x60] sm:$0xff] %vm5035, %v4952
      %5043 = vst.msk [vmem:[#allocation2 + $0x70] sm:$0xff] %vm5035, %v4954
      %5044 = vst.msk [vmem:[#allocation2 + $0x80] sm:$0xff] %vm5035, %v4956
      %5045 = vst.msk [vmem:[#allocation2 + $0x90] sm:$0xff] %vm5035, %v4958
      %5046 = vst.msk [vmem:[#allocation2 + $0xa0] sm:$0xff] %vm5035, %v4960
      %5047 = vst.msk [vmem:[#allocation2 + $0xb0] sm:$0xff] %vm5035, %v4962
      %5048 = vst.msk [vmem:[#allocation2 + $0xc0] sm:$0xff] %vm5035, %v4964
      %5049 = vst.msk [vmem:[#allocation2 + $0xd0] sm:$0xff] %vm5035, %v4966
      %5050 = vst.msk [vmem:[#allocation2 + $0xe0] sm:$0xff] %vm5035, %v4968
      %5051 = vst.msk [vmem:[#allocation2 + $0xf0] sm:$0xff] %vm5035, %v4970
      %5052 = vst.msk [vmem:[#allocation2 + $0x100] sm:$0xff] %vm5035, %v4972
      %5053 = vst.msk [vmem:[#allocation2 + $0x110] sm:$0xff] %vm5035, %v4974
      %5054 = vst.msk [vmem:[#allocation2 + $0x120] sm:$0xff] %vm5035, %v4976
      %5055 = vst.msk [vmem:[#allocation2 + $0x130] sm:$0xff] %vm5035, %v4978
      %5056 = vst.msk [vmem:[#allocation2 + $0x140] sm:$0xff] %vm5035, %v4980
      %5057 = vst.msk [vmem:[#allocation2 + $0x150] sm:$0xff] %vm5035, %v4982
      %5058 = vst.msk [vmem:[#allocation2 + $0x160] sm:$0xff] %vm5035, %v4984
      %5059 = vst.msk [vmem:[#allocation2 + $0x170] sm:$0xff] %vm5035, %v4986
      %5060 = vst.msk [vmem:[#allocation2 + $0x180] sm:$0xff] %vm5035, %v4988
      %5061 = vst.msk [vmem:[#allocation2 + $0x190] sm:$0xff] %vm5035, %v4990
      %5062 = vst.msk [vmem:[#allocation2 + $0x1a0] sm:$0xff] %vm5035, %v4992
      %5063 = vst.msk [vmem:[#allocation2 + $0x1b0] sm:$0xff] %vm5035, %v4994
      %5064 = vst.msk [vmem:[#allocation2 + $0x1c0] sm:$0xff] %vm5035, %v4996
      %5065 = vst.msk [vmem:[#allocation2 + $0x1d0] sm:$0xff] %vm5035, %v4998
      %5066 = vst.msk [vmem:[#allocation2 + $0x1e0] sm:$0xff] %vm5035, %v5000
      %5067 = vst.msk [vmem:[#allocation2 + $0x1f0] sm:$0xff] %vm5035, %v5002
      %v5068 = vld [vmem:[%s282 + $0x1] sm:$0xff]
      %v5069 = vld [vmem:[%s282 + $0x9] sm:$0xff]
      %v5070 = vld [vmem:[%s282 + $0x19] sm:$0xff]
      %v5071 = vld [vmem:[%s282 + $0x21] sm:$0xff]
      %v5072 = vld [vmem:[%s282 + $0x31] sm:$0xff]
      %v5073 = vld [vmem:[%s282 + $0x39] sm:$0xff]
      %v5074 = vld [vmem:[%s282 + $0x49] sm:$0xff]
      %v5075 = vld [vmem:[%s282 + $0x51] sm:$0xff]
      %v5076 = vld [vmem:[%s282 + $0x61] sm:$0xff]
      %v5077 = vld [vmem:[%s282 + $0x69] sm:$0xff]
      %v5078 = vld [vmem:[%s282 + $0x79] sm:$0xff]
      %v5079 = vld [vmem:[%s282 + $0x81] sm:$0xff]
      %v5080 = vld [vmem:[%s282 + $0x91] sm:$0xff]
      %v5081 = vld [vmem:[%s282 + $0x99] sm:$0xff]
      %v5082 = vld [vmem:[%s282 + $0xa9] sm:$0xff]
      %v5083 = vld [vmem:[%s282 + $0xb1] sm:$0xff]
      %v5084 = vld [vmem:[%s282 + $0xc1] sm:$0xff]
      %v5085 = vld [vmem:[%s282 + $0xc9] sm:$0xff]
      %v5086 = vld [vmem:[%s282 + $0xd9] sm:$0xff]
      %v5087 = vld [vmem:[%s282 + $0xe1] sm:$0xff]
      %v5088 = vld [vmem:[%s282 + $0xf1] sm:$0xff]
      %v5089 = vld [vmem:[%s282 + $0xf9] sm:$0xff]
      %v5090 = vld [vmem:[%s282 + $0x109] sm:$0xff]
      %v5091 = vld [vmem:[%s282 + $0x111] sm:$0xff]
      %v5092 = vld [vmem:[%s282 + $0x121] sm:$0xff]
      %v5093 = vld [vmem:[%s282 + $0x129] sm:$0xff]
      %v5094 = vld [vmem:[%s282 + $0x139] sm:$0xff]
      %v5095 = vld [vmem:[%s282 + $0x141] sm:$0xff]
      %v5096 = vld [vmem:[%s282 + $0x151] sm:$0xff]
      %v5097 = vld [vmem:[%s282 + $0x159] sm:$0xff]
      %v5098 = vld [vmem:[%s282 + $0x169] sm:$0xff]
      %v5099 = vld [vmem:[%s282 + $0x171] sm:$0xff]
      %5132 = vrot.lane.b32.xlu0 %v5068, 88
      %v5133 = vpop.permute.xlu0 %5132
      %5134 = vrot.lane.b32.xlu0 %v5069, 88
      %v5135 = vpop.permute.xlu0 %5134
      %5136 = vrot.lane.b32.xlu0 %v5070, 88
      %v5137 = vpop.permute.xlu0 %5136
      %5138 = vrot.lane.b32.xlu0 %v5071, 88
      %v5139 = vpop.permute.xlu0 %5138
      %5140 = vrot.lane.b32.xlu0 %v5072, 88
      %v5141 = vpop.permute.xlu0 %5140
      %5142 = vrot.lane.b32.xlu0 %v5073, 88
      %v5143 = vpop.permute.xlu0 %5142
      %5144 = vrot.lane.b32.xlu0 %v5074, 88
      %v5145 = vpop.permute.xlu0 %5144
      %5146 = vrot.lane.b32.xlu0 %v5075, 88
      %v5147 = vpop.permute.xlu0 %5146
      %5148 = vrot.lane.b32.xlu0 %v5076, 88
      %v5149 = vpop.permute.xlu0 %5148
      %5150 = vrot.lane.b32.xlu0 %v5077, 88
      %v5151 = vpop.permute.xlu0 %5150
      %5152 = vrot.lane.b32.xlu0 %v5078, 88
      %v5153 = vpop.permute.xlu0 %5152
      %5154 = vrot.lane.b32.xlu0 %v5079, 88
      %v5155 = vpop.permute.xlu0 %5154
      %5156 = vrot.lane.b32.xlu0 %v5080, 88
      %v5157 = vpop.permute.xlu0 %5156
      %5158 = vrot.lane.b32.xlu0 %v5081, 88
      %v5159 = vpop.permute.xlu0 %5158
      %5160 = vrot.lane.b32.xlu0 %v5082, 88
      %v5161 = vpop.permute.xlu0 %5160
      %5162 = vrot.lane.b32.xlu0 %v5083, 88
      %v5163 = vpop.permute.xlu0 %5162
      %5164 = vrot.lane.b32.xlu0 %v5084, 88
      %v5165 = vpop.permute.xlu0 %5164
      %5166 = vrot.lane.b32.xlu0 %v5085, 88
      %v5167 = vpop.permute.xlu0 %5166
      %5168 = vrot.lane.b32.xlu0 %v5086, 88
      %v5169 = vpop.permute.xlu0 %5168
      %5170 = vrot.lane.b32.xlu0 %v5087, 88
      %v5171 = vpop.permute.xlu0 %5170
      %5172 = vrot.lane.b32.xlu0 %v5088, 88
      %v5173 = vpop.permute.xlu0 %5172
      %5174 = vrot.lane.b32.xlu0 %v5089, 88
      %v5175 = vpop.permute.xlu0 %5174
      %5176 = vrot.lane.b32.xlu0 %v5090, 88
      %v5177 = vpop.permute.xlu0 %5176
      %5178 = vrot.lane.b32.xlu0 %v5091, 88
      %v5179 = vpop.permute.xlu0 %5178
      %5180 = vrot.lane.b32.xlu0 %v5092, 88
      %v5181 = vpop.permute.xlu0 %5180
      %5182 = vrot.lane.b32.xlu0 %v5093, 88
      %v5183 = vpop.permute.xlu0 %5182
      %5184 = vrot.lane.b32.xlu0 %v5094, 88
      %v5185 = vpop.permute.xlu0 %5184
      %5186 = vrot.lane.b32.xlu0 %v5095, 88
      %v5187 = vpop.permute.xlu0 %5186
      %5188 = vrot.lane.b32.xlu0 %v5096, 88
      %v5189 = vpop.permute.xlu0 %5188
      %5190 = vrot.lane.b32.xlu0 %v5097, 88
      %v5191 = vpop.permute.xlu0 %5190
      %5192 = vrot.lane.b32.xlu0 %v5098, 88
      %v5193 = vpop.permute.xlu0 %5192
      %5194 = vrot.lane.b32.xlu0 %v5099, 88
      %v5195 = vpop.permute.xlu0 %5194
      %vm5228 = vcmask 753344
      %5229 = vst.msk [vmem:[#allocation2] sm:$0xff] %vm5228, %v5133
      %5230 = vst.msk [vmem:[#allocation2 + $0x10] sm:$0xff] %vm5228, %v5135
      %5231 = vst.msk [vmem:[#allocation2 + $0x20] sm:$0xff] %vm5228, %v5137
      %5232 = vst.msk [vmem:[#allocation2 + $0x30] sm:$0xff] %vm5228, %v5139
      %5233 = vst.msk [vmem:[#allocation2 + $0x40] sm:$0xff] %vm5228, %v5141
      %5234 = vst.msk [vmem:[#allocation2 + $0x50] sm:$0xff] %vm5228, %v5143
      %5235 = vst.msk [vmem:[#allocation2 + $0x60] sm:$0xff] %vm5228, %v5145
      %5236 = vst.msk [vmem:[#allocation2 + $0x70] sm:$0xff] %vm5228, %v5147
      %5237 = vst.msk [vmem:[#allocation2 + $0x80] sm:$0xff] %vm5228, %v5149
      %5238 = vst.msk [vmem:[#allocation2 + $0x90] sm:$0xff] %vm5228, %v5151
      %5239 = vst.msk [vmem:[#allocation2 + $0xa0] sm:$0xff] %vm5228, %v5153
      %5240 = vst.msk [vmem:[#allocation2 + $0xb0] sm:$0xff] %vm5228, %v5155
      %5241 = vst.msk [vmem:[#allocation2 + $0xc0] sm:$0xff] %vm5228, %v5157
      %5242 = vst.msk [vmem:[#allocation2 + $0xd0] sm:$0xff] %vm5228, %v5159
      %5243 = vst.msk [vmem:[#allocation2 + $0xe0] sm:$0xff] %vm5228, %v5161
      %5244 = vst.msk [vmem:[#allocation2 + $0xf0] sm:$0xff] %vm5228, %v5163
      %5245 = vst.msk [vmem:[#allocation2 + $0x100] sm:$0xff] %vm5228, %v5165
      %5246 = vst.msk [vmem:[#allocation2 + $0x110] sm:$0xff] %vm5228, %v5167
      %5247 = vst.msk [vmem:[#allocation2 + $0x120] sm:$0xff] %vm5228, %v5169
      %5248 = vst.msk [vmem:[#allocation2 + $0x130] sm:$0xff] %vm5228, %v5171
      %5249 = vst.msk [vmem:[#allocation2 + $0x140] sm:$0xff] %vm5228, %v5173
      %5250 = vst.msk [vmem:[#allocation2 + $0x150] sm:$0xff] %vm5228, %v5175
      %5251 = vst.msk [vmem:[#allocation2 + $0x160] sm:$0xff] %vm5228, %v5177
      %5252 = vst.msk [vmem:[#allocation2 + $0x170] sm:$0xff] %vm5228, %v5179
      %5253 = vst.msk [vmem:[#allocation2 + $0x180] sm:$0xff] %vm5228, %v5181
      %5254 = vst.msk [vmem:[#allocation2 + $0x190] sm:$0xff] %vm5228, %v5183
      %5255 = vst.msk [vmem:[#allocation2 + $0x1a0] sm:$0xff] %vm5228, %v5185
      %5256 = vst.msk [vmem:[#allocation2 + $0x1b0] sm:$0xff] %vm5228, %v5187
      %5257 = vst.msk [vmem:[#allocation2 + $0x1c0] sm:$0xff] %vm5228, %v5189
      %5258 = vst.msk [vmem:[#allocation2 + $0x1d0] sm:$0xff] %vm5228, %v5191
      %5259 = vst.msk [vmem:[#allocation2 + $0x1e0] sm:$0xff] %vm5228, %v5193
      %5260 = vst.msk [vmem:[#allocation2 + $0x1f0] sm:$0xff] %vm5228, %v5195
      %v5261 = vld [vmem:[%s282 + $0x2] sm:$0xff]
      %v5262 = vld [vmem:[%s282 + $0xa] sm:$0xff]
      %v5263 = vld [vmem:[%s282 + $0x1a] sm:$0xff]
      %v5264 = vld [vmem:[%s282 + $0x22] sm:$0xff]
      %v5265 = vld [vmem:[%s282 + $0x32] sm:$0xff]
      %v5266 = vld [vmem:[%s282 + $0x3a] sm:$0xff]
      %v5267 = vld [vmem:[%s282 + $0x4a] sm:$0xff]
      %v5268 = vld [vmem:[%s282 + $0x52] sm:$0xff]
      %v5269 = vld [vmem:[%s282 + $0x62] sm:$0xff]
      %v5270 = vld [vmem:[%s282 + $0x6a] sm:$0xff]
      %v5271 = vld [vmem:[%s282 + $0x7a] sm:$0xff]
      %v5272 = vld [vmem:[%s282 + $0x82] sm:$0xff]
      %v5273 = vld [vmem:[%s282 + $0x92] sm:$0xff]
      %v5274 = vld [vmem:[%s282 + $0x9a] sm:$0xff]
      %v5275 = vld [vmem:[%s282 + $0xaa] sm:$0xff]
      %v5276 = vld [vmem:[%s282 + $0xb2] sm:$0xff]
      %v5277 = vld [vmem:[%s282 + $0xc2] sm:$0xff]
      %v5278 = vld [vmem:[%s282 + $0xca] sm:$0xff]
      %v5279 = vld [vmem:[%s282 + $0xda] sm:$0xff]
      %v5280 = vld [vmem:[%s282 + $0xe2] sm:$0xff]
      %v5281 = vld [vmem:[%s282 + $0xf2] sm:$0xff]
      %v5282 = vld [vmem:[%s282 + $0xfa] sm:$0xff]
      %v5283 = vld [vmem:[%s282 + $0x10a] sm:$0xff]
      %v5284 = vld [vmem:[%s282 + $0x112] sm:$0xff]
      %v5285 = vld [vmem:[%s282 + $0x122] sm:$0xff]
      %v5286 = vld [vmem:[%s282 + $0x12a] sm:$0xff]
      %v5287 = vld [vmem:[%s282 + $0x13a] sm:$0xff]
      %v5288 = vld [vmem:[%s282 + $0x142] sm:$0xff]
      %v5289 = vld [vmem:[%s282 + $0x152] sm:$0xff]
      %v5290 = vld [vmem:[%s282 + $0x15a] sm:$0xff]
      %v5291 = vld [vmem:[%s282 + $0x16a] sm:$0xff]
      %v5292 = vld [vmem:[%s282 + $0x172] sm:$0xff]
      %5325 = vrot.lane.b32.xlu0 %v5261, 92
      %v5326 = vpop.permute.xlu0 %5325
      %5327 = vrot.lane.b32.xlu0 %v5262, 92
      %v5328 = vpop.permute.xlu0 %5327
      %5329 = vrot.lane.b32.xlu0 %v5263, 92
      %v5330 = vpop.permute.xlu0 %5329
      %5331 = vrot.lane.b32.xlu0 %v5264, 92
      %v5332 = vpop.permute.xlu0 %5331
      %5333 = vrot.lane.b32.xlu0 %v5265, 92
      %v5334 = vpop.permute.xlu0 %5333
      %5335 = vrot.lane.b32.xlu0 %v5266, 92
      %v5336 = vpop.permute.xlu0 %5335
      %5337 = vrot.lane.b32.xlu0 %v5267, 92
      %v5338 = vpop.permute.xlu0 %5337
      %5339 = vrot.lane.b32.xlu0 %v5268, 92
      %v5340 = vpop.permute.xlu0 %5339
      %5341 = vrot.lane.b32.xlu0 %v5269, 92
      %v5342 = vpop.permute.xlu0 %5341
      %5343 = vrot.lane.b32.xlu0 %v5270, 92
      %v5344 = vpop.permute.xlu0 %5343
      %5345 = vrot.lane.b32.xlu0 %v5271, 92
      %v5346 = vpop.permute.xlu0 %5345
      %5347 = vrot.lane.b32.xlu0 %v5272, 92
      %v5348 = vpop.permute.xlu0 %5347
      %5349 = vrot.lane.b32.xlu0 %v5273, 92
      %v5350 = vpop.permute.xlu0 %5349
      %5351 = vrot.lane.b32.xlu0 %v5274, 92
      %v5352 = vpop.permute.xlu0 %5351
      %5353 = vrot.lane.b32.xlu0 %v5275, 92
      %v5354 = vpop.permute.xlu0 %5353
      %5355 = vrot.lane.b32.xlu0 %v5276, 92
      %v5356 = vpop.permute.xlu0 %5355
      %5357 = vrot.lane.b32.xlu0 %v5277, 92
      %v5358 = vpop.permute.xlu0 %5357
      %5359 = vrot.lane.b32.xlu0 %v5278, 92
      %v5360 = vpop.permute.xlu0 %5359
      %5361 = vrot.lane.b32.xlu0 %v5279, 92
      %v5362 = vpop.permute.xlu0 %5361
      %5363 = vrot.lane.b32.xlu0 %v5280, 92
      %v5364 = vpop.permute.xlu0 %5363
      %5365 = vrot.lane.b32.xlu0 %v5281, 92
      %v5366 = vpop.permute.xlu0 %5365
      %5367 = vrot.lane.b32.xlu0 %v5282, 92
      %v5368 = vpop.permute.xlu0 %5367
      %5369 = vrot.lane.b32.xlu0 %v5283, 92
      %v5370 = vpop.permute.xlu0 %5369
      %5371 = vrot.lane.b32.xlu0 %v5284, 92
      %v5372 = vpop.permute.xlu0 %5371
      %5373 = vrot.lane.b32.xlu0 %v5285, 92
      %v5374 = vpop.permute.xlu0 %5373
      %5375 = vrot.lane.b32.xlu0 %v5286, 92
      %v5376 = vpop.permute.xlu0 %5375
      %5377 = vrot.lane.b32.xlu0 %v5287, 92
      %v5378 = vpop.permute.xlu0 %5377
      %5379 = vrot.lane.b32.xlu0 %v5288, 92
      %v5380 = vpop.permute.xlu0 %5379
      %5381 = vrot.lane.b32.xlu0 %v5289, 92
      %v5382 = vpop.permute.xlu0 %5381
      %5383 = vrot.lane.b32.xlu0 %v5290, 92
      %v5384 = vpop.permute.xlu0 %5383
      %5385 = vrot.lane.b32.xlu0 %v5291, 92
      %v5386 = vpop.permute.xlu0 %5385
      %5387 = vrot.lane.b32.xlu0 %v5292, 92
      %v5388 = vpop.permute.xlu0 %5387
      %vm5421 = vcmask 786144
      %5422 = vst.msk [vmem:[#allocation2] sm:$0xff] %vm5421, %v5326
      %5423 = vst.msk [vmem:[#allocation2 + $0x10] sm:$0xff] %vm5421, %v5328
      %5424 = vst.msk [vmem:[#allocation2 + $0x20] sm:$0xff] %vm5421, %v5330
      %5425 = vst.msk [vmem:[#allocation2 + $0x30] sm:$0xff] %vm5421, %v5332
      %5426 = vst.msk [vmem:[#allocation2 + $0x40] sm:$0xff] %vm5421, %v5334
      %5427 = vst.msk [vmem:[#allocation2 + $0x50] sm:$0xff] %vm5421, %v5336
      %5428 = vst.msk [vmem:[#allocation2 + $0x60] sm:$0xff] %vm5421, %v5338
      %5429 = vst.msk [vmem:[#allocation2 + $0x70] sm:$0xff] %vm5421, %v5340
      %5430 = vst.msk [vmem:[#allocation2 + $0x80] sm:$0xff] %vm5421, %v5342
      %5431 = vst.msk [vmem:[#allocation2 + $0x90] sm:$0xff] %vm5421, %v5344
      %5432 = vst.msk [vmem:[#allocation2 + $0xa0] sm:$0xff] %vm5421, %v5346
      %5433 = vst.msk [vmem:[#allocation2 + $0xb0] sm:$0xff] %vm5421, %v5348
      %5434 = vst.msk [vmem:[#allocation2 + $0xc0] sm:$0xff] %vm5421, %v5350
      %5435 = vst.msk [vmem:[#allocation2 + $0xd0] sm:$0xff] %vm5421, %v5352
      %5436 = vst.msk [vmem:[#allocation2 + $0xe0] sm:$0xff] %vm5421, %v5354
      %5437 = vst.msk [vmem:[#allocation2 + $0xf0] sm:$0xff] %vm5421, %v5356
      %5438 = vst.msk [vmem:[#allocation2 + $0x100] sm:$0xff] %vm5421, %v5358
      %5439 = vst.msk [vmem:[#allocation2 + $0x110] sm:$0xff] %vm5421, %v5360
      %5440 = vst.msk [vmem:[#allocation2 + $0x120] sm:$0xff] %vm5421, %v5362
      %5441 = vst.msk [vmem:[#allocation2 + $0x130] sm:$0xff] %vm5421, %v5364
      %5442 = vst.msk [vmem:[#allocation2 + $0x140] sm:$0xff] %vm5421, %v5366
      %5443 = vst.msk [vmem:[#allocation2 + $0x150] sm:$0xff] %vm5421, %v5368
      %5444 = vst.msk [vmem:[#allocation2 + $0x160] sm:$0xff] %vm5421, %v5370
      %5445 = vst.msk [vmem:[#allocation2 + $0x170] sm:$0xff] %vm5421, %v5372
      %5446 = vst.msk [vmem:[#allocation2 + $0x180] sm:$0xff] %vm5421, %v5374
      %5447 = vst.msk [vmem:[#allocation2 + $0x190] sm:$0xff] %vm5421, %v5376
      %5448 = vst.msk [vmem:[#allocation2 + $0x1a0] sm:$0xff] %vm5421, %v5378
      %5449 = vst.msk [vmem:[#allocation2 + $0x1b0] sm:$0xff] %vm5421, %v5380
      %5450 = vst.msk [vmem:[#allocation2 + $0x1c0] sm:$0xff] %vm5421, %v5382
      %5451 = vst.msk [vmem:[#allocation2 + $0x1d0] sm:$0xff] %vm5421, %v5384
      %5452 = vst.msk [vmem:[#allocation2 + $0x1e0] sm:$0xff] %vm5421, %v5386
      %5453 = vst.msk [vmem:[#allocation2 + $0x1f0] sm:$0xff] %vm5421, %v5388
      %v5454 = vld [vmem:[%s1344] sm:$0xff]
      %v5455 = vld [vmem:[%s1344 + $0x8] sm:$0xff]
      %v5456 = vld [vmem:[%s1344 + $0x18] sm:$0xff]
      %v5457 = vld [vmem:[%s1344 + $0x20] sm:$0xff]
      %v5458 = vld [vmem:[%s1344 + $0x30] sm:$0xff]
      %v5459 = vld [vmem:[%s1344 + $0x38] sm:$0xff]
      %v5460 = vld [vmem:[%s1344 + $0x48] sm:$0xff]
      %v5461 = vld [vmem:[%s1344 + $0x50] sm:$0xff]
      %v5462 = vld [vmem:[%s1344 + $0x60] sm:$0xff]
      %v5463 = vld [vmem:[%s1344 + $0x68] sm:$0xff]
      %v5464 = vld [vmem:[%s1344 + $0x78] sm:$0xff]
      %v5465 = vld [vmem:[%s1344 + $0x80] sm:$0xff]
      %v5466 = vld [vmem:[%s1344 + $0x90] sm:$0xff]
      %v5467 = vld [vmem:[%s1344 + $0x98] sm:$0xff]
      %v5468 = vld [vmem:[%s1344 + $0xa8] sm:$0xff]
      %v5469 = vld [vmem:[%s1344 + $0xb0] sm:$0xff]
      %v5470 = vld [vmem:[%s1344 + $0xc0] sm:$0xff]
      %v5471 = vld [vmem:[%s1344 + $0xc8] sm:$0xff]
      %v5472 = vld [vmem:[%s1344 + $0xd8] sm:$0xff]
      %v5473 = vld [vmem:[%s1344 + $0xe0] sm:$0xff]
      %v5474 = vld [vmem:[%s1344 + $0xf0] sm:$0xff]
      %v5475 = vld [vmem:[%s1344 + $0xf8] sm:$0xff]
      %v5476 = vld [vmem:[%s1344 + $0x108] sm:$0xff]
      %v5477 = vld [vmem:[%s1344 + $0x110] sm:$0xff]
      %v5478 = vld [vmem:[%s1344 + $0x120] sm:$0xff]
      %v5479 = vld [vmem:[%s1344 + $0x128] sm:$0xff]
      %v5480 = vld [vmem:[%s1344 + $0x138] sm:$0xff]
      %v5481 = vld [vmem:[%s1344 + $0x140] sm:$0xff]
      %v5482 = vld [vmem:[%s1344 + $0x150] sm:$0xff]
      %v5483 = vld [vmem:[%s1344 + $0x158] sm:$0xff]
      %v5484 = vld [vmem:[%s1344 + $0x168] sm:$0xff]
      %v5485 = vld [vmem:[%s1344 + $0x170] sm:$0xff]
      %5518 = vrot.lane.b32.xlu0 %v5454, 96
      %v5519 = vpop.permute.xlu0 %5518
      %5520 = vrot.lane.b32.xlu0 %v5455, 96
      %v5521 = vpop.permute.xlu0 %5520
      %5522 = vrot.lane.b32.xlu0 %v5456, 96
      %v5523 = vpop.permute.xlu0 %5522
      %5524 = vrot.lane.b32.xlu0 %v5457, 96
      %v5525 = vpop.permute.xlu0 %5524
      %5526 = vrot.lane.b32.xlu0 %v5458, 96
      %v5527 = vpop.permute.xlu0 %5526
      %5528 = vrot.lane.b32.xlu0 %v5459, 96
      %v5529 = vpop.permute.xlu0 %5528
      %5530 = vrot.lane.b32.xlu0 %v5460, 96
      %v5531 = vpop.permute.xlu0 %5530
      %5532 = vrot.lane.b32.xlu0 %v5461, 96
      %v5533 = vpop.permute.xlu0 %5532
      %5534 = vrot.lane.b32.xlu0 %v5462, 96
      %v5535 = vpop.permute.xlu0 %5534
      %5536 = vrot.lane.b32.xlu0 %v5463, 96
      %v5537 = vpop.permute.xlu0 %5536
      %5538 = vrot.lane.b32.xlu0 %v5464, 96
      %v5539 = vpop.permute.xlu0 %5538
      %5540 = vrot.lane.b32.xlu0 %v5465, 96
      %v5541 = vpop.permute.xlu0 %5540
      %5542 = vrot.lane.b32.xlu0 %v5466, 96
      %v5543 = vpop.permute.xlu0 %5542
      %5544 = vrot.lane.b32.xlu0 %v5467, 96
      %v5545 = vpop.permute.xlu0 %5544
      %5546 = vrot.lane.b32.xlu0 %v5468, 96
      %v5547 = vpop.permute.xlu0 %5546
      %5548 = vrot.lane.b32.xlu0 %v5469, 96
      %v5549 = vpop.permute.xlu0 %5548
      %5550 = vrot.lane.b32.xlu0 %v5470, 96
      %v5551 = vpop.permute.xlu0 %5550
      %5552 = vrot.lane.b32.xlu0 %v5471, 96
      %v5553 = vpop.permute.xlu0 %5552
      %5554 = vrot.lane.b32.xlu0 %v5472, 96
      %v5555 = vpop.permute.xlu0 %5554
      %5556 = vrot.lane.b32.xlu0 %v5473, 96
      %v5557 = vpop.permute.xlu0 %5556
      %5558 = vrot.lane.b32.xlu0 %v5474, 96
      %v5559 = vpop.permute.xlu0 %5558
      %5560 = vrot.lane.b32.xlu0 %v5475, 96
      %v5561 = vpop.permute.xlu0 %5560
      %5562 = vrot.lane.b32.xlu0 %v5476, 96
      %v5563 = vpop.permute.xlu0 %5562
      %5564 = vrot.lane.b32.xlu0 %v5477, 96
      %v5565 = vpop.permute.xlu0 %5564
      %5566 = vrot.lane.b32.xlu0 %v5478, 96
      %v5567 = vpop.permute.xlu0 %5566
      %5568 = vrot.lane.b32.xlu0 %v5479, 96
      %v5569 = vpop.permute.xlu0 %5568
      %5570 = vrot.lane.b32.xlu0 %v5480, 96
      %v5571 = vpop.permute.xlu0 %5570
      %5572 = vrot.lane.b32.xlu0 %v5481, 96
      %v5573 = vpop.permute.xlu0 %5572
      %5574 = vrot.lane.b32.xlu0 %v5482, 96
      %v5575 = vpop.permute.xlu0 %5574
      %5576 = vrot.lane.b32.xlu0 %v5483, 96
      %v5577 = vpop.permute.xlu0 %5576
      %5578 = vrot.lane.b32.xlu0 %v5484, 96
      %v5579 = vpop.permute.xlu0 %5578
      %5580 = vrot.lane.b32.xlu0 %v5485, 96
      %v5581 = vpop.permute.xlu0 %5580
      %vm5614 = vcmask 818944
      %5615 = vst.msk [vmem:[#allocation2] sm:$0xff] %vm5614, %v5519
      %5616 = vst.msk [vmem:[#allocation2 + $0x10] sm:$0xff] %vm5614, %v5521
      %5617 = vst.msk [vmem:[#allocation2 + $0x20] sm:$0xff] %vm5614, %v5523
      %5618 = vst.msk [vmem:[#allocation2 + $0x30] sm:$0xff] %vm5614, %v5525
      %5619 = vst.msk [vmem:[#allocation2 + $0x40] sm:$0xff] %vm5614, %v5527
      %5620 = vst.msk [vmem:[#allocation2 + $0x50] sm:$0xff] %vm5614, %v5529
      %5621 = vst.msk [vmem:[#allocation2 + $0x60] sm:$0xff] %vm5614, %v5531
      %5622 = vst.msk [vmem:[#allocation2 + $0x70] sm:$0xff] %vm5614, %v5533
      %5623 = vst.msk [vmem:[#allocation2 + $0x80] sm:$0xff] %vm5614, %v5535
      %5624 = vst.msk [vmem:[#allocation2 + $0x90] sm:$0xff] %vm5614, %v5537
      %5625 = vst.msk [vmem:[#allocation2 + $0xa0] sm:$0xff] %vm5614, %v5539
      %5626 = vst.msk [vmem:[#allocation2 + $0xb0] sm:$0xff] %vm5614, %v5541
      %5627 = vst.msk [vmem:[#allocation2 + $0xc0] sm:$0xff] %vm5614, %v5543
      %5628 = vst.msk [vmem:[#allocation2 + $0xd0] sm:$0xff] %vm5614, %v5545
      %5629 = vst.msk [vmem:[#allocation2 + $0xe0] sm:$0xff] %vm5614, %v5547
      %5630 = vst.msk [vmem:[#allocation2 + $0xf0] sm:$0xff] %vm5614, %v5549
      %5631 = vst.msk [vmem:[#allocation2 + $0x100] sm:$0xff] %vm5614, %v5551
      %5632 = vst.msk [vmem:[#allocation2 + $0x110] sm:$0xff] %vm5614, %v5553
      %5633 = vst.msk [vmem:[#allocation2 + $0x120] sm:$0xff] %vm5614, %v5555
      %5634 = vst.msk [vmem:[#allocation2 + $0x130] sm:$0xff] %vm5614, %v5557
      %5635 = vst.msk [vmem:[#allocation2 + $0x140] sm:$0xff] %vm5614, %v5559
      %5636 = vst.msk [vmem:[#allocation2 + $0x150] sm:$0xff] %vm5614, %v5561
      %5637 = vst.msk [vmem:[#allocation2 + $0x160] sm:$0xff] %vm5614, %v5563
      %5638 = vst.msk [vmem:[#allocation2 + $0x170] sm:$0xff] %vm5614, %v5565
      %5639 = vst.msk [vmem:[#allocation2 + $0x180] sm:$0xff] %vm5614, %v5567
      %5640 = vst.msk [vmem:[#allocation2 + $0x190] sm:$0xff] %vm5614, %v5569
      %5641 = vst.msk [vmem:[#allocation2 + $0x1a0] sm:$0xff] %vm5614, %v5571
      %5642 = vst.msk [vmem:[#allocation2 + $0x1b0] sm:$0xff] %vm5614, %v5573
      %5643 = vst.msk [vmem:[#allocation2 + $0x1c0] sm:$0xff] %vm5614, %v5575
      %5644 = vst.msk [vmem:[#allocation2 + $0x1d0] sm:$0xff] %vm5614, %v5577
      %5645 = vst.msk [vmem:[#allocation2 + $0x1e0] sm:$0xff] %vm5614, %v5579
      %5646 = vst.msk [vmem:[#allocation2 + $0x1f0] sm:$0xff] %vm5614, %v5581
      %v5647 = vld [vmem:[%s1344 + $0x1] sm:$0xff]
      %v5648 = vld [vmem:[%s1344 + $0x9] sm:$0xff]
      %v5649 = vld [vmem:[%s1344 + $0x19] sm:$0xff]
      %v5650 = vld [vmem:[%s1344 + $0x21] sm:$0xff]
      %v5651 = vld [vmem:[%s1344 + $0x31] sm:$0xff]
      %v5652 = vld [vmem:[%s1344 + $0x39] sm:$0xff]
      %v5653 = vld [vmem:[%s1344 + $0x49] sm:$0xff]
      %v5654 = vld [vmem:[%s1344 + $0x51] sm:$0xff]
      %v5655 = vld [vmem:[%s1344 + $0x61] sm:$0xff]
      %v5656 = vld [vmem:[%s1344 + $0x69] sm:$0xff]
      %v5657 = vld [vmem:[%s1344 + $0x79] sm:$0xff]
      %v5658 = vld [vmem:[%s1344 + $0x81] sm:$0xff]
      %v5659 = vld [vmem:[%s1344 + $0x91] sm:$0xff]
      %v5660 = vld [vmem:[%s1344 + $0x99] sm:$0xff]
      %v5661 = vld [vmem:[%s1344 + $0xa9] sm:$0xff]
      %v5662 = vld [vmem:[%s1344 + $0xb1] sm:$0xff]
      %v5663 = vld [vmem:[%s1344 + $0xc1] sm:$0xff]
      %v5664 = vld [vmem:[%s1344 + $0xc9] sm:$0xff]
      %v5665 = vld [vmem:[%s1344 + $0xd9] sm:$0xff]
      %v5666 = vld [vmem:[%s1344 + $0xe1] sm:$0xff]
      %v5667 = vld [vmem:[%s1344 + $0xf1] sm:$0xff]
      %v5668 = vld [vmem:[%s1344 + $0xf9] sm:$0xff]
      %v5669 = vld [vmem:[%s1344 + $0x109] sm:$0xff]
      %v5670 = vld [vmem:[%s1344 + $0x111] sm:$0xff]
      %v5671 = vld [vmem:[%s1344 + $0x121] sm:$0xff]
      %v5672 = vld [vmem:[%s1344 + $0x129] sm:$0xff]
      %v5673 = vld [vmem:[%s1344 + $0x139] sm:$0xff]
      %v5674 = vld [vmem:[%s1344 + $0x141] sm:$0xff]
      %v5675 = vld [vmem:[%s1344 + $0x151] sm:$0xff]
      %v5676 = vld [vmem:[%s1344 + $0x159] sm:$0xff]
      %v5677 = vld [vmem:[%s1344 + $0x169] sm:$0xff]
      %v5678 = vld [vmem:[%s1344 + $0x171] sm:$0xff]
      %5711 = vrot.lane.b32.xlu0 %v5647, 100
      %v5712 = vpop.permute.xlu0 %5711
      %5713 = vrot.lane.b32.xlu0 %v5648, 100
      %v5714 = vpop.permute.xlu0 %5713
      %5715 = vrot.lane.b32.xlu0 %v5649, 100
      %v5716 = vpop.permute.xlu0 %5715
      %5717 = vrot.lane.b32.xlu0 %v5650, 100
      %v5718 = vpop.permute.xlu0 %5717
      %5719 = vrot.lane.b32.xlu0 %v5651, 100
      %v5720 = vpop.permute.xlu0 %5719
      %5721 = vrot.lane.b32.xlu0 %v5652, 100
      %v5722 = vpop.permute.xlu0 %5721
      %5723 = vrot.lane.b32.xlu0 %v5653, 100
      %v5724 = vpop.permute.xlu0 %5723
      %5725 = vrot.lane.b32.xlu0 %v5654, 100
      %v5726 = vpop.permute.xlu0 %5725
      %5727 = vrot.lane.b32.xlu0 %v5655, 100
      %v5728 = vpop.permute.xlu0 %5727
      %5729 = vrot.lane.b32.xlu0 %v5656, 100
      %v5730 = vpop.permute.xlu0 %5729
      %5731 = vrot.lane.b32.xlu0 %v5657, 100
      %v5732 = vpop.permute.xlu0 %5731
      %5733 = vrot.lane.b32.xlu0 %v5658, 100
      %v5734 = vpop.permute.xlu0 %5733
      %5735 = vrot.lane.b32.xlu0 %v5659, 100
      %v5736 = vpop.permute.xlu0 %5735
      %5737 = vrot.lane.b32.xlu0 %v5660, 100
      %v5738 = vpop.permute.xlu0 %5737
      %5739 = vrot.lane.b32.xlu0 %v5661, 100
      %v5740 = vpop.permute.xlu0 %5739
      %5741 = vrot.lane.b32.xlu0 %v5662, 100
      %v5742 = vpop.permute.xlu0 %5741
      %5743 = vrot.lane.b32.xlu0 %v5663, 100
      %v5744 = vpop.permute.xlu0 %5743
      %5745 = vrot.lane.b32.xlu0 %v5664, 100
      %v5746 = vpop.permute.xlu0 %5745
      %5747 = vrot.lane.b32.xlu0 %v5665, 100
      %v5748 = vpop.permute.xlu0 %5747
      %5749 = vrot.lane.b32.xlu0 %v5666, 100
      %v5750 = vpop.permute.xlu0 %5749
      %5751 = vrot.lane.b32.xlu0 %v5667, 100
      %v5752 = vpop.permute.xlu0 %5751
      %5753 = vrot.lane.b32.xlu0 %v5668, 100
      %v5754 = vpop.permute.xlu0 %5753
      %5755 = vrot.lane.b32.xlu0 %v5669, 100
      %v5756 = vpop.permute.xlu0 %5755
      %5757 = vrot.lane.b32.xlu0 %v5670, 100
      %v5758 = vpop.permute.xlu0 %5757
      %5759 = vrot.lane.b32.xlu0 %v5671, 100
      %v5760 = vpop.permute.xlu0 %5759
      %5761 = vrot.lane.b32.xlu0 %v5672, 100
      %v5762 = vpop.permute.xlu0 %5761
      %5763 = vrot.lane.b32.xlu0 %v5673, 100
      %v5764 = vpop.permute.xlu0 %5763
      %5765 = vrot.lane.b32.xlu0 %v5674, 100
      %v5766 = vpop.permute.xlu0 %5765
      %5767 = vrot.lane.b32.xlu0 %v5675, 100
      %v5768 = vpop.permute.xlu0 %5767
      %5769 = vrot.lane.b32.xlu0 %v5676, 100
      %v5770 = vpop.permute.xlu0 %5769
      %5771 = vrot.lane.b32.xlu0 %v5677, 100
      %v5772 = vpop.permute.xlu0 %5771
      %5773 = vrot.lane.b32.xlu0 %v5678, 100
      %v5774 = vpop.permute.xlu0 %5773
      %vm5807 = vcmask 851744
      %5808 = vst.msk [vmem:[#allocation2] sm:$0xff] %vm5807, %v5712
      %5809 = vst.msk [vmem:[#allocation2 + $0x10] sm:$0xff] %vm5807, %v5714
      %5810 = vst.msk [vmem:[#allocation2 + $0x20] sm:$0xff] %vm5807, %v5716
      %5811 = vst.msk [vmem:[#allocation2 + $0x30] sm:$0xff] %vm5807, %v5718
      %5812 = vst.msk [vmem:[#allocation2 + $0x40] sm:$0xff] %vm5807, %v5720
      %5813 = vst.msk [vmem:[#allocation2 + $0x50] sm:$0xff] %vm5807, %v5722
      %5814 = vst.msk [vmem:[#allocation2 + $0x60] sm:$0xff] %vm5807, %v5724
      %5815 = vst.msk [vmem:[#allocation2 + $0x70] sm:$0xff] %vm5807, %v5726
      %5816 = vst.msk [vmem:[#allocation2 + $0x80] sm:$0xff] %vm5807, %v5728
      %5817 = vst.msk [vmem:[#allocation2 + $0x90] sm:$0xff] %vm5807, %v5730
      %5818 = vst.msk [vmem:[#allocation2 + $0xa0] sm:$0xff] %vm5807, %v5732
      %5819 = vst.msk [vmem:[#allocation2 + $0xb0] sm:$0xff] %vm5807, %v5734
      %5820 = vst.msk [vmem:[#allocation2 + $0xc0] sm:$0xff] %vm5807, %v5736
      %5821 = vst.msk [vmem:[#allocation2 + $0xd0] sm:$0xff] %vm5807, %v5738
      %5822 = vst.msk [vmem:[#allocation2 + $0xe0] sm:$0xff] %vm5807, %v5740
      %5823 = vst.msk [vmem:[#allocation2 + $0xf0] sm:$0xff] %vm5807, %v5742
      %5824 = vst.msk [vmem:[#allocation2 + $0x100] sm:$0xff] %vm5807, %v5744
      %5825 = vst.msk [vmem:[#allocation2 + $0x110] sm:$0xff] %vm5807, %v5746
      %5826 = vst.msk [vmem:[#allocation2 + $0x120] sm:$0xff] %vm5807, %v5748
      %5827 = vst.msk [vmem:[#allocation2 + $0x130] sm:$0xff] %vm5807, %v5750
      %5828 = vst.msk [vmem:[#allocation2 + $0x140] sm:$0xff] %vm5807, %v5752
      %5829 = vst.msk [vmem:[#allocation2 + $0x150] sm:$0xff] %vm5807, %v5754
      %5830 = vst.msk [vmem:[#allocation2 + $0x160] sm:$0xff] %vm5807, %v5756
      %5831 = vst.msk [vmem:[#allocation2 + $0x170] sm:$0xff] %vm5807, %v5758
      %5832 = vst.msk [vmem:[#allocation2 + $0x180] sm:$0xff] %vm5807, %v5760
      %5833 = vst.msk [vmem:[#allocation2 + $0x190] sm:$0xff] %vm5807, %v5762
      %5834 = vst.msk [vmem:[#allocation2 + $0x1a0] sm:$0xff] %vm5807, %v5764
      %5835 = vst.msk [vmem:[#allocation2 + $0x1b0] sm:$0xff] %vm5807, %v5766
      %5836 = vst.msk [vmem:[#allocation2 + $0x1c0] sm:$0xff] %vm5807, %v5768
      %5837 = vst.msk [vmem:[#allocation2 + $0x1d0] sm:$0xff] %vm5807, %v5770
      %5838 = vst.msk [vmem:[#allocation2 + $0x1e0] sm:$0xff] %vm5807, %v5772
      %5839 = vst.msk [vmem:[#allocation2 + $0x1f0] sm:$0xff] %vm5807, %v5774
      %v5840 = vld [vmem:[%s1344 + $0x2] sm:$0xff]
      %v5841 = vld [vmem:[%s1344 + $0xa] sm:$0xff]
      %v5842 = vld [vmem:[%s1344 + $0x1a] sm:$0xff]
      %v5843 = vld [vmem:[%s1344 + $0x22] sm:$0xff]
      %v5844 = vld [vmem:[%s1344 + $0x32] sm:$0xff]
      %v5845 = vld [vmem:[%s1344 + $0x3a] sm:$0xff]
      %v5846 = vld [vmem:[%s1344 + $0x4a] sm:$0xff]
      %v5847 = vld [vmem:[%s1344 + $0x52] sm:$0xff]
      %v5848 = vld [vmem:[%s1344 + $0x62] sm:$0xff]
      %v5849 = vld [vmem:[%s1344 + $0x6a] sm:$0xff]
      %v5850 = vld [vmem:[%s1344 + $0x7a] sm:$0xff]
      %v5851 = vld [vmem:[%s1344 + $0x82] sm:$0xff]
      %v5852 = vld [vmem:[%s1344 + $0x92] sm:$0xff]
      %v5853 = vld [vmem:[%s1344 + $0x9a] sm:$0xff]
      %v5854 = vld [vmem:[%s1344 + $0xaa] sm:$0xff]
      %v5855 = vld [vmem:[%s1344 + $0xb2] sm:$0xff]
      %v5856 = vld [vmem:[%s1344 + $0xc2] sm:$0xff]
      %v5857 = vld [vmem:[%s1344 + $0xca] sm:$0xff]
      %v5858 = vld [vmem:[%s1344 + $0xda] sm:$0xff]
      %v5859 = vld [vmem:[%s1344 + $0xe2] sm:$0xff]
      %v5860 = vld [vmem:[%s1344 + $0xf2] sm:$0xff]
      %v5861 = vld [vmem:[%s1344 + $0xfa] sm:$0xff]
      %v5862 = vld [vmem:[%s1344 + $0x10a] sm:$0xff]
      %v5863 = vld [vmem:[%s1344 + $0x112] sm:$0xff]
      %v5864 = vld [vmem:[%s1344 + $0x122] sm:$0xff]
      %v5865 = vld [vmem:[%s1344 + $0x12a] sm:$0xff]
      %v5866 = vld [vmem:[%s1344 + $0x13a] sm:$0xff]
      %v5867 = vld [vmem:[%s1344 + $0x142] sm:$0xff]
      %v5868 = vld [vmem:[%s1344 + $0x152] sm:$0xff]
      %v5869 = vld [vmem:[%s1344 + $0x15a] sm:$0xff]
      %v5870 = vld [vmem:[%s1344 + $0x16a] sm:$0xff]
      %v5871 = vld [vmem:[%s1344 + $0x172] sm:$0xff]
      %5904 = vrot.lane.b32.xlu0 %v5840, 104
      %v5905 = vpop.permute.xlu0 %5904
      %5906 = vrot.lane.b32.xlu0 %v5841, 104
      %v5907 = vpop.permute.xlu0 %5906
      %5908 = vrot.lane.b32.xlu0 %v5842, 104
      %v5909 = vpop.permute.xlu0 %5908
      %5910 = vrot.lane.b32.xlu0 %v5843, 104
      %v5911 = vpop.permute.xlu0 %5910
      %5912 = vrot.lane.b32.xlu0 %v5844, 104
      %v5913 = vpop.permute.xlu0 %5912
      %5914 = vrot.lane.b32.xlu0 %v5845, 104
      %v5915 = vpop.permute.xlu0 %5914
      %5916 = vrot.lane.b32.xlu0 %v5846, 104
      %v5917 = vpop.permute.xlu0 %5916
      %5918 = vrot.lane.b32.xlu0 %v5847, 104
      %v5919 = vpop.permute.xlu0 %5918
      %5920 = vrot.lane.b32.xlu0 %v5848, 104
      %v5921 = vpop.permute.xlu0 %5920
      %5922 = vrot.lane.b32.xlu0 %v5849, 104
      %v5923 = vpop.permute.xlu0 %5922
      %5924 = vrot.lane.b32.xlu0 %v5850, 104
      %v5925 = vpop.permute.xlu0 %5924
      %5926 = vrot.lane.b32.xlu0 %v5851, 104
      %v5927 = vpop.permute.xlu0 %5926
      %5928 = vrot.lane.b32.xlu0 %v5852, 104
      %v5929 = vpop.permute.xlu0 %5928
      %5930 = vrot.lane.b32.xlu0 %v5853, 104
      %v5931 = vpop.permute.xlu0 %5930
      %5932 = vrot.lane.b32.xlu0 %v5854, 104
      %v5933 = vpop.permute.xlu0 %5932
      %5934 = vrot.lane.b32.xlu0 %v5855, 104
      %v5935 = vpop.permute.xlu0 %5934
      %5936 = vrot.lane.b32.xlu0 %v5856, 104
      %v5937 = vpop.permute.xlu0 %5936
      %5938 = vrot.lane.b32.xlu0 %v5857, 104
      %v5939 = vpop.permute.xlu0 %5938
      %5940 = vrot.lane.b32.xlu0 %v5858, 104
      %v5941 = vpop.permute.xlu0 %5940
      %5942 = vrot.lane.b32.xlu0 %v5859, 104
      %v5943 = vpop.permute.xlu0 %5942
      %5944 = vrot.lane.b32.xlu0 %v5860, 104
      %v5945 = vpop.permute.xlu0 %5944
      %5946 = vrot.lane.b32.xlu0 %v5861, 104
      %v5947 = vpop.permute.xlu0 %5946
      %5948 = vrot.lane.b32.xlu0 %v5862, 104
      %v5949 = vpop.permute.xlu0 %5948
      %5950 = vrot.lane.b32.xlu0 %v5863, 104
      %v5951 = vpop.permute.xlu0 %5950
      %5952 = vrot.lane.b32.xlu0 %v5864, 104
      %v5953 = vpop.permute.xlu0 %5952
      %5954 = vrot.lane.b32.xlu0 %v5865, 104
      %v5955 = vpop.permute.xlu0 %5954
      %5956 = vrot.lane.b32.xlu0 %v5866, 104
      %v5957 = vpop.permute.xlu0 %5956
      %5958 = vrot.lane.b32.xlu0 %v5867, 104
      %v5959 = vpop.permute.xlu0 %5958
      %5960 = vrot.lane.b32.xlu0 %v5868, 104
      %v5961 = vpop.permute.xlu0 %5960
      %5962 = vrot.lane.b32.xlu0 %v5869, 104
      %v5963 = vpop.permute.xlu0 %5962
      %5964 = vrot.lane.b32.xlu0 %v5870, 104
      %v5965 = vpop.permute.xlu0 %5964
      %5966 = vrot.lane.b32.xlu0 %v5871, 104
      %v5967 = vpop.permute.xlu0 %5966
      %vm6000 = vcmask 884544
      %6001 = vst.msk [vmem:[#allocation2] sm:$0xff] %vm6000, %v5905
      %6002 = vst.msk [vmem:[#allocation2 + $0x10] sm:$0xff] %vm6000, %v5907
      %6003 = vst.msk [vmem:[#allocation2 + $0x20] sm:$0xff] %vm6000, %v5909
      %6004 = vst.msk [vmem:[#allocation2 + $0x30] sm:$0xff] %vm6000, %v5911
      %6005 = vst.msk [vmem:[#allocation2 + $0x40] sm:$0xff] %vm6000, %v5913
      %6006 = vst.msk [vmem:[#allocation2 + $0x50] sm:$0xff] %vm6000, %v5915
      %6007 = vst.msk [vmem:[#allocation2 + $0x60] sm:$0xff] %vm6000, %v5917
      %6008 = vst.msk [vmem:[#allocation2 + $0x70] sm:$0xff] %vm6000, %v5919
      %6009 = vst.msk [vmem:[#allocation2 + $0x80] sm:$0xff] %vm6000, %v5921
      %6010 = vst.msk [vmem:[#allocation2 + $0x90] sm:$0xff] %vm6000, %v5923
      %6011 = vst.msk [vmem:[#allocation2 + $0xa0] sm:$0xff] %vm6000, %v5925
      %6012 = vst.msk [vmem:[#allocation2 + $0xb0] sm:$0xff] %vm6000, %v5927
      %6013 = vst.msk [vmem:[#allocation2 + $0xc0] sm:$0xff] %vm6000, %v5929
      %6014 = vst.msk [vmem:[#allocation2 + $0xd0] sm:$0xff] %vm6000, %v5931
      %6015 = vst.msk [vmem:[#allocation2 + $0xe0] sm:$0xff] %vm6000, %v5933
      %6016 = vst.msk [vmem:[#allocation2 + $0xf0] sm:$0xff] %vm6000, %v5935
      %6017 = vst.msk [vmem:[#allocation2 + $0x100] sm:$0xff] %vm6000, %v5937
      %6018 = vst.msk [vmem:[#allocation2 + $0x110] sm:$0xff] %vm6000, %v5939
      %6019 = vst.msk [vmem:[#allocation2 + $0x120] sm:$0xff] %vm6000, %v5941
      %6020 = vst.msk [vmem:[#allocation2 + $0x130] sm:$0xff] %vm6000, %v5943
      %6021 = vst.msk [vmem:[#allocation2 + $0x140] sm:$0xff] %vm6000, %v5945
      %6022 = vst.msk [vmem:[#allocation2 + $0x150] sm:$0xff] %vm6000, %v5947
      %6023 = vst.msk [vmem:[#allocation2 + $0x160] sm:$0xff] %vm6000, %v5949
      %6024 = vst.msk [vmem:[#allocation2 + $0x170] sm:$0xff] %vm6000, %v5951
      %6025 = vst.msk [vmem:[#allocation2 + $0x180] sm:$0xff] %vm6000, %v5953
      %6026 = vst.msk [vmem:[#allocation2 + $0x190] sm:$0xff] %vm6000, %v5955
      %6027 = vst.msk [vmem:[#allocation2 + $0x1a0] sm:$0xff] %vm6000, %v5957
      %6028 = vst.msk [vmem:[#allocation2 + $0x1b0] sm:$0xff] %vm6000, %v5959
      %6029 = vst.msk [vmem:[#allocation2 + $0x1c0] sm:$0xff] %vm6000, %v5961
      %6030 = vst.msk [vmem:[#allocation2 + $0x1d0] sm:$0xff] %vm6000, %v5963
      %6031 = vst.msk [vmem:[#allocation2 + $0x1e0] sm:$0xff] %vm6000, %v5965
      %6032 = vst.msk [vmem:[#allocation2 + $0x1f0] sm:$0xff] %vm6000, %v5967
      %v6033 = vld [vmem:[#allocation2] sm:$0xff]
      %v6034 = vld [vmem:[#allocation2 + $0x10] sm:$0xff]
      %v6035 = vld [vmem:[#allocation2 + $0x20] sm:$0xff]
      %v6036 = vld [vmem:[#allocation2 + $0x30] sm:$0xff]
      %v6037 = vld [vmem:[#allocation2 + $0x40] sm:$0xff]
      %v6038 = vld [vmem:[#allocation2 + $0x50] sm:$0xff]
      %v6039 = vld [vmem:[#allocation2 + $0x60] sm:$0xff]
      %v6040 = vld [vmem:[#allocation2 + $0x70] sm:$0xff]
      %v6041 = vld [vmem:[#allocation2 + $0x80] sm:$0xff]
      %v6042 = vld [vmem:[#allocation2 + $0x90] sm:$0xff]
      %v6043 = vld [vmem:[#allocation2 + $0xa0] sm:$0xff]
      %v6044 = vld [vmem:[#allocation2 + $0xb0] sm:$0xff]
      %v6045 = vld [vmem:[#allocation2 + $0xc0] sm:$0xff]
      %v6046 = vld [vmem:[#allocation2 + $0xd0] sm:$0xff]
      %v6047 = vld [vmem:[#allocation2 + $0xe0] sm:$0xff]
      %v6048 = vld [vmem:[#allocation2 + $0xf0] sm:$0xff]
      %v6049 = vld [vmem:[#allocation2 + $0x100] sm:$0xff]
      %v6050 = vld [vmem:[#allocation2 + $0x110] sm:$0xff]
      %v6051 = vld [vmem:[#allocation2 + $0x120] sm:$0xff]
      %v6052 = vld [vmem:[#allocation2 + $0x130] sm:$0xff]
      %v6053 = vld [vmem:[#allocation2 + $0x140] sm:$0xff]
      %v6054 = vld [vmem:[#allocation2 + $0x150] sm:$0xff]
      %v6055 = vld [vmem:[#allocation2 + $0x160] sm:$0xff]
      %v6056 = vld [vmem:[#allocation2 + $0x170] sm:$0xff]
      %v6057 = vld [vmem:[#allocation2 + $0x180] sm:$0xff]
      %v6058 = vld [vmem:[#allocation2 + $0x190] sm:$0xff]
      %v6059 = vld [vmem:[#allocation2 + $0x1a0] sm:$0xff]
      %v6060 = vld [vmem:[#allocation2 + $0x1b0] sm:$0xff]
      %v6061 = vld [vmem:[#allocation2 + $0x1c0] sm:$0xff]
      %v6062 = vld [vmem:[#allocation2 + $0x1d0] sm:$0xff]
      %v6063 = vld [vmem:[#allocation2 + $0x1e0] sm:$0xff]
      %v6064 = vld [vmem:[#allocation2 + $0x1f0] sm:$0xff]
      %s6065 = scalar_lea.vmem %s1, 304
      %v6066 = vld [vmem:[%s6065] sm:$0xff]
      %v6067 = vld [vmem:[%s6065 + $0x8] sm:$0xff]
      %v6068 = vld [vmem:[%s6065 + $0x10] sm:$0xff]
      %v6069 = vld [vmem:[%s6065 + $0x18] sm:$0xff]
      %v6070 = vld [vmem:[%s6065 + $0x20] sm:$0xff]
      %v6071 = vld [vmem:[%s6065 + $0x28] sm:$0xff]
      %v6072 = vld [vmem:[%s6065 + $0x30] sm:$0xff]
      %v6073 = vld [vmem:[%s6065 + $0x38] sm:$0xff]
      %v6074 = vld [vmem:[%s6065 + $0x40] sm:$0xff]
      %v6075 = vld [vmem:[%s6065 + $0x48] sm:$0xff]
      %v6076 = vld [vmem:[%s6065 + $0x50] sm:$0xff]
      %v6077 = vld [vmem:[%s6065 + $0x58] sm:$0xff]
      %v6078 = vld [vmem:[%s6065 + $0x60] sm:$0xff]
      %v6079 = vld [vmem:[%s6065 + $0x68] sm:$0xf]
      %v6080 = vld [vmem:[%s2 + $0x2] sm:$0x1]
      %v6081 = vperm.slane %v6080, 0
      %vm6082 = vcmask 883712
      %v6084 = vsel %vm6082, %v6033, 0
      %v6087 = vsel %vm6082, %v6034, 0
      %v6090 = vsel %vm6082, %v6035, 0
      %v6093 = vsel %vm6082, %v6036, 0
      %v6096 = vsel %vm6082, %v6037, 0
      %v6099 = vsel %vm6082, %v6038, 0
      %v6102 = vsel %vm6082, %v6039, 0
      %v6105 = vsel %vm6082, %v6040, 0
      %v6108 = vsel %vm6082, %v6041, 0
      %v6111 = vsel %vm6082, %v6042, 0
      %v6114 = vsel %vm6082, %v6043, 0
      %v6117 = vsel %vm6082, %v6044, 0
      %v6120 = vsel %vm6082, %v6045, 0
      %v6123 = vsel %vm6082, %v6046, 0
      %v6126 = vsel %vm6082, %v6047, 0
      %v6129 = vsel %vm6082, %v6048, 0
      %v6132 = vsel %vm6082, %v6049, 0
      %v6135 = vsel %vm6082, %v6050, 0
      %v6138 = vsel %vm6082, %v6051, 0
      %v6141 = vsel %vm6082, %v6052, 0
      %v6144 = vsel %vm6082, %v6053, 0
      %v6147 = vsel %vm6082, %v6054, 0
      %v6150 = vsel %vm6082, %v6055, 0
      %v6153 = vsel %vm6082, %v6056, 0
      %v6156 = vsel %vm6082, %v6057, 0
      %v6159 = vsel %vm6082, %v6058, 0
      %v6162 = vsel %vm6082, %v6059, 0
      %v6165 = vsel %vm6082, %v6060, 0
      %v6168 = vsel %vm6082, %v6061, 0
      %v6171 = vsel %vm6082, %v6062, 0
      %v6174 = vsel %vm6082, %v6063, 0
      %v6177 = vsel %vm6082, %v6064, 0
      %v6180 = vsel %vm2060, %v6079, 0
      %6182 = vmatpush.msra.mxu0 0.0
      %6183 = vmatpush.msra.mxu0 0.0
      %6184 = vmatpush.msra.mxu0 %v6180
      %6185 = vmatpush.msra.mxu0 %v6078
      %6186 = vmatpush.msra.mxu0 %v6077
      %6187 = vmatpush.msra.mxu0 %v6076
      %6188 = vmatpush.msra.mxu0 %v6075
      %6189 = vmatpush.msra.mxu0 %v6074
      %6190 = vmatpush.msra.mxu0 %v6073
      %6191 = vmatpush.msra.mxu0 %v6072
      %6192 = vmatpush.msra.mxu0 %v6071
      %6193 = vmatpush.msra.mxu0 %v6070
      %6194 = vmatpush.msra.mxu0 %v6069
      %6195 = vmatpush.msra.mxu0 %v6068
      %6196 = vmatpush.msra.mxu0 %v6067
      %6197 = vmatpush.msra.mxu0 %v6066
      %6198 = vmatmul.f32.gmra.mxu0 %v6084
      %v6199 = vpop.f32.mrf.mxu0
      %v6200 = vadd.f32 %v6081, %v6199
      %6201 = vmatmul.f32.gmra.mxu0 %v6087
      %v6202 = vpop.f32.mrf.mxu0
      %v6203 = vadd.f32 %v6081, %v6202
      %6204 = vmatmul.f32.gmra.mxu0 %v6090
      %v6205 = vpop.f32.mrf.mxu0
      %v6206 = vadd.f32 %v6081, %v6205
      %6207 = vmatmul.f32.gmra.mxu0 %v6093
      %v6208 = vpop.f32.mrf.mxu0
      %v6209 = vadd.f32 %v6081, %v6208
      %6210 = vmatmul.f32.gmra.mxu0 %v6096
      %v6211 = vpop.f32.mrf.mxu0
      %v6212 = vadd.f32 %v6081, %v6211
      %6213 = vmatmul.f32.gmra.mxu0 %v6099
      %v6214 = vpop.f32.mrf.mxu0
      %v6215 = vadd.f32 %v6081, %v6214
      %6216 = vmatmul.f32.gmra.mxu0 %v6102
      %v6217 = vpop.f32.mrf.mxu0
      %v6218 = vadd.f32 %v6081, %v6217
      %6219 = vmatmul.f32.gmra.mxu0 %v6105
      %v6220 = vpop.f32.mrf.mxu0
      %v6221 = vadd.f32 %v6081, %v6220
      %6222 = vmatmul.f32.gmra.mxu0 %v6108
      %v6223 = vpop.f32.mrf.mxu0
      %v6224 = vadd.f32 %v6081, %v6223
      %6225 = vmatmul.f32.gmra.mxu0 %v6111
      %v6226 = vpop.f32.mrf.mxu0
      %v6227 = vadd.f32 %v6081, %v6226
      %6228 = vmatmul.f32.gmra.mxu0 %v6114
      %v6229 = vpop.f32.mrf.mxu0
      %v6230 = vadd.f32 %v6081, %v6229
      %6231 = vmatmul.f32.gmra.mxu0 %v6117
      %v6232 = vpop.f32.mrf.mxu0
      %v6233 = vadd.f32 %v6081, %v6232
      %6234 = vmatmul.f32.gmra.mxu0 %v6120
      %v6235 = vpop.f32.mrf.mxu0
      %v6236 = vadd.f32 %v6081, %v6235
      %6237 = vmatmul.f32.gmra.mxu0 %v6123
      %v6238 = vpop.f32.mrf.mxu0
      %v6239 = vadd.f32 %v6081, %v6238
      %6240 = vmatmul.f32.gmra.mxu0 %v6126
      %v6241 = vpop.f32.mrf.mxu0
      %v6242 = vadd.f32 %v6081, %v6241
      %6243 = vmatmul.f32.gmra.mxu0 %v6129
      %v6244 = vpop.f32.mrf.mxu0
      %v6245 = vadd.f32 %v6081, %v6244
      %6246 = vmatmul.f32.gmra.mxu0 %v6132
      %v6247 = vpop.f32.mrf.mxu0
      %v6248 = vadd.f32 %v6081, %v6247
      %6249 = vmatmul.f32.gmra.mxu0 %v6135
      %v6250 = vpop.f32.mrf.mxu0
      %v6251 = vadd.f32 %v6081, %v6250
      %6252 = vmatmul.f32.gmra.mxu0 %v6138
      %v6253 = vpop.f32.mrf.mxu0
      %v6254 = vadd.f32 %v6081, %v6253
      %6255 = vmatmul.f32.gmra.mxu0 %v6141
      %v6256 = vpop.f32.mrf.mxu0
      %v6257 = vadd.f32 %v6081, %v6256
      %6258 = vmatmul.f32.gmra.mxu0 %v6144
      %v6259 = vpop.f32.mrf.mxu0
      %v6260 = vadd.f32 %v6081, %v6259
      %6261 = vmatmul.f32.gmra.mxu0 %v6147
      %v6262 = vpop.f32.mrf.mxu0
      %v6263 = vadd.f32 %v6081, %v6262
      %6264 = vmatmul.f32.gmra.mxu0 %v6150
      %v6265 = vpop.f32.mrf.mxu0
      %v6266 = vadd.f32 %v6081, %v6265
      %6267 = vmatmul.f32.gmra.mxu0 %v6153
      %v6268 = vpop.f32.mrf.mxu0
      %v6269 = vadd.f32 %v6081, %v6268
      %6270 = vmatmul.f32.gmra.mxu0 %v6156
      %v6271 = vpop.f32.mrf.mxu0
      %v6272 = vadd.f32 %v6081, %v6271
      %6273 = vmatmul.f32.gmra.mxu0 %v6159
      %v6274 = vpop.f32.mrf.mxu0
      %v6275 = vadd.f32 %v6081, %v6274
      %6276 = vmatmul.f32.gmra.mxu0 %v6162
      %v6277 = vpop.f32.mrf.mxu0
      %v6278 = vadd.f32 %v6081, %v6277
      %6279 = vmatmul.f32.gmra.mxu0 %v6165
      %v6280 = vpop.f32.mrf.mxu0
      %v6281 = vadd.f32 %v6081, %v6280
      %6282 = vmatmul.f32.gmra.mxu0 %v6168
      %v6283 = vpop.f32.mrf.mxu0
      %v6284 = vadd.f32 %v6081, %v6283
      %6285 = vmatmul.f32.gmra.mxu0 %v6171
      %v6286 = vpop.f32.mrf.mxu0
      %v6287 = vadd.f32 %v6081, %v6286
      %6288 = vmatmul.f32.gmra.mxu0 %v6174
      %v6289 = vpop.f32.mrf.mxu0
      %v6290 = vadd.f32 %v6081, %v6289
      %6291 = vmatmul.f32.gmra.mxu0 %v6177
      %v6292 = vpop.f32.mrf.mxu0
      %v6293 = vadd.f32 %v6081, %v6292
      %6294 = vdwg.mxu0
      %v6295 = vmax.f32 %v6200, 0.0
      %v6296 = vmax.f32 %v6203, 0.0
      %v6297 = vmax.f32 %v6206, 0.0
      %v6298 = vmax.f32 %v6209, 0.0
      %v6299 = vmax.f32 %v6212, 0.0
      %v6300 = vmax.f32 %v6215, 0.0
      %v6301 = vmax.f32 %v6218, 0.0
      %v6302 = vmax.f32 %v6221, 0.0
      %v6303 = vmax.f32 %v6224, 0.0
      %v6304 = vmax.f32 %v6227, 0.0
      %v6305 = vmax.f32 %v6230, 0.0
      %v6306 = vmax.f32 %v6233, 0.0
      %v6307 = vmax.f32 %v6236, 0.0
      %v6308 = vmax.f32 %v6239, 0.0
      %v6309 = vmax.f32 %v6242, 0.0
      %v6310 = vmax.f32 %v6245, 0.0
      %v6311 = vmax.f32 %v6248, 0.0
      %v6312 = vmax.f32 %v6251, 0.0
      %v6313 = vmax.f32 %v6254, 0.0
      %v6314 = vmax.f32 %v6257, 0.0
      %v6315 = vmax.f32 %v6260, 0.0
      %v6316 = vmax.f32 %v6263, 0.0
      %v6317 = vmax.f32 %v6266, 0.0
      %v6318 = vmax.f32 %v6269, 0.0
      %v6319 = vmax.f32 %v6272, 0.0
      %v6320 = vmax.f32 %v6275, 0.0
      %v6321 = vmax.f32 %v6278, 0.0
      %v6322 = vmax.f32 %v6281, 0.0
      %v6323 = vmax.f32 %v6284, 0.0
      %v6324 = vmax.f32 %v6287, 0.0
      %v6325 = vmax.f32 %v6290, 0.0
      %v6326 = vmax.f32 %v6293, 0.0
      %6327 = vst.msk [vmem:[%s282 + $0x1] sm:$0xff] %vm171, %v6295
      %6328 = vst.msk [vmem:[%s282 + $0x9] sm:$0xff] %vm171, %v6296
      %6329 = vst.msk [vmem:[%s282 + $0x19] sm:$0xff] %vm171, %v6297
      %6330 = vst.msk [vmem:[%s282 + $0x21] sm:$0xff] %vm171, %v6298
      %6331 = vst.msk [vmem:[%s282 + $0x31] sm:$0xff] %vm171, %v6299
      %6332 = vst.msk [vmem:[%s282 + $0x39] sm:$0xff] %vm171, %v6300
      %6333 = vst.msk [vmem:[%s282 + $0x49] sm:$0xff] %vm171, %v6301
      %6334 = vst.msk [vmem:[%s282 + $0x51] sm:$0xff] %vm171, %v6302
      %6335 = vst.msk [vmem:[%s282 + $0x61] sm:$0xff] %vm171, %v6303
      %6336 = vst.msk [vmem:[%s282 + $0x69] sm:$0xff] %vm171, %v6304
      %6337 = vst.msk [vmem:[%s282 + $0x79] sm:$0xff] %vm171, %v6305
      %6338 = vst.msk [vmem:[%s282 + $0x81] sm:$0xff] %vm171, %v6306
      %6339 = vst.msk [vmem:[%s282 + $0x91] sm:$0xff] %vm171, %v6307
      %6340 = vst.msk [vmem:[%s282 + $0x99] sm:$0xff] %vm171, %v6308
      %6341 = vst.msk [vmem:[%s282 + $0xa9] sm:$0xff] %vm171, %v6309
      %6342 = vst.msk [vmem:[%s282 + $0xb1] sm:$0xff] %vm171, %v6310
      %6343 = vst.msk [vmem:[%s282 + $0xc1] sm:$0xff] %vm171, %v6311
      %6344 = vst.msk [vmem:[%s282 + $0xc9] sm:$0xff] %vm171, %v6312
      %6345 = vst.msk [vmem:[%s282 + $0xd9] sm:$0xff] %vm171, %v6313
      %6346 = vst.msk [vmem:[%s282 + $0xe1] sm:$0xff] %vm171, %v6314
      %6347 = vst.msk [vmem:[%s282 + $0xf1] sm:$0xff] %vm171, %v6315
      %6348 = vst.msk [vmem:[%s282 + $0xf9] sm:$0xff] %vm171, %v6316
      %6349 = vst.msk [vmem:[%s282 + $0x109] sm:$0xff] %vm171, %v6317
      %6350 = vst.msk [vmem:[%s282 + $0x111] sm:$0xff] %vm171, %v6318
      %6351 = vst.msk [vmem:[%s282 + $0x121] sm:$0xff] %vm171, %v6319
      %6352 = vst.msk [vmem:[%s282 + $0x129] sm:$0xff] %vm171, %v6320
      %6353 = vst.msk [vmem:[%s282 + $0x139] sm:$0xff] %vm171, %v6321
      %6354 = vst.msk [vmem:[%s282 + $0x141] sm:$0xff] %vm171, %v6322
      %6355 = vst.msk [vmem:[%s282 + $0x151] sm:$0xff] %vm171, %v6323
      %6356 = vst.msk [vmem:[%s282 + $0x159] sm:$0xff] %vm171, %v6324
      %6357 = vst.msk [vmem:[%s282 + $0x169] sm:$0xff] %vm171, %v6325
      %6358 = vst.msk [vmem:[%s282 + $0x171] sm:$0xff] %vm171, %v6326
      %v6359 = vld [vmem:[#allocation3] sm:$0xff]
      %v6360 = vld [vmem:[#allocation3 + $0x8] sm:$0xff]
      %v6361 = vld [vmem:[#allocation3 + $0x18] sm:$0xff]
      %v6362 = vld [vmem:[#allocation3 + $0x20] sm:$0xff]
      %v6363 = vld [vmem:[#allocation3 + $0x30] sm:$0xff]
      %v6364 = vld [vmem:[#allocation3 + $0x38] sm:$0xff]
      %v6365 = vld [vmem:[#allocation3 + $0x48] sm:$0xff]
      %v6366 = vld [vmem:[#allocation3 + $0x50] sm:$0xff]
      %v6367 = vld [vmem:[#allocation3 + $0x60] sm:$0xff]
      %v6368 = vld [vmem:[#allocation3 + $0x68] sm:$0xff]
      %v6369 = vld [vmem:[#allocation3 + $0x78] sm:$0xff]
      %v6370 = vld [vmem:[#allocation3 + $0x80] sm:$0xff]
      %v6371 = vld [vmem:[#allocation3 + $0x90] sm:$0xff]
      %v6372 = vld [vmem:[#allocation3 + $0x98] sm:$0xff]
      %v6373 = vld [vmem:[#allocation3 + $0xa8] sm:$0xff]
      %v6374 = vld [vmem:[#allocation3 + $0xb0] sm:$0xff]
      %v6375 = vld [vmem:[#allocation3 + $0xc0] sm:$0xff]
      %v6376 = vld [vmem:[#allocation3 + $0xc8] sm:$0xff]
      %v6377 = vld [vmem:[#allocation3 + $0xd8] sm:$0xff]
      %v6378 = vld [vmem:[#allocation3 + $0xe0] sm:$0xff]
      %v6379 = vld [vmem:[#allocation3 + $0xf0] sm:$0xff]
      %v6380 = vld [vmem:[#allocation3 + $0xf8] sm:$0xff]
      %v6381 = vld [vmem:[#allocation3 + $0x108] sm:$0xff]
      %v6382 = vld [vmem:[#allocation3 + $0x110] sm:$0xff]
      %v6383 = vld [vmem:[#allocation3 + $0x120] sm:$0xff]
      %v6384 = vld [vmem:[#allocation3 + $0x128] sm:$0xff]
      %v6385 = vld [vmem:[#allocation3 + $0x138] sm:$0xff]
      %v6386 = vld [vmem:[#allocation3 + $0x140] sm:$0xff]
      %v6387 = vld [vmem:[#allocation3 + $0x150] sm:$0xff]
      %v6388 = vld [vmem:[#allocation3 + $0x158] sm:$0xff]
      %v6389 = vld [vmem:[#allocation3 + $0x168] sm:$0xff]
      %v6390 = vld [vmem:[#allocation3 + $0x170] sm:$0xff]
      %6423 = vrot.lane.b32.xlu0 %v6359, 108
      %v6424 = vpop.permute.xlu0 %6423
      %6425 = vrot.lane.b32.xlu0 %v6360, 108
      %v6426 = vpop.permute.xlu0 %6425
      %6427 = vrot.lane.b32.xlu0 %v6361, 108
      %v6428 = vpop.permute.xlu0 %6427
      %6429 = vrot.lane.b32.xlu0 %v6362, 108
      %v6430 = vpop.permute.xlu0 %6429
      %6431 = vrot.lane.b32.xlu0 %v6363, 108
      %v6432 = vpop.permute.xlu0 %6431
      %6433 = vrot.lane.b32.xlu0 %v6364, 108
      %v6434 = vpop.permute.xlu0 %6433
      %6435 = vrot.lane.b32.xlu0 %v6365, 108
      %v6436 = vpop.permute.xlu0 %6435
      %6437 = vrot.lane.b32.xlu0 %v6366, 108
      %v6438 = vpop.permute.xlu0 %6437
      %6439 = vrot.lane.b32.xlu0 %v6367, 108
      %v6440 = vpop.permute.xlu0 %6439
      %6441 = vrot.lane.b32.xlu0 %v6368, 108
      %v6442 = vpop.permute.xlu0 %6441
      %6443 = vrot.lane.b32.xlu0 %v6369, 108
      %v6444 = vpop.permute.xlu0 %6443
      %6445 = vrot.lane.b32.xlu0 %v6370, 108
      %v6446 = vpop.permute.xlu0 %6445
      %6447 = vrot.lane.b32.xlu0 %v6371, 108
      %v6448 = vpop.permute.xlu0 %6447
      %6449 = vrot.lane.b32.xlu0 %v6372, 108
      %v6450 = vpop.permute.xlu0 %6449
      %6451 = vrot.lane.b32.xlu0 %v6373, 108
      %v6452 = vpop.permute.xlu0 %6451
      %6453 = vrot.lane.b32.xlu0 %v6374, 108
      %v6454 = vpop.permute.xlu0 %6453
      %6455 = vrot.lane.b32.xlu0 %v6375, 108
      %v6456 = vpop.permute.xlu0 %6455
      %6457 = vrot.lane.b32.xlu0 %v6376, 108
      %v6458 = vpop.permute.xlu0 %6457
      %6459 = vrot.lane.b32.xlu0 %v6377, 108
      %v6460 = vpop.permute.xlu0 %6459
      %6461 = vrot.lane.b32.xlu0 %v6378, 108
      %v6462 = vpop.permute.xlu0 %6461
      %6463 = vrot.lane.b32.xlu0 %v6379, 108
      %v6464 = vpop.permute.xlu0 %6463
      %6465 = vrot.lane.b32.xlu0 %v6380, 108
      %v6466 = vpop.permute.xlu0 %6465
      %6467 = vrot.lane.b32.xlu0 %v6381, 108
      %v6468 = vpop.permute.xlu0 %6467
      %6469 = vrot.lane.b32.xlu0 %v6382, 108
      %v6470 = vpop.permute.xlu0 %6469
      %6471 = vrot.lane.b32.xlu0 %v6383, 108
      %v6472 = vpop.permute.xlu0 %6471
      %6473 = vrot.lane.b32.xlu0 %v6384, 108
      %v6474 = vpop.permute.xlu0 %6473
      %6475 = vrot.lane.b32.xlu0 %v6385, 108
      %v6476 = vpop.permute.xlu0 %6475
      %6477 = vrot.lane.b32.xlu0 %v6386, 108
      %v6478 = vpop.permute.xlu0 %6477
      %6479 = vrot.lane.b32.xlu0 %v6387, 108
      %v6480 = vpop.permute.xlu0 %6479
      %6481 = vrot.lane.b32.xlu0 %v6388, 108
      %v6482 = vpop.permute.xlu0 %6481
      %6483 = vrot.lane.b32.xlu0 %v6389, 108
      %v6484 = vpop.permute.xlu0 %6483
      %6485 = vrot.lane.b32.xlu0 %v6390, 108
      %v6486 = vpop.permute.xlu0 %6485
      %vm6519 = vcmask 917344
      %6520 = vst.msk [vmem:[#allocation2] sm:$0xff] %vm6519, %v6424
      %6521 = vst.msk [vmem:[#allocation2 + $0x10] sm:$0xff] %vm6519, %v6426
      %6522 = vst.msk [vmem:[#allocation2 + $0x20] sm:$0xff] %vm6519, %v6428
      %6523 = vst.msk [vmem:[#allocation2 + $0x30] sm:$0xff] %vm6519, %v6430
      %6524 = vst.msk [vmem:[#allocation2 + $0x40] sm:$0xff] %vm6519, %v6432
      %6525 = vst.msk [vmem:[#allocation2 + $0x50] sm:$0xff] %vm6519, %v6434
      %6526 = vst.msk [vmem:[#allocation2 + $0x60] sm:$0xff] %vm6519, %v6436
      %6527 = vst.msk [vmem:[#allocation2 + $0x70] sm:$0xff] %vm6519, %v6438
      %6528 = vst.msk [vmem:[#allocation2 + $0x80] sm:$0xff] %vm6519, %v6440
      %6529 = vst.msk [vmem:[#allocation2 + $0x90] sm:$0xff] %vm6519, %v6442
      %6530 = vst.msk [vmem:[#allocation2 + $0xa0] sm:$0xff] %vm6519, %v6444
      %6531 = vst.msk [vmem:[#allocation2 + $0xb0] sm:$0xff] %vm6519, %v6446
      %6532 = vst.msk [vmem:[#allocation2 + $0xc0] sm:$0xff] %vm6519, %v6448
      %6533 = vst.msk [vmem:[#allocation2 + $0xd0] sm:$0xff] %vm6519, %v6450
      %6534 = vst.msk [vmem:[#allocation2 + $0xe0] sm:$0xff] %vm6519, %v6452
      %6535 = vst.msk [vmem:[#allocation2 + $0xf0] sm:$0xff] %vm6519, %v6454
      %6536 = vst.msk [vmem:[#allocation2 + $0x100] sm:$0xff] %vm6519, %v6456
      %6537 = vst.msk [vmem:[#allocation2 + $0x110] sm:$0xff] %vm6519, %v6458
      %6538 = vst.msk [vmem:[#allocation2 + $0x120] sm:$0xff] %vm6519, %v6460
      %6539 = vst.msk [vmem:[#allocation2 + $0x130] sm:$0xff] %vm6519, %v6462
      %6540 = vst.msk [vmem:[#allocation2 + $0x140] sm:$0xff] %vm6519, %v6464
      %6541 = vst.msk [vmem:[#allocation2 + $0x150] sm:$0xff] %vm6519, %v6466
      %6542 = vst.msk [vmem:[#allocation2 + $0x160] sm:$0xff] %vm6519, %v6468
      %6543 = vst.msk [vmem:[#allocation2 + $0x170] sm:$0xff] %vm6519, %v6470
      %6544 = vst.msk [vmem:[#allocation2 + $0x180] sm:$0xff] %vm6519, %v6472
      %6545 = vst.msk [vmem:[#allocation2 + $0x190] sm:$0xff] %vm6519, %v6474
      %6546 = vst.msk [vmem:[#allocation2 + $0x1a0] sm:$0xff] %vm6519, %v6476
      %6547 = vst.msk [vmem:[#allocation2 + $0x1b0] sm:$0xff] %vm6519, %v6478
      %6548 = vst.msk [vmem:[#allocation2 + $0x1c0] sm:$0xff] %vm6519, %v6480
      %6549 = vst.msk [vmem:[#allocation2 + $0x1d0] sm:$0xff] %vm6519, %v6482
      %6550 = vst.msk [vmem:[#allocation2 + $0x1e0] sm:$0xff] %vm6519, %v6484
      %6551 = vst.msk [vmem:[#allocation2 + $0x1f0] sm:$0xff] %vm6519, %v6486
      %v6552 = vld [vmem:[#allocation3 + $0x1] sm:$0xff]
      %v6553 = vld [vmem:[#allocation3 + $0x9] sm:$0xff]
      %v6554 = vld [vmem:[#allocation3 + $0x19] sm:$0xff]
      %v6555 = vld [vmem:[#allocation3 + $0x21] sm:$0xff]
      %v6556 = vld [vmem:[#allocation3 + $0x31] sm:$0xff]
      %v6557 = vld [vmem:[#allocation3 + $0x39] sm:$0xff]
      %v6558 = vld [vmem:[#allocation3 + $0x49] sm:$0xff]
      %v6559 = vld [vmem:[#allocation3 + $0x51] sm:$0xff]
      %v6560 = vld [vmem:[#allocation3 + $0x61] sm:$0xff]
      %v6561 = vld [vmem:[#allocation3 + $0x69] sm:$0xff]
      %v6562 = vld [vmem:[#allocation3 + $0x79] sm:$0xff]
      %v6563 = vld [vmem:[#allocation3 + $0x81] sm:$0xff]
      %v6564 = vld [vmem:[#allocation3 + $0x91] sm:$0xff]
      %v6565 = vld [vmem:[#allocation3 + $0x99] sm:$0xff]
      %v6566 = vld [vmem:[#allocation3 + $0xa9] sm:$0xff]
      %v6567 = vld [vmem:[#allocation3 + $0xb1] sm:$0xff]
      %v6568 = vld [vmem:[#allocation3 + $0xc1] sm:$0xff]
      %v6569 = vld [vmem:[#allocation3 + $0xc9] sm:$0xff]
      %v6570 = vld [vmem:[#allocation3 + $0xd9] sm:$0xff]
      %v6571 = vld [vmem:[#allocation3 + $0xe1] sm:$0xff]
      %v6572 = vld [vmem:[#allocation3 + $0xf1] sm:$0xff]
      %v6573 = vld [vmem:[#allocation3 + $0xf9] sm:$0xff]
      %v6574 = vld [vmem:[#allocation3 + $0x109] sm:$0xff]
      %v6575 = vld [vmem:[#allocation3 + $0x111] sm:$0xff]
      %v6576 = vld [vmem:[#allocation3 + $0x121] sm:$0xff]
      %v6577 = vld [vmem:[#allocation3 + $0x129] sm:$0xff]
      %v6578 = vld [vmem:[#allocation3 + $0x139] sm:$0xff]
      %v6579 = vld [vmem:[#allocation3 + $0x141] sm:$0xff]
      %v6580 = vld [vmem:[#allocation3 + $0x151] sm:$0xff]
      %v6581 = vld [vmem:[#allocation3 + $0x159] sm:$0xff]
      %v6582 = vld [vmem:[#allocation3 + $0x169] sm:$0xff]
      %v6583 = vld [vmem:[#allocation3 + $0x171] sm:$0xff]
      %6616 = vrot.lane.b32.xlu0 %v6552, 112
      %v6617 = vpop.permute.xlu0 %6616
      %6618 = vrot.lane.b32.xlu0 %v6553, 112
      %v6619 = vpop.permute.xlu0 %6618
      %6620 = vrot.lane.b32.xlu0 %v6554, 112
      %v6621 = vpop.permute.xlu0 %6620
      %6622 = vrot.lane.b32.xlu0 %v6555, 112
      %v6623 = vpop.permute.xlu0 %6622
      %6624 = vrot.lane.b32.xlu0 %v6556, 112
      %v6625 = vpop.permute.xlu0 %6624
      %6626 = vrot.lane.b32.xlu0 %v6557, 112
      %v6627 = vpop.permute.xlu0 %6626
      %6628 = vrot.lane.b32.xlu0 %v6558, 112
      %v6629 = vpop.permute.xlu0 %6628
      %6630 = vrot.lane.b32.xlu0 %v6559, 112
      %v6631 = vpop.permute.xlu0 %6630
      %6632 = vrot.lane.b32.xlu0 %v6560, 112
      %v6633 = vpop.permute.xlu0 %6632
      %6634 = vrot.lane.b32.xlu0 %v6561, 112
      %v6635 = vpop.permute.xlu0 %6634
      %6636 = vrot.lane.b32.xlu0 %v6562, 112
      %v6637 = vpop.permute.xlu0 %6636
      %6638 = vrot.lane.b32.xlu0 %v6563, 112
      %v6639 = vpop.permute.xlu0 %6638
      %6640 = vrot.lane.b32.xlu0 %v6564, 112
      %v6641 = vpop.permute.xlu0 %6640
      %6642 = vrot.lane.b32.xlu0 %v6565, 112
      %v6643 = vpop.permute.xlu0 %6642
      %6644 = vrot.lane.b32.xlu0 %v6566, 112
      %v6645 = vpop.permute.xlu0 %6644
      %6646 = vrot.lane.b32.xlu0 %v6567, 112
      %v6647 = vpop.permute.xlu0 %6646
      %6648 = vrot.lane.b32.xlu0 %v6568, 112
      %v6649 = vpop.permute.xlu0 %6648
      %6650 = vrot.lane.b32.xlu0 %v6569, 112
      %v6651 = vpop.permute.xlu0 %6650
      %6652 = vrot.lane.b32.xlu0 %v6570, 112
      %v6653 = vpop.permute.xlu0 %6652
      %6654 = vrot.lane.b32.xlu0 %v6571, 112
      %v6655 = vpop.permute.xlu0 %6654
      %6656 = vrot.lane.b32.xlu0 %v6572, 112
      %v6657 = vpop.permute.xlu0 %6656
      %6658 = vrot.lane.b32.xlu0 %v6573, 112
      %v6659 = vpop.permute.xlu0 %6658
      %6660 = vrot.lane.b32.xlu0 %v6574, 112
      %v6661 = vpop.permute.xlu0 %6660
      %6662 = vrot.lane.b32.xlu0 %v6575, 112
      %v6663 = vpop.permute.xlu0 %6662
      %6664 = vrot.lane.b32.xlu0 %v6576, 112
      %v6665 = vpop.permute.xlu0 %6664
      %6666 = vrot.lane.b32.xlu0 %v6577, 112
      %v6667 = vpop.permute.xlu0 %6666
      %6668 = vrot.lane.b32.xlu0 %v6578, 112
      %v6669 = vpop.permute.xlu0 %6668
      %6670 = vrot.lane.b32.xlu0 %v6579, 112
      %v6671 = vpop.permute.xlu0 %6670
      %6672 = vrot.lane.b32.xlu0 %v6580, 112
      %v6673 = vpop.permute.xlu0 %6672
      %6674 = vrot.lane.b32.xlu0 %v6581, 112
      %v6675 = vpop.permute.xlu0 %6674
      %6676 = vrot.lane.b32.xlu0 %v6582, 112
      %v6677 = vpop.permute.xlu0 %6676
      %6678 = vrot.lane.b32.xlu0 %v6583, 112
      %v6679 = vpop.permute.xlu0 %6678
      %vm6712 = vcmask 950144
      %6713 = vst.msk [vmem:[#allocation2] sm:$0xff] %vm6712, %v6617
      %6714 = vst.msk [vmem:[#allocation2 + $0x10] sm:$0xff] %vm6712, %v6619
      %6715 = vst.msk [vmem:[#allocation2 + $0x20] sm:$0xff] %vm6712, %v6621
      %6716 = vst.msk [vmem:[#allocation2 + $0x30] sm:$0xff] %vm6712, %v6623
      %6717 = vst.msk [vmem:[#allocation2 + $0x40] sm:$0xff] %vm6712, %v6625
      %6718 = vst.msk [vmem:[#allocation2 + $0x50] sm:$0xff] %vm6712, %v6627
      %6719 = vst.msk [vmem:[#allocation2 + $0x60] sm:$0xff] %vm6712, %v6629
      %6720 = vst.msk [vmem:[#allocation2 + $0x70] sm:$0xff] %vm6712, %v6631
      %6721 = vst.msk [vmem:[#allocation2 + $0x80] sm:$0xff] %vm6712, %v6633
      %6722 = vst.msk [vmem:[#allocation2 + $0x90] sm:$0xff] %vm6712, %v6635
      %6723 = vst.msk [vmem:[#allocation2 + $0xa0] sm:$0xff] %vm6712, %v6637
      %6724 = vst.msk [vmem:[#allocation2 + $0xb0] sm:$0xff] %vm6712, %v6639
      %6725 = vst.msk [vmem:[#allocation2 + $0xc0] sm:$0xff] %vm6712, %v6641
      %6726 = vst.msk [vmem:[#allocation2 + $0xd0] sm:$0xff] %vm6712, %v6643
      %6727 = vst.msk [vmem:[#allocation2 + $0xe0] sm:$0xff] %vm6712, %v6645
      %6728 = vst.msk [vmem:[#allocation2 + $0xf0] sm:$0xff] %vm6712, %v6647
      %6729 = vst.msk [vmem:[#allocation2 + $0x100] sm:$0xff] %vm6712, %v6649
      %6730 = vst.msk [vmem:[#allocation2 + $0x110] sm:$0xff] %vm6712, %v6651
      %6731 = vst.msk [vmem:[#allocation2 + $0x120] sm:$0xff] %vm6712, %v6653
      %6732 = vst.msk [vmem:[#allocation2 + $0x130] sm:$0xff] %vm6712, %v6655
      %6733 = vst.msk [vmem:[#allocation2 + $0x140] sm:$0xff] %vm6712, %v6657
      %6734 = vst.msk [vmem:[#allocation2 + $0x150] sm:$0xff] %vm6712, %v6659
      %6735 = vst.msk [vmem:[#allocation2 + $0x160] sm:$0xff] %vm6712, %v6661
      %6736 = vst.msk [vmem:[#allocation2 + $0x170] sm:$0xff] %vm6712, %v6663
      %6737 = vst.msk [vmem:[#allocation2 + $0x180] sm:$0xff] %vm6712, %v6665
      %6738 = vst.msk [vmem:[#allocation2 + $0x190] sm:$0xff] %vm6712, %v6667
      %6739 = vst.msk [vmem:[#allocation2 + $0x1a0] sm:$0xff] %vm6712, %v6669
      %6740 = vst.msk [vmem:[#allocation2 + $0x1b0] sm:$0xff] %vm6712, %v6671
      %6741 = vst.msk [vmem:[#allocation2 + $0x1c0] sm:$0xff] %vm6712, %v6673
      %6742 = vst.msk [vmem:[#allocation2 + $0x1d0] sm:$0xff] %vm6712, %v6675
      %6743 = vst.msk [vmem:[#allocation2 + $0x1e0] sm:$0xff] %vm6712, %v6677
      %6744 = vst.msk [vmem:[#allocation2 + $0x1f0] sm:$0xff] %vm6712, %v6679
      %v6745 = vld [vmem:[#allocation3 + $0x2] sm:$0xff]
      %v6746 = vld [vmem:[#allocation3 + $0xa] sm:$0xff]
      %v6747 = vld [vmem:[#allocation3 + $0x1a] sm:$0xff]
      %v6748 = vld [vmem:[#allocation3 + $0x22] sm:$0xff]
      %v6749 = vld [vmem:[#allocation3 + $0x32] sm:$0xff]
      %v6750 = vld [vmem:[#allocation3 + $0x3a] sm:$0xff]
      %v6751 = vld [vmem:[#allocation3 + $0x4a] sm:$0xff]
      %v6752 = vld [vmem:[#allocation3 + $0x52] sm:$0xff]
      %v6753 = vld [vmem:[#allocation3 + $0x62] sm:$0xff]
      %v6754 = vld [vmem:[#allocation3 + $0x6a] sm:$0xff]
      %v6755 = vld [vmem:[#allocation3 + $0x7a] sm:$0xff]
      %v6756 = vld [vmem:[#allocation3 + $0x82] sm:$0xff]
      %v6757 = vld [vmem:[#allocation3 + $0x92] sm:$0xff]
      %v6758 = vld [vmem:[#allocation3 + $0x9a] sm:$0xff]
      %v6759 = vld [vmem:[#allocation3 + $0xaa] sm:$0xff]
      %v6760 = vld [vmem:[#allocation3 + $0xb2] sm:$0xff]
      %v6761 = vld [vmem:[#allocation3 + $0xc2] sm:$0xff]
      %v6762 = vld [vmem:[#allocation3 + $0xca] sm:$0xff]
      %v6763 = vld [vmem:[#allocation3 + $0xda] sm:$0xff]
      %v6764 = vld [vmem:[#allocation3 + $0xe2] sm:$0xff]
      %v6765 = vld [vmem:[#allocation3 + $0xf2] sm:$0xff]
      %v6766 = vld [vmem:[#allocation3 + $0xfa] sm:$0xff]
      %v6767 = vld [vmem:[#allocation3 + $0x10a] sm:$0xff]
      %v6768 = vld [vmem:[#allocation3 + $0x112] sm:$0xff]
      %v6769 = vld [vmem:[#allocation3 + $0x122] sm:$0xff]
      %v6770 = vld [vmem:[#allocation3 + $0x12a] sm:$0xff]
      %v6771 = vld [vmem:[#allocation3 + $0x13a] sm:$0xff]
      %v6772 = vld [vmem:[#allocation3 + $0x142] sm:$0xff]
      %v6773 = vld [vmem:[#allocation3 + $0x152] sm:$0xff]
      %v6774 = vld [vmem:[#allocation3 + $0x15a] sm:$0xff]
      %v6775 = vld [vmem:[#allocation3 + $0x16a] sm:$0xff]
      %v6776 = vld [vmem:[#allocation3 + $0x172] sm:$0xff]
      %6809 = vrot.lane.b32.xlu0 %v6745, 116
      %v6810 = vpop.permute.xlu0 %6809
      %6811 = vrot.lane.b32.xlu0 %v6746, 116
      %v6812 = vpop.permute.xlu0 %6811
      %6813 = vrot.lane.b32.xlu0 %v6747, 116
      %v6814 = vpop.permute.xlu0 %6813
      %6815 = vrot.lane.b32.xlu0 %v6748, 116
      %v6816 = vpop.permute.xlu0 %6815
      %6817 = vrot.lane.b32.xlu0 %v6749, 116
      %v6818 = vpop.permute.xlu0 %6817
      %6819 = vrot.lane.b32.xlu0 %v6750, 116
      %v6820 = vpop.permute.xlu0 %6819
      %6821 = vrot.lane.b32.xlu0 %v6751, 116
      %v6822 = vpop.permute.xlu0 %6821
      %6823 = vrot.lane.b32.xlu0 %v6752, 116
      %v6824 = vpop.permute.xlu0 %6823
      %6825 = vrot.lane.b32.xlu0 %v6753, 116
      %v6826 = vpop.permute.xlu0 %6825
      %6827 = vrot.lane.b32.xlu0 %v6754, 116
      %v6828 = vpop.permute.xlu0 %6827
      %6829 = vrot.lane.b32.xlu0 %v6755, 116
      %v6830 = vpop.permute.xlu0 %6829
      %6831 = vrot.lane.b32.xlu0 %v6756, 116
      %v6832 = vpop.permute.xlu0 %6831
      %6833 = vrot.lane.b32.xlu0 %v6757, 116
      %v6834 = vpop.permute.xlu0 %6833
      %6835 = vrot.lane.b32.xlu0 %v6758, 116
      %v6836 = vpop.permute.xlu0 %6835
      %6837 = vrot.lane.b32.xlu0 %v6759, 116
      %v6838 = vpop.permute.xlu0 %6837
      %6839 = vrot.lane.b32.xlu0 %v6760, 116
      %v6840 = vpop.permute.xlu0 %6839
      %6841 = vrot.lane.b32.xlu0 %v6761, 116
      %v6842 = vpop.permute.xlu0 %6841
      %6843 = vrot.lane.b32.xlu0 %v6762, 116
      %v6844 = vpop.permute.xlu0 %6843
      %6845 = vrot.lane.b32.xlu0 %v6763, 116
      %v6846 = vpop.permute.xlu0 %6845
      %6847 = vrot.lane.b32.xlu0 %v6764, 116
      %v6848 = vpop.permute.xlu0 %6847
      %6849 = vrot.lane.b32.xlu0 %v6765, 116
      %v6850 = vpop.permute.xlu0 %6849
      %6851 = vrot.lane.b32.xlu0 %v6766, 116
      %v6852 = vpop.permute.xlu0 %6851
      %6853 = vrot.lane.b32.xlu0 %v6767, 116
      %v6854 = vpop.permute.xlu0 %6853
      %6855 = vrot.lane.b32.xlu0 %v6768, 116
      %v6856 = vpop.permute.xlu0 %6855
      %6857 = vrot.lane.b32.xlu0 %v6769, 116
      %v6858 = vpop.permute.xlu0 %6857
      %6859 = vrot.lane.b32.xlu0 %v6770, 116
      %v6860 = vpop.permute.xlu0 %6859
      %6861 = vrot.lane.b32.xlu0 %v6771, 116
      %v6862 = vpop.permute.xlu0 %6861
      %6863 = vrot.lane.b32.xlu0 %v6772, 116
      %v6864 = vpop.permute.xlu0 %6863
      %6865 = vrot.lane.b32.xlu0 %v6773, 116
      %v6866 = vpop.permute.xlu0 %6865
      %6867 = vrot.lane.b32.xlu0 %v6774, 116
      %v6868 = vpop.permute.xlu0 %6867
      %6869 = vrot.lane.b32.xlu0 %v6775, 116
      %v6870 = vpop.permute.xlu0 %6869
      %6871 = vrot.lane.b32.xlu0 %v6776, 116
      %v6872 = vpop.permute.xlu0 %6871
      %vm6905 = vcmask 982944
      %6906 = vst.msk [vmem:[#allocation2] sm:$0xff] %vm6905, %v6810
      %6907 = vst.msk [vmem:[#allocation2 + $0x10] sm:$0xff] %vm6905, %v6812
      %6908 = vst.msk [vmem:[#allocation2 + $0x20] sm:$0xff] %vm6905, %v6814
      %6909 = vst.msk [vmem:[#allocation2 + $0x30] sm:$0xff] %vm6905, %v6816
      %6910 = vst.msk [vmem:[#allocation2 + $0x40] sm:$0xff] %vm6905, %v6818
      %6911 = vst.msk [vmem:[#allocation2 + $0x50] sm:$0xff] %vm6905, %v6820
      %6912 = vst.msk [vmem:[#allocation2 + $0x60] sm:$0xff] %vm6905, %v6822
      %6913 = vst.msk [vmem:[#allocation2 + $0x70] sm:$0xff] %vm6905, %v6824
      %6914 = vst.msk [vmem:[#allocation2 + $0x80] sm:$0xff] %vm6905, %v6826
      %6915 = vst.msk [vmem:[#allocation2 + $0x90] sm:$0xff] %vm6905, %v6828
      %6916 = vst.msk [vmem:[#allocation2 + $0xa0] sm:$0xff] %vm6905, %v6830
      %6917 = vst.msk [vmem:[#allocation2 + $0xb0] sm:$0xff] %vm6905, %v6832
      %6918 = vst.msk [vmem:[#allocation2 + $0xc0] sm:$0xff] %vm6905, %v6834
      %6919 = vst.msk [vmem:[#allocation2 + $0xd0] sm:$0xff] %vm6905, %v6836
      %6920 = vst.msk [vmem:[#allocation2 + $0xe0] sm:$0xff] %vm6905, %v6838
      %6921 = vst.msk [vmem:[#allocation2 + $0xf0] sm:$0xff] %vm6905, %v6840
      %6922 = vst.msk [vmem:[#allocation2 + $0x100] sm:$0xff] %vm6905, %v6842
      %6923 = vst.msk [vmem:[#allocation2 + $0x110] sm:$0xff] %vm6905, %v6844
      %6924 = vst.msk [vmem:[#allocation2 + $0x120] sm:$0xff] %vm6905, %v6846
      %6925 = vst.msk [vmem:[#allocation2 + $0x130] sm:$0xff] %vm6905, %v6848
      %6926 = vst.msk [vmem:[#allocation2 + $0x140] sm:$0xff] %vm6905, %v6850
      %6927 = vst.msk [vmem:[#allocation2 + $0x150] sm:$0xff] %vm6905, %v6852
      %6928 = vst.msk [vmem:[#allocation2 + $0x160] sm:$0xff] %vm6905, %v6854
      %6929 = vst.msk [vmem:[#allocation2 + $0x170] sm:$0xff] %vm6905, %v6856
      %6930 = vst.msk [vmem:[#allocation2 + $0x180] sm:$0xff] %vm6905, %v6858
      %6931 = vst.msk [vmem:[#allocation2 + $0x190] sm:$0xff] %vm6905, %v6860
      %6932 = vst.msk [vmem:[#allocation2 + $0x1a0] sm:$0xff] %vm6905, %v6862
      %6933 = vst.msk [vmem:[#allocation2 + $0x1b0] sm:$0xff] %vm6905, %v6864
      %6934 = vst.msk [vmem:[#allocation2 + $0x1c0] sm:$0xff] %vm6905, %v6866
      %6935 = vst.msk [vmem:[#allocation2 + $0x1d0] sm:$0xff] %vm6905, %v6868
      %6936 = vst.msk [vmem:[#allocation2 + $0x1e0] sm:$0xff] %vm6905, %v6870
      %6937 = vst.msk [vmem:[#allocation2 + $0x1f0] sm:$0xff] %vm6905, %v6872
      %v6938 = vld [vmem:[%s282] sm:$0xff]
      %v6939 = vld [vmem:[%s282 + $0x8] sm:$0xff]
      %v6940 = vld [vmem:[%s282 + $0x18] sm:$0xff]
      %v6941 = vld [vmem:[%s282 + $0x20] sm:$0xff]
      %v6942 = vld [vmem:[%s282 + $0x30] sm:$0xff]
      %v6943 = vld [vmem:[%s282 + $0x38] sm:$0xff]
      %v6944 = vld [vmem:[%s282 + $0x48] sm:$0xff]
      %v6945 = vld [vmem:[%s282 + $0x50] sm:$0xff]
      %v6946 = vld [vmem:[%s282 + $0x60] sm:$0xff]
      %v6947 = vld [vmem:[%s282 + $0x68] sm:$0xff]
      %v6948 = vld [vmem:[%s282 + $0x78] sm:$0xff]
      %v6949 = vld [vmem:[%s282 + $0x80] sm:$0xff]
      %v6950 = vld [vmem:[%s282 + $0x90] sm:$0xff]
      %v6951 = vld [vmem:[%s282 + $0x98] sm:$0xff]
      %v6952 = vld [vmem:[%s282 + $0xa8] sm:$0xff]
      %v6953 = vld [vmem:[%s282 + $0xb0] sm:$0xff]
      %v6954 = vld [vmem:[%s282 + $0xc0] sm:$0xff]
      %v6955 = vld [vmem:[%s282 + $0xc8] sm:$0xff]
      %v6956 = vld [vmem:[%s282 + $0xd8] sm:$0xff]
      %v6957 = vld [vmem:[%s282 + $0xe0] sm:$0xff]
      %v6958 = vld [vmem:[%s282 + $0xf0] sm:$0xff]
      %v6959 = vld [vmem:[%s282 + $0xf8] sm:$0xff]
      %v6960 = vld [vmem:[%s282 + $0x108] sm:$0xff]
      %v6961 = vld [vmem:[%s282 + $0x110] sm:$0xff]
      %v6962 = vld [vmem:[%s282 + $0x120] sm:$0xff]
      %v6963 = vld [vmem:[%s282 + $0x128] sm:$0xff]
      %v6964 = vld [vmem:[%s282 + $0x138] sm:$0xff]
      %v6965 = vld [vmem:[%s282 + $0x140] sm:$0xff]
      %v6966 = vld [vmem:[%s282 + $0x150] sm:$0xff]
      %v6967 = vld [vmem:[%s282 + $0x158] sm:$0xff]
      %v6968 = vld [vmem:[%s282 + $0x168] sm:$0xff]
      %v6969 = vld [vmem:[%s282 + $0x170] sm:$0xff]
      %7002 = vrot.lane.b32.xlu0 %v6938, 120
      %v7003 = vpop.permute.xlu0 %7002
      %7004 = vrot.lane.b32.xlu0 %v6939, 120
      %v7005 = vpop.permute.xlu0 %7004
      %7006 = vrot.lane.b32.xlu0 %v6940, 120
      %v7007 = vpop.permute.xlu0 %7006
      %7008 = vrot.lane.b32.xlu0 %v6941, 120
      %v7009 = vpop.permute.xlu0 %7008
      %7010 = vrot.lane.b32.xlu0 %v6942, 120
      %v7011 = vpop.permute.xlu0 %7010
      %7012 = vrot.lane.b32.xlu0 %v6943, 120
      %v7013 = vpop.permute.xlu0 %7012
      %7014 = vrot.lane.b32.xlu0 %v6944, 120
      %v7015 = vpop.permute.xlu0 %7014
      %7016 = vrot.lane.b32.xlu0 %v6945, 120
      %v7017 = vpop.permute.xlu0 %7016
      %7018 = vrot.lane.b32.xlu0 %v6946, 120
      %v7019 = vpop.permute.xlu0 %7018
      %7020 = vrot.lane.b32.xlu0 %v6947, 120
      %v7021 = vpop.permute.xlu0 %7020
      %7022 = vrot.lane.b32.xlu0 %v6948, 120
      %v7023 = vpop.permute.xlu0 %7022
      %7024 = vrot.lane.b32.xlu0 %v6949, 120
      %v7025 = vpop.permute.xlu0 %7024
      %7026 = vrot.lane.b32.xlu0 %v6950, 120
      %v7027 = vpop.permute.xlu0 %7026
      %7028 = vrot.lane.b32.xlu0 %v6951, 120
      %v7029 = vpop.permute.xlu0 %7028
      %7030 = vrot.lane.b32.xlu0 %v6952, 120
      %v7031 = vpop.permute.xlu0 %7030
      %7032 = vrot.lane.b32.xlu0 %v6953, 120
      %v7033 = vpop.permute.xlu0 %7032
      %7034 = vrot.lane.b32.xlu0 %v6954, 120
      %v7035 = vpop.permute.xlu0 %7034
      %7036 = vrot.lane.b32.xlu0 %v6955, 120
      %v7037 = vpop.permute.xlu0 %7036
      %7038 = vrot.lane.b32.xlu0 %v6956, 120
      %v7039 = vpop.permute.xlu0 %7038
      %7040 = vrot.lane.b32.xlu0 %v6957, 120
      %v7041 = vpop.permute.xlu0 %7040
      %7042 = vrot.lane.b32.xlu0 %v6958, 120
      %v7043 = vpop.permute.xlu0 %7042
      %7044 = vrot.lane.b32.xlu0 %v6959, 120
      %v7045 = vpop.permute.xlu0 %7044
      %7046 = vrot.lane.b32.xlu0 %v6960, 120
      %v7047 = vpop.permute.xlu0 %7046
      %7048 = vrot.lane.b32.xlu0 %v6961, 120
      %v7049 = vpop.permute.xlu0 %7048
      %7050 = vrot.lane.b32.xlu0 %v6962, 120
      %v7051 = vpop.permute.xlu0 %7050
      %7052 = vrot.lane.b32.xlu0 %v6963, 120
      %v7053 = vpop.permute.xlu0 %7052
      %7054 = vrot.lane.b32.xlu0 %v6964, 120
      %v7055 = vpop.permute.xlu0 %7054
      %7056 = vrot.lane.b32.xlu0 %v6965, 120
      %v7057 = vpop.permute.xlu0 %7056
      %7058 = vrot.lane.b32.xlu0 %v6966, 120
      %v7059 = vpop.permute.xlu0 %7058
      %7060 = vrot.lane.b32.xlu0 %v6967, 120
      %v7061 = vpop.permute.xlu0 %7060
      %7062 = vrot.lane.b32.xlu0 %v6968, 120
      %v7063 = vpop.permute.xlu0 %7062
      %7064 = vrot.lane.b32.xlu0 %v6969, 120
      %v7065 = vpop.permute.xlu0 %7064
      %vm7098 = vcmask 1015744
      %7099 = vst.msk [vmem:[#allocation2] sm:$0xff] %vm7098, %v7003
      %7100 = vst.msk [vmem:[#allocation2 + $0x10] sm:$0xff] %vm7098, %v7005
      %7101 = vst.msk [vmem:[#allocation2 + $0x20] sm:$0xff] %vm7098, %v7007
      %7102 = vst.msk [vmem:[#allocation2 + $0x30] sm:$0xff] %vm7098, %v7009
      %7103 = vst.msk [vmem:[#allocation2 + $0x40] sm:$0xff] %vm7098, %v7011
      %7104 = vst.msk [vmem:[#allocation2 + $0x50] sm:$0xff] %vm7098, %v7013
      %7105 = vst.msk [vmem:[#allocation2 + $0x60] sm:$0xff] %vm7098, %v7015
      %7106 = vst.msk [vmem:[#allocation2 + $0x70] sm:$0xff] %vm7098, %v7017
      %7107 = vst.msk [vmem:[#allocation2 + $0x80] sm:$0xff] %vm7098, %v7019
      %7108 = vst.msk [vmem:[#allocation2 + $0x90] sm:$0xff] %vm7098, %v7021
      %7109 = vst.msk [vmem:[#allocation2 + $0xa0] sm:$0xff] %vm7098, %v7023
      %7110 = vst.msk [vmem:[#allocation2 + $0xb0] sm:$0xff] %vm7098, %v7025
      %7111 = vst.msk [vmem:[#allocation2 + $0xc0] sm:$0xff] %vm7098, %v7027
      %7112 = vst.msk [vmem:[#allocation2 + $0xd0] sm:$0xff] %vm7098, %v7029
      %7113 = vst.msk [vmem:[#allocation2 + $0xe0] sm:$0xff] %vm7098, %v7031
      %7114 = vst.msk [vmem:[#allocation2 + $0xf0] sm:$0xff] %vm7098, %v7033
      %7115 = vst.msk [vmem:[#allocation2 + $0x100] sm:$0xff] %vm7098, %v7035
      %7116 = vst.msk [vmem:[#allocation2 + $0x110] sm:$0xff] %vm7098, %v7037
      %7117 = vst.msk [vmem:[#allocation2 + $0x120] sm:$0xff] %vm7098, %v7039
      %7118 = vst.msk [vmem:[#allocation2 + $0x130] sm:$0xff] %vm7098, %v7041
      %7119 = vst.msk [vmem:[#allocation2 + $0x140] sm:$0xff] %vm7098, %v7043
      %7120 = vst.msk [vmem:[#allocation2 + $0x150] sm:$0xff] %vm7098, %v7045
      %7121 = vst.msk [vmem:[#allocation2 + $0x160] sm:$0xff] %vm7098, %v7047
      %7122 = vst.msk [vmem:[#allocation2 + $0x170] sm:$0xff] %vm7098, %v7049
      %7123 = vst.msk [vmem:[#allocation2 + $0x180] sm:$0xff] %vm7098, %v7051
      %7124 = vst.msk [vmem:[#allocation2 + $0x190] sm:$0xff] %vm7098, %v7053
      %7125 = vst.msk [vmem:[#allocation2 + $0x1a0] sm:$0xff] %vm7098, %v7055
      %7126 = vst.msk [vmem:[#allocation2 + $0x1b0] sm:$0xff] %vm7098, %v7057
      %7127 = vst.msk [vmem:[#allocation2 + $0x1c0] sm:$0xff] %vm7098, %v7059
      %7128 = vst.msk [vmem:[#allocation2 + $0x1d0] sm:$0xff] %vm7098, %v7061
      %7129 = vst.msk [vmem:[#allocation2 + $0x1e0] sm:$0xff] %vm7098, %v7063
      %7130 = vst.msk [vmem:[#allocation2 + $0x1f0] sm:$0xff] %vm7098, %v7065
      %v7131 = vld [vmem:[%s282 + $0x1] sm:$0xff]
      %v7132 = vld [vmem:[%s282 + $0x9] sm:$0xff]
      %v7133 = vld [vmem:[%s282 + $0x19] sm:$0xff]
      %v7134 = vld [vmem:[%s282 + $0x21] sm:$0xff]
      %v7135 = vld [vmem:[%s282 + $0x31] sm:$0xff]
      %v7136 = vld [vmem:[%s282 + $0x39] sm:$0xff]
      %v7137 = vld [vmem:[%s282 + $0x49] sm:$0xff]
      %v7138 = vld [vmem:[%s282 + $0x51] sm:$0xff]
      %v7139 = vld [vmem:[%s282 + $0x61] sm:$0xff]
      %v7140 = vld [vmem:[%s282 + $0x69] sm:$0xff]
      %v7141 = vld [vmem:[%s282 + $0x79] sm:$0xff]
      %v7142 = vld [vmem:[%s282 + $0x81] sm:$0xff]
      %v7143 = vld [vmem:[%s282 + $0x91] sm:$0xff]
      %v7144 = vld [vmem:[%s282 + $0x99] sm:$0xff]
      %v7145 = vld [vmem:[%s282 + $0xa9] sm:$0xff]
      %v7146 = vld [vmem:[%s282 + $0xb1] sm:$0xff]
      %v7147 = vld [vmem:[%s282 + $0xc1] sm:$0xff]
      %v7148 = vld [vmem:[%s282 + $0xc9] sm:$0xff]
      %v7149 = vld [vmem:[%s282 + $0xd9] sm:$0xff]
      %v7150 = vld [vmem:[%s282 + $0xe1] sm:$0xff]
      %v7151 = vld [vmem:[%s282 + $0xf1] sm:$0xff]
      %v7152 = vld [vmem:[%s282 + $0xf9] sm:$0xff]
      %v7153 = vld [vmem:[%s282 + $0x109] sm:$0xff]
      %v7154 = vld [vmem:[%s282 + $0x111] sm:$0xff]
      %v7155 = vld [vmem:[%s282 + $0x121] sm:$0xff]
      %v7156 = vld [vmem:[%s282 + $0x129] sm:$0xff]
      %v7157 = vld [vmem:[%s282 + $0x139] sm:$0xff]
      %v7158 = vld [vmem:[%s282 + $0x141] sm:$0xff]
      %v7159 = vld [vmem:[%s282 + $0x151] sm:$0xff]
      %v7160 = vld [vmem:[%s282 + $0x159] sm:$0xff]
      %v7161 = vld [vmem:[%s282 + $0x169] sm:$0xff]
      %v7162 = vld [vmem:[%s282 + $0x171] sm:$0xff]
      %7195 = vrot.lane.b32.xlu0 %v7131, 124
      %v7196 = vpop.permute.xlu0 %7195
      %7197 = vrot.lane.b32.xlu0 %v7132, 124
      %v7198 = vpop.permute.xlu0 %7197
      %7199 = vrot.lane.b32.xlu0 %v7133, 124
      %v7200 = vpop.permute.xlu0 %7199
      %7201 = vrot.lane.b32.xlu0 %v7134, 124
      %v7202 = vpop.permute.xlu0 %7201
      %7203 = vrot.lane.b32.xlu0 %v7135, 124
      %v7204 = vpop.permute.xlu0 %7203
      %7205 = vrot.lane.b32.xlu0 %v7136, 124
      %v7206 = vpop.permute.xlu0 %7205
      %7207 = vrot.lane.b32.xlu0 %v7137, 124
      %v7208 = vpop.permute.xlu0 %7207
      %7209 = vrot.lane.b32.xlu0 %v7138, 124
      %v7210 = vpop.permute.xlu0 %7209
      %7211 = vrot.lane.b32.xlu0 %v7139, 124
      %v7212 = vpop.permute.xlu0 %7211
      %7213 = vrot.lane.b32.xlu0 %v7140, 124
      %v7214 = vpop.permute.xlu0 %7213
      %7215 = vrot.lane.b32.xlu0 %v7141, 124
      %v7216 = vpop.permute.xlu0 %7215
      %7217 = vrot.lane.b32.xlu0 %v7142, 124
      %v7218 = vpop.permute.xlu0 %7217
      %7219 = vrot.lane.b32.xlu0 %v7143, 124
      %v7220 = vpop.permute.xlu0 %7219
      %7221 = vrot.lane.b32.xlu0 %v7144, 124
      %v7222 = vpop.permute.xlu0 %7221
      %7223 = vrot.lane.b32.xlu0 %v7145, 124
      %v7224 = vpop.permute.xlu0 %7223
      %7225 = vrot.lane.b32.xlu0 %v7146, 124
      %v7226 = vpop.permute.xlu0 %7225
      %7227 = vrot.lane.b32.xlu0 %v7147, 124
      %v7228 = vpop.permute.xlu0 %7227
      %7229 = vrot.lane.b32.xlu0 %v7148, 124
      %v7230 = vpop.permute.xlu0 %7229
      %7231 = vrot.lane.b32.xlu0 %v7149, 124
      %v7232 = vpop.permute.xlu0 %7231
      %7233 = vrot.lane.b32.xlu0 %v7150, 124
      %v7234 = vpop.permute.xlu0 %7233
      %7235 = vrot.lane.b32.xlu0 %v7151, 124
      %v7236 = vpop.permute.xlu0 %7235
      %7237 = vrot.lane.b32.xlu0 %v7152, 124
      %v7238 = vpop.permute.xlu0 %7237
      %7239 = vrot.lane.b32.xlu0 %v7153, 124
      %v7240 = vpop.permute.xlu0 %7239
      %7241 = vrot.lane.b32.xlu0 %v7154, 124
      %v7242 = vpop.permute.xlu0 %7241
      %7243 = vrot.lane.b32.xlu0 %v7155, 124
      %v7244 = vpop.permute.xlu0 %7243
      %7245 = vrot.lane.b32.xlu0 %v7156, 124
      %v7246 = vpop.permute.xlu0 %7245
      %7247 = vrot.lane.b32.xlu0 %v7157, 124
      %v7248 = vpop.permute.xlu0 %7247
      %7249 = vrot.lane.b32.xlu0 %v7158, 124
      %v7250 = vpop.permute.xlu0 %7249
      %7251 = vrot.lane.b32.xlu0 %v7159, 124
      %v7252 = vpop.permute.xlu0 %7251
      %7253 = vrot.lane.b32.xlu0 %v7160, 124
      %v7254 = vpop.permute.xlu0 %7253
      %7255 = vrot.lane.b32.xlu0 %v7161, 124
      %v7256 = vpop.permute.xlu0 %7255
      %7257 = vrot.lane.b32.xlu0 %v7162, 124
      %v7258 = vpop.permute.xlu0 %7257
      %vm7291 = vcmask 1048544
      %7292 = vst.msk [vmem:[#allocation2] sm:$0xff] %vm7291, %v7196
      %7293 = vst.msk [vmem:[#allocation2 + $0x10] sm:$0xff] %vm7291, %v7198
      %7294 = vst.msk [vmem:[#allocation2 + $0x20] sm:$0xff] %vm7291, %v7200
      %7295 = vst.msk [vmem:[#allocation2 + $0x30] sm:$0xff] %vm7291, %v7202
      %7296 = vst.msk [vmem:[#allocation2 + $0x40] sm:$0xff] %vm7291, %v7204
      %7297 = vst.msk [vmem:[#allocation2 + $0x50] sm:$0xff] %vm7291, %v7206
      %7298 = vst.msk [vmem:[#allocation2 + $0x60] sm:$0xff] %vm7291, %v7208
      %7299 = vst.msk [vmem:[#allocation2 + $0x70] sm:$0xff] %vm7291, %v7210
      %7300 = vst.msk [vmem:[#allocation2 + $0x80] sm:$0xff] %vm7291, %v7212
      %7301 = vst.msk [vmem:[#allocation2 + $0x90] sm:$0xff] %vm7291, %v7214
      %7302 = vst.msk [vmem:[#allocation2 + $0xa0] sm:$0xff] %vm7291, %v7216
      %7303 = vst.msk [vmem:[#allocation2 + $0xb0] sm:$0xff] %vm7291, %v7218
      %7304 = vst.msk [vmem:[#allocation2 + $0xc0] sm:$0xff] %vm7291, %v7220
      %7305 = vst.msk [vmem:[#allocation2 + $0xd0] sm:$0xff] %vm7291, %v7222
      %7306 = vst.msk [vmem:[#allocation2 + $0xe0] sm:$0xff] %vm7291, %v7224
      %7307 = vst.msk [vmem:[#allocation2 + $0xf0] sm:$0xff] %vm7291, %v7226
      %7308 = vst.msk [vmem:[#allocation2 + $0x100] sm:$0xff] %vm7291, %v7228
      %7309 = vst.msk [vmem:[#allocation2 + $0x110] sm:$0xff] %vm7291, %v7230
      %7310 = vst.msk [vmem:[#allocation2 + $0x120] sm:$0xff] %vm7291, %v7232
      %7311 = vst.msk [vmem:[#allocation2 + $0x130] sm:$0xff] %vm7291, %v7234
      %7312 = vst.msk [vmem:[#allocation2 + $0x140] sm:$0xff] %vm7291, %v7236
      %7313 = vst.msk [vmem:[#allocation2 + $0x150] sm:$0xff] %vm7291, %v7238
      %7314 = vst.msk [vmem:[#allocation2 + $0x160] sm:$0xff] %vm7291, %v7240
      %7315 = vst.msk [vmem:[#allocation2 + $0x170] sm:$0xff] %vm7291, %v7242
      %7316 = vst.msk [vmem:[#allocation2 + $0x180] sm:$0xff] %vm7291, %v7244
      %7317 = vst.msk [vmem:[#allocation2 + $0x190] sm:$0xff] %vm7291, %v7246
      %7318 = vst.msk [vmem:[#allocation2 + $0x1a0] sm:$0xff] %vm7291, %v7248
      %7319 = vst.msk [vmem:[#allocation2 + $0x1b0] sm:$0xff] %vm7291, %v7250
      %7320 = vst.msk [vmem:[#allocation2 + $0x1c0] sm:$0xff] %vm7291, %v7252
      %7321 = vst.msk [vmem:[#allocation2 + $0x1d0] sm:$0xff] %vm7291, %v7254
      %7322 = vst.msk [vmem:[#allocation2 + $0x1e0] sm:$0xff] %vm7291, %v7256
      %7323 = vst.msk [vmem:[#allocation2 + $0x1f0] sm:$0xff] %vm7291, %v7258
      %v7324 = vld [vmem:[%s282 + $0x2] sm:$0xff]
      %v7325 = vld [vmem:[%s282 + $0xa] sm:$0xff]
      %v7326 = vld [vmem:[%s282 + $0x1a] sm:$0xff]
      %v7327 = vld [vmem:[%s282 + $0x22] sm:$0xff]
      %v7328 = vld [vmem:[%s282 + $0x32] sm:$0xff]
      %v7329 = vld [vmem:[%s282 + $0x3a] sm:$0xff]
      %v7330 = vld [vmem:[%s282 + $0x4a] sm:$0xff]
      %v7331 = vld [vmem:[%s282 + $0x52] sm:$0xff]
      %v7332 = vld [vmem:[%s282 + $0x62] sm:$0xff]
      %v7333 = vld [vmem:[%s282 + $0x6a] sm:$0xff]
      %v7334 = vld [vmem:[%s282 + $0x7a] sm:$0xff]
      %v7335 = vld [vmem:[%s282 + $0x82] sm:$0xff]
      %v7336 = vld [vmem:[%s282 + $0x92] sm:$0xff]
      %v7337 = vld [vmem:[%s282 + $0x9a] sm:$0xff]
      %v7338 = vld [vmem:[%s282 + $0xaa] sm:$0xff]
      %v7339 = vld [vmem:[%s282 + $0xb2] sm:$0xff]
      %v7340 = vld [vmem:[%s282 + $0xc2] sm:$0xff]
      %v7341 = vld [vmem:[%s282 + $0xca] sm:$0xff]
      %v7342 = vld [vmem:[%s282 + $0xda] sm:$0xff]
      %v7343 = vld [vmem:[%s282 + $0xe2] sm:$0xff]
      %v7344 = vld [vmem:[%s282 + $0xf2] sm:$0xff]
      %v7345 = vld [vmem:[%s282 + $0xfa] sm:$0xff]
      %v7346 = vld [vmem:[%s282 + $0x10a] sm:$0xff]
      %v7347 = vld [vmem:[%s282 + $0x112] sm:$0xff]
      %v7348 = vld [vmem:[%s282 + $0x122] sm:$0xff]
      %v7349 = vld [vmem:[%s282 + $0x12a] sm:$0xff]
      %v7350 = vld [vmem:[%s282 + $0x13a] sm:$0xff]
      %v7351 = vld [vmem:[%s282 + $0x142] sm:$0xff]
      %v7352 = vld [vmem:[%s282 + $0x152] sm:$0xff]
      %v7353 = vld [vmem:[%s282 + $0x15a] sm:$0xff]
      %v7354 = vld [vmem:[%s282 + $0x16a] sm:$0xff]
      %v7355 = vld [vmem:[%s282 + $0x172] sm:$0xff]
      %7356 = vst.msk [vmem:[#allocation2 + $0x8] sm:$0xff] %vm171, %v7324
      %7357 = vst.msk [vmem:[#allocation2 + $0x18] sm:$0xff] %vm171, %v7325
      %7358 = vst.msk [vmem:[#allocation2 + $0x28] sm:$0xff] %vm171, %v7326
      %7359 = vst.msk [vmem:[#allocation2 + $0x38] sm:$0xff] %vm171, %v7327
      %7360 = vst.msk [vmem:[#allocation2 + $0x48] sm:$0xff] %vm171, %v7328
      %7361 = vst.msk [vmem:[#allocation2 + $0x58] sm:$0xff] %vm171, %v7329
      %7362 = vst.msk [vmem:[#allocation2 + $0x68] sm:$0xff] %vm171, %v7330
      %7363 = vst.msk [vmem:[#allocation2 + $0x78] sm:$0xff] %vm171, %v7331
      %7364 = vst.msk [vmem:[#allocation2 + $0x88] sm:$0xff] %vm171, %v7332
      %7365 = vst.msk [vmem:[#allocation2 + $0x98] sm:$0xff] %vm171, %v7333
      %7366 = vst.msk [vmem:[#allocation2 + $0xa8] sm:$0xff] %vm171, %v7334
      %7367 = vst.msk [vmem:[#allocation2 + $0xb8] sm:$0xff] %vm171, %v7335
      %7368 = vst.msk [vmem:[#allocation2 + $0xc8] sm:$0xff] %vm171, %v7336
      %7369 = vst.msk [vmem:[#allocation2 + $0xd8] sm:$0xff] %vm171, %v7337
      %7370 = vst.msk [vmem:[#allocation2 + $0xe8] sm:$0xff] %vm171, %v7338
      %7371 = vst.msk [vmem:[#allocation2 + $0xf8] sm:$0xff] %vm171, %v7339
      %7372 = vst.msk [vmem:[#allocation2 + $0x108] sm:$0xff] %vm171, %v7340
      %7373 = vst.msk [vmem:[#allocation2 + $0x118] sm:$0xff] %vm171, %v7341
      %7374 = vst.msk [vmem:[#allocation2 + $0x128] sm:$0xff] %vm171, %v7342
      %7375 = vst.msk [vmem:[#allocation2 + $0x138] sm:$0xff] %vm171, %v7343
      %7376 = vst.msk [vmem:[#allocation2 + $0x148] sm:$0xff] %vm171, %v7344
      %7377 = vst.msk [vmem:[#allocation2 + $0x158] sm:$0xff] %vm171, %v7345
      %7378 = vst.msk [vmem:[#allocation2 + $0x168] sm:$0xff] %vm171, %v7346
      %7379 = vst.msk [vmem:[#allocation2 + $0x178] sm:$0xff] %vm171, %v7347
      %7380 = vst.msk [vmem:[#allocation2 + $0x188] sm:$0xff] %vm171, %v7348
      %7381 = vst.msk [vmem:[#allocation2 + $0x198] sm:$0xff] %vm171, %v7349
      %7382 = vst.msk [vmem:[#allocation2 + $0x1a8] sm:$0xff] %vm171, %v7350
      %7383 = vst.msk [vmem:[#allocation2 + $0x1b8] sm:$0xff] %vm171, %v7351
      %7384 = vst.msk [vmem:[#allocation2 + $0x1c8] sm:$0xff] %vm171, %v7352
      %7385 = vst.msk [vmem:[#allocation2 + $0x1d8] sm:$0xff] %vm171, %v7353
      %7386 = vst.msk [vmem:[#allocation2 + $0x1e8] sm:$0xff] %vm171, %v7354
      %7387 = vst.msk [vmem:[#allocation2 + $0x1f8] sm:$0xff] %vm171, %v7355
      %v7388 = vld [vmem:[%s1344] sm:$0xff]
      %v7389 = vld [vmem:[%s1344 + $0x8] sm:$0xff]
      %v7390 = vld [vmem:[%s1344 + $0x18] sm:$0xff]
      %v7391 = vld [vmem:[%s1344 + $0x20] sm:$0xff]
      %v7392 = vld [vmem:[%s1344 + $0x30] sm:$0xff]
      %v7393 = vld [vmem:[%s1344 + $0x38] sm:$0xff]
      %v7394 = vld [vmem:[%s1344 + $0x48] sm:$0xff]
      %v7395 = vld [vmem:[%s1344 + $0x50] sm:$0xff]
      %v7396 = vld [vmem:[%s1344 + $0x60] sm:$0xff]
      %v7397 = vld [vmem:[%s1344 + $0x68] sm:$0xff]
      %v7398 = vld [vmem:[%s1344 + $0x78] sm:$0xff]
      %v7399 = vld [vmem:[%s1344 + $0x80] sm:$0xff]
      %v7400 = vld [vmem:[%s1344 + $0x90] sm:$0xff]
      %v7401 = vld [vmem:[%s1344 + $0x98] sm:$0xff]
      %v7402 = vld [vmem:[%s1344 + $0xa8] sm:$0xff]
      %v7403 = vld [vmem:[%s1344 + $0xb0] sm:$0xff]
      %v7404 = vld [vmem:[%s1344 + $0xc0] sm:$0xff]
      %v7405 = vld [vmem:[%s1344 + $0xc8] sm:$0xff]
      %v7406 = vld [vmem:[%s1344 + $0xd8] sm:$0xff]
      %v7407 = vld [vmem:[%s1344 + $0xe0] sm:$0xff]
      %v7408 = vld [vmem:[%s1344 + $0xf0] sm:$0xff]
      %v7409 = vld [vmem:[%s1344 + $0xf8] sm:$0xff]
      %v7410 = vld [vmem:[%s1344 + $0x108] sm:$0xff]
      %v7411 = vld [vmem:[%s1344 + $0x110] sm:$0xff]
      %v7412 = vld [vmem:[%s1344 + $0x120] sm:$0xff]
      %v7413 = vld [vmem:[%s1344 + $0x128] sm:$0xff]
      %v7414 = vld [vmem:[%s1344 + $0x138] sm:$0xff]
      %v7415 = vld [vmem:[%s1344 + $0x140] sm:$0xff]
      %v7416 = vld [vmem:[%s1344 + $0x150] sm:$0xff]
      %v7417 = vld [vmem:[%s1344 + $0x158] sm:$0xff]
      %v7418 = vld [vmem:[%s1344 + $0x168] sm:$0xff]
      %v7419 = vld [vmem:[%s1344 + $0x170] sm:$0xff]
      %7452 = vrot.lane.b32.xlu0 %v7388, 4
      %v7453 = vpop.permute.xlu0 %7452
      %7454 = vrot.lane.b32.xlu0 %v7389, 4
      %v7455 = vpop.permute.xlu0 %7454
      %7456 = vrot.lane.b32.xlu0 %v7390, 4
      %v7457 = vpop.permute.xlu0 %7456
      %7458 = vrot.lane.b32.xlu0 %v7391, 4
      %v7459 = vpop.permute.xlu0 %7458
      %7460 = vrot.lane.b32.xlu0 %v7392, 4
      %v7461 = vpop.permute.xlu0 %7460
      %7462 = vrot.lane.b32.xlu0 %v7393, 4
      %v7463 = vpop.permute.xlu0 %7462
      %7464 = vrot.lane.b32.xlu0 %v7394, 4
      %v7465 = vpop.permute.xlu0 %7464
      %7466 = vrot.lane.b32.xlu0 %v7395, 4
      %v7467 = vpop.permute.xlu0 %7466
      %7468 = vrot.lane.b32.xlu0 %v7396, 4
      %v7469 = vpop.permute.xlu0 %7468
      %7470 = vrot.lane.b32.xlu0 %v7397, 4
      %v7471 = vpop.permute.xlu0 %7470
      %7472 = vrot.lane.b32.xlu0 %v7398, 4
      %v7473 = vpop.permute.xlu0 %7472
      %7474 = vrot.lane.b32.xlu0 %v7399, 4
      %v7475 = vpop.permute.xlu0 %7474
      %7476 = vrot.lane.b32.xlu0 %v7400, 4
      %v7477 = vpop.permute.xlu0 %7476
      %7478 = vrot.lane.b32.xlu0 %v7401, 4
      %v7479 = vpop.permute.xlu0 %7478
      %7480 = vrot.lane.b32.xlu0 %v7402, 4
      %v7481 = vpop.permute.xlu0 %7480
      %7482 = vrot.lane.b32.xlu0 %v7403, 4
      %v7483 = vpop.permute.xlu0 %7482
      %7484 = vrot.lane.b32.xlu0 %v7404, 4
      %v7485 = vpop.permute.xlu0 %7484
      %7486 = vrot.lane.b32.xlu0 %v7405, 4
      %v7487 = vpop.permute.xlu0 %7486
      %7488 = vrot.lane.b32.xlu0 %v7406, 4
      %v7489 = vpop.permute.xlu0 %7488
      %7490 = vrot.lane.b32.xlu0 %v7407, 4
      %v7491 = vpop.permute.xlu0 %7490
      %7492 = vrot.lane.b32.xlu0 %v7408, 4
      %v7493 = vpop.permute.xlu0 %7492
      %7494 = vrot.lane.b32.xlu0 %v7409, 4
      %v7495 = vpop.permute.xlu0 %7494
      %7496 = vrot.lane.b32.xlu0 %v7410, 4
      %v7497 = vpop.permute.xlu0 %7496
      %7498 = vrot.lane.b32.xlu0 %v7411, 4
      %v7499 = vpop.permute.xlu0 %7498
      %7500 = vrot.lane.b32.xlu0 %v7412, 4
      %v7501 = vpop.permute.xlu0 %7500
      %7502 = vrot.lane.b32.xlu0 %v7413, 4
      %v7503 = vpop.permute.xlu0 %7502
      %7504 = vrot.lane.b32.xlu0 %v7414, 4
      %v7505 = vpop.permute.xlu0 %7504
      %7506 = vrot.lane.b32.xlu0 %v7415, 4
      %v7507 = vpop.permute.xlu0 %7506
      %7508 = vrot.lane.b32.xlu0 %v7416, 4
      %v7509 = vpop.permute.xlu0 %7508
      %7510 = vrot.lane.b32.xlu0 %v7417, 4
      %v7511 = vpop.permute.xlu0 %7510
      %7512 = vrot.lane.b32.xlu0 %v7418, 4
      %v7513 = vpop.permute.xlu0 %7512
      %7514 = vrot.lane.b32.xlu0 %v7419, 4
      %v7515 = vpop.permute.xlu0 %7514
      %7548 = vst.msk [vmem:[#allocation2 + $0x8] sm:$0xff] %vm539, %v7453
      %7549 = vst.msk [vmem:[#allocation2 + $0x18] sm:$0xff] %vm539, %v7455
      %7550 = vst.msk [vmem:[#allocation2 + $0x28] sm:$0xff] %vm539, %v7457
      %7551 = vst.msk [vmem:[#allocation2 + $0x38] sm:$0xff] %vm539, %v7459
      %7552 = vst.msk [vmem:[#allocation2 + $0x48] sm:$0xff] %vm539, %v7461
      %7553 = vst.msk [vmem:[#allocation2 + $0x58] sm:$0xff] %vm539, %v7463
      %7554 = vst.msk [vmem:[#allocation2 + $0x68] sm:$0xff] %vm539, %v7465
      %7555 = vst.msk [vmem:[#allocation2 + $0x78] sm:$0xff] %vm539, %v7467
      %7556 = vst.msk [vmem:[#allocation2 + $0x88] sm:$0xff] %vm539, %v7469
      %7557 = vst.msk [vmem:[#allocation2 + $0x98] sm:$0xff] %vm539, %v7471
      %7558 = vst.msk [vmem:[#allocation2 + $0xa8] sm:$0xff] %vm539, %v7473
      %7559 = vst.msk [vmem:[#allocation2 + $0xb8] sm:$0xff] %vm539, %v7475
      %7560 = vst.msk [vmem:[#allocation2 + $0xc8] sm:$0xff] %vm539, %v7477
      %7561 = vst.msk [vmem:[#allocation2 + $0xd8] sm:$0xff] %vm539, %v7479
      %7562 = vst.msk [vmem:[#allocation2 + $0xe8] sm:$0xff] %vm539, %v7481
      %7563 = vst.msk [vmem:[#allocation2 + $0xf8] sm:$0xff] %vm539, %v7483
      %7564 = vst.msk [vmem:[#allocation2 + $0x108] sm:$0xff] %vm539, %v7485
      %7565 = vst.msk [vmem:[#allocation2 + $0x118] sm:$0xff] %vm539, %v7487
      %7566 = vst.msk [vmem:[#allocation2 + $0x128] sm:$0xff] %vm539, %v7489
      %7567 = vst.msk [vmem:[#allocation2 + $0x138] sm:$0xff] %vm539, %v7491
      %7568 = vst.msk [vmem:[#allocation2 + $0x148] sm:$0xff] %vm539, %v7493
      %7569 = vst.msk [vmem:[#allocation2 + $0x158] sm:$0xff] %vm539, %v7495
      %7570 = vst.msk [vmem:[#allocation2 + $0x168] sm:$0xff] %vm539, %v7497
      %7571 = vst.msk [vmem:[#allocation2 + $0x178] sm:$0xff] %vm539, %v7499
      %7572 = vst.msk [vmem:[#allocation2 + $0x188] sm:$0xff] %vm539, %v7501
      %7573 = vst.msk [vmem:[#allocation2 + $0x198] sm:$0xff] %vm539, %v7503
      %7574 = vst.msk [vmem:[#allocation2 + $0x1a8] sm:$0xff] %vm539, %v7505
      %7575 = vst.msk [vmem:[#allocation2 + $0x1b8] sm:$0xff] %vm539, %v7507
      %7576 = vst.msk [vmem:[#allocation2 + $0x1c8] sm:$0xff] %vm539, %v7509
      %7577 = vst.msk [vmem:[#allocation2 + $0x1d8] sm:$0xff] %vm539, %v7511
      %7578 = vst.msk [vmem:[#allocation2 + $0x1e8] sm:$0xff] %vm539, %v7513
      %7579 = vst.msk [vmem:[#allocation2 + $0x1f8] sm:$0xff] %vm539, %v7515
      %v7580 = vld [vmem:[%s1344 + $0x1] sm:$0xff]
      %v7581 = vld [vmem:[%s1344 + $0x9] sm:$0xff]
      %v7582 = vld [vmem:[%s1344 + $0x19] sm:$0xff]
      %v7583 = vld [vmem:[%s1344 + $0x21] sm:$0xff]
      %v7584 = vld [vmem:[%s1344 + $0x31] sm:$0xff]
      %v7585 = vld [vmem:[%s1344 + $0x39] sm:$0xff]
      %v7586 = vld [vmem:[%s1344 + $0x49] sm:$0xff]
      %v7587 = vld [vmem:[%s1344 + $0x51] sm:$0xff]
      %v7588 = vld [vmem:[%s1344 + $0x61] sm:$0xff]
      %v7589 = vld [vmem:[%s1344 + $0x69] sm:$0xff]
      %v7590 = vld [vmem:[%s1344 + $0x79] sm:$0xff]
      %v7591 = vld [vmem:[%s1344 + $0x81] sm:$0xff]
      %v7592 = vld [vmem:[%s1344 + $0x91] sm:$0xff]
      %v7593 = vld [vmem:[%s1344 + $0x99] sm:$0xff]
      %v7594 = vld [vmem:[%s1344 + $0xa9] sm:$0xff]
      %v7595 = vld [vmem:[%s1344 + $0xb1] sm:$0xff]
      %v7596 = vld [vmem:[%s1344 + $0xc1] sm:$0xff]
      %v7597 = vld [vmem:[%s1344 + $0xc9] sm:$0xff]
      %v7598 = vld [vmem:[%s1344 + $0xd9] sm:$0xff]
      %v7599 = vld [vmem:[%s1344 + $0xe1] sm:$0xff]
      %v7600 = vld [vmem:[%s1344 + $0xf1] sm:$0xff]
      %v7601 = vld [vmem:[%s1344 + $0xf9] sm:$0xff]
      %v7602 = vld [vmem:[%s1344 + $0x109] sm:$0xff]
      %v7603 = vld [vmem:[%s1344 + $0x111] sm:$0xff]
      %v7604 = vld [vmem:[%s1344 + $0x121] sm:$0xff]
      %v7605 = vld [vmem:[%s1344 + $0x129] sm:$0xff]
      %v7606 = vld [vmem:[%s1344 + $0x139] sm:$0xff]
      %v7607 = vld [vmem:[%s1344 + $0x141] sm:$0xff]
      %v7608 = vld [vmem:[%s1344 + $0x151] sm:$0xff]
      %v7609 = vld [vmem:[%s1344 + $0x159] sm:$0xff]
      %v7610 = vld [vmem:[%s1344 + $0x169] sm:$0xff]
      %v7611 = vld [vmem:[%s1344 + $0x171] sm:$0xff]
      %7644 = vrot.lane.b32.xlu0 %v7580, 8
      %v7645 = vpop.permute.xlu0 %7644
      %7646 = vrot.lane.b32.xlu0 %v7581, 8
      %v7647 = vpop.permute.xlu0 %7646
      %7648 = vrot.lane.b32.xlu0 %v7582, 8
      %v7649 = vpop.permute.xlu0 %7648
      %7650 = vrot.lane.b32.xlu0 %v7583, 8
      %v7651 = vpop.permute.xlu0 %7650
      %7652 = vrot.lane.b32.xlu0 %v7584, 8
      %v7653 = vpop.permute.xlu0 %7652
      %7654 = vrot.lane.b32.xlu0 %v7585, 8
      %v7655 = vpop.permute.xlu0 %7654
      %7656 = vrot.lane.b32.xlu0 %v7586, 8
      %v7657 = vpop.permute.xlu0 %7656
      %7658 = vrot.lane.b32.xlu0 %v7587, 8
      %v7659 = vpop.permute.xlu0 %7658
      %7660 = vrot.lane.b32.xlu0 %v7588, 8
      %v7661 = vpop.permute.xlu0 %7660
      %7662 = vrot.lane.b32.xlu0 %v7589, 8
      %v7663 = vpop.permute.xlu0 %7662
      %7664 = vrot.lane.b32.xlu0 %v7590, 8
      %v7665 = vpop.permute.xlu0 %7664
      %7666 = vrot.lane.b32.xlu0 %v7591, 8
      %v7667 = vpop.permute.xlu0 %7666
      %7668 = vrot.lane.b32.xlu0 %v7592, 8
      %v7669 = vpop.permute.xlu0 %7668
      %7670 = vrot.lane.b32.xlu0 %v7593, 8
      %v7671 = vpop.permute.xlu0 %7670
      %7672 = vrot.lane.b32.xlu0 %v7594, 8
      %v7673 = vpop.permute.xlu0 %7672
      %7674 = vrot.lane.b32.xlu0 %v7595, 8
      %v7675 = vpop.permute.xlu0 %7674
      %7676 = vrot.lane.b32.xlu0 %v7596, 8
      %v7677 = vpop.permute.xlu0 %7676
      %7678 = vrot.lane.b32.xlu0 %v7597, 8
      %v7679 = vpop.permute.xlu0 %7678
      %7680 = vrot.lane.b32.xlu0 %v7598, 8
      %v7681 = vpop.permute.xlu0 %7680
      %7682 = vrot.lane.b32.xlu0 %v7599, 8
      %v7683 = vpop.permute.xlu0 %7682
      %7684 = vrot.lane.b32.xlu0 %v7600, 8
      %v7685 = vpop.permute.xlu0 %7684
      %7686 = vrot.lane.b32.xlu0 %v7601, 8
      %v7687 = vpop.permute.xlu0 %7686
      %7688 = vrot.lane.b32.xlu0 %v7602, 8
      %v7689 = vpop.permute.xlu0 %7688
      %7690 = vrot.lane.b32.xlu0 %v7603, 8
      %v7691 = vpop.permute.xlu0 %7690
      %7692 = vrot.lane.b32.xlu0 %v7604, 8
      %v7693 = vpop.permute.xlu0 %7692
      %7694 = vrot.lane.b32.xlu0 %v7605, 8
      %v7695 = vpop.permute.xlu0 %7694
      %7696 = vrot.lane.b32.xlu0 %v7606, 8
      %v7697 = vpop.permute.xlu0 %7696
      %7698 = vrot.lane.b32.xlu0 %v7607, 8
      %v7699 = vpop.permute.xlu0 %7698
      %7700 = vrot.lane.b32.xlu0 %v7608, 8
      %v7701 = vpop.permute.xlu0 %7700
      %7702 = vrot.lane.b32.xlu0 %v7609, 8
      %v7703 = vpop.permute.xlu0 %7702
      %7704 = vrot.lane.b32.xlu0 %v7610, 8
      %v7705 = vpop.permute.xlu0 %7704
      %7706 = vrot.lane.b32.xlu0 %v7611, 8
      %v7707 = vpop.permute.xlu0 %7706
      %7740 = vst.msk [vmem:[#allocation2 + $0x8] sm:$0xff] %vm732, %v7645
      %7741 = vst.msk [vmem:[#allocation2 + $0x18] sm:$0xff] %vm732, %v7647
      %7742 = vst.msk [vmem:[#allocation2 + $0x28] sm:$0xff] %vm732, %v7649
      %7743 = vst.msk [vmem:[#allocation2 + $0x38] sm:$0xff] %vm732, %v7651
      %7744 = vst.msk [vmem:[#allocation2 + $0x48] sm:$0xff] %vm732, %v7653
      %7745 = vst.msk [vmem:[#allocation2 + $0x58] sm:$0xff] %vm732, %v7655
      %7746 = vst.msk [vmem:[#allocation2 + $0x68] sm:$0xff] %vm732, %v7657
      %7747 = vst.msk [vmem:[#allocation2 + $0x78] sm:$0xff] %vm732, %v7659
      %7748 = vst.msk [vmem:[#allocation2 + $0x88] sm:$0xff] %vm732, %v7661
      %7749 = vst.msk [vmem:[#allocation2 + $0x98] sm:$0xff] %vm732, %v7663
      %7750 = vst.msk [vmem:[#allocation2 + $0xa8] sm:$0xff] %vm732, %v7665
      %7751 = vst.msk [vmem:[#allocation2 + $0xb8] sm:$0xff] %vm732, %v7667
      %7752 = vst.msk [vmem:[#allocation2 + $0xc8] sm:$0xff] %vm732, %v7669
      %7753 = vst.msk [vmem:[#allocation2 + $0xd8] sm:$0xff] %vm732, %v7671
      %7754 = vst.msk [vmem:[#allocation2 + $0xe8] sm:$0xff] %vm732, %v7673
      %7755 = vst.msk [vmem:[#allocation2 + $0xf8] sm:$0xff] %vm732, %v7675
      %7756 = vst.msk [vmem:[#allocation2 + $0x108] sm:$0xff] %vm732, %v7677
      %7757 = vst.msk [vmem:[#allocation2 + $0x118] sm:$0xff] %vm732, %v7679
      %7758 = vst.msk [vmem:[#allocation2 + $0x128] sm:$0xff] %vm732, %v7681
      %7759 = vst.msk [vmem:[#allocation2 + $0x138] sm:$0xff] %vm732, %v7683
      %7760 = vst.msk [vmem:[#allocation2 + $0x148] sm:$0xff] %vm732, %v7685
      %7761 = vst.msk [vmem:[#allocation2 + $0x158] sm:$0xff] %vm732, %v7687
      %7762 = vst.msk [vmem:[#allocation2 + $0x168] sm:$0xff] %vm732, %v7689
      %7763 = vst.msk [vmem:[#allocation2 + $0x178] sm:$0xff] %vm732, %v7691
      %7764 = vst.msk [vmem:[#allocation2 + $0x188] sm:$0xff] %vm732, %v7693
      %7765 = vst.msk [vmem:[#allocation2 + $0x198] sm:$0xff] %vm732, %v7695
      %7766 = vst.msk [vmem:[#allocation2 + $0x1a8] sm:$0xff] %vm732, %v7697
      %7767 = vst.msk [vmem:[#allocation2 + $0x1b8] sm:$0xff] %vm732, %v7699
      %7768 = vst.msk [vmem:[#allocation2 + $0x1c8] sm:$0xff] %vm732, %v7701
      %7769 = vst.msk [vmem:[#allocation2 + $0x1d8] sm:$0xff] %vm732, %v7703
      %7770 = vst.msk [vmem:[#allocation2 + $0x1e8] sm:$0xff] %vm732, %v7705
      %7771 = vst.msk [vmem:[#allocation2 + $0x1f8] sm:$0xff] %vm732, %v7707
      %v7772 = vld [vmem:[%s1344 + $0x2] sm:$0xff]
      %v7773 = vld [vmem:[%s1344 + $0xa] sm:$0xff]
      %v7774 = vld [vmem:[%s1344 + $0x1a] sm:$0xff]
      %v7775 = vld [vmem:[%s1344 + $0x22] sm:$0xff]
      %v7776 = vld [vmem:[%s1344 + $0x32] sm:$0xff]
      %v7777 = vld [vmem:[%s1344 + $0x3a] sm:$0xff]
      %v7778 = vld [vmem:[%s1344 + $0x4a] sm:$0xff]
      %v7779 = vld [vmem:[%s1344 + $0x52] sm:$0xff]
      %v7780 = vld [vmem:[%s1344 + $0x62] sm:$0xff]
      %v7781 = vld [vmem:[%s1344 + $0x6a] sm:$0xff]
      %v7782 = vld [vmem:[%s1344 + $0x7a] sm:$0xff]
      %v7783 = vld [vmem:[%s1344 + $0x82] sm:$0xff]
      %v7784 = vld [vmem:[%s1344 + $0x92] sm:$0xff]
      %v7785 = vld [vmem:[%s1344 + $0x9a] sm:$0xff]
      %v7786 = vld [vmem:[%s1344 + $0xaa] sm:$0xff]
      %v7787 = vld [vmem:[%s1344 + $0xb2] sm:$0xff]
      %v7788 = vld [vmem:[%s1344 + $0xc2] sm:$0xff]
      %v7789 = vld [vmem:[%s1344 + $0xca] sm:$0xff]
      %v7790 = vld [vmem:[%s1344 + $0xda] sm:$0xff]
      %v7791 = vld [vmem:[%s1344 + $0xe2] sm:$0xff]
      %v7792 = vld [vmem:[%s1344 + $0xf2] sm:$0xff]
      %v7793 = vld [vmem:[%s1344 + $0xfa] sm:$0xff]
      %v7794 = vld [vmem:[%s1344 + $0x10a] sm:$0xff]
      %v7795 = vld [vmem:[%s1344 + $0x112] sm:$0xff]
      %v7796 = vld [vmem:[%s1344 + $0x122] sm:$0xff]
      %v7797 = vld [vmem:[%s1344 + $0x12a] sm:$0xff]
      %v7798 = vld [vmem:[%s1344 + $0x13a] sm:$0xff]
      %v7799 = vld [vmem:[%s1344 + $0x142] sm:$0xff]
      %v7800 = vld [vmem:[%s1344 + $0x152] sm:$0xff]
      %v7801 = vld [vmem:[%s1344 + $0x15a] sm:$0xff]
      %v7802 = vld [vmem:[%s1344 + $0x16a] sm:$0xff]
      %v7803 = vld [vmem:[%s1344 + $0x172] sm:$0xff]
      %7836 = vrot.lane.b32.xlu0 %v7772, 12
      %v7837 = vpop.permute.xlu0 %7836
      %7838 = vrot.lane.b32.xlu0 %v7773, 12
      %v7839 = vpop.permute.xlu0 %7838
      %7840 = vrot.lane.b32.xlu0 %v7774, 12
      %v7841 = vpop.permute.xlu0 %7840
      %7842 = vrot.lane.b32.xlu0 %v7775, 12
      %v7843 = vpop.permute.xlu0 %7842
      %7844 = vrot.lane.b32.xlu0 %v7776, 12
      %v7845 = vpop.permute.xlu0 %7844
      %7846 = vrot.lane.b32.xlu0 %v7777, 12
      %v7847 = vpop.permute.xlu0 %7846
      %7848 = vrot.lane.b32.xlu0 %v7778, 12
      %v7849 = vpop.permute.xlu0 %7848
      %7850 = vrot.lane.b32.xlu0 %v7779, 12
      %v7851 = vpop.permute.xlu0 %7850
      %7852 = vrot.lane.b32.xlu0 %v7780, 12
      %v7853 = vpop.permute.xlu0 %7852
      %7854 = vrot.lane.b32.xlu0 %v7781, 12
      %v7855 = vpop.permute.xlu0 %7854
      %7856 = vrot.lane.b32.xlu0 %v7782, 12
      %v7857 = vpop.permute.xlu0 %7856
      %7858 = vrot.lane.b32.xlu0 %v7783, 12
      %v7859 = vpop.permute.xlu0 %7858
      %7860 = vrot.lane.b32.xlu0 %v7784, 12
      %v7861 = vpop.permute.xlu0 %7860
      %7862 = vrot.lane.b32.xlu0 %v7785, 12
      %v7863 = vpop.permute.xlu0 %7862
      %7864 = vrot.lane.b32.xlu0 %v7786, 12
      %v7865 = vpop.permute.xlu0 %7864
      %7866 = vrot.lane.b32.xlu0 %v7787, 12
      %v7867 = vpop.permute.xlu0 %7866
      %7868 = vrot.lane.b32.xlu0 %v7788, 12
      %v7869 = vpop.permute.xlu0 %7868
      %7870 = vrot.lane.b32.xlu0 %v7789, 12
      %v7871 = vpop.permute.xlu0 %7870
      %7872 = vrot.lane.b32.xlu0 %v7790, 12
      %v7873 = vpop.permute.xlu0 %7872
      %7874 = vrot.lane.b32.xlu0 %v7791, 12
      %v7875 = vpop.permute.xlu0 %7874
      %7876 = vrot.lane.b32.xlu0 %v7792, 12
      %v7877 = vpop.permute.xlu0 %7876
      %7878 = vrot.lane.b32.xlu0 %v7793, 12
      %v7879 = vpop.permute.xlu0 %7878
      %7880 = vrot.lane.b32.xlu0 %v7794, 12
      %v7881 = vpop.permute.xlu0 %7880
      %7882 = vrot.lane.b32.xlu0 %v7795, 12
      %v7883 = vpop.permute.xlu0 %7882
      %7884 = vrot.lane.b32.xlu0 %v7796, 12
      %v7885 = vpop.permute.xlu0 %7884
      %7886 = vrot.lane.b32.xlu0 %v7797, 12
      %v7887 = vpop.permute.xlu0 %7886
      %7888 = vrot.lane.b32.xlu0 %v7798, 12
      %v7889 = vpop.permute.xlu0 %7888
      %7890 = vrot.lane.b32.xlu0 %v7799, 12
      %v7891 = vpop.permute.xlu0 %7890
      %7892 = vrot.lane.b32.xlu0 %v7800, 12
      %v7893 = vpop.permute.xlu0 %7892
      %7894 = vrot.lane.b32.xlu0 %v7801, 12
      %v7895 = vpop.permute.xlu0 %7894
      %7896 = vrot.lane.b32.xlu0 %v7802, 12
      %v7897 = vpop.permute.xlu0 %7896
      %7898 = vrot.lane.b32.xlu0 %v7803, 12
      %v7899 = vpop.permute.xlu0 %7898
      %7932 = vst.msk [vmem:[#allocation2 + $0x8] sm:$0xff] %vm925, %v7837
      %7933 = vst.msk [vmem:[#allocation2 + $0x18] sm:$0xff] %vm925, %v7839
      %7934 = vst.msk [vmem:[#allocation2 + $0x28] sm:$0xff] %vm925, %v7841
      %7935 = vst.msk [vmem:[#allocation2 + $0x38] sm:$0xff] %vm925, %v7843
      %7936 = vst.msk [vmem:[#allocation2 + $0x48] sm:$0xff] %vm925, %v7845
      %7937 = vst.msk [vmem:[#allocation2 + $0x58] sm:$0xff] %vm925, %v7847
      %7938 = vst.msk [vmem:[#allocation2 + $0x68] sm:$0xff] %vm925, %v7849
      %7939 = vst.msk [vmem:[#allocation2 + $0x78] sm:$0xff] %vm925, %v7851
      %7940 = vst.msk [vmem:[#allocation2 + $0x88] sm:$0xff] %vm925, %v7853
      %7941 = vst.msk [vmem:[#allocation2 + $0x98] sm:$0xff] %vm925, %v7855
      %7942 = vst.msk [vmem:[#allocation2 + $0xa8] sm:$0xff] %vm925, %v7857
      %7943 = vst.msk [vmem:[#allocation2 + $0xb8] sm:$0xff] %vm925, %v7859
      %7944 = vst.msk [vmem:[#allocation2 + $0xc8] sm:$0xff] %vm925, %v7861
      %7945 = vst.msk [vmem:[#allocation2 + $0xd8] sm:$0xff] %vm925, %v7863
      %7946 = vst.msk [vmem:[#allocation2 + $0xe8] sm:$0xff] %vm925, %v7865
      %7947 = vst.msk [vmem:[#allocation2 + $0xf8] sm:$0xff] %vm925, %v7867
      %7948 = vst.msk [vmem:[#allocation2 + $0x108] sm:$0xff] %vm925, %v7869
      %7949 = vst.msk [vmem:[#allocation2 + $0x118] sm:$0xff] %vm925, %v7871
      %7950 = vst.msk [vmem:[#allocation2 + $0x128] sm:$0xff] %vm925, %v7873
      %7951 = vst.msk [vmem:[#allocation2 + $0x138] sm:$0xff] %vm925, %v7875
      %7952 = vst.msk [vmem:[#allocation2 + $0x148] sm:$0xff] %vm925, %v7877
      %7953 = vst.msk [vmem:[#allocation2 + $0x158] sm:$0xff] %vm925, %v7879
      %7954 = vst.msk [vmem:[#allocation2 + $0x168] sm:$0xff] %vm925, %v7881
      %7955 = vst.msk [vmem:[#allocation2 + $0x178] sm:$0xff] %vm925, %v7883
      %7956 = vst.msk [vmem:[#allocation2 + $0x188] sm:$0xff] %vm925, %v7885
      %7957 = vst.msk [vmem:[#allocation2 + $0x198] sm:$0xff] %vm925, %v7887
      %7958 = vst.msk [vmem:[#allocation2 + $0x1a8] sm:$0xff] %vm925, %v7889
      %7959 = vst.msk [vmem:[#allocation2 + $0x1b8] sm:$0xff] %vm925, %v7891
      %7960 = vst.msk [vmem:[#allocation2 + $0x1c8] sm:$0xff] %vm925, %v7893
      %7961 = vst.msk [vmem:[#allocation2 + $0x1d8] sm:$0xff] %vm925, %v7895
      %7962 = vst.msk [vmem:[#allocation2 + $0x1e8] sm:$0xff] %vm925, %v7897
      %7963 = vst.msk [vmem:[#allocation2 + $0x1f8] sm:$0xff] %vm925, %v7899
      %s7964 = scalar_lea.vmem %s1, 456
      %v7965 = vld [vmem:[%s7964] sm:$0xff]
      %v7966 = vld [vmem:[%s7964 + $0x8] sm:$0xff]
      %v7967 = vld [vmem:[%s7964 + $0x10] sm:$0xff]
      %v7968 = vld [vmem:[%s7964 + $0x18] sm:$0xff]
      %v7969 = vld [vmem:[%s7964 + $0x20] sm:$0xff]
      %v7970 = vld [vmem:[%s7964 + $0x28] sm:$0xff]
      %v7971 = vld [vmem:[%s7964 + $0x30] sm:$0xff]
      %v7972 = vld [vmem:[%s7964 + $0x38] sm:$0xff]
      %v7973 = vld [vmem:[%s7964 + $0x40] sm:$0xff]
      %v7974 = vld [vmem:[%s7964 + $0x48] sm:$0xff]
      %v7975 = vld [vmem:[%s7964 + $0x50] sm:$0xff]
      %v7976 = vld [vmem:[%s7964 + $0x58] sm:$0xff]
      %v7977 = vld [vmem:[%s7964 + $0x60] sm:$0xff]
      %v7978 = vld [vmem:[%s7964 + $0x68] sm:$0xff]
      %v7979 = vld [vmem:[%s7964 + $0x70] sm:$0xff]
      %v7980 = vld [vmem:[%s7964 + $0x78] sm:$0xff]
      %v7981 = vld [vmem:[%s7964 + $0x80] sm:$0xff]
      %v7982 = vld [vmem:[%s7964 + $0x88] sm:$0xff]
      %v7983 = vld [vmem:[%s7964 + $0x90] sm:$0x1]
      %v7984 = vld [vmem:[#allocation2] sm:$0xff]
      %v7985 = vld [vmem:[#allocation2 + $0x8] sm:$0xff]
      %v7986 = vld [vmem:[#allocation2 + $0x10] sm:$0xff]
      %v7987 = vld [vmem:[#allocation2 + $0x18] sm:$0xff]
      %v7988 = vld [vmem:[#allocation2 + $0x20] sm:$0xff]
      %v7989 = vld [vmem:[#allocation2 + $0x28] sm:$0xff]
      %v7990 = vld [vmem:[#allocation2 + $0x30] sm:$0xff]
      %v7991 = vld [vmem:[#allocation2 + $0x38] sm:$0xff]
      %v7992 = vld [vmem:[#allocation2 + $0x40] sm:$0xff]
      %v7993 = vld [vmem:[#allocation2 + $0x48] sm:$0xff]
      %v7994 = vld [vmem:[#allocation2 + $0x50] sm:$0xff]
      %v7995 = vld [vmem:[#allocation2 + $0x58] sm:$0xff]
      %v7996 = vld [vmem:[#allocation2 + $0x60] sm:$0xff]
      %v7997 = vld [vmem:[#allocation2 + $0x68] sm:$0xff]
      %v7998 = vld [vmem:[#allocation2 + $0x70] sm:$0xff]
      %v7999 = vld [vmem:[#allocation2 + $0x78] sm:$0xff]
      %v8000 = vld [vmem:[#allocation2 + $0x80] sm:$0xff]
      %v8001 = vld [vmem:[#allocation2 + $0x88] sm:$0xff]
      %v8002 = vld [vmem:[#allocation2 + $0x90] sm:$0xff]
      %v8003 = vld [vmem:[#allocation2 + $0x98] sm:$0xff]
      %v8004 = vld [vmem:[#allocation2 + $0xa0] sm:$0xff]
      %v8005 = vld [vmem:[#allocation2 + $0xa8] sm:$0xff]
      %v8006 = vld [vmem:[#allocation2 + $0xb0] sm:$0xff]
      %v8007 = vld [vmem:[#allocation2 + $0xb8] sm:$0xff]
      %v8008 = vld [vmem:[#allocation2 + $0xc0] sm:$0xff]
      %v8009 = vld [vmem:[#allocation2 + $0xc8] sm:$0xff]
      %v8010 = vld [vmem:[#allocation2 + $0xd0] sm:$0xff]
      %v8011 = vld [vmem:[#allocation2 + $0xd8] sm:$0xff]
      %v8012 = vld [vmem:[#allocation2 + $0xe0] sm:$0xff]
      %v8013 = vld [vmem:[#allocation2 + $0xe8] sm:$0xff]
      %v8014 = vld [vmem:[#allocation2 + $0xf0] sm:$0xff]
      %v8015 = vld [vmem:[#allocation2 + $0xf8] sm:$0xff]
      %v8016 = vld [vmem:[#allocation2 + $0x100] sm:$0xff]
      %v8017 = vld [vmem:[#allocation2 + $0x108] sm:$0xff]
      %v8018 = vld [vmem:[#allocation2 + $0x110] sm:$0xff]
      %v8019 = vld [vmem:[#allocation2 + $0x118] sm:$0xff]
      %v8020 = vld [vmem:[#allocation2 + $0x120] sm:$0xff]
      %v8021 = vld [vmem:[#allocation2 + $0x128] sm:$0xff]
      %v8022 = vld [vmem:[#allocation2 + $0x130] sm:$0xff]
      %v8023 = vld [vmem:[#allocation2 + $0x138] sm:$0xff]
      %v8024 = vld [vmem:[#allocation2 + $0x140] sm:$0xff]
      %v8025 = vld [vmem:[#allocation2 + $0x148] sm:$0xff]
      %v8026 = vld [vmem:[#allocation2 + $0x150] sm:$0xff]
      %v8027 = vld [vmem:[#allocation2 + $0x158] sm:$0xff]
      %v8028 = vld [vmem:[#allocation2 + $0x160] sm:$0xff]
      %v8029 = vld [vmem:[#allocation2 + $0x168] sm:$0xff]
      %v8030 = vld [vmem:[#allocation2 + $0x170] sm:$0xff]
      %v8031 = vld [vmem:[#allocation2 + $0x178] sm:$0xff]
      %v8032 = vld [vmem:[#allocation2 + $0x180] sm:$0xff]
      %v8033 = vld [vmem:[#allocation2 + $0x188] sm:$0xff]
      %v8034 = vld [vmem:[#allocation2 + $0x190] sm:$0xff]
      %v8035 = vld [vmem:[#allocation2 + $0x198] sm:$0xff]
      %v8036 = vld [vmem:[#allocation2 + $0x1a0] sm:$0xff]
      %v8037 = vld [vmem:[#allocation2 + $0x1a8] sm:$0xff]
      %v8038 = vld [vmem:[#allocation2 + $0x1b0] sm:$0xff]
      %v8039 = vld [vmem:[#allocation2 + $0x1b8] sm:$0xff]
      %v8040 = vld [vmem:[#allocation2 + $0x1c0] sm:$0xff]
      %v8041 = vld [vmem:[#allocation2 + $0x1c8] sm:$0xff]
      %v8042 = vld [vmem:[#allocation2 + $0x1d0] sm:$0xff]
      %v8043 = vld [vmem:[#allocation2 + $0x1d8] sm:$0xff]
      %v8044 = vld [vmem:[#allocation2 + $0x1e0] sm:$0xff]
      %v8045 = vld [vmem:[#allocation2 + $0x1e8] sm:$0xff]
      %v8046 = vld [vmem:[#allocation2 + $0x1f0] sm:$0xff]
      %v8047 = vld [vmem:[#allocation2 + $0x1f8] sm:$0xff]
      %8048 = vxpose.xlu0.b32.start [1/16] %v7965, 128
      %8049 = vxpose.xlu0.b32.cont [2/16] %v7966, 128
      %8050 = vxpose.xlu0.b32.cont [3/16] %v7967, 128
      %8051 = vxpose.xlu0.b32.cont [4/16] %v7968, 128
      %8052 = vxpose.xlu0.b32.cont [5/16] %v7969, 128
      %8053 = vxpose.xlu0.b32.cont [6/16] %v7970, 128
      %8054 = vxpose.xlu0.b32.cont [7/16] %v7971, 128
      %8055 = vxpose.xlu0.b32.cont [8/16] %v7972, 128
      %8056 = vxpose.xlu0.b32.cont [9/16] %v7973, 128
      %8057 = vxpose.xlu0.b32.cont [10/16] %v7974, 128
      %8058 = vxpose.xlu0.b32.cont [11/16] %v7975, 128
      %8059 = vxpose.xlu0.b32.cont [12/16] %v7976, 128
      %8060 = vxpose.xlu0.b32.cont [13/16] %v7977, 128
      %8061 = vxpose.xlu0.b32.cont [14/16] %v7978, 128
      %8062 = vxpose.xlu0.b32.cont [15/16] %v7979, 128
      %8063 = vxpose.xlu0.b32.end [16/16] %v7980, 128
      %v8064 = vpop.trf.xlu0
      %v8065 = vpop.trf.xlu0
      %v8066 = vpop.trf.xlu0
      %v8067 = vpop.trf.xlu0
      %v8068 = vpop.trf.xlu0
      %v8069 = vpop.trf.xlu0
      %v8070 = vpop.trf.xlu0
      %v8071 = vpop.trf.xlu0
      %v8072 = vpop.trf.xlu0
      %v8073 = vpop.trf.xlu0
      %v8074 = vpop.trf.xlu0
      %v8075 = vpop.trf.xlu0
      %v8076 = vpop.trf.xlu0
      %v8077 = vpop.trf.xlu0
      %v8078 = vpop.trf.xlu0
      %v8079 = vpop.trf.xlu0
      %8080 = vxpose.xlu0.b32.start [1/16] %v7981, 128
      %8081 = vxpose.xlu0.b32.cont [2/16] %v7982, 128
      %8082 = vxpose.xlu0.b32.cont [3/16] %v7983, 128
      %8083 = vxpose.xlu0.b32.cont [4/16] 0.0, 128
      %8084 = vxpose.xlu0.b32.cont [5/16] 0.0, 128
      %8085 = vxpose.xlu0.b32.cont [6/16] 0.0, 128
      %8086 = vxpose.xlu0.b32.cont [7/16] 0.0, 128
      %8087 = vxpose.xlu0.b32.cont [8/16] 0.0, 128
      %8088 = vxpose.xlu0.b32.cont [9/16] 0.0, 128
      %8089 = vxpose.xlu0.b32.cont [10/16] 0.0, 128
      %8090 = vxpose.xlu0.b32.cont [11/16] 0.0, 128
      %8091 = vxpose.xlu0.b32.cont [12/16] 0.0, 128
      %8092 = vxpose.xlu0.b32.cont [13/16] 0.0, 128
      %8093 = vxpose.xlu0.b32.cont [14/16] 0.0, 128
      %8094 = vxpose.xlu0.b32.cont [15/16] 0.0, 128
      %8095 = vxpose.xlu0.b32.end [16/16] 0.0, 128
      %v8096 = vpop.trf.xlu0
      %v8097 = vpop.trf.xlu0
      %v8098 = vpop.trf.xlu0
      %v8099 = vpop.trf.xlu0
      %v8100 = vpop.trf.xlu0
      %v8101 = vpop.trf.xlu0
      %v8102 = vpop.trf.xlu0
      %v8103 = vpop.trf.xlu0
      %v8104 = vpop.trf.xlu0
      %v8105 = vpop.trf.xlu0
      %v8106 = vpop.trf.xlu0
      %v8107 = vpop.trf.xlu0
      %v8108 = vpop.trf.xlu0
      %v8109 = vpop.trf.xlu0
      %v8110 = vpop.trf.xlu0
      %v8111 = vpop.trf.xlu0
      %vm8112 = vcmask 138240
      %v8114 = vsel %vm8112, %v8096, 0
      %v8117 = vsel %vm8112, %v7985, 0
      %v8120 = vsel %vm8112, %v7987, 0
      %v8123 = vsel %vm8112, %v7989, 0
      %v8126 = vsel %vm8112, %v7991, 0
      %v8129 = vsel %vm8112, %v7993, 0
      %v8132 = vsel %vm8112, %v7995, 0
      %v8135 = vsel %vm8112, %v7997, 0
      %v8138 = vsel %vm8112, %v7999, 0
      %v8141 = vsel %vm8112, %v8001, 0
      %v8144 = vsel %vm8112, %v8003, 0
      %v8147 = vsel %vm8112, %v8005, 0
      %v8150 = vsel %vm8112, %v8007, 0
      %v8153 = vsel %vm8112, %v8009, 0
      %v8156 = vsel %vm8112, %v8011, 0
      %v8159 = vsel %vm8112, %v8013, 0
      %v8162 = vsel %vm8112, %v8015, 0
      %v8165 = vsel %vm8112, %v8017, 0
      %v8168 = vsel %vm8112, %v8019, 0
      %v8171 = vsel %vm8112, %v8021, 0
      %v8174 = vsel %vm8112, %v8023, 0
      %v8177 = vsel %vm8112, %v8025, 0
      %v8180 = vsel %vm8112, %v8027, 0
      %v8183 = vsel %vm8112, %v8029, 0
      %v8186 = vsel %vm8112, %v8031, 0
      %v8189 = vsel %vm8112, %v8033, 0
      %v8192 = vsel %vm8112, %v8035, 0
      %v8195 = vsel %vm8112, %v8037, 0
      %v8198 = vsel %vm8112, %v8039, 0
      %v8201 = vsel %vm8112, %v8041, 0
      %v8204 = vsel %vm8112, %v8043, 0
      %v8207 = vsel %vm8112, %v8045, 0
      %v8210 = vsel %vm8112, %v8047, 0
      %8212 = vmatpush.xpose.msra.mxu0 %v8014
      %8213 = vmatpush.xpose.msra.mxu0 %v8012
      %8214 = vmatpush.xpose.msra.mxu0 %v8010
      %8215 = vmatpush.xpose.msra.mxu0 %v8008
      %8216 = vmatpush.xpose.msra.mxu0 %v8006
      %8217 = vmatpush.xpose.msra.mxu0 %v8004
      %8218 = vmatpush.xpose.msra.mxu0 %v8002
      %8219 = vmatpush.xpose.msra.mxu0 %v8000
      %8220 = vmatpush.xpose.msra.mxu0 %v7998
      %8221 = vmatpush.xpose.msra.mxu0 %v7996
      %8222 = vmatpush.xpose.msra.mxu0 %v7994
      %8223 = vmatpush.xpose.msra.mxu0 %v7992
      %8224 = vmatpush.xpose.msra.mxu0 %v7990
      %8225 = vmatpush.xpose.msra.mxu0 %v7988
      %8226 = vmatpush.xpose.msra.mxu0 %v7986
      %8227 = vmatpush.xpose.msra.mxu0 %v7984
      %8228 = vmatmul.f32.gmra.mxu0 %v8064
      %v8229 = vpop.f32.mrf.mxu0
      %v8230 = vadd.f32 0.0, %v8229
      %8231 = vdwg.mxu0
      %8232 = vmatpush.xpose.msra.mxu0 %v8162
      %8233 = vmatpush.xpose.msra.mxu0 %v8159
      %8234 = vmatpush.xpose.msra.mxu0 %v8156
      %8235 = vmatpush.xpose.msra.mxu0 %v8153
      %8236 = vmatpush.xpose.msra.mxu0 %v8150
      %8237 = vmatpush.xpose.msra.mxu0 %v8147
      %8238 = vmatpush.xpose.msra.mxu0 %v8144
      %8239 = vmatpush.xpose.msra.mxu0 %v8141
      %8240 = vmatpush.xpose.msra.mxu0 %v8138
      %8241 = vmatpush.xpose.msra.mxu0 %v8135
      %8242 = vmatpush.xpose.msra.mxu0 %v8132
      %8243 = vmatpush.xpose.msra.mxu0 %v8129
      %8244 = vmatpush.xpose.msra.mxu0 %v8126
      %8245 = vmatpush.xpose.msra.mxu0 %v8123
      %8246 = vmatpush.xpose.msra.mxu0 %v8120
      %8247 = vmatpush.xpose.msra.mxu0 %v8117
      %8248 = vmatmul.f32.gmra.mxu0 %v8114
      %v8249 = vpop.f32.mrf.mxu0
      %v8250 = vadd.f32 %v8230, %v8249
      %8251 = vdwg.mxu0
      %8252 = vmatpush.xpose.msra.mxu0 %v8046
      %8253 = vmatpush.xpose.msra.mxu0 %v8044
      %8254 = vmatpush.xpose.msra.mxu0 %v8042
      %8255 = vmatpush.xpose.msra.mxu0 %v8040
      %8256 = vmatpush.xpose.msra.mxu0 %v8038
      %8257 = vmatpush.xpose.msra.mxu0 %v8036
      %8258 = vmatpush.xpose.msra.mxu0 %v8034
      %8259 = vmatpush.xpose.msra.mxu0 %v8032
      %8260 = vmatpush.xpose.msra.mxu0 %v8030
      %8261 = vmatpush.xpose.msra.mxu0 %v8028
      %8262 = vmatpush.xpose.msra.mxu0 %v8026
      %8263 = vmatpush.xpose.msra.mxu0 %v8024
      %8264 = vmatpush.xpose.msra.mxu0 %v8022
      %8265 = vmatpush.xpose.msra.mxu0 %v8020
      %8266 = vmatpush.xpose.msra.mxu0 %v8018
      %8267 = vmatpush.xpose.msra.mxu0 %v8016
      %8268 = vmatmul.f32.gmra.mxu0 %v8064
      %v8269 = vpop.f32.mrf.mxu0
      %v8270 = vadd.f32 0.0, %v8269
      %8271 = vdwg.mxu0
      %8272 = vmatpush.xpose.msra.mxu0 %v8210
      %8273 = vmatpush.xpose.msra.mxu0 %v8207
      %8274 = vmatpush.xpose.msra.mxu0 %v8204
      %8275 = vmatpush.xpose.msra.mxu0 %v8201
      %8276 = vmatpush.xpose.msra.mxu0 %v8198
      %8277 = vmatpush.xpose.msra.mxu0 %v8195
      %8278 = vmatpush.xpose.msra.mxu0 %v8192
      %8279 = vmatpush.xpose.msra.mxu0 %v8189
      %8280 = vmatpush.xpose.msra.mxu0 %v8186
      %8281 = vmatpush.xpose.msra.mxu0 %v8183
      %8282 = vmatpush.xpose.msra.mxu0 %v8180
      %8283 = vmatpush.xpose.msra.mxu0 %v8177
      %8284 = vmatpush.xpose.msra.mxu0 %v8174
      %8285 = vmatpush.xpose.msra.mxu0 %v8171
      %8286 = vmatpush.xpose.msra.mxu0 %v8168
      %8287 = vmatpush.xpose.msra.mxu0 %v8165
      %8288 = vmatmul.f32.gmra.mxu0 %v8114
      %v8289 = vpop.f32.mrf.mxu0
      %v8290 = vadd.f32 %v8270, %v8289
      %8291 = vdwg.mxu0
      %v8294 = vrot.slane %v8290, 4
      %v8295 = vsel %vm2060, %v8250, %v8294
      %8297 = vst [vmem:[%s170] sm:$0xff] %v8295
      %p8298 = scmp.lt.s32.totalorder %s14, 1
      %s8299 = scalar_select %p8298, %s14, 1
      %s8300 = smul.addr %s8299, 2
      %s8301 = smul.addr %s8300, 4
      %s8302 = scalar_lea.vmem %s3, %s8301
      // Predicated region
      $region33: #{_rdb_pallas.1} parent=31 // pred_check
        %p8303 = pneg %p100
      $region34: #{_rdb_pallas.1} parent=31 // pred_check_branch
        %8305 = sbr.rel (%p8303) target = $region36
      $region35: #{_rdb_pallas.1} parent=31 // pred_region
        _
      $region36: #{_rdb_pallas.1} parent=31 // pred_fallthru
        _
    $region32: #{_rdb_pallas.1} parent=5 // pred_fallthru
      _
    %p8306 = scmp.le.s32.totalorder 2, %s9
    // Predicated region
    $region37: #{_rdb_pallas.1} parent=5 // pred_check
      %p8307 = pneg %p8306
    $region38: #{_rdb_pallas.1} parent=5 // pred_check_branch
      %8309 = sbr.rel (%p8307) target = $region40
    $region39: #{_rdb_pallas.1} parent=5 // pred_region
      %s8310 = ssub.s32 %s9, 2
      // Predicated region
      $region41: #{_rdb_pallas.1} parent=39 // pred_check
        %p8311 = pneg %p106
      $region42: #{_rdb_pallas.1} parent=39 // pred_check_branch
        %8313 = sbr.rel (%p8311) target = $region44
      $region43: #{_rdb_pallas.1} parent=39 // pred_region
        %p8314 = scmp.lt.s32.totalorder %s15, 1
        %s8315 = scalar_select %p8314, %s15, 1
        %s8316 = smul.addr %s8315, 2
        %s8317 = smul.addr %s8316, 4
        %s8318 = scalar_lea.vmem %s3, %s8317
      $region44: #{_rdb_pallas.1} parent=39 // pred_fallthru
        _
    $region40: #{_rdb_pallas.1} parent=5 // pred_fallthru
      _
  $region6: #{_rdb_pallas.1} parent=0 // loop_footer
    %s13 = sadd.s32 1, %s9
  $region7: #{_rdb_pallas.1} parent=0 // loop_footer_branch
    %8 = sbr.rel target = $region3
  $region8: #{_rdb_pallas.1} parent=0 // loop_exit
    _

</llo_original>
